<compile_context>
chip_gen: v7x
topology: tpu7x:2x2x1
jax: 0.10.0
libtpu: 0.0.40
codegen_flags: <defaults>
</compile_context>

<pallas_src>
import functools

import numpy as np

import jax
import jax.numpy as jnp
from jax.experimental import pallas as pl
from jax.experimental.pallas import tpu as pltpu

VMEM_LIMIT = 32 * 1024 * 1024  # safe scoped-VMEM ceiling on v5e / v6e / v7x

_SMEM = pl.BlockSpec(memory_space=pltpu.MemorySpace.SMEM)
_VMEM = pl.BlockSpec(memory_space=pltpu.MemorySpace.VMEM)


# ----------------------------------------------------------------------------
# In-kernel fused 3x3 conv (im2col-free), channel-major
# ----------------------------------------------------------------------------
def _conv3x3_from_padded(w_ref, xp_ref, msk_ref, W, M):
    """3x3 conv (padding=1) as 9 shifted (Co,Ci)@(Ci,M) dots.

    w_ref  : (9, Co, Ci)  f32, tap k = kh*3+kw holds W[:, :, kh, kw]
    xp_ref : (Ci, M+2*(W+1)) f32, the activation slab zero-padded by W+1 lanes
    msk_ref: (9, 1, M) f32, 1.0 where the tap reads a valid in-image neighbor
    """
    off = W + 1
    acc = None
    for kh in range(3):
        for kw in range(3):
            dh, dw = kh - 1, kw - 1
            k = kh * 3 + kw
            xs = xp_ref[:, pl.ds(off + dh * W + dw, M)]      # static lane slice
            if not (dh == 0 and dw == 0):
                xs = xs * msk_ref[k]                          # zero-pad boundaries
            part = jnp.dot(w_ref[k], xs, preferred_element_type=jnp.float32)
            acc = part if acc is None else acc + part
    return acc


def _conv_masks(N, H, W):
    """Precomputed (at trace time, numpy) boundary masks, shape (9, 1, N*H*W)."""
    hh = np.arange(H)[:, None]
    ww = np.arange(W)[None, :]
    masks = []
    for kh in range(3):
        for kw in range(3):
            dh, dw = kh - 1, kw - 1
            valid = ((hh + dh >= 0) & (hh + dh < H) &
                     (ww + dw >= 0) & (ww + dw < W))                  # (H, W)
            masks.append(np.broadcast_to(valid[None], (N, H, W)).reshape(-1))
    return np.stack(masks).astype(np.float32).reshape(9, 1, N * H * W)


# ----------------------------------------------------------------------------
# Pallas kernels (all single-invocation; working sets << 1 MiB VMEM)
# ----------------------------------------------------------------------------
def _matmul_cm_kernel(w_ref, x_ref, o_ref):
    # o (Co, M) = w (Co, Ci) @ x (Ci, M); f32 operands, f32 accumulation.
    o_ref[...] = jnp.dot(w_ref[...], x_ref[...],
                         preferred_element_type=jnp.float32)


def conv1x1_cm(x_cm, w_oihw):
    """1x1 conv in channel-major layout: (Ci, M) -> (Co, M), one invocation."""
    Ci, M = x_cm.shape
    Co = w_oihw.shape[0]
    return pl.pallas_call(
        _matmul_cm_kernel,
        out_shape=jax.ShapeDtypeStruct((Co, M), jnp.float32),
        compiler_params=pltpu.CompilerParams(vmem_limit_bytes=VMEM_LIMIT),
    )(w_oihw.reshape(Co, Ci).astype(jnp.float32), x_cm.astype(jnp.float32))


def _block_tail_kernel(w_ref, xp_ref, msk_ref, sre_ref, sim_ref, g_ref, b_ref,
                       o_ref, *, W, eps, slope, inv_count):
    # Fused per-block tail:
    #   spatial 3x3 conv (9 shifted dots, im2col-free)
    # + |ifft| magnitude of the spectral branch
    # + add + BatchNorm2d (train batch stats, one-pass sum/sumsq) + LeakyReLU.
    M = o_ref.shape[1]
    conv = _conv3x3_from_padded(w_ref, xp_ref, msk_ref, W, M)
    sre, sim = sre_ref[...], sim_ref[...]
    x = conv + jnp.sqrt(sre * sre + sim * sim)
    mean = jnp.sum(x, axis=1, keepdims=True) * inv_count      # per-channel stats
    ex2 = jnp.sum(x * x, axis=1, keepdims=True) * inv_count
    inv_std = jax.lax.rsqrt(ex2 - mean * mean + eps)
    y = (x - mean) * (inv_std * g_ref[...]) + b_ref[...]
    o_ref[...] = jnp.where(y >= 0.0, y, slope * y)


def block_tail(x_cm, w_oihw, masks, spec_re, spec_im, gamma, beta, W,
               eps=1e-5, slope=0.01):
    # Single invocation: BatchNorm statistics need the full (C, N*H*W) slab;
    # tiling the M axis here would corrupt the batch mean/var.
    Co, M = spec_re.shape
    Ci = x_cm.shape[0]
    xp = jnp.pad(x_cm, ((0, 0), (W + 1, W + 1)))              # (Ci, M + 2*(W+1))
    w9 = jnp.transpose(w_oihw, (2, 3, 0, 1)).reshape(9, Co, Ci)
    kern = functools.partial(_block_tail_kernel, W=W, eps=eps, slope=slope,
                             inv_count=1.0 / M)
    return pl.pallas_call(
        kern,
        out_shape=jax.ShapeDtypeStruct((Co, M), jnp.float32),
        compiler_params=pltpu.CompilerParams(vmem_limit_bytes=VMEM_LIMIT),
    )(w9.astype(jnp.float32), xp.astype(jnp.float32), masks,
      spec_re, spec_im,
      gamma.reshape(Co, 1).astype(jnp.float32),
      beta.reshape(Co, 1).astype(jnp.float32))


def _gen_residual_kernel(mix_ref, w_ref, xp_ref, msk_ref, b_ref, xin_ref,
                         o_ref, *, W):
    # generate1 3x3 conv (+bias) fused with the softmax residual mix.
    M = o_ref.shape[1]
    conv = _conv3x3_from_padded(w_ref, xp_ref, msk_ref, W, M) + b_ref[...]
    o_ref[...] = mix_ref[0, 0] * xin_ref[...] + mix_ref[0, 1] * conv


def gen_conv_residual(x_cm, w_oihw, bias, masks, x_orig_cm, mix, W):
    Ci, M = x_cm.shape
    Co = w_oihw.shape[0]
    xp = jnp.pad(x_cm, ((0, 0), (W + 1, W + 1)))
    w9 = jnp.transpose(w_oihw, (2, 3, 0, 1)).reshape(9, Co, Ci)
    kern = functools.partial(_gen_residual_kernel, W=W)
    return pl.pallas_call(
        kern,
        in_specs=[_SMEM, _VMEM, _VMEM, _VMEM, _VMEM, _VMEM],
        out_shape=jax.ShapeDtypeStruct((Co, M), jnp.float32),
        compiler_params=pltpu.CompilerParams(vmem_limit_bytes=VMEM_LIMIT),
    )(mix, w9.astype(jnp.float32), xp.astype(jnp.float32), masks,
      bias.reshape(Co, 1).astype(jnp.float32),
      x_orig_cm.astype(jnp.float32))


# ----------------------------------------------------------------------------
# Module forward passes (channel-major glue; FFT/angle/noise stay in XLA)
# ----------------------------------------------------------------------------
def spectral_weight_fwd(x_cm, w1x1, noise_scale, privacy_budget, key, N, HW):
    """Spectral_Weight.forward (channel-major). Returns re/im of the ifft; the
    |.| magnitude is fused into the block-tail kernel."""
    # TODO(synk): `involution` (f_inv_12) is undefined in the reference source; identity.
    z = conv1x1_cm(x_cm, w1x1)                                # f_inv_11 (no bias)
    C, M = z.shape
    f = jnp.fft.fft(z.reshape(C, N, HW), axis=2)              # 1-D FFT over H*W
    # f_rec = |f| * exp(i*(angle(f)+noise)) == f * exp(i*noise); the reference's
    # abs_f_mixed is dead code, so idx_swap has no effect on this branch.
    scale = noise_scale / jnp.maximum(jnp.abs(privacy_budget), 1e-10)
    d = jax.random.laplace(key, f.shape, dtype=jnp.float32) * scale
    f_rec = f * (jnp.cos(d) + 1j * jnp.sin(d))
    g = jnp.fft.ifft(f_rec, axis=2)
    return (jnp.real(g).astype(jnp.float32).reshape(C, M),
            jnp.imag(g).astype(jnp.float32).reshape(C, M))


def spatial_weight_preconv(x_cm, perm, alpha, N, H, W):
    """Spatial_Weight.forward up to (not incl.) Conv_weight; the 3x3 conv is
    fused into the block-tail kernel downstream."""
    C = x_cm.shape[0]
    f = jnp.fft.fft2(x_cm.reshape(C, N, H, W), axes=(-2, -1))
    abs_f = jnp.abs(f)
    # TODO(synk): atan2 (jnp.angle) has no guaranteed Mosaic lowering; kept in XLA glue.
    ang_f = jnp.angle(f)
    abs_m = alpha * abs_f + (1.0 - alpha) * jnp.take(abs_f, perm, axis=1)
    ang_m = alpha * ang_f + (1.0 - alpha) * jnp.take(ang_f, perm, axis=1)
    f_mix = abs_m * (jnp.cos(ang_m) + 1j * jnp.sin(ang_m))
    y = jnp.abs(jnp.fft.ifft2(f_mix, axes=(-2, -1)))
    return y.astype(jnp.float32).reshape(C, N * H * W)


def gnet1_forward(params, x, rng):
    """GNet1.forward — NCHW in / NCHW out; channel-major (C, N*H*W) inside."""
    N, Cb, H, W = x.shape
    HW, M = H * W, N * H * W
    x_cm = jnp.transpose(x, (1, 0, 2, 3)).reshape(Cb, M).astype(jnp.float32)
    masks = jnp.asarray(_conv_masks(N, H, W))                 # (9, 1, M), static

    k_perm = jax.random.split(rng, 3)
    k_noise = jax.random.split(jax.random.fold_in(rng, 123), 3)

    out = x_cm
    for blk in range(3):
        inp = out
        perm = jax.random.permutation(k_perm[blk], N)         # BatchPermutation / block
        spec_re, spec_im = spectral_weight_fwd(
            inp, params["spec_w"][blk], params["noise_scale"][blk],
            params["privacy_budget"][blk], k_noise[blk], N, HW)
        y = spatial_weight_preconv(inp, perm, params["alpha"][blk], N, H, W)
        # fused: spatial 3x3 conv + spectral |ifft| + add + BatchNorm(train) + LeakyReLU
        out = block_tail(y, params["spat_w"][blk], masks, spec_re, spec_im,
                         params["bn_gamma"], params["bn_beta"], W)

    # fused: generate1 3x3 conv (+bias) + softmax residual mix with the input
    mix = jax.nn.softmax(params["weight_alpha1"]).reshape(1, 2).astype(jnp.float32)
    final = gen_conv_residual(out, params["gen1_w"], params["gen1_b"],
                              masks, x_cm, mix, W)
    return jnp.transpose(final.reshape(Cb, N, H, W), (1, 0, 2, 3))


# ----------------------------------------------------------------------------
# Deterministic parameter init (matches GNet1.__init__ / __initialize_weights shapes)
# ----------------------------------------------------------------------------
def init_params(key, n_bands, ch):
    ks = jax.random.split(key, 8)
    normal = lambda k, s: jax.random.normal(k, s, dtype=jnp.float32)  # normal_(0, 1)
    bound = 1.0 / (ch * 9) ** 0.5
    return {
        "spec_w": [normal(ks[0], (ch, n_bands, 1, 1)),
                   normal(ks[1], (ch, ch, 1, 1)),
                   normal(ks[2], (ch, ch, 1, 1))],
        "spat_w": [normal(ks[3], (ch, n_bands, 3, 3)),
                   normal(ks[4], (ch, ch, 3, 3)),
                   normal(ks[5], (ch, ch, 3, 3))],
        "gen1_w": normal(ks[6], (n_bands, ch, 3, 3)),
        "gen1_b": jax.random.uniform(ks[7], (n_bands,), jnp.float32, -bound, bound),
        "bn_gamma": jnp.ones((ch,), jnp.float32),    # single shared bn1, as in reference
        "bn_beta": jnp.zeros((ch,), jnp.float32),
        "weight_alpha1": jnp.ones((2,), jnp.float32) / 2.0,
        "alpha": [jnp.asarray(0.5, jnp.float32)] * 3,
        "noise_scale": [jnp.asarray(0.01, jnp.float32)] * 3,
        "privacy_budget": [jnp.asarray(1.0, jnp.float32)] * 3,
    }


if __name__ == "__main__":
    N, n_bands, ch, H, W = 2, 4, 8, 16, 16        # args.n_bands=4, args.GIN_ch=8
    root = jax.random.PRNGKey(0)
    k_param, k_x, k_fwd = jax.random.split(root, 3)

    params = init_params(k_param, n_bands, ch)
    x = jax.random.normal(k_x, (N, n_bands, H, W), dtype=jnp.float32)

    fwd = jax.jit(gnet1_forward)
    out = jax.block_until_ready(fwd(params, x, k_fwd))

    assert out.shape == (N, n_bands, H, W), out.shape
    assert bool(jnp.all(jnp.isfinite(out)))
    print("KERNEL_OK")
</pallas_src>

<mosaic_0001>
module attributes {stable_mosaic.version = 11 : i64} {
  func.func @_matmul_cm_kernel(%arg0: memref<8x4xf32, #tpu.memory_space<vmem>>, %arg1: memref<4x512xf32, #tpu.memory_space<vmem>>, %arg2: memref<8x512xf32, #tpu.memory_space<vmem>>) attributes {dimension_semantics = [], scalar_prefetch = 0 : i64, scratch_operands = 0 : i64, tpu.core_type = #tpu.core_type<tc>} {
    %c0 = arith.constant 0 : index
    %c0_0 = arith.constant 0 : index
    %0 = vector.load %arg0[%c0, %c0_0] : memref<8x4xf32, #tpu.memory_space<vmem>>, vector<8x4xf32>
    %c0_1 = arith.constant 0 : index
    %c0_2 = arith.constant 0 : index
    %1 = vector.load %arg1[%c0_1, %c0_2] : memref<4x512xf32, #tpu.memory_space<vmem>>, vector<4x512xf32>
    %cst = arith.constant dense<0.000000e+00> : vector<8x512xf32>
    %2 = tpu.matmul %0, %1, %cst {dimension_numbers = #tpu.dot_dimension_numbers<[1], [0], [0], [1], [0, 0, 1, 1], [], []>} : vector<8x4xf32>, vector<4x512xf32>, vector<8x512xf32> -> vector<8x512xf32>
    %c0_3 = arith.constant 0 : index
    %c0_4 = arith.constant 0 : index
    %3 = vector.load %arg2[%c0_3, %c0_4] : memref<8x512xf32, #tpu.memory_space<vmem>>, vector<8x512xf32>
    tpu.vector_store %arg2[%c0_3, %c0_4], %2 {strides = array<i32>} : memref<8x512xf32, #tpu.memory_space<vmem>>, vector<8x512xf32>,
    return
  }
}

module attributes {stable_mosaic.version = 11 : i64} {
  func.func @_block_tail_kernel(%arg0: memref<9x8x4xf32, #tpu.memory_space<vmem>>, %arg1: memref<4x546xf32, #tpu.memory_space<vmem>>, %arg2: memref<9x1x512xf32, #tpu.memory_space<vmem>>, %arg3: memref<8x512xf32, #tpu.memory_space<vmem>>, %arg4: memref<8x512xf32, #tpu.memory_space<vmem>>, %arg5: memref<8x1xf32, #tpu.memory_space<vmem>>, %arg6: memref<8x1xf32, #tpu.memory_space<vmem>>, %arg7: memref<8x512xf32, #tpu.memory_space<vmem>>) attributes {dimension_semantics = [], scalar_prefetch = 0 : i64, scratch_operands = 0 : i64, tpu.core_type = #tpu.core_type<tc>} {
    %c0 = arith.constant 0 : index
    %c0_0 = arith.constant 0 : index
    %0 = vector.load %arg1[%c0, %c0_0] : memref<4x546xf32, #tpu.memory_space<vmem>>, vector<4x512xf32>
    %c0_1 = arith.constant 0 : index
    %c0_2 = arith.constant 0 : index
    %c0_3 = arith.constant 0 : index
    %1 = vector.load %arg2[%c0_1, %c0_2, %c0_3] : memref<9x1x512xf32, #tpu.memory_space<vmem>>, vector<1x1x512xf32>
    %2 = vector.shape_cast %1 : vector<1x1x512xf32> to vector<1x512xf32>
    %3 = vector.broadcast %2 : vector<1x512xf32> to vector<4x512xf32>
    %4 = arith.mulf %0, %3 : vector<4x512xf32>
    %c0_4 = arith.constant 0 : index
    %c0_5 = arith.constant 0 : index
    %c0_6 = arith.constant 0 : index
    %5 = vector.load %arg0[%c0_4, %c0_5, %c0_6] : memref<9x8x4xf32, #tpu.memory_space<vmem>>, vector<1x8x4xf32>
    %6 = vector.shape_cast %5 : vector<1x8x4xf32> to vector<8x4xf32>
    %cst = arith.constant dense<0.000000e+00> : vector<8x512xf32>
    %7 = tpu.matmul %6, %4, %cst {dimension_numbers = #tpu.dot_dimension_numbers<[1], [0], [0], [1], [0, 0, 1, 1], [], []>} : vector<8x4xf32>, vector<4x512xf32>, vector<8x512xf32> -> vector<8x512xf32>
    %c0_7 = arith.constant 0 : index
    %c1 = arith.constant 1 : index
    %8 = vector.load %arg1[%c0_7, %c1] : memref<4x546xf32, #tpu.memory_space<vmem>>, vector<4x512xf32>
    %c1_8 = arith.constant 1 : index
    %c0_9 = arith.constant 0 : index
    %c0_10 = arith.constant 0 : index
    %9 = vector.load %arg2[%c1_8, %c0_9, %c0_10] : memref<9x1x512xf32, #tpu.memory_space<vmem>>, vector<1x1x512xf32>
    %10 = vector.shape_cast %9 : vector<1x1x512xf32> to vector<1x512xf32>
    %11 = vector.broadcast %10 : vector<1x512xf32> to vector<4x512xf32>
    %12 = arith.mulf %8, %11 : vector<4x512xf32>
    %c1_11 = arith.constant 1 : index
    %c0_12 = arith.constant 0 : index
    %c0_13 = arith.constant 0 : index
    %13 = vector.load %arg0[%c1_11, %c0_12, %c0_13] : memref<9x8x4xf32, #tpu.memory_space<vmem>>, vector<1x8x4xf32>
    %14 = vector.shape_cast %13 : vector<1x8x4xf32> to vector<8x4xf32>
    %cst_14 = arith.constant dense<0.000000e+00> : vector<8x512xf32>
    %15 = tpu.matmul %14, %12, %cst_14 {dimension_numbers = #tpu.dot_dimension_numbers<[1], [0], [0], [1], [0, 0, 1, 1], [], []>} : vector<8x4xf32>, vector<4x512xf32>, vector<8x512xf32> -> vector<8x512xf32>
    %16 = arith.addf %7, %15 : vector<8x512xf32>
    %c0_15 = arith.constant 0 : index
    %c2 = arith.constant 2 : index
    %17 = vector.load %arg1[%c0_15, %c2] : memref<4x546xf32, #tpu.memory_space<vmem>>, vector<4x512xf32>
    %c2_16 = arith.constant 2 : index
    %c0_17 = arith.constant 0 : index
    %c0_18 = arith.constant 0 : index
    %18 = vector.load %arg2[%c2_16, %c0_17, %c0_18] : memref<9x1x512xf32, #tpu.memory_space<vmem>>, vector<1x1x512xf32>
    %19 = vector.shape_cast %18 : vector<1x1x512xf32> to vector<1x512xf32>
    %20 = vector.broadcast %19 : vector<1x512xf32> to vector<4x512xf32>
    %21 = arith.mulf %17, %20 : vector<4x512xf32>
    %c2_19 = arith.constant 2 : index
    %c0_20 = arith.constant 0 : index
    %c0_21 = arith.constant 0 : index
    %22 = vector.load %arg0[%c2_19, %c0_20, %c0_21] : memref<9x8x4xf32, #tpu.memory_space<vmem>>, vector<1x8x4xf32>
    %23 = vector.shape_cast %22 : vector<1x8x4xf32> to vector<8x4xf32>
    %cst_22 = arith.constant dense<0.000000e+00> : vector<8x512xf32>
    %24 = tpu.matmul %23, %21, %cst_22 {dimension_numbers = #tpu.dot_dimension_numbers<[1], [0], [0], [1], [0, 0, 1, 1], [], []>} : vector<8x4xf32>, vector<4x512xf32>, vector<8x512xf32> -> vector<8x512xf32>
    %25 = arith.addf %16, %24 : vector<8x512xf32>
    %c0_23 = arith.constant 0 : index
    %c16 = arith.constant 16 : index
    %26 = vector.load %arg1[%c0_23, %c16] : memref<4x546xf32, #tpu.memory_space<vmem>>, vector<4x512xf32>
    %c3 = arith.constant 3 : index
    %c0_24 = arith.constant 0 : index
    %c0_25 = arith.constant 0 : index
    %27 = vector.load %arg2[%c3, %c0_24, %c0_25] : memref<9x1x512xf32, #tpu.memory_space<vmem>>, vector<1x1x512xf32>
    %28 = vector.shape_cast %27 : vector<1x1x512xf32> to vector<1x512xf32>
    %29 = vector.broadcast %28 : vector<1x512xf32> to vector<4x512xf32>
    %30 = arith.mulf %26, %29 : vector<4x512xf32>
    %c3_26 = arith.constant 3 : index
    %c0_27 = arith.constant 0 : index
    %c0_28 = arith.constant 0 : index
    %31 = vector.load %arg0[%c3_26, %c0_27, %c0_28] : memref<9x8x4xf32, #tpu.memory_space<vmem>>, vector<1x8x4xf32>
    %32 = vector.shape_cast %31 : vector<1x8x4xf32> to vector<8x4xf32>
    %cst_29 = arith.constant dense<0.000000e+00> : vector<8x512xf32>
    %33 = tpu.matmul %32, %30, %cst_29 {dimension_numbers = #tpu.dot_dimension_numbers<[1], [0], [0], [1], [0, 0, 1, 1], [], []>} : vector<8x4xf32>, vector<4x512xf32>, vector<8x512xf32> -> vector<8x512xf32>
    %34 = arith.addf %25, %33 : vector<8x512xf32>
    %c0_30 = arith.constant 0 : index
    %c17 = arith.constant 17 : index
    %35 = vector.load %arg1[%c0_30, %c17] : memref<4x546xf32, #tpu.memory_space<vmem>>, vector<4x512xf32>
    %c4 = arith.constant 4 : index
    %c0_31 = arith.constant 0 : index
    %c0_32 = arith.constant 0 : index
    %36 = vector.load %arg0[%c4, %c0_31, %c0_32] : memref<9x8x4xf32, #tpu.memory_space<vmem>>, vector<1x8x4xf32>
    %37 = vector.shape_cast %36 : vector<1x8x4xf32> to vector<8x4xf32>
    %cst_33 = arith.constant dense<0.000000e+00> : vector<8x512xf32>
    %38 = tpu.matmul %37, %35, %cst_33 {dimension_numbers = #tpu.dot_dimension_numbers<[1], [0], [0], [1], [0, 0, 1, 1], [], []>} : vector<8x4xf32>, vector<4x512xf32>, vector<8x512xf32> -> vector<8x512xf32>
    %39 = arith.addf %34, %38 : vector<8x512xf32>
    %c0_34 = arith.constant 0 : index
    %c18 = arith.constant 18 : index
    %40 = vector.load %arg1[%c0_34, %c18] : memref<4x546xf32, #tpu.memory_space<vmem>>, vector<4x512xf32>
    %c5 = arith.constant 5 : index
    %c0_35 = arith.constant 0 : index
    %c0_36 = arith.constant 0 : index
    %41 = vector.load %arg2[%c5, %c0_35, %c0_36] : memref<9x1x512xf32, #tpu.memory_space<vmem>>, vector<1x1x512xf32>
    %42 = vector.shape_cast %41 : vector<1x1x512xf32> to vector<1x512xf32>
    %43 = vector.broadcast %42 : vector<1x512xf32> to vector<4x512xf32>
    %44 = arith.mulf %40, %43 : vector<4x512xf32>
    %c5_37 = arith.constant 5 : index
    %c0_38 = arith.constant 0 : index
    %c0_39 = arith.constant 0 : index
    %45 = vector.load %arg0[%c5_37, %c0_38, %c0_39] : memref<9x8x4xf32, #tpu.memory_space<vmem>>, vector<1x8x4xf32>
    %46 = vector.shape_cast %45 : vector<1x8x4xf32> to vector<8x4xf32>
    %cst_40 = arith.constant dense<0.000000e+00> : vector<8x512xf32>
    %47 = tpu.matmul %46, %44, %cst_40 {dimension_numbers = #tpu.dot_dimension_numbers<[1], [0], [0], [1], [0, 0, 1, 1], [], []>} : vector<8x4xf32>, vector<4x512xf32>, vector<8x512xf32> -> vector<8x512xf32>
    %48 = arith.addf %39, %47 : vector<8x512xf32>
    %c0_41 = arith.constant 0 : index
    %c32 = arith.constant 32 : index
    %49 = vector.load %arg1[%c0_41, %c32] : memref<4x546xf32, #tpu.memory_space<vmem>>, vector<4x512xf32>
    %c6 = arith.constant 6 : index
    %c0_42 = arith.constant 0 : index
    %c0_43 = arith.constant 0 : index
    %50 = vector.load %arg2[%c6, %c0_42, %c0_43] : memref<9x1x512xf32, #tpu.memory_space<vmem>>, vector<1x1x512xf32>
    %51 = vector.shape_cast %50 : vector<1x1x512xf32> to vector<1x512xf32>
    %52 = vector.broadcast %51 : vector<1x512xf32> to vector<4x512xf32>
    %53 = arith.mulf %49, %52 : vector<4x512xf32>
    %c6_44 = arith.constant 6 : index
    %c0_45 = arith.constant 0 : index
    %c0_46 = arith.constant 0 : index
    %54 = vector.load %arg0[%c6_44, %c0_45, %c0_46] : memref<9x8x4xf32, #tpu.memory_space<vmem>>, vector<1x8x4xf32>
    %55 = vector.shape_cast %54 : vector<1x8x4xf32> to vector<8x4xf32>
    %cst_47 = arith.constant dense<0.000000e+00> : vector<8x512xf32>
    %56 = tpu.matmul %55, %53, %cst_47 {dimension_numbers = #tpu.dot_dimension_numbers<[1], [0], [0], [1], [0, 0, 1, 1], [], []>} : vector<8x4xf32>, vector<4x512xf32>, vector<8x512xf32> -> vector<8x512xf32>
    %57 = arith.addf %48, %56 : vector<8x512xf32>
    %c0_48 = arith.constant 0 : index
    %c33 = arith.constant 33 : index
    %58 = vector.load %arg1[%c0_48, %c33] : memref<4x546xf32, #tpu.memory_space<vmem>>, vector<4x512xf32>
    %c7 = arith.constant 7 : index
    %c0_49 = arith.constant 0 : index
    %c0_50 = arith.constant 0 : index
    %59 = vector.load %arg2[%c7, %c0_49, %c0_50] : memref<9x1x512xf32, #tpu.memory_space<vmem>>, vector<1x1x512xf32>
    %60 = vector.shape_cast %59 : vector<1x1x512xf32> to vector<1x512xf32>
    %61 = vector.broadcast %60 : vector<1x512xf32> to vector<4x512xf32>
    %62 = arith.mulf %58, %61 : vector<4x512xf32>
    %c7_51 = arith.constant 7 : index
    %c0_52 = arith.constant 0 : index
    %c0_53 = arith.constant 0 : index
    %63 = vector.load %arg0[%c7_51, %c0_52, %c0_53] : memref<9x8x4xf32, #tpu.memory_space<vmem>>, vector<1x8x4xf32>
    %64 = vector.shape_cast %63 : vector<1x8x4xf32> to vector<8x4xf32>
    %cst_54 = arith.constant dense<0.000000e+00> : vector<8x512xf32>
    %65 = tpu.matmul %64, %62, %cst_54 {dimension_numbers = #tpu.dot_dimension_numbers<[1], [0], [0], [1], [0, 0, 1, 1], [], []>} : vector<8x4xf32>, vector<4x512xf32>, vector<8x512xf32> -> vector<8x512xf32>
    %66 = arith.addf %57, %65 : vector<8x512xf32>
    %c0_55 = arith.constant 0 : index
    %c34 = arith.constant 34 : index
    %67 = vector.load %arg1[%c0_55, %c34] : memref<4x546xf32, #tpu.memory_space<vmem>>, vector<4x512xf32>
    %c8 = arith.constant 8 : index
    %c0_56 = arith.constant 0 : index
    %c0_57 = arith.constant 0 : index
    %68 = vector.load %arg2[%c8, %c0_56, %c0_57] : memref<9x1x512xf32, #tpu.memory_space<vmem>>, vector<1x1x512xf32>
    %69 = vector.shape_cast %68 : vector<1x1x512xf32> to vector<1x512xf32>
    %70 = vector.broadcast %69 : vector<1x512xf32> to vector<4x512xf32>
    %71 = arith.mulf %67, %70 : vector<4x512xf32>
    %c8_58 = arith.constant 8 : index
    %c0_59 = arith.constant 0 : index
    %c0_60 = arith.constant 0 : index
    %72 = vector.load %arg0[%c8_58, %c0_59, %c0_60] : memref<9x8x4xf32, #tpu.memory_space<vmem>>, vector<1x8x4xf32>
    %73 = vector.shape_cast %72 : vector<1x8x4xf32> to vector<8x4xf32>
    %cst_61 = arith.constant dense<0.000000e+00> : vector<8x512xf32>
    %74 = tpu.matmul %73, %71, %cst_61 {dimension_numbers = #tpu.dot_dimension_numbers<[1], [0], [0], [1], [0, 0, 1, 1], [], []>} : vector<8x4xf32>, vector<4x512xf32>, vector<8x512xf32> -> vector<8x512xf32>
    %75 = arith.addf %66, %74 : vector<8x512xf32>
    %c0_62 = arith.constant 0 : index
    %c0_63 = arith.constant 0 : index
    %76 = vector.load %arg3[%c0_62, %c0_63] : memref<8x512xf32, #tpu.memory_space<vmem>>, vector<8x512xf32>
    %c0_64 = arith.constant 0 : index
    %c0_65 = arith.constant 0 : index
    %77 = vector.load %arg4[%c0_64, %c0_65] : memref<8x512xf32, #tpu.memory_space<vmem>>, vector<8x512xf32>
    %78 = arith.mulf %76, %76 : vector<8x512xf32>
    %79 = arith.mulf %77, %77 : vector<8x512xf32>
    %80 = arith.addf %78, %79 : vector<8x512xf32>
    %81 = math.sqrt %80 : vector<8x512xf32>
    %82 = arith.addf %75, %81 : vector<8x512xf32>
    %cst_66 = arith.constant dense<0.000000e+00> : vector<8xf32>
    %83 = vector.multi_reduction <add>, %82, %cst_66 [1] : vector<8x512xf32> to vector<8xf32>
    %84 = vector.shape_cast %83 : vector<8xf32> to vector<8x1xf32>
    %cst_67 = arith.constant 0.001953125 : f32
    %85 = vector.broadcast %cst_67 : f32 to vector<8x1xf32>
    %86 = arith.mulf %84, %85 : vector<8x1xf32>
    %87 = arith.mulf %82, %82 : vector<8x512xf32>
    %cst_68 = arith.constant dense<0.000000e+00> : vector<8xf32>
    %88 = vector.multi_reduction <add>, %87, %cst_68 [1] : vector<8x512xf32> to vector<8xf32>
    %89 = vector.shape_cast %88 : vector<8xf32> to vector<8x1xf32>
    %cst_69 = arith.constant 0.001953125 : f32
    %90 = vector.broadcast %cst_69 : f32 to vector<8x1xf32>
    %91 = arith.mulf %89, %90 : vector<8x1xf32>
    %92 = arith.mulf %86, %86 : vector<8x1xf32>
    %93 = arith.subf %91, %92 : vector<8x1xf32>
    %cst_70 = arith.constant 9.99999974E-6 : f32
    %94 = vector.broadcast %cst_70 : f32 to vector<8x1xf32>
    %95 = arith.addf %93, %94 : vector<8x1xf32>
    %96 = math.rsqrt %95 : vector<8x1xf32>
    %97 = vector.broadcast %86 : vector<8x1xf32> to vector<8x512xf32>
    %98 = arith.subf %82, %97 : vector<8x512xf32>
    %c0_71 = arith.constant 0 : index
    %c0_72 = arith.constant 0 : index
    %99 = vector.load %arg5[%c0_71, %c0_72] : memref<8x1xf32, #tpu.memory_space<vmem>>, vector<8x1xf32>
    %100 = arith.mulf %96, %99 : vector<8x1xf32>
    %101 = vector.broadcast %100 : vector<8x1xf32> to vector<8x512xf32>
    %102 = arith.mulf %98, %101 : vector<8x512xf32>
    %c0_73 = arith.constant 0 : index
    %c0_74 = arith.constant 0 : index
    %103 = vector.load %arg6[%c0_73, %c0_74] : memref<8x1xf32, #tpu.memory_space<vmem>>, vector<8x1xf32>
    %104 = vector.broadcast %103 : vector<8x1xf32> to vector<8x512xf32>
    %105 = arith.addf %102, %104 : vector<8x512xf32>
    %cst_75 = arith.constant 0.000000e+00 : f32
    %106 = vector.broadcast %cst_75 : f32 to vector<8x512xf32>
    %107 = arith.cmpf oge, %105, %106 : vector<8x512xf32>
    %cst_76 = arith.constant 0.00999999977 : f32
    %108 = vector.broadcast %cst_76 : f32 to vector<8x512xf32>
    %109 = arith.mulf %108, %105 : vector<8x512xf32>
    %110 = arith.select %107, %105, %109 : vector<8x512xi1>, vector<8x512xf32>
    %c0_77 = arith.constant 0 : index
    %c0_78 = arith.constant 0 : index
    %111 = vector.load %arg7[%c0_77, %c0_78] : memref<8x512xf32, #tpu.memory_space<vmem>>, vector<8x512xf32>
    tpu.vector_store %arg7[%c0_77, %c0_78], %110 {strides = array<i32>} : memref<8x512xf32, #tpu.memory_space<vmem>>, vector<8x512xf32>,
    return
  }
}

module attributes {stable_mosaic.version = 11 : i64} {
  func.func @_matmul_cm_kernel(%arg0: memref<8x8xf32, #tpu.memory_space<vmem>>, %arg1: memref<8x512xf32, #tpu.memory_space<vmem>>, %arg2: memref<8x512xf32, #tpu.memory_space<vmem>>) attributes {dimension_semantics = [], scalar_prefetch = 0 : i64, scratch_operands = 0 : i64, tpu.core_type = #tpu.core_type<tc>} {
    %c0 = arith.constant 0 : index
    %c0_0 = arith.constant 0 : index
    %0 = vector.load %arg0[%c0, %c0_0] : memref<8x8xf32, #tpu.memory_space<vmem>>, vector<8x8xf32>
    %c0_1 = arith.constant 0 : index
    %c0_2 = arith.constant 0 : index
    %1 = vector.load %arg1[%c0_1, %c0_2] : memref<8x512xf32, #tpu.memory_space<vmem>>, vector<8x512xf32>
    %cst = arith.constant dense<0.000000e+00> : vector<8x512xf32>
    %2 = tpu.matmul %0, %1, %cst {dimension_numbers = #tpu.dot_dimension_numbers<[1], [0], [0], [1], [0, 0, 1, 1], [], []>} : vector<8x8xf32>, vector<8x512xf32>, vector<8x512xf32> -> vector<8x512xf32>
    %c0_3 = arith.constant 0 : index
    %c0_4 = arith.constant 0 : index
    %3 = vector.load %arg2[%c0_3, %c0_4] : memref<8x512xf32, #tpu.memory_space<vmem>>, vector<8x512xf32>
    tpu.vector_store %arg2[%c0_3, %c0_4], %2 {strides = array<i32>} : memref<8x512xf32, #tpu.memory_space<vmem>>, vector<8x512xf32>,
    return
  }
}

module attributes {stable_mosaic.version = 11 : i64} {
  func.func @_block_tail_kernel(%arg0: memref<9x8x8xf32, #tpu.memory_space<vmem>>, %arg1: memref<8x546xf32, #tpu.memory_space<vmem>>, %arg2: memref<9x1x512xf32, #tpu.memory_space<vmem>>, %arg3: memref<8x512xf32, #tpu.memory_space<vmem>>, %arg4: memref<8x512xf32, #tpu.memory_space<vmem>>, %arg5: memref<8x1xf32, #tpu.memory_space<vmem>>, %arg6: memref<8x1xf32, #tpu.memory_space<vmem>>, %arg7: memref<8x512xf32, #tpu.memory_space<vmem>>) attributes {dimension_semantics = [], scalar_prefetch = 0 : i64, scratch_operands = 0 : i64, tpu.core_type = #tpu.core_type<tc>} {
    %c0 = arith.constant 0 : index
    %c0_0 = arith.constant 0 : index
    %0 = vector.load %arg1[%c0, %c0_0] : memref<8x546xf32, #tpu.memory_space<vmem>>, vector<8x512xf32>
    %c0_1 = arith.constant 0 : index
    %c0_2 = arith.constant 0 : index
    %c0_3 = arith.constant 0 : index
    %1 = vector.load %arg2[%c0_1, %c0_2, %c0_3] : memref<9x1x512xf32, #tpu.memory_space<vmem>>, vector<1x1x512xf32>
    %2 = vector.shape_cast %1 : vector<1x1x512xf32> to vector<1x512xf32>
    %3 = vector.broadcast %2 : vector<1x512xf32> to vector<8x512xf32>
    %4 = arith.mulf %0, %3 : vector<8x512xf32>
    %c0_4 = arith.constant 0 : index
    %c0_5 = arith.constant 0 : index
    %c0_6 = arith.constant 0 : index
    %5 = vector.load %arg0[%c0_4, %c0_5, %c0_6] : memref<9x8x8xf32, #tpu.memory_space<vmem>>, vector<1x8x8xf32>
    %6 = vector.shape_cast %5 : vector<1x8x8xf32> to vector<8x8xf32>
    %cst = arith.constant dense<0.000000e+00> : vector<8x512xf32>
    %7 = tpu.matmul %6, %4, %cst {dimension_numbers = #tpu.dot_dimension_numbers<[1], [0], [0], [1], [0, 0, 1, 1], [], []>} : vector<8x8xf32>, vector<8x512xf32>, vector<8x512xf32> -> vector<8x512xf32>
    %c0_7 = arith.constant 0 : index
    %c1 = arith.constant 1 : index
    %8 = vector.load %arg1[%c0_7, %c1] : memref<8x546xf32, #tpu.memory_space<vmem>>, vector<8x512xf32>
    %c1_8 = arith.constant 1 : index
    %c0_9 = arith.constant 0 : index
    %c0_10 = arith.constant 0 : index
    %9 = vector.load %arg2[%c1_8, %c0_9, %c0_10] : memref<9x1x512xf32, #tpu.memory_space<vmem>>, vector<1x1x512xf32>
    %10 = vector.shape_cast %9 : vector<1x1x512xf32> to vector<1x512xf32>
    %11 = vector.broadcast %10 : vector<1x512xf32> to vector<8x512xf32>
    %12 = arith.mulf %8, %11 : vector<8x512xf32>
    %c1_11 = arith.constant 1 : index
    %c0_12 = arith.constant 0 : index
    %c0_13 = arith.constant 0 : index
    %13 = vector.load %arg0[%c1_11, %c0_12, %c0_13] : memref<9x8x8xf32, #tpu.memory_space<vmem>>, vector<1x8x8xf32>
    %14 = vector.shape_cast %13 : vector<1x8x8xf32> to vector<8x8xf32>
    %cst_14 = arith.constant dense<0.000000e+00> : vector<8x512xf32>
    %15 = tpu.matmul %14, %12, %cst_14 {dimension_numbers = #tpu.dot_dimension_numbers<[1], [0], [0], [1], [0, 0, 1, 1], [], []>} : vector<8x8xf32>, vector<8x512xf32>, vector<8x512xf32> -> vector<8x512xf32>
    %16 = arith.addf %7, %15 : vector<8x512xf32>
    %c0_15 = arith.constant 0 : index
    %c2 = arith.constant 2 : index
    %17 = vector.load %arg1[%c0_15, %c2] : memref<8x546xf32, #tpu.memory_space<vmem>>, vector<8x512xf32>
    %c2_16 = arith.constant 2 : index
    %c0_17 = arith.constant 0 : index
    %c0_18 = arith.constant 0 : index
    %18 = vector.load %arg2[%c2_16, %c0_17, %c0_18] : memref<9x1x512xf32, #tpu.memory_space<vmem>>, vector<1x1x512xf32>
    %19 = vector.shape_cast %18 : vector<1x1x512xf32> to vector<1x512xf32>
    %20 = vector.broadcast %19 : vector<1x512xf32> to vector<8x512xf32>
    %21 = arith.mulf %17, %20 : vector<8x512xf32>
    %c2_19 = arith.constant 2 : index
    %c0_20 = arith.constant 0 : index
    %c0_21 = arith.constant 0 : index
    %22 = vector.load %arg0[%c2_19, %c0_20, %c0_21] : memref<9x8x8xf32, #tpu.memory_space<vmem>>, vector<1x8x8xf32>
    %23 = vector.shape_cast %22 : vector<1x8x8xf32> to vector<8x8xf32>
    %cst_22 = arith.constant dense<0.000000e+00> : vector<8x512xf32>
    %24 = tpu.matmul %23, %21, %cst_22 {dimension_numbers = #tpu.dot_dimension_numbers<[1], [0], [0], [1], [0, 0, 1, 1], [], []>} : vector<8x8xf32>, vector<8x512xf32>, vector<8x512xf32> -> vector<8x512xf32>
    %25 = arith.addf %16, %24 : vector<8x512xf32>
    %c0_23 = arith.constant 0 : index
    %c16 = arith.constant 16 : index
    %26 = vector.load %arg1[%c0_23, %c16] : memref<8x546xf32, #tpu.memory_space<vmem>>, vector<8x512xf32>
    %c3 = arith.constant 3 : index
    %c0_24 = arith.constant 0 : index
    %c0_25 = arith.constant 0 : index
    %27 = vector.load %arg2[%c3, %c0_24, %c0_25] : memref<9x1x512xf32, #tpu.memory_space<vmem>>, vector<1x1x512xf32>
    %28 = vector.shape_cast %27 : vector<1x1x512xf32> to vector<1x512xf32>
    %29 = vector.broadcast %28 : vector<1x512xf32> to vector<8x512xf32>
    %30 = arith.mulf %26, %29 : vector<8x512xf32>
    %c3_26 = arith.constant 3 : index
    %c0_27 = arith.constant 0 : index
    %c0_28 = arith.constant 0 : index
    %31 = vector.load %arg0[%c3_26, %c0_27, %c0_28] : memref<9x8x8xf32, #tpu.memory_space<vmem>>, vector<1x8x8xf32>
    %32 = vector.shape_cast %31 : vector<1x8x8xf32> to vector<8x8xf32>
    %cst_29 = arith.constant dense<0.000000e+00> : vector<8x512xf32>
    %33 = tpu.matmul %32, %30, %cst_29 {dimension_numbers = #tpu.dot_dimension_numbers<[1], [0], [0], [1], [0, 0, 1, 1], [], []>} : vector<8x8xf32>, vector<8x512xf32>, vector<8x512xf32> -> vector<8x512xf32>
    %34 = arith.addf %25, %33 : vector<8x512xf32>
    %c0_30 = arith.constant 0 : index
    %c17 = arith.constant 17 : index
    %35 = vector.load %arg1[%c0_30, %c17] : memref<8x546xf32, #tpu.memory_space<vmem>>, vector<8x512xf32>
    %c4 = arith.constant 4 : index
    %c0_31 = arith.constant 0 : index
    %c0_32 = arith.constant 0 : index
    %36 = vector.load %arg0[%c4, %c0_31, %c0_32] : memref<9x8x8xf32, #tpu.memory_space<vmem>>, vector<1x8x8xf32>
    %37 = vector.shape_cast %36 : vector<1x8x8xf32> to vector<8x8xf32>
    %cst_33 = arith.constant dense<0.000000e+00> : vector<8x512xf32>
    %38 = tpu.matmul %37, %35, %cst_33 {dimension_numbers = #tpu.dot_dimension_numbers<[1], [0], [0], [1], [0, 0, 1, 1], [], []>} : vector<8x8xf32>, vector<8x512xf32>, vector<8x512xf32> -> vector<8x512xf32>
    %39 = arith.addf %34, %38 : vector<8x512xf32>
    %c0_34 = arith.constant 0 : index
    %c18 = arith.constant 18 : index
    %40 = vector.load %arg1[%c0_34, %c18] : memref<8x546xf32, #tpu.memory_space<vmem>>, vector<8x512xf32>
    %c5 = arith.constant 5 : index
    %c0_35 = arith.constant 0 : index
    %c0_36 = arith.constant 0 : index
    %41 = vector.load %arg2[%c5, %c0_35, %c0_36] : memref<9x1x512xf32, #tpu.memory_space<vmem>>, vector<1x1x512xf32>
    %42 = vector.shape_cast %41 : vector<1x1x512xf32> to vector<1x512xf32>
    %43 = vector.broadcast %42 : vector<1x512xf32> to vector<8x512xf32>
    %44 = arith.mulf %40, %43 : vector<8x512xf32>
    %c5_37 = arith.constant 5 : index
    %c0_38 = arith.constant 0 : index
    %c0_39 = arith.constant 0 : index
    %45 = vector.load %arg0[%c5_37, %c0_38, %c0_39] : memref<9x8x8xf32, #tpu.memory_space<vmem>>, vector<1x8x8xf32>
    %46 = vector.shape_cast %45 : vector<1x8x8xf32> to vector<8x8xf32>
    %cst_40 = arith.constant dense<0.000000e+00> : vector<8x512xf32>
    %47 = tpu.matmul %46, %44, %cst_40 {dimension_numbers = #tpu.dot_dimension_numbers<[1], [0], [0], [1], [0, 0, 1, 1], [], []>} : vector<8x8xf32>, vector<8x512xf32>, vector<8x512xf32> -> vector<8x512xf32>
    %48 = arith.addf %39, %47 : vector<8x512xf32>
    %c0_41 = arith.constant 0 : index
    %c32 = arith.constant 32 : index
    %49 = vector.load %arg1[%c0_41, %c32] : memref<8x546xf32, #tpu.memory_space<vmem>>, vector<8x512xf32>
    %c6 = arith.constant 6 : index
    %c0_42 = arith.constant 0 : index
    %c0_43 = arith.constant 0 : index
    %50 = vector.load %arg2[%c6, %c0_42, %c0_43] : memref<9x1x512xf32, #tpu.memory_space<vmem>>, vector<1x1x512xf32>
    %51 = vector.shape_cast %50 : vector<1x1x512xf32> to vector<1x512xf32>
    %52 = vector.broadcast %51 : vector<1x512xf32> to vector<8x512xf32>
    %53 = arith.mulf %49, %52 : vector<8x512xf32>
    %c6_44 = arith.constant 6 : index
    %c0_45 = arith.constant 0 : index
    %c0_46 = arith.constant 0 : index
    %54 = vector.load %arg0[%c6_44, %c0_45, %c0_46] : memref<9x8x8xf32, #tpu.memory_space<vmem>>, vector<1x8x8xf32>
    %55 = vector.shape_cast %54 : vector<1x8x8xf32> to vector<8x8xf32>
    %cst_47 = arith.constant dense<0.000000e+00> : vector<8x512xf32>
    %56 = tpu.matmul %55, %53, %cst_47 {dimension_numbers = #tpu.dot_dimension_numbers<[1], [0], [0], [1], [0, 0, 1, 1], [], []>} : vector<8x8xf32>, vector<8x512xf32>, vector<8x512xf32> -> vector<8x512xf32>
    %57 = arith.addf %48, %56 : vector<8x512xf32>
    %c0_48 = arith.constant 0 : index
    %c33 = arith.constant 33 : index
    %58 = vector.load %arg1[%c0_48, %c33] : memref<8x546xf32, #tpu.memory_space<vmem>>, vector<8x512xf32>
    %c7 = arith.constant 7 : index
    %c0_49 = arith.constant 0 : index
    %c0_50 = arith.constant 0 : index
    %59 = vector.load %arg2[%c7, %c0_49, %c0_50] : memref<9x1x512xf32, #tpu.memory_space<vmem>>, vector<1x1x512xf32>
    %60 = vector.shape_cast %59 : vector<1x1x512xf32> to vector<1x512xf32>
    %61 = vector.broadcast %60 : vector<1x512xf32> to vector<8x512xf32>
    %62 = arith.mulf %58, %61 : vector<8x512xf32>
    %c7_51 = arith.constant 7 : index
    %c0_52 = arith.constant 0 : index
    %c0_53 = arith.constant 0 : index
    %63 = vector.load %arg0[%c7_51, %c0_52, %c0_53] : memref<9x8x8xf32, #tpu.memory_space<vmem>>, vector<1x8x8xf32>
    %64 = vector.shape_cast %63 : vector<1x8x8xf32> to vector<8x8xf32>
    %cst_54 = arith.constant dense<0.000000e+00> : vector<8x512xf32>
    %65 = tpu.matmul %64, %62, %cst_54 {dimension_numbers = #tpu.dot_dimension_numbers<[1], [0], [0], [1], [0, 0, 1, 1], [], []>} : vector<8x8xf32>, vector<8x512xf32>, vector<8x512xf32> -> vector<8x512xf32>
    %66 = arith.addf %57, %65 : vector<8x512xf32>
    %c0_55 = arith.constant 0 : index
    %c34 = arith.constant 34 : index
    %67 = vector.load %arg1[%c0_55, %c34] : memref<8x546xf32, #tpu.memory_space<vmem>>, vector<8x512xf32>
    %c8 = arith.constant 8 : index
    %c0_56 = arith.constant 0 : index
    %c0_57 = arith.constant 0 : index
    %68 = vector.load %arg2[%c8, %c0_56, %c0_57] : memref<9x1x512xf32, #tpu.memory_space<vmem>>, vector<1x1x512xf32>
    %69 = vector.shape_cast %68 : vector<1x1x512xf32> to vector<1x512xf32>
    %70 = vector.broadcast %69 : vector<1x512xf32> to vector<8x512xf32>
    %71 = arith.mulf %67, %70 : vector<8x512xf32>
    %c8_58 = arith.constant 8 : index
    %c0_59 = arith.constant 0 : index
    %c0_60 = arith.constant 0 : index
    %72 = vector.load %arg0[%c8_58, %c0_59, %c0_60] : memref<9x8x8xf32, #tpu.memory_space<vmem>>, vector<1x8x8xf32>
    %73 = vector.shape_cast %72 : vector<1x8x8xf32> to vector<8x8xf32>
    %cst_61 = arith.constant dense<0.000000e+00> : vector<8x512xf32>
    %74 = tpu.matmul %73, %71, %cst_61 {dimension_numbers = #tpu.dot_dimension_numbers<[1], [0], [0], [1], [0, 0, 1, 1], [], []>} : vector<8x8xf32>, vector<8x512xf32>, vector<8x512xf32> -> vector<8x512xf32>
    %75 = arith.addf %66, %74 : vector<8x512xf32>
    %c0_62 = arith.constant 0 : index
    %c0_63 = arith.constant 0 : index
    %76 = vector.load %arg3[%c0_62, %c0_63] : memref<8x512xf32, #tpu.memory_space<vmem>>, vector<8x512xf32>
    %c0_64 = arith.constant 0 : index
    %c0_65 = arith.constant 0 : index
    %77 = vector.load %arg4[%c0_64, %c0_65] : memref<8x512xf32, #tpu.memory_space<vmem>>, vector<8x512xf32>
    %78 = arith.mulf %76, %76 : vector<8x512xf32>
    %79 = arith.mulf %77, %77 : vector<8x512xf32>
    %80 = arith.addf %78, %79 : vector<8x512xf32>
    %81 = math.sqrt %80 : vector<8x512xf32>
    %82 = arith.addf %75, %81 : vector<8x512xf32>
    %cst_66 = arith.constant dense<0.000000e+00> : vector<8xf32>
    %83 = vector.multi_reduction <add>, %82, %cst_66 [1] : vector<8x512xf32> to vector<8xf32>
    %84 = vector.shape_cast %83 : vector<8xf32> to vector<8x1xf32>
    %cst_67 = arith.constant 0.001953125 : f32
    %85 = vector.broadcast %cst_67 : f32 to vector<8x1xf32>
    %86 = arith.mulf %84, %85 : vector<8x1xf32>
    %87 = arith.mulf %82, %82 : vector<8x512xf32>
    %cst_68 = arith.constant dense<0.000000e+00> : vector<8xf32>
    %88 = vector.multi_reduction <add>, %87, %cst_68 [1] : vector<8x512xf32> to vector<8xf32>
    %89 = vector.shape_cast %88 : vector<8xf32> to vector<8x1xf32>
    %cst_69 = arith.constant 0.001953125 : f32
    %90 = vector.broadcast %cst_69 : f32 to vector<8x1xf32>
    %91 = arith.mulf %89, %90 : vector<8x1xf32>
    %92 = arith.mulf %86, %86 : vector<8x1xf32>
    %93 = arith.subf %91, %92 : vector<8x1xf32>
    %cst_70 = arith.constant 9.99999974E-6 : f32
    %94 = vector.broadcast %cst_70 : f32 to vector<8x1xf32>
    %95 = arith.addf %93, %94 : vector<8x1xf32>
    %96 = math.rsqrt %95 : vector<8x1xf32>
    %97 = vector.broadcast %86 : vector<8x1xf32> to vector<8x512xf32>
    %98 = arith.subf %82, %97 : vector<8x512xf32>
    %c0_71 = arith.constant 0 : index
    %c0_72 = arith.constant 0 : index
    %99 = vector.load %arg5[%c0_71, %c0_72] : memref<8x1xf32, #tpu.memory_space<vmem>>, vector<8x1xf32>
    %100 = arith.mulf %96, %99 : vector<8x1xf32>
    %101 = vector.broadcast %100 : vector<8x1xf32> to vector<8x512xf32>
    %102 = arith.mulf %98, %101 : vector<8x512xf32>
    %c0_73 = arith.constant 0 : index
    %c0_74 = arith.constant 0 : index
    %103 = vector.load %arg6[%c0_73, %c0_74] : memref<8x1xf32, #tpu.memory_space<vmem>>, vector<8x1xf32>
    %104 = vector.broadcast %103 : vector<8x1xf32> to vector<8x512xf32>
    %105 = arith.addf %102, %104 : vector<8x512xf32>
    %cst_75 = arith.constant 0.000000e+00 : f32
    %106 = vector.broadcast %cst_75 : f32 to vector<8x512xf32>
    %107 = arith.cmpf oge, %105, %106 : vector<8x512xf32>
    %cst_76 = arith.constant 0.00999999977 : f32
    %108 = vector.broadcast %cst_76 : f32 to vector<8x512xf32>
    %109 = arith.mulf %108, %105 : vector<8x512xf32>
    %110 = arith.select %107, %105, %109 : vector<8x512xi1>, vector<8x512xf32>
    %c0_77 = arith.constant 0 : index
    %c0_78 = arith.constant 0 : index
    %111 = vector.load %arg7[%c0_77, %c0_78] : memref<8x512xf32, #tpu.memory_space<vmem>>, vector<8x512xf32>
    tpu.vector_store %arg7[%c0_77, %c0_78], %110 {strides = array<i32>} : memref<8x512xf32, #tpu.memory_space<vmem>>, vector<8x512xf32>,
    return
  }
}

module attributes {stable_mosaic.version = 11 : i64} {
  func.func @_gen_residual_kernel(%arg0: memref<1x2xf32, #tpu.memory_space<smem>>, %arg1: memref<9x4x8xf32, #tpu.memory_space<vmem>>, %arg2: memref<8x546xf32, #tpu.memory_space<vmem>>, %arg3: memref<9x1x512xf32, #tpu.memory_space<vmem>>, %arg4: memref<4x1xf32, #tpu.memory_space<vmem>>, %arg5: memref<4x512xf32, #tpu.memory_space<vmem>>, %arg6: memref<4x512xf32, #tpu.memory_space<vmem>>) attributes {dimension_semantics = [], scalar_prefetch = 0 : i64, scratch_operands = 0 : i64, tpu.core_type = #tpu.core_type<tc>} {
    %c0 = arith.constant 0 : index
    %c0_0 = arith.constant 0 : index
    %0 = vector.load %arg2[%c0, %c0_0] : memref<8x546xf32, #tpu.memory_space<vmem>>, vector<8x512xf32>
    %c0_1 = arith.constant 0 : index
    %c0_2 = arith.constant 0 : index
    %c0_3 = arith.constant 0 : index
    %1 = vector.load %arg3[%c0_1, %c0_2, %c0_3] : memref<9x1x512xf32, #tpu.memory_space<vmem>>, vector<1x1x512xf32>
    %2 = vector.shape_cast %1 : vector<1x1x512xf32> to vector<1x512xf32>
    %3 = vector.broadcast %2 : vector<1x512xf32> to vector<8x512xf32>
    %4 = arith.mulf %0, %3 : vector<8x512xf32>
    %c0_4 = arith.constant 0 : index
    %c0_5 = arith.constant 0 : index
    %c0_6 = arith.constant 0 : index
    %5 = vector.load %arg1[%c0_4, %c0_5, %c0_6] : memref<9x4x8xf32, #tpu.memory_space<vmem>>, vector<1x4x8xf32>
    %6 = vector.shape_cast %5 : vector<1x4x8xf32> to vector<4x8xf32>
    %cst = arith.constant dense<0.000000e+00> : vector<4x512xf32>
    %7 = tpu.matmul %6, %4, %cst {dimension_numbers = #tpu.dot_dimension_numbers<[1], [0], [0], [1], [0, 0, 1, 1], [], []>} : vector<4x8xf32>, vector<8x512xf32>, vector<4x512xf32> -> vector<4x512xf32>
    %c0_7 = arith.constant 0 : index
    %c1 = arith.constant 1 : index
    %8 = vector.load %arg2[%c0_7, %c1] : memref<8x546xf32, #tpu.memory_space<vmem>>, vector<8x512xf32>
    %c1_8 = arith.constant 1 : index
    %c0_9 = arith.constant 0 : index
    %c0_10 = arith.constant 0 : index
    %9 = vector.load %arg3[%c1_8, %c0_9, %c0_10] : memref<9x1x512xf32, #tpu.memory_space<vmem>>, vector<1x1x512xf32>
    %10 = vector.shape_cast %9 : vector<1x1x512xf32> to vector<1x512xf32>
    %11 = vector.broadcast %10 : vector<1x512xf32> to vector<8x512xf32>
    %12 = arith.mulf %8, %11 : vector<8x512xf32>
    %c1_11 = arith.constant 1 : index
    %c0_12 = arith.constant 0 : index
    %c0_13 = arith.constant 0 : index
    %13 = vector.load %arg1[%c1_11, %c0_12, %c0_13] : memref<9x4x8xf32, #tpu.memory_space<vmem>>, vector<1x4x8xf32>
    %14 = vector.shape_cast %13 : vector<1x4x8xf32> to vector<4x8xf32>
    %cst_14 = arith.constant dense<0.000000e+00> : vector<4x512xf32>
    %15 = tpu.matmul %14, %12, %cst_14 {dimension_numbers = #tpu.dot_dimension_numbers<[1], [0], [0], [1], [0, 0, 1, 1], [], []>} : vector<4x8xf32>, vector<8x512xf32>, vector<4x512xf32> -> vector<4x512xf32>
    %16 = arith.addf %7, %15 : vector<4x512xf32>
    %c0_15 = arith.constant 0 : index
    %c2 = arith.constant 2 : index
    %17 = vector.load %arg2[%c0_15, %c2] : memref<8x546xf32, #tpu.memory_space<vmem>>, vector<8x512xf32>
    %c2_16 = arith.constant 2 : index
    %c0_17 = arith.constant 0 : index
    %c0_18 = arith.constant 0 : index
    %18 = vector.load %arg3[%c2_16, %c0_17, %c0_18] : memref<9x1x512xf32, #tpu.memory_space<vmem>>, vector<1x1x512xf32>
    %19 = vector.shape_cast %18 : vector<1x1x512xf32> to vector<1x512xf32>
    %20 = vector.broadcast %19 : vector<1x512xf32> to vector<8x512xf32>
    %21 = arith.mulf %17, %20 : vector<8x512xf32>
    %c2_19 = arith.constant 2 : index
    %c0_20 = arith.constant 0 : index
    %c0_21 = arith.constant 0 : index
    %22 = vector.load %arg1[%c2_19, %c0_20, %c0_21] : memref<9x4x8xf32, #tpu.memory_space<vmem>>, vector<1x4x8xf32>
    %23 = vector.shape_cast %22 : vector<1x4x8xf32> to vector<4x8xf32>
    %cst_22 = arith.constant dense<0.000000e+00> : vector<4x512xf32>
    %24 = tpu.matmul %23, %21, %cst_22 {dimension_numbers = #tpu.dot_dimension_numbers<[1], [0], [0], [1], [0, 0, 1, 1], [], []>} : vector<4x8xf32>, vector<8x512xf32>, vector<4x512xf32> -> vector<4x512xf32>
    %25 = arith.addf %16, %24 : vector<4x512xf32>
    %c0_23 = arith.constant 0 : index
    %c16 = arith.constant 16 : index
    %26 = vector.load %arg2[%c0_23, %c16] : memref<8x546xf32, #tpu.memory_space<vmem>>, vector<8x512xf32>
    %c3 = arith.constant 3 : index
    %c0_24 = arith.constant 0 : index
    %c0_25 = arith.constant 0 : index
    %27 = vector.load %arg3[%c3, %c0_24, %c0_25] : memref<9x1x512xf32, #tpu.memory_space<vmem>>, vector<1x1x512xf32>
    %28 = vector.shape_cast %27 : vector<1x1x512xf32> to vector<1x512xf32>
    %29 = vector.broadcast %28 : vector<1x512xf32> to vector<8x512xf32>
    %30 = arith.mulf %26, %29 : vector<8x512xf32>
    %c3_26 = arith.constant 3 : index
    %c0_27 = arith.constant 0 : index
    %c0_28 = arith.constant 0 : index
    %31 = vector.load %arg1[%c3_26, %c0_27, %c0_28] : memref<9x4x8xf32, #tpu.memory_space<vmem>>, vector<1x4x8xf32>
    %32 = vector.shape_cast %31 : vector<1x4x8xf32> to vector<4x8xf32>
    %cst_29 = arith.constant dense<0.000000e+00> : vector<4x512xf32>
    %33 = tpu.matmul %32, %30, %cst_29 {dimension_numbers = #tpu.dot_dimension_numbers<[1], [0], [0], [1], [0, 0, 1, 1], [], []>} : vector<4x8xf32>, vector<8x512xf32>, vector<4x512xf32> -> vector<4x512xf32>
    %34 = arith.addf %25, %33 : vector<4x512xf32>
    %c0_30 = arith.constant 0 : index
    %c17 = arith.constant 17 : index
    %35 = vector.load %arg2[%c0_30, %c17] : memref<8x546xf32, #tpu.memory_space<vmem>>, vector<8x512xf32>
    %c4 = arith.constant 4 : index
    %c0_31 = arith.constant 0 : index
    %c0_32 = arith.constant 0 : index
    %36 = vector.load %arg1[%c4, %c0_31, %c0_32] : memref<9x4x8xf32, #tpu.memory_space<vmem>>, vector<1x4x8xf32>
    %37 = vector.shape_cast %36 : vector<1x4x8xf32> to vector<4x8xf32>
    %cst_33 = arith.constant dense<0.000000e+00> : vector<4x512xf32>
    %38 = tpu.matmul %37, %35, %cst_33 {dimension_numbers = #tpu.dot_dimension_numbers<[1], [0], [0], [1], [0, 0, 1, 1], [], []>} : vector<4x8xf32>, vector<8x512xf32>, vector<4x512xf32> -> vector<4x512xf32>
    %39 = arith.addf %34, %38 : vector<4x512xf32>
    %c0_34 = arith.constant 0 : index
    %c18 = arith.constant 18 : index
    %40 = vector.load %arg2[%c0_34, %c18] : memref<8x546xf32, #tpu.memory_space<vmem>>, vector<8x512xf32>
    %c5 = arith.constant 5 : index
    %c0_35 = arith.constant 0 : index
    %c0_36 = arith.constant 0 : index
    %41 = vector.load %arg3[%c5, %c0_35, %c0_36] : memref<9x1x512xf32, #tpu.memory_space<vmem>>, vector<1x1x512xf32>
    %42 = vector.shape_cast %41 : vector<1x1x512xf32> to vector<1x512xf32>
    %43 = vector.broadcast %42 : vector<1x512xf32> to vector<8x512xf32>
    %44 = arith.mulf %40, %43 : vector<8x512xf32>
    %c5_37 = arith.constant 5 : index
    %c0_38 = arith.constant 0 : index
    %c0_39 = arith.constant 0 : index
    %45 = vector.load %arg1[%c5_37, %c0_38, %c0_39] : memref<9x4x8xf32, #tpu.memory_space<vmem>>, vector<1x4x8xf32>
    %46 = vector.shape_cast %45 : vector<1x4x8xf32> to vector<4x8xf32>
    %cst_40 = arith.constant dense<0.000000e+00> : vector<4x512xf32>
    %47 = tpu.matmul %46, %44, %cst_40 {dimension_numbers = #tpu.dot_dimension_numbers<[1], [0], [0], [1], [0, 0, 1, 1], [], []>} : vector<4x8xf32>, vector<8x512xf32>, vector<4x512xf32> -> vector<4x512xf32>
    %48 = arith.addf %39, %47 : vector<4x512xf32>
    %c0_41 = arith.constant 0 : index
    %c32 = arith.constant 32 : index
    %49 = vector.load %arg2[%c0_41, %c32] : memref<8x546xf32, #tpu.memory_space<vmem>>, vector<8x512xf32>
    %c6 = arith.constant 6 : index
    %c0_42 = arith.constant 0 : index
    %c0_43 = arith.constant 0 : index
    %50 = vector.load %arg3[%c6, %c0_42, %c0_43] : memref<9x1x512xf32, #tpu.memory_space<vmem>>, vector<1x1x512xf32>
    %51 = vector.shape_cast %50 : vector<1x1x512xf32> to vector<1x512xf32>
    %52 = vector.broadcast %51 : vector<1x512xf32> to vector<8x512xf32>
    %53 = arith.mulf %49, %52 : vector<8x512xf32>
    %c6_44 = arith.constant 6 : index
    %c0_45 = arith.constant 0 : index
    %c0_46 = arith.constant 0 : index
    %54 = vector.load %arg1[%c6_44, %c0_45, %c0_46] : memref<9x4x8xf32, #tpu.memory_space<vmem>>, vector<1x4x8xf32>
    %55 = vector.shape_cast %54 : vector<1x4x8xf32> to vector<4x8xf32>
    %cst_47 = arith.constant dense<0.000000e+00> : vector<4x512xf32>
    %56 = tpu.matmul %55, %53, %cst_47 {dimension_numbers = #tpu.dot_dimension_numbers<[1], [0], [0], [1], [0, 0, 1, 1], [], []>} : vector<4x8xf32>, vector<8x512xf32>, vector<4x512xf32> -> vector<4x512xf32>
    %57 = arith.addf %48, %56 : vector<4x512xf32>
    %c0_48 = arith.constant 0 : index
    %c33 = arith.constant 33 : index
    %58 = vector.load %arg2[%c0_48, %c33] : memref<8x546xf32, #tpu.memory_space<vmem>>, vector<8x512xf32>
    %c7 = arith.constant 7 : index
    %c0_49 = arith.constant 0 : index
    %c0_50 = arith.constant 0 : index
    %59 = vector.load %arg3[%c7, %c0_49, %c0_50] : memref<9x1x512xf32, #tpu.memory_space<vmem>>, vector<1x1x512xf32>
    %60 = vector.shape_cast %59 : vector<1x1x512xf32> to vector<1x512xf32>
    %61 = vector.broadcast %60 : vector<1x512xf32> to vector<8x512xf32>
    %62 = arith.mulf %58, %61 : vector<8x512xf32>
    %c7_51 = arith.constant 7 : index
    %c0_52 = arith.constant 0 : index
    %c0_53 = arith.constant 0 : index
    %63 = vector.load %arg1[%c7_51, %c0_52, %c0_53] : memref<9x4x8xf32, #tpu.memory_space<vmem>>, vector<1x4x8xf32>
    %64 = vector.shape_cast %63 : vector<1x4x8xf32> to vector<4x8xf32>
    %cst_54 = arith.constant dense<0.000000e+00> : vector<4x512xf32>
    %65 = tpu.matmul %64, %62, %cst_54 {dimension_numbers = #tpu.dot_dimension_numbers<[1], [0], [0], [1], [0, 0, 1, 1], [], []>} : vector<4x8xf32>, vector<8x512xf32>, vector<4x512xf32> -> vector<4x512xf32>
    %66 = arith.addf %57, %65 : vector<4x512xf32>
    %c0_55 = arith.constant 0 : index
    %c34 = arith.constant 34 : index
    %67 = vector.load %arg2[%c0_55, %c34] : memref<8x546xf32, #tpu.memory_space<vmem>>, vector<8x512xf32>
    %c8 = arith.constant 8 : index
    %c0_56 = arith.constant 0 : index
    %c0_57 = arith.constant 0 : index
    %68 = vector.load %arg3[%c8, %c0_56, %c0_57] : memref<9x1x512xf32, #tpu.memory_space<vmem>>, vector<1x1x512xf32>
    %69 = vector.shape_cast %68 : vector<1x1x512xf32> to vector<1x512xf32>
    %70 = vector.broadcast %69 : vector<1x512xf32> to vector<8x512xf32>
    %71 = arith.mulf %67, %70 : vector<8x512xf32>
    %c8_58 = arith.constant 8 : index
    %c0_59 = arith.constant 0 : index
    %c0_60 = arith.constant 0 : index
    %72 = vector.load %arg1[%c8_58, %c0_59, %c0_60] : memref<9x4x8xf32, #tpu.memory_space<vmem>>, vector<1x4x8xf32>
    %73 = vector.shape_cast %72 : vector<1x4x8xf32> to vector<4x8xf32>
    %cst_61 = arith.constant dense<0.000000e+00> : vector<4x512xf32>
    %74 = tpu.matmul %73, %71, %cst_61 {dimension_numbers = #tpu.dot_dimension_numbers<[1], [0], [0], [1], [0, 0, 1, 1], [], []>} : vector<4x8xf32>, vector<8x512xf32>, vector<4x512xf32> -> vector<4x512xf32>
    %75 = arith.addf %66, %74 : vector<4x512xf32>
    %c0_62 = arith.constant 0 : index
    %c0_63 = arith.constant 0 : index
    %76 = vector.load %arg4[%c0_62, %c0_63] : memref<4x1xf32, #tpu.memory_space<vmem>>, vector<4x1xf32>
    %77 = vector.broadcast %76 : vector<4x1xf32> to vector<4x512xf32>
    %78 = arith.addf %75, %77 : vector<4x512xf32>
    %c0_64 = arith.constant 0 : index
    %c0_65 = arith.constant 0 : index
    %79 = memref.load %arg0[%c0_64, %c0_65] : memref<1x2xf32, #tpu.memory_space<smem>>
    %c0_66 = arith.constant 0 : index
    %c0_67 = arith.constant 0 : index
    %80 = vector.load %arg5[%c0_66, %c0_67] : memref<4x512xf32, #tpu.memory_space<vmem>>, vector<4x512xf32>
    %81 = vector.broadcast %79 : f32 to vector<4x512xf32>
    %82 = arith.mulf %81, %80 : vector<4x512xf32>
    %c0_68 = arith.constant 0 : index
    %c1_69 = arith.constant 1 : index
    %83 = memref.load %arg0[%c0_68, %c1_69] : memref<1x2xf32, #tpu.memory_space<smem>>
    %84 = vector.broadcast %83 : f32 to vector<4x512xf32>
    %85 = arith.mulf %84, %78 : vector<4x512xf32>
    %86 = arith.addf %82, %85 : vector<4x512xf32>
    %c0_70 = arith.constant 0 : index
    %c0_71 = arith.constant 0 : index
    %87 = vector.load %arg6[%c0_70, %c0_71] : memref<4x512xf32, #tpu.memory_space<vmem>>, vector<4x512xf32>
    tpu.vector_store %arg6[%c0_70, %c0_71], %86 {strides = array<i32>} : memref<4x512xf32, #tpu.memory_space<vmem>>, vector<4x512xf32>,
    return
  }
}

</mosaic_0001>

<llo_original>
// kernel: gnet1_forward.9
$region0: #{gnet1_forward.9}
  #allocation0 [shape = 'u32[]', space=smem, size = 0x4, offset = 0x4, fixed_abs, tag = 'smem constant byte address 0x4 - core index']
  #allocation1 [shape = 'u32[144,128]{1,0:T(1,128)}', space=vmem, size = 0x12000, scoped, tag = 'internal scratch']
  %s0 = inlined_call_operand.vmem [shape: f32[8,4], index: 0, kind: input, shape index: {}]
  %s1 = inlined_call_operand.vmem [shape: f32[4,512], index: 1, kind: input, shape index: {}]
  %s2 = inlined_call_operand.vmem [shape: f32[8,512], index: 2, kind: output, shape index: {}]
  %s3 = sld [smem:[#allocation0]]
  $region18: #{gnet1_forward.9} parent=0
    _
  %s5 = ssub.s32 1, %s3
  %s6 = scalar_select 0, %s5, %s3
  // Predicated region
  $region2: #{gnet1_forward.9} parent=0 // pred_check
    _
  $region3: #{gnet1_forward.9} parent=0 // pred_check_branch
    %8 = sbr.rel (0) target = $region5
  $region4: #{gnet1_forward.9} parent=0 // pred_region
    _
  $region5: #{gnet1_forward.9} parent=0 // pred_fallthru
    _
  // Predicated region
  $region6: #{gnet1_forward.9} parent=0 // pred_check
    _
  $region7: #{gnet1_forward.9} parent=0 // pred_check_branch
    %10 = sbr.rel (0) target = $region9
  $region8: #{gnet1_forward.9} parent=0 // pred_region
    _
  $region9: #{gnet1_forward.9} parent=0 // pred_fallthru
    _
  %v11 = vld [vmem:[%s0] sm:$0xff]
  %v12 = vld [vmem:[%s1] sm:$0xff]
  %v13 = vld [vmem:[%s1 + $0x8] sm:$0xff]
  %v16 = vcombine.high %v12, %v12
  %v17 = vcombine.high %v13, %v13
  %vm18 = vcmask 31744
  %v20 = vsel %vm18, %v11, 0
  %vm22 = vcmask 1043456
  %v23 = vsel %vm22, %v12, 0
  %v25 = vsel %vm22, %v16, 0
  %v27 = vsel %vm22, %v13, 0
  %v29 = vsel %vm22, %v17, 0
  %31 = vmatprep.subr.mxu0 %v25
  %32 = vmatpush1.msra.mxu0 %v23
  %33 = vmatprep.subr.mxu0 0.0
  %34 = vmatpush1.msra.mxu0 0.0
  %35 = vmatprep.subr.mxu0 0.0
  %36 = vmatpush1.msra.mxu0 0.0
  %37 = vmatprep.subr.mxu0 0.0
  %38 = vmatpush1.msra.mxu0 0.0
  %39 = vmatprep.subr.mxu0 0.0
  %40 = vmatpush1.msra.mxu0 0.0
  %41 = vmatprep.subr.mxu0 0.0
  %42 = vmatpush1.msra.mxu0 0.0
  %43 = vmatprep.subr.mxu0 0.0
  %44 = vmatpush1.msra.mxu0 0.0
  %45 = vmatprep.subr.mxu0 0.0
  %46 = vmatpush1.msra.mxu0 0.0
  %47 = vmatprep.subr.mxu0 0.0
  %48 = vmatpush1.msra.mxu0 0.0
  %49 = vmatprep.subr.mxu0 0.0
  %50 = vmatpush1.msra.mxu0 0.0
  %51 = vmatprep.subr.mxu0 0.0
  %52 = vmatpush1.msra.mxu0 0.0
  %53 = vmatprep.subr.mxu0 0.0
  %54 = vmatpush1.msra.mxu0 0.0
  %55 = vmatprep.subr.mxu0 0.0
  %56 = vmatpush1.msra.mxu0 0.0
  %57 = vmatprep.subr.mxu0 0.0
  %58 = vmatpush1.msra.mxu0 0.0
  %59 = vmatprep.subr.mxu0 0.0
  %60 = vmatpush1.msra.mxu0 0.0
  %61 = vmatprep.subr.mxu0 0.0
  %62 = vmatpush1.msra.mxu0 0.0
  %63 = vmatprep.subr.mxu0 0.0
  %64 = vmatpush1.msra.mxu0 0.0
  %65 = vmatprep.subr.mxu0 0.0
  %66 = vmatpush1.msra.mxu0 0.0
  %67 = vmatprep.subr.mxu0 0.0
  %68 = vmatpush1.msra.mxu0 0.0
  %69 = vmatprep.subr.mxu0 0.0
  %70 = vmatpush1.msra.mxu0 0.0
  %71 = vmatprep.subr.mxu0 0.0
  %72 = vmatpush1.msra.mxu0 0.0
  %73 = vmatprep.subr.mxu0 0.0
  %74 = vmatpush1.msra.mxu0 0.0
  %75 = vmatprep.subr.mxu0 0.0
  %76 = vmatpush1.msra.mxu0 0.0
  %77 = vmatprep.subr.mxu0 0.0
  %78 = vmatpush1.msra.mxu0 0.0
  %79 = vmatprep.subr.mxu0 0.0
  %80 = vmatpush1.msra.mxu0 0.0
  %81 = vmatprep.subr.mxu0 0.0
  %82 = vmatpush1.msra.mxu0 0.0
  %83 = vmatprep.subr.mxu0 0.0
  %84 = vmatpush1.msra.mxu0 0.0
  %85 = vmatprep.subr.mxu0 0.0
  %86 = vmatpush1.msra.mxu0 0.0
  %87 = vmatprep.subr.mxu0 0.0
  %88 = vmatpush1.msra.mxu0 0.0
  %89 = vmatprep.subr.mxu0 0.0
  %90 = vmatpush1.msra.mxu0 0.0
  %91 = vmatprep.subr.mxu0 0.0
  %92 = vmatpush1.msra.mxu0 0.0
  %93 = vmatprep.subr.mxu0 0.0
  %94 = vmatpush1.msra.mxu0 0.0
  %95 = vmatprep.mubr.f32.mxu0 0.0
  %96 = vmatmul.mubr.f32.gmra.mrb[0].mxu0 %v20
  %v97 = vpop.f32.mrb[0].mxu0
  %v98 = vadd.f32 0.0, %v97
  %v99 = vpop.f32.mrb[0].mxu0
  %v100 = vadd.f32 0.0, %v99
  %101 = vdwg.mxu0
  %102 = vmatprep.subr.mxu0 %v29
  %103 = vmatpush1.msra.mxu0 %v27
  %104 = vmatprep.subr.mxu0 0.0
  %105 = vmatpush1.msra.mxu0 0.0
  %106 = vmatprep.subr.mxu0 0.0
  %107 = vmatpush1.msra.mxu0 0.0
  %108 = vmatprep.subr.mxu0 0.0
  %109 = vmatpush1.msra.mxu0 0.0
  %110 = vmatprep.subr.mxu0 0.0
  %111 = vmatpush1.msra.mxu0 0.0
  %112 = vmatprep.subr.mxu0 0.0
  %113 = vmatpush1.msra.mxu0 0.0
  %114 = vmatprep.subr.mxu0 0.0
  %115 = vmatpush1.msra.mxu0 0.0
  %116 = vmatprep.subr.mxu0 0.0
  %117 = vmatpush1.msra.mxu0 0.0
  %118 = vmatprep.subr.mxu0 0.0
  %119 = vmatpush1.msra.mxu0 0.0
  %120 = vmatprep.subr.mxu0 0.0
  %121 = vmatpush1.msra.mxu0 0.0
  %122 = vmatprep.subr.mxu0 0.0
  %123 = vmatpush1.msra.mxu0 0.0
  %124 = vmatprep.subr.mxu0 0.0
  %125 = vmatpush1.msra.mxu0 0.0
  %126 = vmatprep.subr.mxu0 0.0
  %127 = vmatpush1.msra.mxu0 0.0
  %128 = vmatprep.subr.mxu0 0.0
  %129 = vmatpush1.msra.mxu0 0.0
  %130 = vmatprep.subr.mxu0 0.0
  %131 = vmatpush1.msra.mxu0 0.0
  %132 = vmatprep.subr.mxu0 0.0
  %133 = vmatpush1.msra.mxu0 0.0
  %134 = vmatprep.subr.mxu0 0.0
  %135 = vmatpush1.msra.mxu0 0.0
  %136 = vmatprep.subr.mxu0 0.0
  %137 = vmatpush1.msra.mxu0 0.0
  %138 = vmatprep.subr.mxu0 0.0
  %139 = vmatpush1.msra.mxu0 0.0
  %140 = vmatprep.subr.mxu0 0.0
  %141 = vmatpush1.msra.mxu0 0.0
  %142 = vmatprep.subr.mxu0 0.0
  %143 = vmatpush1.msra.mxu0 0.0
  %144 = vmatprep.subr.mxu0 0.0
  %145 = vmatpush1.msra.mxu0 0.0
  %146 = vmatprep.subr.mxu0 0.0
  %147 = vmatpush1.msra.mxu0 0.0
  %148 = vmatprep.subr.mxu0 0.0
  %149 = vmatpush1.msra.mxu0 0.0
  %150 = vmatprep.subr.mxu0 0.0
  %151 = vmatpush1.msra.mxu0 0.0
  %152 = vmatprep.subr.mxu0 0.0
  %153 = vmatpush1.msra.mxu0 0.0
  %154 = vmatprep.subr.mxu0 0.0
  %155 = vmatpush1.msra.mxu0 0.0
  %156 = vmatprep.subr.mxu0 0.0
  %157 = vmatpush1.msra.mxu0 0.0
  %158 = vmatprep.subr.mxu0 0.0
  %159 = vmatpush1.msra.mxu0 0.0
  %160 = vmatprep.subr.mxu0 0.0
  %161 = vmatpush1.msra.mxu0 0.0
  %162 = vmatprep.subr.mxu0 0.0
  %163 = vmatpush1.msra.mxu0 0.0
  %164 = vmatprep.subr.mxu0 0.0
  %165 = vmatpush1.msra.mxu0 0.0
  %166 = vmatprep.mubr.f32.mxu0 0.0
  %167 = vmatmul.mubr.f32.gmra.mrb[0].mxu0 %v20
  %v168 = vpop.f32.mrb[0].mxu0
  %v169 = vadd.f32 0.0, %v168
  %v170 = vpop.f32.mrb[0].mxu0
  %v171 = vadd.f32 0.0, %v170
  %172 = vdwg.mxu0
  %173 = vst [vmem:[%s2] sm:$0xff] %v98
  %174 = vst [vmem:[%s2 + $0x8] sm:$0xff] %v100
  %175 = vst [vmem:[%s2 + $0x10] sm:$0xff] %v169
  %176 = vst [vmem:[%s2 + $0x18] sm:$0xff] %v171
  // Predicated region
  $region10: #{gnet1_forward.9} parent=0 // pred_check
    _
  $region11: #{gnet1_forward.9} parent=0 // pred_check_branch
    %178 = sbr.rel (0) target = $region13
  $region12: #{gnet1_forward.9} parent=0 // pred_region
    _
  $region13: #{gnet1_forward.9} parent=0 // pred_fallthru
    _
  // Predicated region
  $region14: #{gnet1_forward.9} parent=0 // pred_check
    _
  $region15: #{gnet1_forward.9} parent=0 // pred_check_branch
    %180 = sbr.rel (0) target = $region17
  $region16: #{gnet1_forward.9} parent=0 // pred_region
    _
  $region17: #{gnet1_forward.9} parent=0 // pred_fallthru
    _

// kernel: gnet1_forward.11
$region0: #{gnet1_forward.11}
  #allocation0 [shape = 'u32[]', space=smem, size = 0x4, offset = 0x4, fixed_abs, tag = 'smem constant byte address 0x4 - core index']
  #allocation1 [shape = 'u32[144,128]{1,0:T(1,128)}', space=vmem, size = 0x12000, scoped, tag = 'internal scratch']
  %s0 = inlined_call_operand.vmem [shape: f32[8,8], index: 0, kind: input, shape index: {}]
  %s1 = inlined_call_operand.vmem [shape: f32[8,512], index: 1, kind: input, shape index: {}]
  %s2 = inlined_call_operand.vmem [shape: f32[8,512], index: 2, kind: output, shape index: {}]
  %s3 = sld [smem:[#allocation0]]
  $region18: #{gnet1_forward.11} parent=0
    _
  %s5 = ssub.s32 1, %s3
  %s6 = scalar_select 0, %s5, %s3
  // Predicated region
  $region2: #{gnet1_forward.11} parent=0 // pred_check
    _
  $region3: #{gnet1_forward.11} parent=0 // pred_check_branch
    %8 = sbr.rel (0) target = $region5
  $region4: #{gnet1_forward.11} parent=0 // pred_region
    _
  $region5: #{gnet1_forward.11} parent=0 // pred_fallthru
    _
  // Predicated region
  $region6: #{gnet1_forward.11} parent=0 // pred_check
    _
  $region7: #{gnet1_forward.11} parent=0 // pred_check_branch
    %10 = sbr.rel (0) target = $region9
  $region8: #{gnet1_forward.11} parent=0 // pred_region
    _
  $region9: #{gnet1_forward.11} parent=0 // pred_fallthru
    _
  %v11 = vld [vmem:[%s0] sm:$0xff]
  %v12 = vld [vmem:[%s1] sm:$0xff]
  %v13 = vld [vmem:[%s1 + $0x8] sm:$0xff]
  %v14 = vld [vmem:[%s1 + $0x10] sm:$0xff]
  %v15 = vld [vmem:[%s1 + $0x18] sm:$0xff]
  %vm16 = vcmask 64512
  %v18 = vsel %vm16, %v11, 0
  %20 = vmatprep.subr.mxu0 %v13
  %21 = vmatpush1.msra.mxu0 %v12
  %22 = vmatprep.subr.mxu0 0.0
  %23 = vmatpush1.msra.mxu0 0.0
  %24 = vmatprep.subr.mxu0 0.0
  %25 = vmatpush1.msra.mxu0 0.0
  %26 = vmatprep.subr.mxu0 0.0
  %27 = vmatpush1.msra.mxu0 0.0
  %28 = vmatprep.subr.mxu0 0.0
  %29 = vmatpush1.msra.mxu0 0.0
  %30 = vmatprep.subr.mxu0 0.0
  %31 = vmatpush1.msra.mxu0 0.0
  %32 = vmatprep.subr.mxu0 0.0
  %33 = vmatpush1.msra.mxu0 0.0
  %34 = vmatprep.subr.mxu0 0.0
  %35 = vmatpush1.msra.mxu0 0.0
  %36 = vmatprep.subr.mxu0 0.0
  %37 = vmatpush1.msra.mxu0 0.0
  %38 = vmatprep.subr.mxu0 0.0
  %39 = vmatpush1.msra.mxu0 0.0
  %40 = vmatprep.subr.mxu0 0.0
  %41 = vmatpush1.msra.mxu0 0.0
  %42 = vmatprep.subr.mxu0 0.0
  %43 = vmatpush1.msra.mxu0 0.0
  %44 = vmatprep.subr.mxu0 0.0
  %45 = vmatpush1.msra.mxu0 0.0
  %46 = vmatprep.subr.mxu0 0.0
  %47 = vmatpush1.msra.mxu0 0.0
  %48 = vmatprep.subr.mxu0 0.0
  %49 = vmatpush1.msra.mxu0 0.0
  %50 = vmatprep.subr.mxu0 0.0
  %51 = vmatpush1.msra.mxu0 0.0
  %52 = vmatprep.subr.mxu0 0.0
  %53 = vmatpush1.msra.mxu0 0.0
  %54 = vmatprep.subr.mxu0 0.0
  %55 = vmatpush1.msra.mxu0 0.0
  %56 = vmatprep.subr.mxu0 0.0
  %57 = vmatpush1.msra.mxu0 0.0
  %58 = vmatprep.subr.mxu0 0.0
  %59 = vmatpush1.msra.mxu0 0.0
  %60 = vmatprep.subr.mxu0 0.0
  %61 = vmatpush1.msra.mxu0 0.0
  %62 = vmatprep.subr.mxu0 0.0
  %63 = vmatpush1.msra.mxu0 0.0
  %64 = vmatprep.subr.mxu0 0.0
  %65 = vmatpush1.msra.mxu0 0.0
  %66 = vmatprep.subr.mxu0 0.0
  %67 = vmatpush1.msra.mxu0 0.0
  %68 = vmatprep.subr.mxu0 0.0
  %69 = vmatpush1.msra.mxu0 0.0
  %70 = vmatprep.subr.mxu0 0.0
  %71 = vmatpush1.msra.mxu0 0.0
  %72 = vmatprep.subr.mxu0 0.0
  %73 = vmatpush1.msra.mxu0 0.0
  %74 = vmatprep.subr.mxu0 0.0
  %75 = vmatpush1.msra.mxu0 0.0
  %76 = vmatprep.subr.mxu0 0.0
  %77 = vmatpush1.msra.mxu0 0.0
  %78 = vmatprep.subr.mxu0 0.0
  %79 = vmatpush1.msra.mxu0 0.0
  %80 = vmatprep.subr.mxu0 0.0
  %81 = vmatpush1.msra.mxu0 0.0
  %82 = vmatprep.subr.mxu0 0.0
  %83 = vmatpush1.msra.mxu0 0.0
  %84 = vmatprep.mubr.f32.mxu0 0.0
  %85 = vmatmul.mubr.f32.gmra.mrb[0].mxu0 %v18
  %v86 = vpop.f32.mrb[0].mxu0
  %v87 = vadd.f32 0.0, %v86
  %v88 = vpop.f32.mrb[0].mxu0
  %v89 = vadd.f32 0.0, %v88
  %90 = vdwg.mxu0
  %91 = vmatprep.subr.mxu0 %v15
  %92 = vmatpush1.msra.mxu0 %v14
  %93 = vmatprep.subr.mxu0 0.0
  %94 = vmatpush1.msra.mxu0 0.0
  %95 = vmatprep.subr.mxu0 0.0
  %96 = vmatpush1.msra.mxu0 0.0
  %97 = vmatprep.subr.mxu0 0.0
  %98 = vmatpush1.msra.mxu0 0.0
  %99 = vmatprep.subr.mxu0 0.0
  %100 = vmatpush1.msra.mxu0 0.0
  %101 = vmatprep.subr.mxu0 0.0
  %102 = vmatpush1.msra.mxu0 0.0
  %103 = vmatprep.subr.mxu0 0.0
  %104 = vmatpush1.msra.mxu0 0.0
  %105 = vmatprep.subr.mxu0 0.0
  %106 = vmatpush1.msra.mxu0 0.0
  %107 = vmatprep.subr.mxu0 0.0
  %108 = vmatpush1.msra.mxu0 0.0
  %109 = vmatprep.subr.mxu0 0.0
  %110 = vmatpush1.msra.mxu0 0.0
  %111 = vmatprep.subr.mxu0 0.0
  %112 = vmatpush1.msra.mxu0 0.0
  %113 = vmatprep.subr.mxu0 0.0
  %114 = vmatpush1.msra.mxu0 0.0
  %115 = vmatprep.subr.mxu0 0.0
  %116 = vmatpush1.msra.mxu0 0.0
  %117 = vmatprep.subr.mxu0 0.0
  %118 = vmatpush1.msra.mxu0 0.0
  %119 = vmatprep.subr.mxu0 0.0
  %120 = vmatpush1.msra.mxu0 0.0
  %121 = vmatprep.subr.mxu0 0.0
  %122 = vmatpush1.msra.mxu0 0.0
  %123 = vmatprep.subr.mxu0 0.0
  %124 = vmatpush1.msra.mxu0 0.0
  %125 = vmatprep.subr.mxu0 0.0
  %126 = vmatpush1.msra.mxu0 0.0
  %127 = vmatprep.subr.mxu0 0.0
  %128 = vmatpush1.msra.mxu0 0.0
  %129 = vmatprep.subr.mxu0 0.0
  %130 = vmatpush1.msra.mxu0 0.0
  %131 = vmatprep.subr.mxu0 0.0
  %132 = vmatpush1.msra.mxu0 0.0
  %133 = vmatprep.subr.mxu0 0.0
  %134 = vmatpush1.msra.mxu0 0.0
  %135 = vmatprep.subr.mxu0 0.0
  %136 = vmatpush1.msra.mxu0 0.0
  %137 = vmatprep.subr.mxu0 0.0
  %138 = vmatpush1.msra.mxu0 0.0
  %139 = vmatprep.subr.mxu0 0.0
  %140 = vmatpush1.msra.mxu0 0.0
  %141 = vmatprep.subr.mxu0 0.0
  %142 = vmatpush1.msra.mxu0 0.0
  %143 = vmatprep.subr.mxu0 0.0
  %144 = vmatpush1.msra.mxu0 0.0
  %145 = vmatprep.subr.mxu0 0.0
  %146 = vmatpush1.msra.mxu0 0.0
  %147 = vmatprep.subr.mxu0 0.0
  %148 = vmatpush1.msra.mxu0 0.0
  %149 = vmatprep.subr.mxu0 0.0
  %150 = vmatpush1.msra.mxu0 0.0
  %151 = vmatprep.subr.mxu0 0.0
  %152 = vmatpush1.msra.mxu0 0.0
  %153 = vmatprep.subr.mxu0 0.0
  %154 = vmatpush1.msra.mxu0 0.0
  %155 = vmatprep.mubr.f32.mxu0 0.0
  %156 = vmatmul.mubr.f32.gmra.mrb[0].mxu0 %v18
  %v157 = vpop.f32.mrb[0].mxu0
  %v158 = vadd.f32 0.0, %v157
  %v159 = vpop.f32.mrb[0].mxu0
  %v160 = vadd.f32 0.0, %v159
  %161 = vdwg.mxu0
  %162 = vst [vmem:[%s2] sm:$0xff] %v87
  %163 = vst [vmem:[%s2 + $0x8] sm:$0xff] %v89
  %164 = vst [vmem:[%s2 + $0x10] sm:$0xff] %v158
  %165 = vst [vmem:[%s2 + $0x18] sm:$0xff] %v160
  // Predicated region
  $region10: #{gnet1_forward.11} parent=0 // pred_check
    _
  $region11: #{gnet1_forward.11} parent=0 // pred_check_branch
    %167 = sbr.rel (0) target = $region13
  $region12: #{gnet1_forward.11} parent=0 // pred_region
    _
  $region13: #{gnet1_forward.11} parent=0 // pred_fallthru
    _
  // Predicated region
  $region14: #{gnet1_forward.11} parent=0 // pred_check
    _
  $region15: #{gnet1_forward.11} parent=0 // pred_check_branch
    %169 = sbr.rel (0) target = $region17
  $region16: #{gnet1_forward.11} parent=0 // pred_region
    _
  $region17: #{gnet1_forward.11} parent=0 // pred_fallthru
    _

// kernel: gnet1_forward.10
$region0: #{gnet1_forward.10}
  #allocation0 [shape = 'u32[]', space=smem, size = 0x4, offset = 0x4, fixed_abs, tag = 'smem constant byte address 0x4 - core index']
  #allocation1 [shape = 'u32[144,128]{1,0:T(1,128)}', space=vmem, size = 0x12000, scoped, tag = 'internal scratch']
  %s0 = inlined_call_operand.vmem [shape: f32[9,8,4], index: 0, kind: input, shape index: {}]
  %s1 = inlined_call_operand.vmem [shape: f32[4,546], index: 1, kind: input, shape index: {}]
  %s2 = inlined_call_operand.vmem [shape: f32[9,1,512], index: 2, kind: input, shape index: {}]
  %s3 = inlined_call_operand.vmem [shape: f32[8,512], index: 3, kind: input, shape index: {}]
  %s4 = inlined_call_operand.vmem [shape: f32[8,512], index: 4, kind: input, shape index: {}]
  %s5 = inlined_call_operand.vmem [shape: f32[8,1], index: 5, kind: input, shape index: {}]
  %s6 = inlined_call_operand.vmem [shape: f32[8,1], index: 6, kind: input, shape index: {}]
  %s7 = inlined_call_operand.vmem [shape: f32[8,512], index: 7, kind: output, shape index: {}]
  %s8 = sld [smem:[#allocation0]]
  $region38: #{gnet1_forward.10} parent=0
    _
  %s10 = ssub.s32 1, %s8
  %s11 = scalar_select 0, %s10, %s8
  // Predicated region
  $region2: #{gnet1_forward.10} parent=0 // pred_check
    _
  $region3: #{gnet1_forward.10} parent=0 // pred_check_branch
    %13 = sbr.rel (0) target = $region5
  $region4: #{gnet1_forward.10} parent=0 // pred_region
    _
  $region5: #{gnet1_forward.10} parent=0 // pred_fallthru
    _
  // Predicated region
  $region6: #{gnet1_forward.10} parent=0 // pred_check
    _
  $region7: #{gnet1_forward.10} parent=0 // pred_check_branch
    %15 = sbr.rel (0) target = $region9
  $region8: #{gnet1_forward.10} parent=0 // pred_region
    _
  $region9: #{gnet1_forward.10} parent=0 // pred_fallthru
    _
  // Predicated region
  $region10: #{gnet1_forward.10} parent=0 // pred_check
    _
  $region11: #{gnet1_forward.10} parent=0 // pred_check_branch
    %17 = sbr.rel (0) target = $region13
  $region12: #{gnet1_forward.10} parent=0 // pred_region
    _
  $region13: #{gnet1_forward.10} parent=0 // pred_fallthru
    _
  // Predicated region
  $region14: #{gnet1_forward.10} parent=0 // pred_check
    _
  $region15: #{gnet1_forward.10} parent=0 // pred_check_branch
    %19 = sbr.rel (0) target = $region17
  $region16: #{gnet1_forward.10} parent=0 // pred_region
    _
  $region17: #{gnet1_forward.10} parent=0 // pred_fallthru
    _
  // Predicated region
  $region18: #{gnet1_forward.10} parent=0 // pred_check
    _
  $region19: #{gnet1_forward.10} parent=0 // pred_check_branch
    %21 = sbr.rel (0) target = $region21
  $region20: #{gnet1_forward.10} parent=0 // pred_region
    _
  $region21: #{gnet1_forward.10} parent=0 // pred_fallthru
    _
  // Predicated region
  $region22: #{gnet1_forward.10} parent=0 // pred_check
    _
  $region23: #{gnet1_forward.10} parent=0 // pred_check_branch
    %23 = sbr.rel (0) target = $region25
  $region24: #{gnet1_forward.10} parent=0 // pred_region
    _
  $region25: #{gnet1_forward.10} parent=0 // pred_fallthru
    _
  // Predicated region
  $region26: #{gnet1_forward.10} parent=0 // pred_check
    _
  $region27: #{gnet1_forward.10} parent=0 // pred_check_branch
    %25 = sbr.rel (0) target = $region29
  $region28: #{gnet1_forward.10} parent=0 // pred_region
    _
  $region29: #{gnet1_forward.10} parent=0 // pred_fallthru
    _
  %v26 = vld [vmem:[%s1] sm:$0xff]
  %v27 = vld [vmem:[%s1 + $0x8] sm:$0xff]
  %v28 = vld [vmem:[%s2] sm:$0xf]
  %v30 = vlaneseq
  %v31 = vshrl.u32 %v30, 7
  %v32 = vsub.s32 0, %v31
  %v33 = vrot.slane %v28, %v32
  %v34 = vlaneseq
  %v35 = vshrl.u32 %v34, 7
  %v36 = vsub.s32 1, %v35
  %v37 = vrot.slane %v28, %v36
  %v38 = vlaneseq
  %v39 = vshrl.u32 %v38, 7
  %v40 = vsub.s32 2, %v39
  %v41 = vrot.slane %v28, %v40
  %v42 = vlaneseq
  %v43 = vshrl.u32 %v42, 7
  %v44 = vsub.s32 3, %v43
  %v45 = vrot.slane %v28, %v44
  %v46 = vcombine.low %v33, %v37
  %v47 = vcombine.low %v41, %v45
  %v50 = vmul.f32 %v26, %v46
  %v51 = vmul.f32 %v27, %v47
  %v52 = vld [vmem:[%s0] sm:$0xff]
  %v53 = vld [vmem:[%s1 + $0x10] sm:$0xf]
  %s54 = scalar_lea.vmem %s2, 4
  %v55 = vld [vmem:[%s54] sm:$0xf]
  %v57 = vlaneseq
  %v58 = vshrl.u32 %v57, 7
  %v59 = vsub.s32 0, %v58
  %v60 = vrot.slane %v55, %v59
  %v61 = vlaneseq
  %v62 = vshrl.u32 %v61, 7
  %v63 = vsub.s32 1, %v62
  %v64 = vrot.slane %v55, %v63
  %v65 = vlaneseq
  %v66 = vshrl.u32 %v65, 7
  %v67 = vsub.s32 2, %v66
  %v68 = vrot.slane %v55, %v67
  %v69 = vlaneseq
  %v70 = vshrl.u32 %v69, 7
  %v71 = vsub.s32 3, %v70
  %v72 = vrot.slane %v55, %v71
  %v73 = vcombine.low %v60, %v64
  %v74 = vcombine.low %v68, %v72
  %75 = vrot.lane.b32.xlu0 %v73, 1
  %v76 = vpop.permute.xlu0 %75
  %77 = vrot.lane.b32.xlu0 %v74, 1
  %v78 = vpop.permute.xlu0 %77
  %v79 = vrot.slane %v76, 4
  %v80 = vrot.slane %v78, 4
  %vm81 = vcmask 7168
  %v82 = vsel %vm81, %v79, %v76
  %vm83 = vcmask 1043456
  %v84 = vsel %vm83, %v79, %v80
  %v85 = vsel %vm81, %v84, %v78
  %v89 = vmul.f32 %v26, %v82
  %v90 = vmul.f32 %v27, %v85
  %v91 = vmul.f32 %v53, %v80
  %s92 = scalar_lea.vmem %s0, 8
  %v93 = vld [vmem:[%s92] sm:$0xff]
  %v97 = vcombine.high %v89, %v89
  %v98 = vcombine.high %v90, %v90
  %99 = vrot.lane.b32.xlu0 %v89, 127
  %v100 = vpop.permute.xlu0 %99
  %101 = vrot.lane.b32.xlu0 %v97, 127
  %v102 = vpop.permute.xlu0 %101
  %103 = vrot.lane.b32.xlu0 %v90, 127
  %v104 = vpop.permute.xlu0 %103
  %105 = vrot.lane.b32.xlu0 %v98, 127
  %v106 = vpop.permute.xlu0 %105
  %107 = vrot.lane.b32.xlu0 %v91, 127
  %v108 = vpop.permute.xlu0 %107
  %vm109 = vcmask 1039360
  %v110 = vsel %vm109, %v100, %v102
  %v111 = vsel %vm109, %v102, %v104
  %v112 = vsel %vm109, %v104, %v106
  %v113 = vsel %vm109, %v106, %v108
  %vm114 = vcmask 31744
  %v116 = vsel %vm114, %v93, 0
  %v118 = vsel %vm83, %v110, 0
  %v120 = vsel %vm83, %v111, 0
  %v122 = vsel %vm83, %v112, 0
  %v124 = vsel %vm83, %v113, 0
  %126 = vmatprep.subr.mxu0 %v120
  %127 = vmatpush1.msra.mxu0 %v118
  %128 = vmatprep.subr.mxu0 0.0
  %129 = vmatpush1.msra.mxu0 0.0
  %130 = vmatprep.subr.mxu0 0.0
  %131 = vmatpush1.msra.mxu0 0.0
  %132 = vmatprep.subr.mxu0 0.0
  %133 = vmatpush1.msra.mxu0 0.0
  %134 = vmatprep.subr.mxu0 0.0
  %135 = vmatpush1.msra.mxu0 0.0
  %136 = vmatprep.subr.mxu0 0.0
  %137 = vmatpush1.msra.mxu0 0.0
  %138 = vmatprep.subr.mxu0 0.0
  %139 = vmatpush1.msra.mxu0 0.0
  %140 = vmatprep.subr.mxu0 0.0
  %141 = vmatpush1.msra.mxu0 0.0
  %142 = vmatprep.subr.mxu0 0.0
  %143 = vmatpush1.msra.mxu0 0.0
  %144 = vmatprep.subr.mxu0 0.0
  %145 = vmatpush1.msra.mxu0 0.0
  %146 = vmatprep.subr.mxu0 0.0
  %147 = vmatpush1.msra.mxu0 0.0
  %148 = vmatprep.subr.mxu0 0.0
  %149 = vmatpush1.msra.mxu0 0.0
  %150 = vmatprep.subr.mxu0 0.0
  %151 = vmatpush1.msra.mxu0 0.0
  %152 = vmatprep.subr.mxu0 0.0
  %153 = vmatpush1.msra.mxu0 0.0
  %154 = vmatprep.subr.mxu0 0.0
  %155 = vmatpush1.msra.mxu0 0.0
  %156 = vmatprep.subr.mxu0 0.0
  %157 = vmatpush1.msra.mxu0 0.0
  %158 = vmatprep.subr.mxu0 0.0
  %159 = vmatpush1.msra.mxu0 0.0
  %160 = vmatprep.subr.mxu0 0.0
  %161 = vmatpush1.msra.mxu0 0.0
  %162 = vmatprep.subr.mxu0 0.0
  %163 = vmatpush1.msra.mxu0 0.0
  %164 = vmatprep.subr.mxu0 0.0
  %165 = vmatpush1.msra.mxu0 0.0
  %166 = vmatprep.subr.mxu0 0.0
  %167 = vmatpush1.msra.mxu0 0.0
  %168 = vmatprep.subr.mxu0 0.0
  %169 = vmatpush1.msra.mxu0 0.0
  %170 = vmatprep.subr.mxu0 0.0
  %171 = vmatpush1.msra.mxu0 0.0
  %172 = vmatprep.subr.mxu0 0.0
  %173 = vmatpush1.msra.mxu0 0.0
  %174 = vmatprep.subr.mxu0 0.0
  %175 = vmatpush1.msra.mxu0 0.0
  %176 = vmatprep.subr.mxu0 0.0
  %177 = vmatpush1.msra.mxu0 0.0
  %178 = vmatprep.subr.mxu0 0.0
  %179 = vmatpush1.msra.mxu0 0.0
  %180 = vmatprep.subr.mxu0 0.0
  %181 = vmatpush1.msra.mxu0 0.0
  %182 = vmatprep.subr.mxu0 0.0
  %183 = vmatpush1.msra.mxu0 0.0
  %184 = vmatprep.subr.mxu0 0.0
  %185 = vmatpush1.msra.mxu0 0.0
  %186 = vmatprep.subr.mxu0 0.0
  %187 = vmatpush1.msra.mxu0 0.0
  %188 = vmatprep.subr.mxu0 0.0
  %189 = vmatpush1.msra.mxu0 0.0
  %190 = vmatprep.mubr.f32.mxu0 0.0
  %191 = vmatmul.mubr.f32.gmra.mrb[0].mxu0 %v116
  %v192 = vpop.f32.mrb[0].mxu0
  %v193 = vadd.f32 0.0, %v192
  %v194 = vpop.f32.mrb[0].mxu0
  %v195 = vadd.f32 0.0, %v194
  %196 = vdwg.mxu0
  %197 = vmatprep.subr.mxu0 %v124
  %198 = vmatpush1.msra.mxu0 %v122
  %199 = vmatprep.subr.mxu0 0.0
  %200 = vmatpush1.msra.mxu0 0.0
  %201 = vmatprep.subr.mxu0 0.0
  %202 = vmatpush1.msra.mxu0 0.0
  %203 = vmatprep.subr.mxu0 0.0
  %204 = vmatpush1.msra.mxu0 0.0
  %205 = vmatprep.subr.mxu0 0.0
  %206 = vmatpush1.msra.mxu0 0.0
  %207 = vmatprep.subr.mxu0 0.0
  %208 = vmatpush1.msra.mxu0 0.0
  %209 = vmatprep.subr.mxu0 0.0
  %210 = vmatpush1.msra.mxu0 0.0
  %211 = vmatprep.subr.mxu0 0.0
  %212 = vmatpush1.msra.mxu0 0.0
  %213 = vmatprep.subr.mxu0 0.0
  %214 = vmatpush1.msra.mxu0 0.0
  %215 = vmatprep.subr.mxu0 0.0
  %216 = vmatpush1.msra.mxu0 0.0
  %217 = vmatprep.subr.mxu0 0.0
  %218 = vmatpush1.msra.mxu0 0.0
  %219 = vmatprep.subr.mxu0 0.0
  %220 = vmatpush1.msra.mxu0 0.0
  %221 = vmatprep.subr.mxu0 0.0
  %222 = vmatpush1.msra.mxu0 0.0
  %223 = vmatprep.subr.mxu0 0.0
  %224 = vmatpush1.msra.mxu0 0.0
  %225 = vmatprep.subr.mxu0 0.0
  %226 = vmatpush1.msra.mxu0 0.0
  %227 = vmatprep.subr.mxu0 0.0
  %228 = vmatpush1.msra.mxu0 0.0
  %229 = vmatprep.subr.mxu0 0.0
  %230 = vmatpush1.msra.mxu0 0.0
  %231 = vmatprep.subr.mxu0 0.0
  %232 = vmatpush1.msra.mxu0 0.0
  %233 = vmatprep.subr.mxu0 0.0
  %234 = vmatpush1.msra.mxu0 0.0
  %235 = vmatprep.subr.mxu0 0.0
  %236 = vmatpush1.msra.mxu0 0.0
  %237 = vmatprep.subr.mxu0 0.0
  %238 = vmatpush1.msra.mxu0 0.0
  %239 = vmatprep.subr.mxu0 0.0
  %240 = vmatpush1.msra.mxu0 0.0
  %241 = vmatprep.subr.mxu0 0.0
  %242 = vmatpush1.msra.mxu0 0.0
  %243 = vmatprep.subr.mxu0 0.0
  %244 = vmatpush1.msra.mxu0 0.0
  %245 = vmatprep.subr.mxu0 0.0
  %246 = vmatpush1.msra.mxu0 0.0
  %247 = vmatprep.subr.mxu0 0.0
  %248 = vmatpush1.msra.mxu0 0.0
  %249 = vmatprep.subr.mxu0 0.0
  %250 = vmatpush1.msra.mxu0 0.0
  %251 = vmatprep.subr.mxu0 0.0
  %252 = vmatpush1.msra.mxu0 0.0
  %253 = vmatprep.subr.mxu0 0.0
  %254 = vmatpush1.msra.mxu0 0.0
  %255 = vmatprep.subr.mxu0 0.0
  %256 = vmatpush1.msra.mxu0 0.0
  %257 = vmatprep.subr.mxu0 0.0
  %258 = vmatpush1.msra.mxu0 0.0
  %259 = vmatprep.subr.mxu0 0.0
  %260 = vmatpush1.msra.mxu0 0.0
  %261 = vmatprep.mubr.f32.mxu0 0.0
  %262 = vmatmul.mubr.f32.gmra.mrb[0].mxu0 %v116
  %v263 = vpop.f32.mrb[0].mxu0
  %v264 = vadd.f32 0.0, %v263
  %v265 = vpop.f32.mrb[0].mxu0
  %v266 = vadd.f32 0.0, %v265
  %267 = vdwg.mxu0
  %v270 = vcombine.high %v50, %v50
  %v271 = vcombine.high %v51, %v51
  %v273 = vsel %vm114, %v52, 0
  %v275 = vsel %vm83, %v50, 0
  %v277 = vsel %vm83, %v270, 0
  %v279 = vsel %vm83, %v51, 0
  %v281 = vsel %vm83, %v271, 0
  %283 = vmatprep.subr.mxu0 %v277
  %284 = vmatpush1.msra.mxu0 %v275
  %285 = vmatprep.subr.mxu0 0.0
  %286 = vmatpush1.msra.mxu0 0.0
  %287 = vmatprep.subr.mxu0 0.0
  %288 = vmatpush1.msra.mxu0 0.0
  %289 = vmatprep.subr.mxu0 0.0
  %290 = vmatpush1.msra.mxu0 0.0
  %291 = vmatprep.subr.mxu0 0.0
  %292 = vmatpush1.msra.mxu0 0.0
  %293 = vmatprep.subr.mxu0 0.0
  %294 = vmatpush1.msra.mxu0 0.0
  %295 = vmatprep.subr.mxu0 0.0
  %296 = vmatpush1.msra.mxu0 0.0
  %297 = vmatprep.subr.mxu0 0.0
  %298 = vmatpush1.msra.mxu0 0.0
  %299 = vmatprep.subr.mxu0 0.0
  %300 = vmatpush1.msra.mxu0 0.0
  %301 = vmatprep.subr.mxu0 0.0
  %302 = vmatpush1.msra.mxu0 0.0
  %303 = vmatprep.subr.mxu0 0.0
  %304 = vmatpush1.msra.mxu0 0.0
  %305 = vmatprep.subr.mxu0 0.0
  %306 = vmatpush1.msra.mxu0 0.0
  %307 = vmatprep.subr.mxu0 0.0
  %308 = vmatpush1.msra.mxu0 0.0
  %309 = vmatprep.subr.mxu0 0.0
  %310 = vmatpush1.msra.mxu0 0.0
  %311 = vmatprep.subr.mxu0 0.0
  %312 = vmatpush1.msra.mxu0 0.0
  %313 = vmatprep.subr.mxu0 0.0
  %314 = vmatpush1.msra.mxu0 0.0
  %315 = vmatprep.subr.mxu0 0.0
  %316 = vmatpush1.msra.mxu0 0.0
  %317 = vmatprep.subr.mxu0 0.0
  %318 = vmatpush1.msra.mxu0 0.0
  %319 = vmatprep.subr.mxu0 0.0
  %320 = vmatpush1.msra.mxu0 0.0
  %321 = vmatprep.subr.mxu0 0.0
  %322 = vmatpush1.msra.mxu0 0.0
  %323 = vmatprep.subr.mxu0 0.0
  %324 = vmatpush1.msra.mxu0 0.0
  %325 = vmatprep.subr.mxu0 0.0
  %326 = vmatpush1.msra.mxu0 0.0
  %327 = vmatprep.subr.mxu0 0.0
  %328 = vmatpush1.msra.mxu0 0.0
  %329 = vmatprep.subr.mxu0 0.0
  %330 = vmatpush1.msra.mxu0 0.0
  %331 = vmatprep.subr.mxu0 0.0
  %332 = vmatpush1.msra.mxu0 0.0
  %333 = vmatprep.subr.mxu0 0.0
  %334 = vmatpush1.msra.mxu0 0.0
  %335 = vmatprep.subr.mxu0 0.0
  %336 = vmatpush1.msra.mxu0 0.0
  %337 = vmatprep.subr.mxu0 0.0
  %338 = vmatpush1.msra.mxu0 0.0
  %339 = vmatprep.subr.mxu0 0.0
  %340 = vmatpush1.msra.mxu0 0.0
  %341 = vmatprep.subr.mxu0 0.0
  %342 = vmatpush1.msra.mxu0 0.0
  %343 = vmatprep.subr.mxu0 0.0
  %344 = vmatpush1.msra.mxu0 0.0
  %345 = vmatprep.subr.mxu0 0.0
  %346 = vmatpush1.msra.mxu0 0.0
  %347 = vmatprep.mubr.f32.mxu0 0.0
  %348 = vmatmul.mubr.f32.gmra.mrb[0].mxu0 %v273
  %v349 = vpop.f32.mrb[0].mxu0
  %v350 = vadd.f32 %v193, %v349
  %v351 = vpop.f32.mrb[0].mxu0
  %v352 = vadd.f32 %v195, %v351
  %353 = vdwg.mxu0
  %354 = vmatprep.subr.mxu0 %v281
  %355 = vmatpush1.msra.mxu0 %v279
  %356 = vmatprep.subr.mxu0 0.0
  %357 = vmatpush1.msra.mxu0 0.0
  %358 = vmatprep.subr.mxu0 0.0
  %359 = vmatpush1.msra.mxu0 0.0
  %360 = vmatprep.subr.mxu0 0.0
  %361 = vmatpush1.msra.mxu0 0.0
  %362 = vmatprep.subr.mxu0 0.0
  %363 = vmatpush1.msra.mxu0 0.0
  %364 = vmatprep.subr.mxu0 0.0
  %365 = vmatpush1.msra.mxu0 0.0
  %366 = vmatprep.subr.mxu0 0.0
  %367 = vmatpush1.msra.mxu0 0.0
  %368 = vmatprep.subr.mxu0 0.0
  %369 = vmatpush1.msra.mxu0 0.0
  %370 = vmatprep.subr.mxu0 0.0
  %371 = vmatpush1.msra.mxu0 0.0
  %372 = vmatprep.subr.mxu0 0.0
  %373 = vmatpush1.msra.mxu0 0.0
  %374 = vmatprep.subr.mxu0 0.0
  %375 = vmatpush1.msra.mxu0 0.0
  %376 = vmatprep.subr.mxu0 0.0
  %377 = vmatpush1.msra.mxu0 0.0
  %378 = vmatprep.subr.mxu0 0.0
  %379 = vmatpush1.msra.mxu0 0.0
  %380 = vmatprep.subr.mxu0 0.0
  %381 = vmatpush1.msra.mxu0 0.0
  %382 = vmatprep.subr.mxu0 0.0
  %383 = vmatpush1.msra.mxu0 0.0
  %384 = vmatprep.subr.mxu0 0.0
  %385 = vmatpush1.msra.mxu0 0.0
  %386 = vmatprep.subr.mxu0 0.0
  %387 = vmatpush1.msra.mxu0 0.0
  %388 = vmatprep.subr.mxu0 0.0
  %389 = vmatpush1.msra.mxu0 0.0
  %390 = vmatprep.subr.mxu0 0.0
  %391 = vmatpush1.msra.mxu0 0.0
  %392 = vmatprep.subr.mxu0 0.0
  %393 = vmatpush1.msra.mxu0 0.0
  %394 = vmatprep.subr.mxu0 0.0
  %395 = vmatpush1.msra.mxu0 0.0
  %396 = vmatprep.subr.mxu0 0.0
  %397 = vmatpush1.msra.mxu0 0.0
  %398 = vmatprep.subr.mxu0 0.0
  %399 = vmatpush1.msra.mxu0 0.0
  %400 = vmatprep.subr.mxu0 0.0
  %401 = vmatpush1.msra.mxu0 0.0
  %402 = vmatprep.subr.mxu0 0.0
  %403 = vmatpush1.msra.mxu0 0.0
  %404 = vmatprep.subr.mxu0 0.0
  %405 = vmatpush1.msra.mxu0 0.0
  %406 = vmatprep.subr.mxu0 0.0
  %407 = vmatpush1.msra.mxu0 0.0
  %408 = vmatprep.subr.mxu0 0.0
  %409 = vmatpush1.msra.mxu0 0.0
  %410 = vmatprep.subr.mxu0 0.0
  %411 = vmatpush1.msra.mxu0 0.0
  %412 = vmatprep.subr.mxu0 0.0
  %413 = vmatpush1.msra.mxu0 0.0
  %414 = vmatprep.subr.mxu0 0.0
  %415 = vmatpush1.msra.mxu0 0.0
  %416 = vmatprep.subr.mxu0 0.0
  %417 = vmatpush1.msra.mxu0 0.0
  %418 = vmatprep.mubr.f32.mxu0 0.0
  %419 = vmatmul.mubr.f32.gmra.mrb[0].mxu0 %v273
  %v420 = vpop.f32.mrb[0].mxu0
  %v421 = vadd.f32 %v264, %v420
  %v422 = vpop.f32.mrb[0].mxu0
  %v423 = vadd.f32 %v266, %v422
  %424 = vdwg.mxu0
  %v425 = vld [vmem:[%s1] sm:$0xff]
  %v426 = vld [vmem:[%s1 + $0x8] sm:$0xff]
  %v427 = vld [vmem:[%s1 + $0x10] sm:$0xf]
  %s428 = scalar_lea.vmem %s2, 8
  %v429 = vld [vmem:[%s428] sm:$0xf]
  %v431 = vlaneseq
  %v432 = vshrl.u32 %v431, 7
  %v433 = vsub.s32 0, %v432
  %v434 = vrot.slane %v429, %v433
  %v435 = vlaneseq
  %v436 = vshrl.u32 %v435, 7
  %v437 = vsub.s32 1, %v436
  %v438 = vrot.slane %v429, %v437
  %v439 = vlaneseq
  %v440 = vshrl.u32 %v439, 7
  %v441 = vsub.s32 2, %v440
  %v442 = vrot.slane %v429, %v441
  %v443 = vlaneseq
  %v444 = vshrl.u32 %v443, 7
  %v445 = vsub.s32 3, %v444
  %v446 = vrot.slane %v429, %v445
  %v447 = vcombine.low %v434, %v438
  %v448 = vcombine.low %v442, %v446
  %449 = vrot.lane.b32.xlu0 %v447, 2
  %v450 = vpop.permute.xlu0 %449
  %451 = vrot.lane.b32.xlu0 %v448, 2
  %v452 = vpop.permute.xlu0 %451
  %v453 = vrot.slane %v450, 4
  %v454 = vrot.slane %v452, 4
  %vm455 = vcmask 15360
  %v456 = vsel %vm455, %v453, %v450
  %v457 = vsel %vm83, %v453, %v454
  %v458 = vsel %vm455, %v457, %v452
  %v462 = vmul.f32 %v425, %v456
  %v463 = vmul.f32 %v426, %v458
  %v464 = vmul.f32 %v427, %v454
  %s465 = scalar_lea.vmem %s0, 16
  %v466 = vld [vmem:[%s465] sm:$0xff]
  %v470 = vcombine.high %v462, %v462
  %v471 = vcombine.high %v463, %v463
  %472 = vrot.lane.b32.xlu0 %v462, 126
  %v473 = vpop.permute.xlu0 %472
  %474 = vrot.lane.b32.xlu0 %v470, 126
  %v475 = vpop.permute.xlu0 %474
  %476 = vrot.lane.b32.xlu0 %v463, 126
  %v477 = vpop.permute.xlu0 %476
  %478 = vrot.lane.b32.xlu0 %v471, 126
  %v479 = vpop.permute.xlu0 %478
  %480 = vrot.lane.b32.xlu0 %v464, 126
  %v481 = vpop.permute.xlu0 %480
  %vm482 = vcmask 1031168
  %v483 = vsel %vm482, %v473, %v475
  %v484 = vsel %vm482, %v475, %v477
  %v485 = vsel %vm482, %v477, %v479
  %v486 = vsel %vm482, %v479, %v481
  %v488 = vsel %vm114, %v466, 0
  %v490 = vsel %vm83, %v483, 0
  %v492 = vsel %vm83, %v484, 0
  %v494 = vsel %vm83, %v485, 0
  %v496 = vsel %vm83, %v486, 0
  %498 = vmatprep.subr.mxu0 %v492
  %499 = vmatpush1.msra.mxu0 %v490
  %500 = vmatprep.subr.mxu0 0.0
  %501 = vmatpush1.msra.mxu0 0.0
  %502 = vmatprep.subr.mxu0 0.0
  %503 = vmatpush1.msra.mxu0 0.0
  %504 = vmatprep.subr.mxu0 0.0
  %505 = vmatpush1.msra.mxu0 0.0
  %506 = vmatprep.subr.mxu0 0.0
  %507 = vmatpush1.msra.mxu0 0.0
  %508 = vmatprep.subr.mxu0 0.0
  %509 = vmatpush1.msra.mxu0 0.0
  %510 = vmatprep.subr.mxu0 0.0
  %511 = vmatpush1.msra.mxu0 0.0
  %512 = vmatprep.subr.mxu0 0.0
  %513 = vmatpush1.msra.mxu0 0.0
  %514 = vmatprep.subr.mxu0 0.0
  %515 = vmatpush1.msra.mxu0 0.0
  %516 = vmatprep.subr.mxu0 0.0
  %517 = vmatpush1.msra.mxu0 0.0
  %518 = vmatprep.subr.mxu0 0.0
  %519 = vmatpush1.msra.mxu0 0.0
  %520 = vmatprep.subr.mxu0 0.0
  %521 = vmatpush1.msra.mxu0 0.0
  %522 = vmatprep.subr.mxu0 0.0
  %523 = vmatpush1.msra.mxu0 0.0
  %524 = vmatprep.subr.mxu0 0.0
  %525 = vmatpush1.msra.mxu0 0.0
  %526 = vmatprep.subr.mxu0 0.0
  %527 = vmatpush1.msra.mxu0 0.0
  %528 = vmatprep.subr.mxu0 0.0
  %529 = vmatpush1.msra.mxu0 0.0
  %530 = vmatprep.subr.mxu0 0.0
  %531 = vmatpush1.msra.mxu0 0.0
  %532 = vmatprep.subr.mxu0 0.0
  %533 = vmatpush1.msra.mxu0 0.0
  %534 = vmatprep.subr.mxu0 0.0
  %535 = vmatpush1.msra.mxu0 0.0
  %536 = vmatprep.subr.mxu0 0.0
  %537 = vmatpush1.msra.mxu0 0.0
  %538 = vmatprep.subr.mxu0 0.0
  %539 = vmatpush1.msra.mxu0 0.0
  %540 = vmatprep.subr.mxu0 0.0
  %541 = vmatpush1.msra.mxu0 0.0
  %542 = vmatprep.subr.mxu0 0.0
  %543 = vmatpush1.msra.mxu0 0.0
  %544 = vmatprep.subr.mxu0 0.0
  %545 = vmatpush1.msra.mxu0 0.0
  %546 = vmatprep.subr.mxu0 0.0
  %547 = vmatpush1.msra.mxu0 0.0
  %548 = vmatprep.subr.mxu0 0.0
  %549 = vmatpush1.msra.mxu0 0.0
  %550 = vmatprep.subr.mxu0 0.0
  %551 = vmatpush1.msra.mxu0 0.0
  %552 = vmatprep.subr.mxu0 0.0
  %553 = vmatpush1.msra.mxu0 0.0
  %554 = vmatprep.subr.mxu0 0.0
  %555 = vmatpush1.msra.mxu0 0.0
  %556 = vmatprep.subr.mxu0 0.0
  %557 = vmatpush1.msra.mxu0 0.0
  %558 = vmatprep.subr.mxu0 0.0
  %559 = vmatpush1.msra.mxu0 0.0
  %560 = vmatprep.subr.mxu0 0.0
  %561 = vmatpush1.msra.mxu0 0.0
  %562 = vmatprep.mubr.f32.mxu0 0.0
  %563 = vmatmul.mubr.f32.gmra.mrb[0].mxu0 %v488
  %v564 = vpop.f32.mrb[0].mxu0
  %v565 = vadd.f32 0.0, %v564
  %v566 = vpop.f32.mrb[0].mxu0
  %v567 = vadd.f32 0.0, %v566
  %568 = vdwg.mxu0
  %569 = vmatprep.subr.mxu0 %v496
  %570 = vmatpush1.msra.mxu0 %v494
  %571 = vmatprep.subr.mxu0 0.0
  %572 = vmatpush1.msra.mxu0 0.0
  %573 = vmatprep.subr.mxu0 0.0
  %574 = vmatpush1.msra.mxu0 0.0
  %575 = vmatprep.subr.mxu0 0.0
  %576 = vmatpush1.msra.mxu0 0.0
  %577 = vmatprep.subr.mxu0 0.0
  %578 = vmatpush1.msra.mxu0 0.0
  %579 = vmatprep.subr.mxu0 0.0
  %580 = vmatpush1.msra.mxu0 0.0
  %581 = vmatprep.subr.mxu0 0.0
  %582 = vmatpush1.msra.mxu0 0.0
  %583 = vmatprep.subr.mxu0 0.0
  %584 = vmatpush1.msra.mxu0 0.0
  %585 = vmatprep.subr.mxu0 0.0
  %586 = vmatpush1.msra.mxu0 0.0
  %587 = vmatprep.subr.mxu0 0.0
  %588 = vmatpush1.msra.mxu0 0.0
  %589 = vmatprep.subr.mxu0 0.0
  %590 = vmatpush1.msra.mxu0 0.0
  %591 = vmatprep.subr.mxu0 0.0
  %592 = vmatpush1.msra.mxu0 0.0
  %593 = vmatprep.subr.mxu0 0.0
  %594 = vmatpush1.msra.mxu0 0.0
  %595 = vmatprep.subr.mxu0 0.0
  %596 = vmatpush1.msra.mxu0 0.0
  %597 = vmatprep.subr.mxu0 0.0
  %598 = vmatpush1.msra.mxu0 0.0
  %599 = vmatprep.subr.mxu0 0.0
  %600 = vmatpush1.msra.mxu0 0.0
  %601 = vmatprep.subr.mxu0 0.0
  %602 = vmatpush1.msra.mxu0 0.0
  %603 = vmatprep.subr.mxu0 0.0
  %604 = vmatpush1.msra.mxu0 0.0
  %605 = vmatprep.subr.mxu0 0.0
  %606 = vmatpush1.msra.mxu0 0.0
  %607 = vmatprep.subr.mxu0 0.0
  %608 = vmatpush1.msra.mxu0 0.0
  %609 = vmatprep.subr.mxu0 0.0
  %610 = vmatpush1.msra.mxu0 0.0
  %611 = vmatprep.subr.mxu0 0.0
  %612 = vmatpush1.msra.mxu0 0.0
  %613 = vmatprep.subr.mxu0 0.0
  %614 = vmatpush1.msra.mxu0 0.0
  %615 = vmatprep.subr.mxu0 0.0
  %616 = vmatpush1.msra.mxu0 0.0
  %617 = vmatprep.subr.mxu0 0.0
  %618 = vmatpush1.msra.mxu0 0.0
  %619 = vmatprep.subr.mxu0 0.0
  %620 = vmatpush1.msra.mxu0 0.0
  %621 = vmatprep.subr.mxu0 0.0
  %622 = vmatpush1.msra.mxu0 0.0
  %623 = vmatprep.subr.mxu0 0.0
  %624 = vmatpush1.msra.mxu0 0.0
  %625 = vmatprep.subr.mxu0 0.0
  %626 = vmatpush1.msra.mxu0 0.0
  %627 = vmatprep.subr.mxu0 0.0
  %628 = vmatpush1.msra.mxu0 0.0
  %629 = vmatprep.subr.mxu0 0.0
  %630 = vmatpush1.msra.mxu0 0.0
  %631 = vmatprep.subr.mxu0 0.0
  %632 = vmatpush1.msra.mxu0 0.0
  %633 = vmatprep.mubr.f32.mxu0 0.0
  %634 = vmatmul.mubr.f32.gmra.mrb[0].mxu0 %v488
  %v635 = vpop.f32.mrb[0].mxu0
  %v636 = vadd.f32 0.0, %v635
  %v637 = vpop.f32.mrb[0].mxu0
  %v638 = vadd.f32 0.0, %v637
  %639 = vdwg.mxu0
  %v640 = vadd.f32 %v350, %v565
  %v641 = vadd.f32 %v352, %v567
  %v642 = vadd.f32 %v421, %v636
  %v643 = vadd.f32 %v423, %v638
  %v644 = vld [vmem:[%s1] sm:$0xff]
  %v645 = vld [vmem:[%s1 + $0x8] sm:$0xff]
  %v646 = vld [vmem:[%s1 + $0x10] sm:$0xf]
  %s647 = scalar_lea.vmem %s2, 12
  %v648 = vld [vmem:[%s647] sm:$0xf]
  %v650 = vlaneseq
  %v651 = vshrl.u32 %v650, 7
  %v652 = vsub.s32 0, %v651
  %v653 = vrot.slane %v648, %v652
  %v654 = vlaneseq
  %v655 = vshrl.u32 %v654, 7
  %v656 = vsub.s32 1, %v655
  %v657 = vrot.slane %v648, %v656
  %v658 = vlaneseq
  %v659 = vshrl.u32 %v658, 7
  %v660 = vsub.s32 2, %v659
  %v661 = vrot.slane %v648, %v660
  %v662 = vlaneseq
  %v663 = vshrl.u32 %v662, 7
  %v664 = vsub.s32 3, %v663
  %v665 = vrot.slane %v648, %v664
  %v666 = vcombine.low %v653, %v657
  %v667 = vcombine.low %v661, %v665
  %668 = vrot.lane.b32.xlu0 %v666, 16
  %v669 = vpop.permute.xlu0 %668
  %670 = vrot.lane.b32.xlu0 %v667, 16
  %v671 = vpop.permute.xlu0 %670
  %v672 = vrot.slane %v669, 4
  %v673 = vrot.slane %v671, 4
  %vm674 = vcmask 130048
  %v675 = vsel %vm674, %v672, %v669
  %v676 = vsel %vm83, %v672, %v673
  %v677 = vsel %vm674, %v676, %v671
  %v681 = vmul.f32 %v644, %v675
  %v682 = vmul.f32 %v645, %v677
  %v683 = vmul.f32 %v646, %v673
  %s684 = scalar_lea.vmem %s0, 24
  %v685 = vld [vmem:[%s684] sm:$0xff]
  %v689 = vcombine.high %v681, %v681
  %v690 = vcombine.high %v682, %v682
  %691 = vrot.lane.b32.xlu0 %v681, 112
  %v692 = vpop.permute.xlu0 %691
  %693 = vrot.lane.b32.xlu0 %v689, 112
  %v694 = vpop.permute.xlu0 %693
  %695 = vrot.lane.b32.xlu0 %v682, 112
  %v696 = vpop.permute.xlu0 %695
  %697 = vrot.lane.b32.xlu0 %v690, 112
  %v698 = vpop.permute.xlu0 %697
  %699 = vrot.lane.b32.xlu0 %v683, 112
  %v700 = vpop.permute.xlu0 %699
  %vm701 = vcmask 916480
  %v702 = vsel %vm701, %v692, %v694
  %v703 = vsel %vm701, %v694, %v696
  %v704 = vsel %vm701, %v696, %v698
  %v705 = vsel %vm701, %v698, %v700
  %v707 = vsel %vm114, %v685, 0
  %v709 = vsel %vm83, %v702, 0
  %v711 = vsel %vm83, %v703, 0
  %v713 = vsel %vm83, %v704, 0
  %v715 = vsel %vm83, %v705, 0
  %717 = vmatprep.subr.mxu0 %v711
  %718 = vmatpush1.msra.mxu0 %v709
  %719 = vmatprep.subr.mxu0 0.0
  %720 = vmatpush1.msra.mxu0 0.0
  %721 = vmatprep.subr.mxu0 0.0
  %722 = vmatpush1.msra.mxu0 0.0
  %723 = vmatprep.subr.mxu0 0.0
  %724 = vmatpush1.msra.mxu0 0.0
  %725 = vmatprep.subr.mxu0 0.0
  %726 = vmatpush1.msra.mxu0 0.0
  %727 = vmatprep.subr.mxu0 0.0
  %728 = vmatpush1.msra.mxu0 0.0
  %729 = vmatprep.subr.mxu0 0.0
  %730 = vmatpush1.msra.mxu0 0.0
  %731 = vmatprep.subr.mxu0 0.0
  %732 = vmatpush1.msra.mxu0 0.0
  %733 = vmatprep.subr.mxu0 0.0
  %734 = vmatpush1.msra.mxu0 0.0
  %735 = vmatprep.subr.mxu0 0.0
  %736 = vmatpush1.msra.mxu0 0.0
  %737 = vmatprep.subr.mxu0 0.0
  %738 = vmatpush1.msra.mxu0 0.0
  %739 = vmatprep.subr.mxu0 0.0
  %740 = vmatpush1.msra.mxu0 0.0
  %741 = vmatprep.subr.mxu0 0.0
  %742 = vmatpush1.msra.mxu0 0.0
  %743 = vmatprep.subr.mxu0 0.0
  %744 = vmatpush1.msra.mxu0 0.0
  %745 = vmatprep.subr.mxu0 0.0
  %746 = vmatpush1.msra.mxu0 0.0
  %747 = vmatprep.subr.mxu0 0.0
  %748 = vmatpush1.msra.mxu0 0.0
  %749 = vmatprep.subr.mxu0 0.0
  %750 = vmatpush1.msra.mxu0 0.0
  %751 = vmatprep.subr.mxu0 0.0
  %752 = vmatpush1.msra.mxu0 0.0
  %753 = vmatprep.subr.mxu0 0.0
  %754 = vmatpush1.msra.mxu0 0.0
  %755 = vmatprep.subr.mxu0 0.0
  %756 = vmatpush1.msra.mxu0 0.0
  %757 = vmatprep.subr.mxu0 0.0
  %758 = vmatpush1.msra.mxu0 0.0
  %759 = vmatprep.subr.mxu0 0.0
  %760 = vmatpush1.msra.mxu0 0.0
  %761 = vmatprep.subr.mxu0 0.0
  %762 = vmatpush1.msra.mxu0 0.0
  %763 = vmatprep.subr.mxu0 0.0
  %764 = vmatpush1.msra.mxu0 0.0
  %765 = vmatprep.subr.mxu0 0.0
  %766 = vmatpush1.msra.mxu0 0.0
  %767 = vmatprep.subr.mxu0 0.0
  %768 = vmatpush1.msra.mxu0 0.0
  %769 = vmatprep.subr.mxu0 0.0
  %770 = vmatpush1.msra.mxu0 0.0
  %771 = vmatprep.subr.mxu0 0.0
  %772 = vmatpush1.msra.mxu0 0.0
  %773 = vmatprep.subr.mxu0 0.0
  %774 = vmatpush1.msra.mxu0 0.0
  %775 = vmatprep.subr.mxu0 0.0
  %776 = vmatpush1.msra.mxu0 0.0
  %777 = vmatprep.subr.mxu0 0.0
  %778 = vmatpush1.msra.mxu0 0.0
  %779 = vmatprep.subr.mxu0 0.0
  %780 = vmatpush1.msra.mxu0 0.0
  %781 = vmatprep.mubr.f32.mxu0 0.0
  %782 = vmatmul.mubr.f32.gmra.mrb[0].mxu0 %v707
  %v783 = vpop.f32.mrb[0].mxu0
  %v784 = vadd.f32 0.0, %v783
  %v785 = vpop.f32.mrb[0].mxu0
  %v786 = vadd.f32 0.0, %v785
  %787 = vdwg.mxu0
  %788 = vmatprep.subr.mxu0 %v715
  %789 = vmatpush1.msra.mxu0 %v713
  %790 = vmatprep.subr.mxu0 0.0
  %791 = vmatpush1.msra.mxu0 0.0
  %792 = vmatprep.subr.mxu0 0.0
  %793 = vmatpush1.msra.mxu0 0.0
  %794 = vmatprep.subr.mxu0 0.0
  %795 = vmatpush1.msra.mxu0 0.0
  %796 = vmatprep.subr.mxu0 0.0
  %797 = vmatpush1.msra.mxu0 0.0
  %798 = vmatprep.subr.mxu0 0.0
  %799 = vmatpush1.msra.mxu0 0.0
  %800 = vmatprep.subr.mxu0 0.0
  %801 = vmatpush1.msra.mxu0 0.0
  %802 = vmatprep.subr.mxu0 0.0
  %803 = vmatpush1.msra.mxu0 0.0
  %804 = vmatprep.subr.mxu0 0.0
  %805 = vmatpush1.msra.mxu0 0.0
  %806 = vmatprep.subr.mxu0 0.0
  %807 = vmatpush1.msra.mxu0 0.0
  %808 = vmatprep.subr.mxu0 0.0
  %809 = vmatpush1.msra.mxu0 0.0
  %810 = vmatprep.subr.mxu0 0.0
  %811 = vmatpush1.msra.mxu0 0.0
  %812 = vmatprep.subr.mxu0 0.0
  %813 = vmatpush1.msra.mxu0 0.0
  %814 = vmatprep.subr.mxu0 0.0
  %815 = vmatpush1.msra.mxu0 0.0
  %816 = vmatprep.subr.mxu0 0.0
  %817 = vmatpush1.msra.mxu0 0.0
  %818 = vmatprep.subr.mxu0 0.0
  %819 = vmatpush1.msra.mxu0 0.0
  %820 = vmatprep.subr.mxu0 0.0
  %821 = vmatpush1.msra.mxu0 0.0
  %822 = vmatprep.subr.mxu0 0.0
  %823 = vmatpush1.msra.mxu0 0.0
  %824 = vmatprep.subr.mxu0 0.0
  %825 = vmatpush1.msra.mxu0 0.0
  %826 = vmatprep.subr.mxu0 0.0
  %827 = vmatpush1.msra.mxu0 0.0
  %828 = vmatprep.subr.mxu0 0.0
  %829 = vmatpush1.msra.mxu0 0.0
  %830 = vmatprep.subr.mxu0 0.0
  %831 = vmatpush1.msra.mxu0 0.0
  %832 = vmatprep.subr.mxu0 0.0
  %833 = vmatpush1.msra.mxu0 0.0
  %834 = vmatprep.subr.mxu0 0.0
  %835 = vmatpush1.msra.mxu0 0.0
  %836 = vmatprep.subr.mxu0 0.0
  %837 = vmatpush1.msra.mxu0 0.0
  %838 = vmatprep.subr.mxu0 0.0
  %839 = vmatpush1.msra.mxu0 0.0
  %840 = vmatprep.subr.mxu0 0.0
  %841 = vmatpush1.msra.mxu0 0.0
  %842 = vmatprep.subr.mxu0 0.0
  %843 = vmatpush1.msra.mxu0 0.0
  %844 = vmatprep.subr.mxu0 0.0
  %845 = vmatpush1.msra.mxu0 0.0
  %846 = vmatprep.subr.mxu0 0.0
  %847 = vmatpush1.msra.mxu0 0.0
  %848 = vmatprep.subr.mxu0 0.0
  %849 = vmatpush1.msra.mxu0 0.0
  %850 = vmatprep.subr.mxu0 0.0
  %851 = vmatpush1.msra.mxu0 0.0
  %852 = vmatprep.mubr.f32.mxu0 0.0
  %853 = vmatmul.mubr.f32.gmra.mrb[0].mxu0 %v707
  %v854 = vpop.f32.mrb[0].mxu0
  %v855 = vadd.f32 0.0, %v854
  %v856 = vpop.f32.mrb[0].mxu0
  %v857 = vadd.f32 0.0, %v856
  %858 = vdwg.mxu0
  %v859 = vadd.f32 %v640, %v784
  %v860 = vadd.f32 %v641, %v786
  %v861 = vadd.f32 %v642, %v855
  %v862 = vadd.f32 %v643, %v857
  %v863 = vld [vmem:[%s1] sm:$0xff]
  %v864 = vld [vmem:[%s1 + $0x8] sm:$0xff]
  %v865 = vld [vmem:[%s1 + $0x10] sm:$0xf]
  %s866 = scalar_lea.vmem %s0, 32
  %v867 = vld [vmem:[%s866] sm:$0xff]
  %v871 = vcombine.high %v863, %v863
  %v872 = vcombine.high %v864, %v864
  %873 = vrot.lane.b32.xlu0 %v863, 111
  %v874 = vpop.permute.xlu0 %873
  %875 = vrot.lane.b32.xlu0 %v871, 111
  %v876 = vpop.permute.xlu0 %875
  %877 = vrot.lane.b32.xlu0 %v864, 111
  %v878 = vpop.permute.xlu0 %877
  %879 = vrot.lane.b32.xlu0 %v872, 111
  %v880 = vpop.permute.xlu0 %879
  %881 = vrot.lane.b32.xlu0 %v865, 111
  %v882 = vpop.permute.xlu0 %881
  %vm883 = vcmask 908288
  %v884 = vsel %vm883, %v874, %v876
  %v885 = vsel %vm883, %v876, %v878
  %v886 = vsel %vm883, %v878, %v880
  %v887 = vsel %vm883, %v880, %v882
  %v889 = vsel %vm114, %v867, 0
  %v891 = vsel %vm83, %v884, 0
  %v893 = vsel %vm83, %v885, 0
  %v895 = vsel %vm83, %v886, 0
  %v897 = vsel %vm83, %v887, 0
  %899 = vmatprep.subr.mxu0 %v893
  %900 = vmatpush1.msra.mxu0 %v891
  %901 = vmatprep.subr.mxu0 0.0
  %902 = vmatpush1.msra.mxu0 0.0
  %903 = vmatprep.subr.mxu0 0.0
  %904 = vmatpush1.msra.mxu0 0.0
  %905 = vmatprep.subr.mxu0 0.0
  %906 = vmatpush1.msra.mxu0 0.0
  %907 = vmatprep.subr.mxu0 0.0
  %908 = vmatpush1.msra.mxu0 0.0
  %909 = vmatprep.subr.mxu0 0.0
  %910 = vmatpush1.msra.mxu0 0.0
  %911 = vmatprep.subr.mxu0 0.0
  %912 = vmatpush1.msra.mxu0 0.0
  %913 = vmatprep.subr.mxu0 0.0
  %914 = vmatpush1.msra.mxu0 0.0
  %915 = vmatprep.subr.mxu0 0.0
  %916 = vmatpush1.msra.mxu0 0.0
  %917 = vmatprep.subr.mxu0 0.0
  %918 = vmatpush1.msra.mxu0 0.0
  %919 = vmatprep.subr.mxu0 0.0
  %920 = vmatpush1.msra.mxu0 0.0
  %921 = vmatprep.subr.mxu0 0.0
  %922 = vmatpush1.msra.mxu0 0.0
  %923 = vmatprep.subr.mxu0 0.0
  %924 = vmatpush1.msra.mxu0 0.0
  %925 = vmatprep.subr.mxu0 0.0
  %926 = vmatpush1.msra.mxu0 0.0
  %927 = vmatprep.subr.mxu0 0.0
  %928 = vmatpush1.msra.mxu0 0.0
  %929 = vmatprep.subr.mxu0 0.0
  %930 = vmatpush1.msra.mxu0 0.0
  %931 = vmatprep.subr.mxu0 0.0
  %932 = vmatpush1.msra.mxu0 0.0
  %933 = vmatprep.subr.mxu0 0.0
  %934 = vmatpush1.msra.mxu0 0.0
  %935 = vmatprep.subr.mxu0 0.0
  %936 = vmatpush1.msra.mxu0 0.0
  %937 = vmatprep.subr.mxu0 0.0
  %938 = vmatpush1.msra.mxu0 0.0
  %939 = vmatprep.subr.mxu0 0.0
  %940 = vmatpush1.msra.mxu0 0.0
  %941 = vmatprep.subr.mxu0 0.0
  %942 = vmatpush1.msra.mxu0 0.0
  %943 = vmatprep.subr.mxu0 0.0
  %944 = vmatpush1.msra.mxu0 0.0
  %945 = vmatprep.subr.mxu0 0.0
  %946 = vmatpush1.msra.mxu0 0.0
  %947 = vmatprep.subr.mxu0 0.0
  %948 = vmatpush1.msra.mxu0 0.0
  %949 = vmatprep.subr.mxu0 0.0
  %950 = vmatpush1.msra.mxu0 0.0
  %951 = vmatprep.subr.mxu0 0.0
  %952 = vmatpush1.msra.mxu0 0.0
  %953 = vmatprep.subr.mxu0 0.0
  %954 = vmatpush1.msra.mxu0 0.0
  %955 = vmatprep.subr.mxu0 0.0
  %956 = vmatpush1.msra.mxu0 0.0
  %957 = vmatprep.subr.mxu0 0.0
  %958 = vmatpush1.msra.mxu0 0.0
  %959 = vmatprep.subr.mxu0 0.0
  %960 = vmatpush1.msra.mxu0 0.0
  %961 = vmatprep.subr.mxu0 0.0
  %962 = vmatpush1.msra.mxu0 0.0
  %963 = vmatprep.mubr.f32.mxu0 0.0
  %964 = vmatmul.mubr.f32.gmra.mrb[0].mxu0 %v889
  %v965 = vpop.f32.mrb[0].mxu0
  %v966 = vadd.f32 0.0, %v965
  %v967 = vpop.f32.mrb[0].mxu0
  %v968 = vadd.f32 0.0, %v967
  %969 = vdwg.mxu0
  %970 = vmatprep.subr.mxu0 %v897
  %971 = vmatpush1.msra.mxu0 %v895
  %972 = vmatprep.subr.mxu0 0.0
  %973 = vmatpush1.msra.mxu0 0.0
  %974 = vmatprep.subr.mxu0 0.0
  %975 = vmatpush1.msra.mxu0 0.0
  %976 = vmatprep.subr.mxu0 0.0
  %977 = vmatpush1.msra.mxu0 0.0
  %978 = vmatprep.subr.mxu0 0.0
  %979 = vmatpush1.msra.mxu0 0.0
  %980 = vmatprep.subr.mxu0 0.0
  %981 = vmatpush1.msra.mxu0 0.0
  %982 = vmatprep.subr.mxu0 0.0
  %983 = vmatpush1.msra.mxu0 0.0
  %984 = vmatprep.subr.mxu0 0.0
  %985 = vmatpush1.msra.mxu0 0.0
  %986 = vmatprep.subr.mxu0 0.0
  %987 = vmatpush1.msra.mxu0 0.0
  %988 = vmatprep.subr.mxu0 0.0
  %989 = vmatpush1.msra.mxu0 0.0
  %990 = vmatprep.subr.mxu0 0.0
  %991 = vmatpush1.msra.mxu0 0.0
  %992 = vmatprep.subr.mxu0 0.0
  %993 = vmatpush1.msra.mxu0 0.0
  %994 = vmatprep.subr.mxu0 0.0
  %995 = vmatpush1.msra.mxu0 0.0
  %996 = vmatprep.subr.mxu0 0.0
  %997 = vmatpush1.msra.mxu0 0.0
  %998 = vmatprep.subr.mxu0 0.0
  %999 = vmatpush1.msra.mxu0 0.0
  %1000 = vmatprep.subr.mxu0 0.0
  %1001 = vmatpush1.msra.mxu0 0.0
  %1002 = vmatprep.subr.mxu0 0.0
  %1003 = vmatpush1.msra.mxu0 0.0
  %1004 = vmatprep.subr.mxu0 0.0
  %1005 = vmatpush1.msra.mxu0 0.0
  %1006 = vmatprep.subr.mxu0 0.0
  %1007 = vmatpush1.msra.mxu0 0.0
  %1008 = vmatprep.subr.mxu0 0.0
  %1009 = vmatpush1.msra.mxu0 0.0
  %1010 = vmatprep.subr.mxu0 0.0
  %1011 = vmatpush1.msra.mxu0 0.0
  %1012 = vmatprep.subr.mxu0 0.0
  %1013 = vmatpush1.msra.mxu0 0.0
  %1014 = vmatprep.subr.mxu0 0.0
  %1015 = vmatpush1.msra.mxu0 0.0
  %1016 = vmatprep.subr.mxu0 0.0
  %1017 = vmatpush1.msra.mxu0 0.0
  %1018 = vmatprep.subr.mxu0 0.0
  %1019 = vmatpush1.msra.mxu0 0.0
  %1020 = vmatprep.subr.mxu0 0.0
  %1021 = vmatpush1.msra.mxu0 0.0
  %1022 = vmatprep.subr.mxu0 0.0
  %1023 = vmatpush1.msra.mxu0 0.0
  %1024 = vmatprep.subr.mxu0 0.0
  %1025 = vmatpush1.msra.mxu0 0.0
  %1026 = vmatprep.subr.mxu0 0.0
  %1027 = vmatpush1.msra.mxu0 0.0
  %1028 = vmatprep.subr.mxu0 0.0
  %1029 = vmatpush1.msra.mxu0 0.0
  %1030 = vmatprep.subr.mxu0 0.0
  %1031 = vmatpush1.msra.mxu0 0.0
  %1032 = vmatprep.subr.mxu0 0.0
  %1033 = vmatpush1.msra.mxu0 0.0
  %1034 = vmatprep.mubr.f32.mxu0 0.0
  %1035 = vmatmul.mubr.f32.gmra.mrb[0].mxu0 %v889
  %v1036 = vpop.f32.mrb[0].mxu0
  %v1037 = vadd.f32 0.0, %v1036
  %v1038 = vpop.f32.mrb[0].mxu0
  %v1039 = vadd.f32 0.0, %v1038
  %1040 = vdwg.mxu0
  %v1041 = vadd.f32 %v859, %v966
  %v1042 = vadd.f32 %v860, %v968
  %v1043 = vadd.f32 %v861, %v1037
  %v1044 = vadd.f32 %v862, %v1039
  %v1045 = vld [vmem:[%s1] sm:$0xff]
  %v1046 = vld [vmem:[%s1 + $0x8] sm:$0xff]
  %v1047 = vld [vmem:[%s1 + $0x10] sm:$0xf]
  %s1048 = scalar_lea.vmem %s2, 20
  %v1049 = vld [vmem:[%s1048] sm:$0xf]
  %v1051 = vlaneseq
  %v1052 = vshrl.u32 %v1051, 7
  %v1053 = vsub.s32 0, %v1052
  %v1054 = vrot.slane %v1049, %v1053
  %v1055 = vlaneseq
  %v1056 = vshrl.u32 %v1055, 7
  %v1057 = vsub.s32 1, %v1056
  %v1058 = vrot.slane %v1049, %v1057
  %v1059 = vlaneseq
  %v1060 = vshrl.u32 %v1059, 7
  %v1061 = vsub.s32 2, %v1060
  %v1062 = vrot.slane %v1049, %v1061
  %v1063 = vlaneseq
  %v1064 = vshrl.u32 %v1063, 7
  %v1065 = vsub.s32 3, %v1064
  %v1066 = vrot.slane %v1049, %v1065
  %v1067 = vcombine.low %v1054, %v1058
  %v1068 = vcombine.low %v1062, %v1066
  %1069 = vrot.lane.b32.xlu0 %v1067, 18
  %v1070 = vpop.permute.xlu0 %1069
  %1071 = vrot.lane.b32.xlu0 %v1068, 18
  %v1072 = vpop.permute.xlu0 %1071
  %v1073 = vrot.slane %v1070, 4
  %v1074 = vrot.slane %v1072, 4
  %vm1075 = vcmask 146432
  %v1076 = vsel %vm1075, %v1073, %v1070
  %v1077 = vsel %vm83, %v1073, %v1074
  %v1078 = vsel %vm1075, %v1077, %v1072
  %v1082 = vmul.f32 %v1045, %v1076
  %v1083 = vmul.f32 %v1046, %v1078
  %v1084 = vmul.f32 %v1047, %v1074
  %s1085 = scalar_lea.vmem %s0, 40
  %v1086 = vld [vmem:[%s1085] sm:$0xff]
  %v1090 = vcombine.high %v1082, %v1082
  %v1091 = vcombine.high %v1083, %v1083
  %1092 = vrot.lane.b32.xlu0 %v1082, 110
  %v1093 = vpop.permute.xlu0 %1092
  %1094 = vrot.lane.b32.xlu0 %v1090, 110
  %v1095 = vpop.permute.xlu0 %1094
  %1096 = vrot.lane.b32.xlu0 %v1083, 110
  %v1097 = vpop.permute.xlu0 %1096
  %1098 = vrot.lane.b32.xlu0 %v1091, 110
  %v1099 = vpop.permute.xlu0 %1098
  %1100 = vrot.lane.b32.xlu0 %v1084, 110
  %v1101 = vpop.permute.xlu0 %1100
  %vm1102 = vcmask 900096
  %v1103 = vsel %vm1102, %v1093, %v1095
  %v1104 = vsel %vm1102, %v1095, %v1097
  %v1105 = vsel %vm1102, %v1097, %v1099
  %v1106 = vsel %vm1102, %v1099, %v1101
  %v1108 = vsel %vm114, %v1086, 0
  %v1110 = vsel %vm83, %v1103, 0
  %v1112 = vsel %vm83, %v1104, 0
  %v1114 = vsel %vm83, %v1105, 0
  %v1116 = vsel %vm83, %v1106, 0
  %1118 = vmatprep.subr.mxu0 %v1112
  %1119 = vmatpush1.msra.mxu0 %v1110
  %1120 = vmatprep.subr.mxu0 0.0
  %1121 = vmatpush1.msra.mxu0 0.0
  %1122 = vmatprep.subr.mxu0 0.0
  %1123 = vmatpush1.msra.mxu0 0.0
  %1124 = vmatprep.subr.mxu0 0.0
  %1125 = vmatpush1.msra.mxu0 0.0
  %1126 = vmatprep.subr.mxu0 0.0
  %1127 = vmatpush1.msra.mxu0 0.0
  %1128 = vmatprep.subr.mxu0 0.0
  %1129 = vmatpush1.msra.mxu0 0.0
  %1130 = vmatprep.subr.mxu0 0.0
  %1131 = vmatpush1.msra.mxu0 0.0
  %1132 = vmatprep.subr.mxu0 0.0
  %1133 = vmatpush1.msra.mxu0 0.0
  %1134 = vmatprep.subr.mxu0 0.0
  %1135 = vmatpush1.msra.mxu0 0.0
  %1136 = vmatprep.subr.mxu0 0.0
  %1137 = vmatpush1.msra.mxu0 0.0
  %1138 = vmatprep.subr.mxu0 0.0
  %1139 = vmatpush1.msra.mxu0 0.0
  %1140 = vmatprep.subr.mxu0 0.0
  %1141 = vmatpush1.msra.mxu0 0.0
  %1142 = vmatprep.subr.mxu0 0.0
  %1143 = vmatpush1.msra.mxu0 0.0
  %1144 = vmatprep.subr.mxu0 0.0
  %1145 = vmatpush1.msra.mxu0 0.0
  %1146 = vmatprep.subr.mxu0 0.0
  %1147 = vmatpush1.msra.mxu0 0.0
  %1148 = vmatprep.subr.mxu0 0.0
  %1149 = vmatpush1.msra.mxu0 0.0
  %1150 = vmatprep.subr.mxu0 0.0
  %1151 = vmatpush1.msra.mxu0 0.0
  %1152 = vmatprep.subr.mxu0 0.0
  %1153 = vmatpush1.msra.mxu0 0.0
  %1154 = vmatprep.subr.mxu0 0.0
  %1155 = vmatpush1.msra.mxu0 0.0
  %1156 = vmatprep.subr.mxu0 0.0
  %1157 = vmatpush1.msra.mxu0 0.0
  %1158 = vmatprep.subr.mxu0 0.0
  %1159 = vmatpush1.msra.mxu0 0.0
  %1160 = vmatprep.subr.mxu0 0.0
  %1161 = vmatpush1.msra.mxu0 0.0
  %1162 = vmatprep.subr.mxu0 0.0
  %1163 = vmatpush1.msra.mxu0 0.0
  %1164 = vmatprep.subr.mxu0 0.0
  %1165 = vmatpush1.msra.mxu0 0.0
  %1166 = vmatprep.subr.mxu0 0.0
  %1167 = vmatpush1.msra.mxu0 0.0
  %1168 = vmatprep.subr.mxu0 0.0
  %1169 = vmatpush1.msra.mxu0 0.0
  %1170 = vmatprep.subr.mxu0 0.0
  %1171 = vmatpush1.msra.mxu0 0.0
  %1172 = vmatprep.subr.mxu0 0.0
  %1173 = vmatpush1.msra.mxu0 0.0
  %1174 = vmatprep.subr.mxu0 0.0
  %1175 = vmatpush1.msra.mxu0 0.0
  %1176 = vmatprep.subr.mxu0 0.0
  %1177 = vmatpush1.msra.mxu0 0.0
  %1178 = vmatprep.subr.mxu0 0.0
  %1179 = vmatpush1.msra.mxu0 0.0
  %1180 = vmatprep.subr.mxu0 0.0
  %1181 = vmatpush1.msra.mxu0 0.0
  %1182 = vmatprep.mubr.f32.mxu0 0.0
  %1183 = vmatmul.mubr.f32.gmra.mrb[0].mxu0 %v1108
  %v1184 = vpop.f32.mrb[0].mxu0
  %v1185 = vadd.f32 0.0, %v1184
  %v1186 = vpop.f32.mrb[0].mxu0
  %v1187 = vadd.f32 0.0, %v1186
  %1188 = vdwg.mxu0
  %1189 = vmatprep.subr.mxu0 %v1116
  %1190 = vmatpush1.msra.mxu0 %v1114
  %1191 = vmatprep.subr.mxu0 0.0
  %1192 = vmatpush1.msra.mxu0 0.0
  %1193 = vmatprep.subr.mxu0 0.0
  %1194 = vmatpush1.msra.mxu0 0.0
  %1195 = vmatprep.subr.mxu0 0.0
  %1196 = vmatpush1.msra.mxu0 0.0
  %1197 = vmatprep.subr.mxu0 0.0
  %1198 = vmatpush1.msra.mxu0 0.0
  %1199 = vmatprep.subr.mxu0 0.0
  %1200 = vmatpush1.msra.mxu0 0.0
  %1201 = vmatprep.subr.mxu0 0.0
  %1202 = vmatpush1.msra.mxu0 0.0
  %1203 = vmatprep.subr.mxu0 0.0
  %1204 = vmatpush1.msra.mxu0 0.0
  %1205 = vmatprep.subr.mxu0 0.0
  %1206 = vmatpush1.msra.mxu0 0.0
  %1207 = vmatprep.subr.mxu0 0.0
  %1208 = vmatpush1.msra.mxu0 0.0
  %1209 = vmatprep.subr.mxu0 0.0
  %1210 = vmatpush1.msra.mxu0 0.0
  %1211 = vmatprep.subr.mxu0 0.0
  %1212 = vmatpush1.msra.mxu0 0.0
  %1213 = vmatprep.subr.mxu0 0.0
  %1214 = vmatpush1.msra.mxu0 0.0
  %1215 = vmatprep.subr.mxu0 0.0
  %1216 = vmatpush1.msra.mxu0 0.0
  %1217 = vmatprep.subr.mxu0 0.0
  %1218 = vmatpush1.msra.mxu0 0.0
  %1219 = vmatprep.subr.mxu0 0.0
  %1220 = vmatpush1.msra.mxu0 0.0
  %1221 = vmatprep.subr.mxu0 0.0
  %1222 = vmatpush1.msra.mxu0 0.0
  %1223 = vmatprep.subr.mxu0 0.0
  %1224 = vmatpush1.msra.mxu0 0.0
  %1225 = vmatprep.subr.mxu0 0.0
  %1226 = vmatpush1.msra.mxu0 0.0
  %1227 = vmatprep.subr.mxu0 0.0
  %1228 = vmatpush1.msra.mxu0 0.0
  %1229 = vmatprep.subr.mxu0 0.0
  %1230 = vmatpush1.msra.mxu0 0.0
  %1231 = vmatprep.subr.mxu0 0.0
  %1232 = vmatpush1.msra.mxu0 0.0
  %1233 = vmatprep.subr.mxu0 0.0
  %1234 = vmatpush1.msra.mxu0 0.0
  %1235 = vmatprep.subr.mxu0 0.0
  %1236 = vmatpush1.msra.mxu0 0.0
  %1237 = vmatprep.subr.mxu0 0.0
  %1238 = vmatpush1.msra.mxu0 0.0
  %1239 = vmatprep.subr.mxu0 0.0
  %1240 = vmatpush1.msra.mxu0 0.0
  %1241 = vmatprep.subr.mxu0 0.0
  %1242 = vmatpush1.msra.mxu0 0.0
  %1243 = vmatprep.subr.mxu0 0.0
  %1244 = vmatpush1.msra.mxu0 0.0
  %1245 = vmatprep.subr.mxu0 0.0
  %1246 = vmatpush1.msra.mxu0 0.0
  %1247 = vmatprep.subr.mxu0 0.0
  %1248 = vmatpush1.msra.mxu0 0.0
  %1249 = vmatprep.subr.mxu0 0.0
  %1250 = vmatpush1.msra.mxu0 0.0
  %1251 = vmatprep.subr.mxu0 0.0
  %1252 = vmatpush1.msra.mxu0 0.0
  %1253 = vmatprep.mubr.f32.mxu0 0.0
  %1254 = vmatmul.mubr.f32.gmra.mrb[0].mxu0 %v1108
  %v1255 = vpop.f32.mrb[0].mxu0
  %v1256 = vadd.f32 0.0, %v1255
  %v1257 = vpop.f32.mrb[0].mxu0
  %v1258 = vadd.f32 0.0, %v1257
  %1259 = vdwg.mxu0
  %v1260 = vadd.f32 %v1041, %v1185
  %v1261 = vadd.f32 %v1042, %v1187
  %v1262 = vadd.f32 %v1043, %v1256
  %v1263 = vadd.f32 %v1044, %v1258
  %v1264 = vld [vmem:[%s1] sm:$0xff]
  %v1265 = vld [vmem:[%s1 + $0x8] sm:$0xff]
  %v1266 = vld [vmem:[%s1 + $0x10] sm:$0xf]
  %s1267 = scalar_lea.vmem %s2, 24
  %v1268 = vld [vmem:[%s1267] sm:$0xf]
  %v1270 = vlaneseq
  %v1271 = vshrl.u32 %v1270, 7
  %v1272 = vsub.s32 0, %v1271
  %v1273 = vrot.slane %v1268, %v1272
  %v1274 = vlaneseq
  %v1275 = vshrl.u32 %v1274, 7
  %v1276 = vsub.s32 1, %v1275
  %v1277 = vrot.slane %v1268, %v1276
  %v1278 = vlaneseq
  %v1279 = vshrl.u32 %v1278, 7
  %v1280 = vsub.s32 2, %v1279
  %v1281 = vrot.slane %v1268, %v1280
  %v1282 = vlaneseq
  %v1283 = vshrl.u32 %v1282, 7
  %v1284 = vsub.s32 3, %v1283
  %v1285 = vrot.slane %v1268, %v1284
  %v1286 = vcombine.low %v1273, %v1277
  %v1287 = vcombine.low %v1281, %v1285
  %1288 = vrot.lane.b32.xlu0 %v1286, 32
  %v1289 = vpop.permute.xlu0 %1288
  %1290 = vrot.lane.b32.xlu0 %v1287, 32
  %v1291 = vpop.permute.xlu0 %1290
  %v1292 = vrot.slane %v1289, 4
  %v1293 = vrot.slane %v1291, 4
  %vm1294 = vcmask 261120
  %v1295 = vsel %vm1294, %v1292, %v1289
  %v1296 = vsel %vm83, %v1292, %v1293
  %v1297 = vsel %vm1294, %v1296, %v1291
  %v1301 = vmul.f32 %v1264, %v1295
  %v1302 = vmul.f32 %v1265, %v1297
  %v1303 = vmul.f32 %v1266, %v1293
  %s1304 = scalar_lea.vmem %s0, 48
  %v1305 = vld [vmem:[%s1304] sm:$0xff]
  %v1309 = vcombine.high %v1301, %v1301
  %v1310 = vcombine.high %v1302, %v1302
  %1311 = vrot.lane.b32.xlu0 %v1301, 96
  %v1312 = vpop.permute.xlu0 %1311
  %1313 = vrot.lane.b32.xlu0 %v1309, 96
  %v1314 = vpop.permute.xlu0 %1313
  %1315 = vrot.lane.b32.xlu0 %v1302, 96
  %v1316 = vpop.permute.xlu0 %1315
  %1317 = vrot.lane.b32.xlu0 %v1310, 96
  %v1318 = vpop.permute.xlu0 %1317
  %1319 = vrot.lane.b32.xlu0 %v1303, 96
  %v1320 = vpop.permute.xlu0 %1319
  %vm1321 = vcmask 785408
  %v1322 = vsel %vm1321, %v1312, %v1314
  %v1323 = vsel %vm1321, %v1314, %v1316
  %v1324 = vsel %vm1321, %v1316, %v1318
  %v1325 = vsel %vm1321, %v1318, %v1320
  %v1327 = vsel %vm114, %v1305, 0
  %v1329 = vsel %vm83, %v1322, 0
  %v1331 = vsel %vm83, %v1323, 0
  %v1333 = vsel %vm83, %v1324, 0
  %v1335 = vsel %vm83, %v1325, 0
  %1337 = vmatprep.subr.mxu0 %v1331
  %1338 = vmatpush1.msra.mxu0 %v1329
  %1339 = vmatprep.subr.mxu0 0.0
  %1340 = vmatpush1.msra.mxu0 0.0
  %1341 = vmatprep.subr.mxu0 0.0
  %1342 = vmatpush1.msra.mxu0 0.0
  %1343 = vmatprep.subr.mxu0 0.0
  %1344 = vmatpush1.msra.mxu0 0.0
  %1345 = vmatprep.subr.mxu0 0.0
  %1346 = vmatpush1.msra.mxu0 0.0
  %1347 = vmatprep.subr.mxu0 0.0
  %1348 = vmatpush1.msra.mxu0 0.0
  %1349 = vmatprep.subr.mxu0 0.0
  %1350 = vmatpush1.msra.mxu0 0.0
  %1351 = vmatprep.subr.mxu0 0.0
  %1352 = vmatpush1.msra.mxu0 0.0
  %1353 = vmatprep.subr.mxu0 0.0
  %1354 = vmatpush1.msra.mxu0 0.0
  %1355 = vmatprep.subr.mxu0 0.0
  %1356 = vmatpush1.msra.mxu0 0.0
  %1357 = vmatprep.subr.mxu0 0.0
  %1358 = vmatpush1.msra.mxu0 0.0
  %1359 = vmatprep.subr.mxu0 0.0
  %1360 = vmatpush1.msra.mxu0 0.0
  %1361 = vmatprep.subr.mxu0 0.0
  %1362 = vmatpush1.msra.mxu0 0.0
  %1363 = vmatprep.subr.mxu0 0.0
  %1364 = vmatpush1.msra.mxu0 0.0
  %1365 = vmatprep.subr.mxu0 0.0
  %1366 = vmatpush1.msra.mxu0 0.0
  %1367 = vmatprep.subr.mxu0 0.0
  %1368 = vmatpush1.msra.mxu0 0.0
  %1369 = vmatprep.subr.mxu0 0.0
  %1370 = vmatpush1.msra.mxu0 0.0
  %1371 = vmatprep.subr.mxu0 0.0
  %1372 = vmatpush1.msra.mxu0 0.0
  %1373 = vmatprep.subr.mxu0 0.0
  %1374 = vmatpush1.msra.mxu0 0.0
  %1375 = vmatprep.subr.mxu0 0.0
  %1376 = vmatpush1.msra.mxu0 0.0
  %1377 = vmatprep.subr.mxu0 0.0
  %1378 = vmatpush1.msra.mxu0 0.0
  %1379 = vmatprep.subr.mxu0 0.0
  %1380 = vmatpush1.msra.mxu0 0.0
  %1381 = vmatprep.subr.mxu0 0.0
  %1382 = vmatpush1.msra.mxu0 0.0
  %1383 = vmatprep.subr.mxu0 0.0
  %1384 = vmatpush1.msra.mxu0 0.0
  %1385 = vmatprep.subr.mxu0 0.0
  %1386 = vmatpush1.msra.mxu0 0.0
  %1387 = vmatprep.subr.mxu0 0.0
  %1388 = vmatpush1.msra.mxu0 0.0
  %1389 = vmatprep.subr.mxu0 0.0
  %1390 = vmatpush1.msra.mxu0 0.0
  %1391 = vmatprep.subr.mxu0 0.0
  %1392 = vmatpush1.msra.mxu0 0.0
  %1393 = vmatprep.subr.mxu0 0.0
  %1394 = vmatpush1.msra.mxu0 0.0
  %1395 = vmatprep.subr.mxu0 0.0
  %1396 = vmatpush1.msra.mxu0 0.0
  %1397 = vmatprep.subr.mxu0 0.0
  %1398 = vmatpush1.msra.mxu0 0.0
  %1399 = vmatprep.subr.mxu0 0.0
  %1400 = vmatpush1.msra.mxu0 0.0
  %1401 = vmatprep.mubr.f32.mxu0 0.0
  %1402 = vmatmul.mubr.f32.gmra.mrb[0].mxu0 %v1327
  %v1403 = vpop.f32.mrb[0].mxu0
  %v1404 = vadd.f32 0.0, %v1403
  %v1405 = vpop.f32.mrb[0].mxu0
  %v1406 = vadd.f32 0.0, %v1405
  %1407 = vdwg.mxu0
  %1408 = vmatprep.subr.mxu0 %v1335
  %1409 = vmatpush1.msra.mxu0 %v1333
  %1410 = vmatprep.subr.mxu0 0.0
  %1411 = vmatpush1.msra.mxu0 0.0
  %1412 = vmatprep.subr.mxu0 0.0
  %1413 = vmatpush1.msra.mxu0 0.0
  %1414 = vmatprep.subr.mxu0 0.0
  %1415 = vmatpush1.msra.mxu0 0.0
  %1416 = vmatprep.subr.mxu0 0.0
  %1417 = vmatpush1.msra.mxu0 0.0
  %1418 = vmatprep.subr.mxu0 0.0
  %1419 = vmatpush1.msra.mxu0 0.0
  %1420 = vmatprep.subr.mxu0 0.0
  %1421 = vmatpush1.msra.mxu0 0.0
  %1422 = vmatprep.subr.mxu0 0.0
  %1423 = vmatpush1.msra.mxu0 0.0
  %1424 = vmatprep.subr.mxu0 0.0
  %1425 = vmatpush1.msra.mxu0 0.0
  %1426 = vmatprep.subr.mxu0 0.0
  %1427 = vmatpush1.msra.mxu0 0.0
  %1428 = vmatprep.subr.mxu0 0.0
  %1429 = vmatpush1.msra.mxu0 0.0
  %1430 = vmatprep.subr.mxu0 0.0
  %1431 = vmatpush1.msra.mxu0 0.0
  %1432 = vmatprep.subr.mxu0 0.0
  %1433 = vmatpush1.msra.mxu0 0.0
  %1434 = vmatprep.subr.mxu0 0.0
  %1435 = vmatpush1.msra.mxu0 0.0
  %1436 = vmatprep.subr.mxu0 0.0
  %1437 = vmatpush1.msra.mxu0 0.0
  %1438 = vmatprep.subr.mxu0 0.0
  %1439 = vmatpush1.msra.mxu0 0.0
  %1440 = vmatprep.subr.mxu0 0.0
  %1441 = vmatpush1.msra.mxu0 0.0
  %1442 = vmatprep.subr.mxu0 0.0
  %1443 = vmatpush1.msra.mxu0 0.0
  %1444 = vmatprep.subr.mxu0 0.0
  %1445 = vmatpush1.msra.mxu0 0.0
  %1446 = vmatprep.subr.mxu0 0.0
  %1447 = vmatpush1.msra.mxu0 0.0
  %1448 = vmatprep.subr.mxu0 0.0
  %1449 = vmatpush1.msra.mxu0 0.0
  %1450 = vmatprep.subr.mxu0 0.0
  %1451 = vmatpush1.msra.mxu0 0.0
  %1452 = vmatprep.subr.mxu0 0.0
  %1453 = vmatpush1.msra.mxu0 0.0
  %1454 = vmatprep.subr.mxu0 0.0
  %1455 = vmatpush1.msra.mxu0 0.0
  %1456 = vmatprep.subr.mxu0 0.0
  %1457 = vmatpush1.msra.mxu0 0.0
  %1458 = vmatprep.subr.mxu0 0.0
  %1459 = vmatpush1.msra.mxu0 0.0
  %1460 = vmatprep.subr.mxu0 0.0
  %1461 = vmatpush1.msra.mxu0 0.0
  %1462 = vmatprep.subr.mxu0 0.0
  %1463 = vmatpush1.msra.mxu0 0.0
  %1464 = vmatprep.subr.mxu0 0.0
  %1465 = vmatpush1.msra.mxu0 0.0
  %1466 = vmatprep.subr.mxu0 0.0
  %1467 = vmatpush1.msra.mxu0 0.0
  %1468 = vmatprep.subr.mxu0 0.0
  %1469 = vmatpush1.msra.mxu0 0.0
  %1470 = vmatprep.subr.mxu0 0.0
  %1471 = vmatpush1.msra.mxu0 0.0
  %1472 = vmatprep.mubr.f32.mxu0 0.0
  %1473 = vmatmul.mubr.f32.gmra.mrb[0].mxu0 %v1327
  %v1474 = vpop.f32.mrb[0].mxu0
  %v1475 = vadd.f32 0.0, %v1474
  %v1476 = vpop.f32.mrb[0].mxu0
  %v1477 = vadd.f32 0.0, %v1476
  %1478 = vdwg.mxu0
  %v1479 = vadd.f32 %v1260, %v1404
  %v1480 = vadd.f32 %v1261, %v1406
  %v1481 = vadd.f32 %v1262, %v1475
  %v1482 = vadd.f32 %v1263, %v1477
  %v1483 = vld [vmem:[%s1] sm:$0xff]
  %v1484 = vld [vmem:[%s1 + $0x8] sm:$0xff]
  %v1485 = vld [vmem:[%s1 + $0x10] sm:$0xf]
  %s1486 = scalar_lea.vmem %s2, 28
  %v1487 = vld [vmem:[%s1486] sm:$0xf]
  %v1489 = vlaneseq
  %v1490 = vshrl.u32 %v1489, 7
  %v1491 = vsub.s32 0, %v1490
  %v1492 = vrot.slane %v1487, %v1491
  %v1493 = vlaneseq
  %v1494 = vshrl.u32 %v1493, 7
  %v1495 = vsub.s32 1, %v1494
  %v1496 = vrot.slane %v1487, %v1495
  %v1497 = vlaneseq
  %v1498 = vshrl.u32 %v1497, 7
  %v1499 = vsub.s32 2, %v1498
  %v1500 = vrot.slane %v1487, %v1499
  %v1501 = vlaneseq
  %v1502 = vshrl.u32 %v1501, 7
  %v1503 = vsub.s32 3, %v1502
  %v1504 = vrot.slane %v1487, %v1503
  %v1505 = vcombine.low %v1492, %v1496
  %v1506 = vcombine.low %v1500, %v1504
  %1507 = vrot.lane.b32.xlu0 %v1505, 33
  %v1508 = vpop.permute.xlu0 %1507
  %1509 = vrot.lane.b32.xlu0 %v1506, 33
  %v1510 = vpop.permute.xlu0 %1509
  %v1511 = vrot.slane %v1508, 4
  %v1512 = vrot.slane %v1510, 4
  %vm1513 = vcmask 269312
  %v1514 = vsel %vm1513, %v1511, %v1508
  %v1515 = vsel %vm83, %v1511, %v1512
  %v1516 = vsel %vm1513, %v1515, %v1510
  %v1520 = vmul.f32 %v1483, %v1514
  %v1521 = vmul.f32 %v1484, %v1516
  %v1522 = vmul.f32 %v1485, %v1512
  %s1523 = scalar_lea.vmem %s0, 56
  %v1524 = vld [vmem:[%s1523] sm:$0xff]
  %v1528 = vcombine.high %v1520, %v1520
  %v1529 = vcombine.high %v1521, %v1521
  %1530 = vrot.lane.b32.xlu0 %v1520, 95
  %v1531 = vpop.permute.xlu0 %1530
  %1532 = vrot.lane.b32.xlu0 %v1528, 95
  %v1533 = vpop.permute.xlu0 %1532
  %1534 = vrot.lane.b32.xlu0 %v1521, 95
  %v1535 = vpop.permute.xlu0 %1534
  %1536 = vrot.lane.b32.xlu0 %v1529, 95
  %v1537 = vpop.permute.xlu0 %1536
  %1538 = vrot.lane.b32.xlu0 %v1522, 95
  %v1539 = vpop.permute.xlu0 %1538
  %vm1540 = vcmask 777216
  %v1541 = vsel %vm1540, %v1531, %v1533
  %v1542 = vsel %vm1540, %v1533, %v1535
  %v1543 = vsel %vm1540, %v1535, %v1537
  %v1544 = vsel %vm1540, %v1537, %v1539
  %v1546 = vsel %vm114, %v1524, 0
  %v1548 = vsel %vm83, %v1541, 0
  %v1550 = vsel %vm83, %v1542, 0
  %v1552 = vsel %vm83, %v1543, 0
  %v1554 = vsel %vm83, %v1544, 0
  %1556 = vmatprep.subr.mxu0 %v1550
  %1557 = vmatpush1.msra.mxu0 %v1548
  %1558 = vmatprep.subr.mxu0 0.0
  %1559 = vmatpush1.msra.mxu0 0.0
  %1560 = vmatprep.subr.mxu0 0.0
  %1561 = vmatpush1.msra.mxu0 0.0
  %1562 = vmatprep.subr.mxu0 0.0
  %1563 = vmatpush1.msra.mxu0 0.0
  %1564 = vmatprep.subr.mxu0 0.0
  %1565 = vmatpush1.msra.mxu0 0.0
  %1566 = vmatprep.subr.mxu0 0.0
  %1567 = vmatpush1.msra.mxu0 0.0
  %1568 = vmatprep.subr.mxu0 0.0
  %1569 = vmatpush1.msra.mxu0 0.0
  %1570 = vmatprep.subr.mxu0 0.0
  %1571 = vmatpush1.msra.mxu0 0.0
  %1572 = vmatprep.subr.mxu0 0.0
  %1573 = vmatpush1.msra.mxu0 0.0
  %1574 = vmatprep.subr.mxu0 0.0
  %1575 = vmatpush1.msra.mxu0 0.0
  %1576 = vmatprep.subr.mxu0 0.0
  %1577 = vmatpush1.msra.mxu0 0.0
  %1578 = vmatprep.subr.mxu0 0.0
  %1579 = vmatpush1.msra.mxu0 0.0
  %1580 = vmatprep.subr.mxu0 0.0
  %1581 = vmatpush1.msra.mxu0 0.0
  %1582 = vmatprep.subr.mxu0 0.0
  %1583 = vmatpush1.msra.mxu0 0.0
  %1584 = vmatprep.subr.mxu0 0.0
  %1585 = vmatpush1.msra.mxu0 0.0
  %1586 = vmatprep.subr.mxu0 0.0
  %1587 = vmatpush1.msra.mxu0 0.0
  %1588 = vmatprep.subr.mxu0 0.0
  %1589 = vmatpush1.msra.mxu0 0.0
  %1590 = vmatprep.subr.mxu0 0.0
  %1591 = vmatpush1.msra.mxu0 0.0
  %1592 = vmatprep.subr.mxu0 0.0
  %1593 = vmatpush1.msra.mxu0 0.0
  %1594 = vmatprep.subr.mxu0 0.0
  %1595 = vmatpush1.msra.mxu0 0.0
  %1596 = vmatprep.subr.mxu0 0.0
  %1597 = vmatpush1.msra.mxu0 0.0
  %1598 = vmatprep.subr.mxu0 0.0
  %1599 = vmatpush1.msra.mxu0 0.0
  %1600 = vmatprep.subr.mxu0 0.0
  %1601 = vmatpush1.msra.mxu0 0.0
  %1602 = vmatprep.subr.mxu0 0.0
  %1603 = vmatpush1.msra.mxu0 0.0
  %1604 = vmatprep.subr.mxu0 0.0
  %1605 = vmatpush1.msra.mxu0 0.0
  %1606 = vmatprep.subr.mxu0 0.0
  %1607 = vmatpush1.msra.mxu0 0.0
  %1608 = vmatprep.subr.mxu0 0.0
  %1609 = vmatpush1.msra.mxu0 0.0
  %1610 = vmatprep.subr.mxu0 0.0
  %1611 = vmatpush1.msra.mxu0 0.0
  %1612 = vmatprep.subr.mxu0 0.0
  %1613 = vmatpush1.msra.mxu0 0.0
  %1614 = vmatprep.subr.mxu0 0.0
  %1615 = vmatpush1.msra.mxu0 0.0
  %1616 = vmatprep.subr.mxu0 0.0
  %1617 = vmatpush1.msra.mxu0 0.0
  %1618 = vmatprep.subr.mxu0 0.0
  %1619 = vmatpush1.msra.mxu0 0.0
  %1620 = vmatprep.mubr.f32.mxu0 0.0
  %1621 = vmatmul.mubr.f32.gmra.mrb[0].mxu0 %v1546
  %v1622 = vpop.f32.mrb[0].mxu0
  %v1623 = vadd.f32 0.0, %v1622
  %v1624 = vpop.f32.mrb[0].mxu0
  %v1625 = vadd.f32 0.0, %v1624
  %1626 = vdwg.mxu0
  %1627 = vmatprep.subr.mxu0 %v1554
  %1628 = vmatpush1.msra.mxu0 %v1552
  %1629 = vmatprep.subr.mxu0 0.0
  %1630 = vmatpush1.msra.mxu0 0.0
  %1631 = vmatprep.subr.mxu0 0.0
  %1632 = vmatpush1.msra.mxu0 0.0
  %1633 = vmatprep.subr.mxu0 0.0
  %1634 = vmatpush1.msra.mxu0 0.0
  %1635 = vmatprep.subr.mxu0 0.0
  %1636 = vmatpush1.msra.mxu0 0.0
  %1637 = vmatprep.subr.mxu0 0.0
  %1638 = vmatpush1.msra.mxu0 0.0
  %1639 = vmatprep.subr.mxu0 0.0
  %1640 = vmatpush1.msra.mxu0 0.0
  %1641 = vmatprep.subr.mxu0 0.0
  %1642 = vmatpush1.msra.mxu0 0.0
  %1643 = vmatprep.subr.mxu0 0.0
  %1644 = vmatpush1.msra.mxu0 0.0
  %1645 = vmatprep.subr.mxu0 0.0
  %1646 = vmatpush1.msra.mxu0 0.0
  %1647 = vmatprep.subr.mxu0 0.0
  %1648 = vmatpush1.msra.mxu0 0.0
  %1649 = vmatprep.subr.mxu0 0.0
  %1650 = vmatpush1.msra.mxu0 0.0
  %1651 = vmatprep.subr.mxu0 0.0
  %1652 = vmatpush1.msra.mxu0 0.0
  %1653 = vmatprep.subr.mxu0 0.0
  %1654 = vmatpush1.msra.mxu0 0.0
  %1655 = vmatprep.subr.mxu0 0.0
  %1656 = vmatpush1.msra.mxu0 0.0
  %1657 = vmatprep.subr.mxu0 0.0
  %1658 = vmatpush1.msra.mxu0 0.0
  %1659 = vmatprep.subr.mxu0 0.0
  %1660 = vmatpush1.msra.mxu0 0.0
  %1661 = vmatprep.subr.mxu0 0.0
  %1662 = vmatpush1.msra.mxu0 0.0
  %1663 = vmatprep.subr.mxu0 0.0
  %1664 = vmatpush1.msra.mxu0 0.0
  %1665 = vmatprep.subr.mxu0 0.0
  %1666 = vmatpush1.msra.mxu0 0.0
  %1667 = vmatprep.subr.mxu0 0.0
  %1668 = vmatpush1.msra.mxu0 0.0
  %1669 = vmatprep.subr.mxu0 0.0
  %1670 = vmatpush1.msra.mxu0 0.0
  %1671 = vmatprep.subr.mxu0 0.0
  %1672 = vmatpush1.msra.mxu0 0.0
  %1673 = vmatprep.subr.mxu0 0.0
  %1674 = vmatpush1.msra.mxu0 0.0
  %1675 = vmatprep.subr.mxu0 0.0
  %1676 = vmatpush1.msra.mxu0 0.0
  %1677 = vmatprep.subr.mxu0 0.0
  %1678 = vmatpush1.msra.mxu0 0.0
  %1679 = vmatprep.subr.mxu0 0.0
  %1680 = vmatpush1.msra.mxu0 0.0
  %1681 = vmatprep.subr.mxu0 0.0
  %1682 = vmatpush1.msra.mxu0 0.0
  %1683 = vmatprep.subr.mxu0 0.0
  %1684 = vmatpush1.msra.mxu0 0.0
  %1685 = vmatprep.subr.mxu0 0.0
  %1686 = vmatpush1.msra.mxu0 0.0
  %1687 = vmatprep.subr.mxu0 0.0
  %1688 = vmatpush1.msra.mxu0 0.0
  %1689 = vmatprep.subr.mxu0 0.0
  %1690 = vmatpush1.msra.mxu0 0.0
  %1691 = vmatprep.mubr.f32.mxu0 0.0
  %1692 = vmatmul.mubr.f32.gmra.mrb[0].mxu0 %v1546
  %v1693 = vpop.f32.mrb[0].mxu0
  %v1694 = vadd.f32 0.0, %v1693
  %v1695 = vpop.f32.mrb[0].mxu0
  %v1696 = vadd.f32 0.0, %v1695
  %1697 = vdwg.mxu0
  %v1698 = vadd.f32 %v1479, %v1623
  %v1699 = vadd.f32 %v1480, %v1625
  %v1700 = vadd.f32 %v1481, %v1694
  %v1701 = vadd.f32 %v1482, %v1696
  %v1702 = vld [vmem:[%s1] sm:$0xff]
  %v1703 = vld [vmem:[%s1 + $0x8] sm:$0xff]
  %v1704 = vld [vmem:[%s1 + $0x10] sm:$0xf]
  %s1705 = scalar_lea.vmem %s2, 32
  %v1706 = vld [vmem:[%s1705] sm:$0xf]
  %v1708 = vlaneseq
  %v1709 = vshrl.u32 %v1708, 7
  %v1710 = vsub.s32 0, %v1709
  %v1711 = vrot.slane %v1706, %v1710
  %v1712 = vlaneseq
  %v1713 = vshrl.u32 %v1712, 7
  %v1714 = vsub.s32 1, %v1713
  %v1715 = vrot.slane %v1706, %v1714
  %v1716 = vlaneseq
  %v1717 = vshrl.u32 %v1716, 7
  %v1718 = vsub.s32 2, %v1717
  %v1719 = vrot.slane %v1706, %v1718
  %v1720 = vlaneseq
  %v1721 = vshrl.u32 %v1720, 7
  %v1722 = vsub.s32 3, %v1721
  %v1723 = vrot.slane %v1706, %v1722
  %v1724 = vcombine.low %v1711, %v1715
  %v1725 = vcombine.low %v1719, %v1723
  %1726 = vrot.lane.b32.xlu0 %v1724, 34
  %v1727 = vpop.permute.xlu0 %1726
  %1728 = vrot.lane.b32.xlu0 %v1725, 34
  %v1729 = vpop.permute.xlu0 %1728
  %v1730 = vrot.slane %v1727, 4
  %v1731 = vrot.slane %v1729, 4
  %vm1732 = vcmask 277504
  %v1733 = vsel %vm1732, %v1730, %v1727
  %v1734 = vsel %vm83, %v1730, %v1731
  %v1735 = vsel %vm1732, %v1734, %v1729
  %v1739 = vmul.f32 %v1702, %v1733
  %v1740 = vmul.f32 %v1703, %v1735
  %v1741 = vmul.f32 %v1704, %v1731
  %s1742 = scalar_lea.vmem %s0, 64
  %v1743 = vld [vmem:[%s1742] sm:$0xff]
  %v1747 = vcombine.high %v1739, %v1739
  %v1748 = vcombine.high %v1740, %v1740
  %1749 = vrot.lane.b32.xlu0 %v1739, 94
  %v1750 = vpop.permute.xlu0 %1749
  %1751 = vrot.lane.b32.xlu0 %v1747, 94
  %v1752 = vpop.permute.xlu0 %1751
  %1753 = vrot.lane.b32.xlu0 %v1740, 94
  %v1754 = vpop.permute.xlu0 %1753
  %1755 = vrot.lane.b32.xlu0 %v1748, 94
  %v1756 = vpop.permute.xlu0 %1755
  %1757 = vrot.lane.b32.xlu0 %v1741, 94
  %v1758 = vpop.permute.xlu0 %1757
  %vm1759 = vcmask 769024
  %v1760 = vsel %vm1759, %v1750, %v1752
  %v1761 = vsel %vm1759, %v1752, %v1754
  %v1762 = vsel %vm1759, %v1754, %v1756
  %v1763 = vsel %vm1759, %v1756, %v1758
  %v1765 = vsel %vm114, %v1743, 0
  %v1767 = vsel %vm83, %v1760, 0
  %v1769 = vsel %vm83, %v1761, 0
  %v1771 = vsel %vm83, %v1762, 0
  %v1773 = vsel %vm83, %v1763, 0
  %1775 = vmatprep.subr.mxu0 %v1769
  %1776 = vmatpush1.msra.mxu0 %v1767
  %1777 = vmatprep.subr.mxu0 0.0
  %1778 = vmatpush1.msra.mxu0 0.0
  %1779 = vmatprep.subr.mxu0 0.0
  %1780 = vmatpush1.msra.mxu0 0.0
  %1781 = vmatprep.subr.mxu0 0.0
  %1782 = vmatpush1.msra.mxu0 0.0
  %1783 = vmatprep.subr.mxu0 0.0
  %1784 = vmatpush1.msra.mxu0 0.0
  %1785 = vmatprep.subr.mxu0 0.0
  %1786 = vmatpush1.msra.mxu0 0.0
  %1787 = vmatprep.subr.mxu0 0.0
  %1788 = vmatpush1.msra.mxu0 0.0
  %1789 = vmatprep.subr.mxu0 0.0
  %1790 = vmatpush1.msra.mxu0 0.0
  %1791 = vmatprep.subr.mxu0 0.0
  %1792 = vmatpush1.msra.mxu0 0.0
  %1793 = vmatprep.subr.mxu0 0.0
  %1794 = vmatpush1.msra.mxu0 0.0
  %1795 = vmatprep.subr.mxu0 0.0
  %1796 = vmatpush1.msra.mxu0 0.0
  %1797 = vmatprep.subr.mxu0 0.0
  %1798 = vmatpush1.msra.mxu0 0.0
  %1799 = vmatprep.subr.mxu0 0.0
  %1800 = vmatpush1.msra.mxu0 0.0
  %1801 = vmatprep.subr.mxu0 0.0
  %1802 = vmatpush1.msra.mxu0 0.0
  %1803 = vmatprep.subr.mxu0 0.0
  %1804 = vmatpush1.msra.mxu0 0.0
  %1805 = vmatprep.subr.mxu0 0.0
  %1806 = vmatpush1.msra.mxu0 0.0
  %1807 = vmatprep.subr.mxu0 0.0
  %1808 = vmatpush1.msra.mxu0 0.0
  %1809 = vmatprep.subr.mxu0 0.0
  %1810 = vmatpush1.msra.mxu0 0.0
  %1811 = vmatprep.subr.mxu0 0.0
  %1812 = vmatpush1.msra.mxu0 0.0
  %1813 = vmatprep.subr.mxu0 0.0
  %1814 = vmatpush1.msra.mxu0 0.0
  %1815 = vmatprep.subr.mxu0 0.0
  %1816 = vmatpush1.msra.mxu0 0.0
  %1817 = vmatprep.subr.mxu0 0.0
  %1818 = vmatpush1.msra.mxu0 0.0
  %1819 = vmatprep.subr.mxu0 0.0
  %1820 = vmatpush1.msra.mxu0 0.0
  %1821 = vmatprep.subr.mxu0 0.0
  %1822 = vmatpush1.msra.mxu0 0.0
  %1823 = vmatprep.subr.mxu0 0.0
  %1824 = vmatpush1.msra.mxu0 0.0
  %1825 = vmatprep.subr.mxu0 0.0
  %1826 = vmatpush1.msra.mxu0 0.0
  %1827 = vmatprep.subr.mxu0 0.0
  %1828 = vmatpush1.msra.mxu0 0.0
  %1829 = vmatprep.subr.mxu0 0.0
  %1830 = vmatpush1.msra.mxu0 0.0
  %1831 = vmatprep.subr.mxu0 0.0
  %1832 = vmatpush1.msra.mxu0 0.0
  %1833 = vmatprep.subr.mxu0 0.0
  %1834 = vmatpush1.msra.mxu0 0.0
  %1835 = vmatprep.subr.mxu0 0.0
  %1836 = vmatpush1.msra.mxu0 0.0
  %1837 = vmatprep.subr.mxu0 0.0
  %1838 = vmatpush1.msra.mxu0 0.0
  %1839 = vmatprep.mubr.f32.mxu0 0.0
  %1840 = vmatmul.mubr.f32.gmra.mrb[0].mxu0 %v1765
  %v1841 = vpop.f32.mrb[0].mxu0
  %v1842 = vadd.f32 0.0, %v1841
  %v1843 = vpop.f32.mrb[0].mxu0
  %v1844 = vadd.f32 0.0, %v1843
  %1845 = vdwg.mxu0
  %1846 = vmatprep.subr.mxu0 %v1773
  %1847 = vmatpush1.msra.mxu0 %v1771
  %1848 = vmatprep.subr.mxu0 0.0
  %1849 = vmatpush1.msra.mxu0 0.0
  %1850 = vmatprep.subr.mxu0 0.0
  %1851 = vmatpush1.msra.mxu0 0.0
  %1852 = vmatprep.subr.mxu0 0.0
  %1853 = vmatpush1.msra.mxu0 0.0
  %1854 = vmatprep.subr.mxu0 0.0
  %1855 = vmatpush1.msra.mxu0 0.0
  %1856 = vmatprep.subr.mxu0 0.0
  %1857 = vmatpush1.msra.mxu0 0.0
  %1858 = vmatprep.subr.mxu0 0.0
  %1859 = vmatpush1.msra.mxu0 0.0
  %1860 = vmatprep.subr.mxu0 0.0
  %1861 = vmatpush1.msra.mxu0 0.0
  %1862 = vmatprep.subr.mxu0 0.0
  %1863 = vmatpush1.msra.mxu0 0.0
  %1864 = vmatprep.subr.mxu0 0.0
  %1865 = vmatpush1.msra.mxu0 0.0
  %1866 = vmatprep.subr.mxu0 0.0
  %1867 = vmatpush1.msra.mxu0 0.0
  %1868 = vmatprep.subr.mxu0 0.0
  %1869 = vmatpush1.msra.mxu0 0.0
  %1870 = vmatprep.subr.mxu0 0.0
  %1871 = vmatpush1.msra.mxu0 0.0
  %1872 = vmatprep.subr.mxu0 0.0
  %1873 = vmatpush1.msra.mxu0 0.0
  %1874 = vmatprep.subr.mxu0 0.0
  %1875 = vmatpush1.msra.mxu0 0.0
  %1876 = vmatprep.subr.mxu0 0.0
  %1877 = vmatpush1.msra.mxu0 0.0
  %1878 = vmatprep.subr.mxu0 0.0
  %1879 = vmatpush1.msra.mxu0 0.0
  %1880 = vmatprep.subr.mxu0 0.0
  %1881 = vmatpush1.msra.mxu0 0.0
  %1882 = vmatprep.subr.mxu0 0.0
  %1883 = vmatpush1.msra.mxu0 0.0
  %1884 = vmatprep.subr.mxu0 0.0
  %1885 = vmatpush1.msra.mxu0 0.0
  %1886 = vmatprep.subr.mxu0 0.0
  %1887 = vmatpush1.msra.mxu0 0.0
  %1888 = vmatprep.subr.mxu0 0.0
  %1889 = vmatpush1.msra.mxu0 0.0
  %1890 = vmatprep.subr.mxu0 0.0
  %1891 = vmatpush1.msra.mxu0 0.0
  %1892 = vmatprep.subr.mxu0 0.0
  %1893 = vmatpush1.msra.mxu0 0.0
  %1894 = vmatprep.subr.mxu0 0.0
  %1895 = vmatpush1.msra.mxu0 0.0
  %1896 = vmatprep.subr.mxu0 0.0
  %1897 = vmatpush1.msra.mxu0 0.0
  %1898 = vmatprep.subr.mxu0 0.0
  %1899 = vmatpush1.msra.mxu0 0.0
  %1900 = vmatprep.subr.mxu0 0.0
  %1901 = vmatpush1.msra.mxu0 0.0
  %1902 = vmatprep.subr.mxu0 0.0
  %1903 = vmatpush1.msra.mxu0 0.0
  %1904 = vmatprep.subr.mxu0 0.0
  %1905 = vmatpush1.msra.mxu0 0.0
  %1906 = vmatprep.subr.mxu0 0.0
  %1907 = vmatpush1.msra.mxu0 0.0
  %1908 = vmatprep.subr.mxu0 0.0
  %1909 = vmatpush1.msra.mxu0 0.0
  %1910 = vmatprep.mubr.f32.mxu0 0.0
  %1911 = vmatmul.mubr.f32.gmra.mrb[0].mxu0 %v1765
  %v1912 = vpop.f32.mrb[0].mxu0
  %v1913 = vadd.f32 0.0, %v1912
  %v1914 = vpop.f32.mrb[0].mxu0
  %v1915 = vadd.f32 0.0, %v1914
  %1916 = vdwg.mxu0
  %v1917 = vadd.f32 %v1698, %v1842
  %v1918 = vadd.f32 %v1699, %v1844
  %v1919 = vadd.f32 %v1700, %v1913
  %v1920 = vadd.f32 %v1701, %v1915
  %v1921 = vld [vmem:[%s3] sm:$0xff]
  %v1922 = vld [vmem:[%s3 + $0x8] sm:$0xff]
  %v1923 = vld [vmem:[%s3 + $0x10] sm:$0xff]
  %v1924 = vld [vmem:[%s3 + $0x18] sm:$0xff]
  %v1925 = vld [vmem:[%s4] sm:$0xff]
  %v1926 = vld [vmem:[%s4 + $0x8] sm:$0xff]
  %v1927 = vld [vmem:[%s4 + $0x10] sm:$0xff]
  %v1928 = vld [vmem:[%s4 + $0x18] sm:$0xff]
  %v1929 = vmul.f32 %v1921, %v1921
  %v1930 = vmul.f32 %v1922, %v1922
  %v1931 = vmul.f32 %v1923, %v1923
  %v1932 = vmul.f32 %v1924, %v1924
  %v1933 = vmul.f32 %v1925, %v1925
  %v1934 = vmul.f32 %v1926, %v1926
  %v1935 = vmul.f32 %v1927, %v1927
  %v1936 = vmul.f32 %v1928, %v1928
  %v1937 = vadd.f32 %v1929, %v1933
  %v1938 = vadd.f32 %v1930, %v1934
  %v1939 = vadd.f32 %v1931, %v1935
  %v1940 = vadd.f32 %v1932, %v1936
  %v1941 = vrsqrt.pop %v1937
  %v1942 = vmul.f32 %v1937, %v1941
  %vm1943 = vcmp.eq.f32.partialorder %v1937, inf
  %v1944 = vsel %vm1943, %v1937, %v1942
  %vm1945 = vcmp.eq.f32.partialorder %v1937, 0.0
  %v1946 = vand.u32 %v1937, 2147483648
  %v1947 = vsel %vm1945, %v1946, %v1944
  %v1948 = vrsqrt.pop %v1938
  %v1949 = vmul.f32 %v1938, %v1948
  %vm1950 = vcmp.eq.f32.partialorder %v1938, inf
  %v1951 = vsel %vm1950, %v1938, %v1949
  %vm1952 = vcmp.eq.f32.partialorder %v1938, 0.0
  %v1953 = vand.u32 %v1938, 2147483648
  %v1954 = vsel %vm1952, %v1953, %v1951
  %v1955 = vrsqrt.pop %v1939
  %v1956 = vmul.f32 %v1939, %v1955
  %vm1957 = vcmp.eq.f32.partialorder %v1939, inf
  %v1958 = vsel %vm1957, %v1939, %v1956
  %vm1959 = vcmp.eq.f32.partialorder %v1939, 0.0
  %v1960 = vand.u32 %v1939, 2147483648
  %v1961 = vsel %vm1959, %v1960, %v1958
  %v1962 = vrsqrt.pop %v1940
  %v1963 = vmul.f32 %v1940, %v1962
  %vm1964 = vcmp.eq.f32.partialorder %v1940, inf
  %v1965 = vsel %vm1964, %v1940, %v1963
  %vm1966 = vcmp.eq.f32.partialorder %v1940, 0.0
  %v1967 = vand.u32 %v1940, 2147483648
  %v1968 = vsel %vm1966, %v1967, %v1965
  %v1969 = vadd.f32 %v1917, %v1947
  %v1970 = vadd.f32 %v1918, %v1954
  %v1971 = vadd.f32 %v1919, %v1961
  %v1972 = vadd.f32 %v1920, %v1968
  %v1973 = vadd.f32 %v1969, %v1970
  %v1974 = vadd.f32 %v1973, %v1971
  %v1975 = vadd.f32 %v1974, %v1972
  %1976 = vadd.xlane.f32.xlu0 %v1975
  %v1977 = vpop.xlane.xlu0 %1976
  %v1978 = vmul.f32 %v1977, 0.001953125
  %v1979 = vmul.f32 %v1969, %v1969
  %v1980 = vmul.f32 %v1970, %v1970
  %v1981 = vmul.f32 %v1971, %v1971
  %v1982 = vmul.f32 %v1972, %v1972
  %v1983 = vadd.f32 %v1979, %v1980
  %v1984 = vadd.f32 %v1983, %v1981
  %v1985 = vadd.f32 %v1984, %v1982
  %1986 = vadd.xlane.f32.xlu0 %v1985
  %v1987 = vpop.xlane.xlu0 %1986
  %v1988 = vmul.f32 %v1987, 0.001953125
  %v1989 = vmul.f32 %v1978, %v1978
  %v1990 = vsub.f32 %v1988, %v1989
  %v1991 = vadd.f32 %v1990, 1e-05
  %v1992 = vrsqrt.pop %v1991
  %v1993 = vsub.f32 %v1969, %v1978
  %v1994 = vsub.f32 %v1970, %v1978
  %v1995 = vsub.f32 %v1971, %v1978
  %v1996 = vsub.f32 %v1972, %v1978
  %v1997 = vld [vmem:[%s5] sm:$0xff]
  %v1998 = vmul.f32 %v1992, %v1997
  %2000 = vset.pattern.permute.xlu0 0
  %2001 = vperm.xlu0 %2000, %v1998
  %v2002 = vpop.permute.xlu0 %2001
  %v2004 = vmul.f32 %v1993, %v2002
  %v2005 = vmul.f32 %v1994, %v2002
  %v2006 = vmul.f32 %v1995, %v2002
  %v2007 = vmul.f32 %v1996, %v2002
  %v2008 = vld [vmem:[%s6] sm:$0xff]
  %2010 = vset.pattern.permute.xlu0 0
  %2011 = vperm.xlu0 %2010, %v2008
  %v2012 = vpop.permute.xlu0 %2011
  %v2014 = vadd.f32 %v2004, %v2012
  %v2015 = vadd.f32 %v2005, %v2012
  %v2016 = vadd.f32 %v2006, %v2012
  %v2017 = vadd.f32 %v2007, %v2012
  %vm2018 = vcmp.ge.f32.partialorder %v2014, 0.0
  %vm2019 = vcmp.ge.f32.partialorder %v2015, 0.0
  %vm2020 = vcmp.ge.f32.partialorder %v2016, 0.0
  %vm2021 = vcmp.ge.f32.partialorder %v2017, 0.0
  %v2022 = vmul.f32 %v2014, 0.01
  %v2023 = vmul.f32 %v2015, 0.01
  %v2024 = vmul.f32 %v2016, 0.01
  %v2025 = vmul.f32 %v2017, 0.01
  %v2026 = vsel %vm2018, %v2014, %v2022
  %v2027 = vsel %vm2019, %v2015, %v2023
  %v2028 = vsel %vm2020, %v2016, %v2024
  %v2029 = vsel %vm2021, %v2017, %v2025
  %2030 = vst [vmem:[%s7] sm:$0xff] %v2026
  %2031 = vst [vmem:[%s7 + $0x8] sm:$0xff] %v2027
  %2032 = vst [vmem:[%s7 + $0x10] sm:$0xff] %v2028
  %2033 = vst [vmem:[%s7 + $0x18] sm:$0xff] %v2029
  // Predicated region
  $region30: #{gnet1_forward.10} parent=0 // pred_check
    _
  $region31: #{gnet1_forward.10} parent=0 // pred_check_branch
    %2035 = sbr.rel (0) target = $region33
  $region32: #{gnet1_forward.10} parent=0 // pred_region
    _
  $region33: #{gnet1_forward.10} parent=0 // pred_fallthru
    _
  // Predicated region
  $region34: #{gnet1_forward.10} parent=0 // pred_check
    _
  $region35: #{gnet1_forward.10} parent=0 // pred_check_branch
    %2037 = sbr.rel (0) target = $region37
  $region36: #{gnet1_forward.10} parent=0 // pred_region
    _
  $region37: #{gnet1_forward.10} parent=0 // pred_fallthru
    _

// kernel: gnet1_forward.14
$region0: #{gnet1_forward.14}
  #allocation0 [shape = 'u32[]', space=smem, size = 0x4, offset = 0x4, fixed_abs, tag = 'smem constant byte address 0x4 - core index']
  #allocation1 [shape = 'u32[144,128]{1,0:T(1,128)}', space=vmem, size = 0x12000, scoped, tag = 'internal scratch']
  %s0 = inlined_call_operand.vmem [shape: f32[9,8,8], index: 0, kind: input, shape index: {}]
  %s1 = inlined_call_operand.vmem [shape: f32[8,546], index: 1, kind: input, shape index: {}]
  %s2 = inlined_call_operand.vmem [shape: f32[9,1,512], index: 2, kind: input, shape index: {}]
  %s3 = inlined_call_operand.vmem [shape: f32[8,512], index: 3, kind: input, shape index: {}]
  %s4 = inlined_call_operand.vmem [shape: f32[8,512], index: 4, kind: input, shape index: {}]
  %s5 = inlined_call_operand.vmem [shape: f32[8,1], index: 5, kind: input, shape index: {}]
  %s6 = inlined_call_operand.vmem [shape: f32[8,1], index: 6, kind: input, shape index: {}]
  %s7 = inlined_call_operand.vmem [shape: f32[8,512], index: 7, kind: output, shape index: {}]
  %s8 = sld [smem:[#allocation0]]
  $region38: #{gnet1_forward.14} parent=0
    _
  %s10 = ssub.s32 1, %s8
  %s11 = scalar_select 0, %s10, %s8
  // Predicated region
  $region2: #{gnet1_forward.14} parent=0 // pred_check
    _
  $region3: #{gnet1_forward.14} parent=0 // pred_check_branch
    %13 = sbr.rel (0) target = $region5
  $region4: #{gnet1_forward.14} parent=0 // pred_region
    _
  $region5: #{gnet1_forward.14} parent=0 // pred_fallthru
    _
  // Predicated region
  $region6: #{gnet1_forward.14} parent=0 // pred_check
    _
  $region7: #{gnet1_forward.14} parent=0 // pred_check_branch
    %15 = sbr.rel (0) target = $region9
  $region8: #{gnet1_forward.14} parent=0 // pred_region
    _
  $region9: #{gnet1_forward.14} parent=0 // pred_fallthru
    _
  // Predicated region
  $region10: #{gnet1_forward.14} parent=0 // pred_check
    _
  $region11: #{gnet1_forward.14} parent=0 // pred_check_branch
    %17 = sbr.rel (0) target = $region13
  $region12: #{gnet1_forward.14} parent=0 // pred_region
    _
  $region13: #{gnet1_forward.14} parent=0 // pred_fallthru
    _
  // Predicated region
  $region14: #{gnet1_forward.14} parent=0 // pred_check
    _
  $region15: #{gnet1_forward.14} parent=0 // pred_check_branch
    %19 = sbr.rel (0) target = $region17
  $region16: #{gnet1_forward.14} parent=0 // pred_region
    _
  $region17: #{gnet1_forward.14} parent=0 // pred_fallthru
    _
  // Predicated region
  $region18: #{gnet1_forward.14} parent=0 // pred_check
    _
  $region19: #{gnet1_forward.14} parent=0 // pred_check_branch
    %21 = sbr.rel (0) target = $region21
  $region20: #{gnet1_forward.14} parent=0 // pred_region
    _
  $region21: #{gnet1_forward.14} parent=0 // pred_fallthru
    _
  // Predicated region
  $region22: #{gnet1_forward.14} parent=0 // pred_check
    _
  $region23: #{gnet1_forward.14} parent=0 // pred_check_branch
    %23 = sbr.rel (0) target = $region25
  $region24: #{gnet1_forward.14} parent=0 // pred_region
    _
  $region25: #{gnet1_forward.14} parent=0 // pred_fallthru
    _
  // Predicated region
  $region26: #{gnet1_forward.14} parent=0 // pred_check
    _
  $region27: #{gnet1_forward.14} parent=0 // pred_check_branch
    %25 = sbr.rel (0) target = $region29
  $region28: #{gnet1_forward.14} parent=0 // pred_region
    _
  $region29: #{gnet1_forward.14} parent=0 // pred_fallthru
    _
  %v26 = vld [vmem:[%s1] sm:$0xff]
  %v27 = vld [vmem:[%s1 + $0x8] sm:$0xff]
  %v28 = vld [vmem:[%s1 + $0x10] sm:$0xff]
  %v29 = vld [vmem:[%s1 + $0x18] sm:$0xff]
  %v30 = vld [vmem:[%s2] sm:$0xf]
  %v32 = vlaneseq
  %v33 = vshrl.u32 %v32, 7
  %v34 = vsub.s32 0, %v33
  %v35 = vrot.slane %v30, %v34
  %v36 = vlaneseq
  %v37 = vshrl.u32 %v36, 7
  %v38 = vsub.s32 1, %v37
  %v39 = vrot.slane %v30, %v38
  %v40 = vlaneseq
  %v41 = vshrl.u32 %v40, 7
  %v42 = vsub.s32 2, %v41
  %v43 = vrot.slane %v30, %v42
  %v44 = vlaneseq
  %v45 = vshrl.u32 %v44, 7
  %v46 = vsub.s32 3, %v45
  %v47 = vrot.slane %v30, %v46
  %v52 = vmul.f32 %v26, %v35
  %v53 = vmul.f32 %v27, %v39
  %v54 = vmul.f32 %v28, %v43
  %v55 = vmul.f32 %v29, %v47
  %v56 = vld [vmem:[%s0] sm:$0xff]
  %v57 = vld [vmem:[%s1 + $0x20] sm:$0xff]
  %s58 = scalar_lea.vmem %s2, 4
  %v59 = vld [vmem:[%s58] sm:$0xf]
  %v61 = vlaneseq
  %v62 = vshrl.u32 %v61, 7
  %v63 = vsub.s32 0, %v62
  %v64 = vrot.slane %v59, %v63
  %v65 = vlaneseq
  %v66 = vshrl.u32 %v65, 7
  %v67 = vsub.s32 1, %v66
  %v68 = vrot.slane %v59, %v67
  %v69 = vlaneseq
  %v70 = vshrl.u32 %v69, 7
  %v71 = vsub.s32 2, %v70
  %v72 = vrot.slane %v59, %v71
  %v73 = vlaneseq
  %v74 = vshrl.u32 %v73, 7
  %v75 = vsub.s32 3, %v74
  %v76 = vrot.slane %v59, %v75
  %77 = vrot.lane.b32.xlu0 %v64, 1
  %v78 = vpop.permute.xlu0 %77
  %79 = vrot.lane.b32.xlu0 %v68, 1
  %v80 = vpop.permute.xlu0 %79
  %81 = vrot.lane.b32.xlu0 %v72, 1
  %v82 = vpop.permute.xlu0 %81
  %83 = vrot.lane.b32.xlu0 %v76, 1
  %v84 = vpop.permute.xlu0 %83
  %vm85 = vcmask 7168
  %v86 = vsel %vm85, %v78, %v80
  %v87 = vsel %vm85, %v80, %v82
  %v88 = vsel %vm85, %v82, %v84
  %v94 = vmul.f32 %v26, %v78
  %v95 = vmul.f32 %v27, %v86
  %v96 = vmul.f32 %v28, %v87
  %v97 = vmul.f32 %v29, %v88
  %v98 = vmul.f32 %v57, %v84
  %s99 = scalar_lea.vmem %s0, 8
  %v100 = vld [vmem:[%s99] sm:$0xff]
  %106 = vrot.lane.b32.xlu0 %v94, 127
  %v107 = vpop.permute.xlu0 %106
  %108 = vrot.lane.b32.xlu0 %v95, 127
  %v109 = vpop.permute.xlu0 %108
  %110 = vrot.lane.b32.xlu0 %v96, 127
  %v111 = vpop.permute.xlu0 %110
  %112 = vrot.lane.b32.xlu0 %v97, 127
  %v113 = vpop.permute.xlu0 %112
  %114 = vrot.lane.b32.xlu0 %v98, 127
  %v115 = vpop.permute.xlu0 %114
  %vm116 = vcmask 1039360
  %v117 = vsel %vm116, %v107, %v109
  %v118 = vsel %vm116, %v109, %v111
  %v119 = vsel %vm116, %v111, %v113
  %v120 = vsel %vm116, %v113, %v115
  %vm125 = vcmask 64512
  %v127 = vsel %vm125, %v100, 0
  %129 = vmatprep.subr.mxu0 %v118
  %130 = vmatpush1.msra.mxu0 %v117
  %131 = vmatprep.subr.mxu0 0.0
  %132 = vmatpush1.msra.mxu0 0.0
  %133 = vmatprep.subr.mxu0 0.0
  %134 = vmatpush1.msra.mxu0 0.0
  %135 = vmatprep.subr.mxu0 0.0
  %136 = vmatpush1.msra.mxu0 0.0
  %137 = vmatprep.subr.mxu0 0.0
  %138 = vmatpush1.msra.mxu0 0.0
  %139 = vmatprep.subr.mxu0 0.0
  %140 = vmatpush1.msra.mxu0 0.0
  %141 = vmatprep.subr.mxu0 0.0
  %142 = vmatpush1.msra.mxu0 0.0
  %143 = vmatprep.subr.mxu0 0.0
  %144 = vmatpush1.msra.mxu0 0.0
  %145 = vmatprep.subr.mxu0 0.0
  %146 = vmatpush1.msra.mxu0 0.0
  %147 = vmatprep.subr.mxu0 0.0
  %148 = vmatpush1.msra.mxu0 0.0
  %149 = vmatprep.subr.mxu0 0.0
  %150 = vmatpush1.msra.mxu0 0.0
  %151 = vmatprep.subr.mxu0 0.0
  %152 = vmatpush1.msra.mxu0 0.0
  %153 = vmatprep.subr.mxu0 0.0
  %154 = vmatpush1.msra.mxu0 0.0
  %155 = vmatprep.subr.mxu0 0.0
  %156 = vmatpush1.msra.mxu0 0.0
  %157 = vmatprep.subr.mxu0 0.0
  %158 = vmatpush1.msra.mxu0 0.0
  %159 = vmatprep.subr.mxu0 0.0
  %160 = vmatpush1.msra.mxu0 0.0
  %161 = vmatprep.subr.mxu0 0.0
  %162 = vmatpush1.msra.mxu0 0.0
  %163 = vmatprep.subr.mxu0 0.0
  %164 = vmatpush1.msra.mxu0 0.0
  %165 = vmatprep.subr.mxu0 0.0
  %166 = vmatpush1.msra.mxu0 0.0
  %167 = vmatprep.subr.mxu0 0.0
  %168 = vmatpush1.msra.mxu0 0.0
  %169 = vmatprep.subr.mxu0 0.0
  %170 = vmatpush1.msra.mxu0 0.0
  %171 = vmatprep.subr.mxu0 0.0
  %172 = vmatpush1.msra.mxu0 0.0
  %173 = vmatprep.subr.mxu0 0.0
  %174 = vmatpush1.msra.mxu0 0.0
  %175 = vmatprep.subr.mxu0 0.0
  %176 = vmatpush1.msra.mxu0 0.0
  %177 = vmatprep.subr.mxu0 0.0
  %178 = vmatpush1.msra.mxu0 0.0
  %179 = vmatprep.subr.mxu0 0.0
  %180 = vmatpush1.msra.mxu0 0.0
  %181 = vmatprep.subr.mxu0 0.0
  %182 = vmatpush1.msra.mxu0 0.0
  %183 = vmatprep.subr.mxu0 0.0
  %184 = vmatpush1.msra.mxu0 0.0
  %185 = vmatprep.subr.mxu0 0.0
  %186 = vmatpush1.msra.mxu0 0.0
  %187 = vmatprep.subr.mxu0 0.0
  %188 = vmatpush1.msra.mxu0 0.0
  %189 = vmatprep.subr.mxu0 0.0
  %190 = vmatpush1.msra.mxu0 0.0
  %191 = vmatprep.subr.mxu0 0.0
  %192 = vmatpush1.msra.mxu0 0.0
  %193 = vmatprep.mubr.f32.mxu0 0.0
  %194 = vmatmul.mubr.f32.gmra.mrb[0].mxu0 %v127
  %v195 = vpop.f32.mrb[0].mxu0
  %v196 = vadd.f32 0.0, %v195
  %v197 = vpop.f32.mrb[0].mxu0
  %v198 = vadd.f32 0.0, %v197
  %199 = vdwg.mxu0
  %200 = vmatprep.subr.mxu0 %v120
  %201 = vmatpush1.msra.mxu0 %v119
  %202 = vmatprep.subr.mxu0 0.0
  %203 = vmatpush1.msra.mxu0 0.0
  %204 = vmatprep.subr.mxu0 0.0
  %205 = vmatpush1.msra.mxu0 0.0
  %206 = vmatprep.subr.mxu0 0.0
  %207 = vmatpush1.msra.mxu0 0.0
  %208 = vmatprep.subr.mxu0 0.0
  %209 = vmatpush1.msra.mxu0 0.0
  %210 = vmatprep.subr.mxu0 0.0
  %211 = vmatpush1.msra.mxu0 0.0
  %212 = vmatprep.subr.mxu0 0.0
  %213 = vmatpush1.msra.mxu0 0.0
  %214 = vmatprep.subr.mxu0 0.0
  %215 = vmatpush1.msra.mxu0 0.0
  %216 = vmatprep.subr.mxu0 0.0
  %217 = vmatpush1.msra.mxu0 0.0
  %218 = vmatprep.subr.mxu0 0.0
  %219 = vmatpush1.msra.mxu0 0.0
  %220 = vmatprep.subr.mxu0 0.0
  %221 = vmatpush1.msra.mxu0 0.0
  %222 = vmatprep.subr.mxu0 0.0
  %223 = vmatpush1.msra.mxu0 0.0
  %224 = vmatprep.subr.mxu0 0.0
  %225 = vmatpush1.msra.mxu0 0.0
  %226 = vmatprep.subr.mxu0 0.0
  %227 = vmatpush1.msra.mxu0 0.0
  %228 = vmatprep.subr.mxu0 0.0
  %229 = vmatpush1.msra.mxu0 0.0
  %230 = vmatprep.subr.mxu0 0.0
  %231 = vmatpush1.msra.mxu0 0.0
  %232 = vmatprep.subr.mxu0 0.0
  %233 = vmatpush1.msra.mxu0 0.0
  %234 = vmatprep.subr.mxu0 0.0
  %235 = vmatpush1.msra.mxu0 0.0
  %236 = vmatprep.subr.mxu0 0.0
  %237 = vmatpush1.msra.mxu0 0.0
  %238 = vmatprep.subr.mxu0 0.0
  %239 = vmatpush1.msra.mxu0 0.0
  %240 = vmatprep.subr.mxu0 0.0
  %241 = vmatpush1.msra.mxu0 0.0
  %242 = vmatprep.subr.mxu0 0.0
  %243 = vmatpush1.msra.mxu0 0.0
  %244 = vmatprep.subr.mxu0 0.0
  %245 = vmatpush1.msra.mxu0 0.0
  %246 = vmatprep.subr.mxu0 0.0
  %247 = vmatpush1.msra.mxu0 0.0
  %248 = vmatprep.subr.mxu0 0.0
  %249 = vmatpush1.msra.mxu0 0.0
  %250 = vmatprep.subr.mxu0 0.0
  %251 = vmatpush1.msra.mxu0 0.0
  %252 = vmatprep.subr.mxu0 0.0
  %253 = vmatpush1.msra.mxu0 0.0
  %254 = vmatprep.subr.mxu0 0.0
  %255 = vmatpush1.msra.mxu0 0.0
  %256 = vmatprep.subr.mxu0 0.0
  %257 = vmatpush1.msra.mxu0 0.0
  %258 = vmatprep.subr.mxu0 0.0
  %259 = vmatpush1.msra.mxu0 0.0
  %260 = vmatprep.subr.mxu0 0.0
  %261 = vmatpush1.msra.mxu0 0.0
  %262 = vmatprep.subr.mxu0 0.0
  %263 = vmatpush1.msra.mxu0 0.0
  %264 = vmatprep.mubr.f32.mxu0 0.0
  %265 = vmatmul.mubr.f32.gmra.mrb[0].mxu0 %v127
  %v266 = vpop.f32.mrb[0].mxu0
  %v267 = vadd.f32 0.0, %v266
  %v268 = vpop.f32.mrb[0].mxu0
  %v269 = vadd.f32 0.0, %v268
  %270 = vdwg.mxu0
  %v272 = vsel %vm125, %v56, 0
  %274 = vmatprep.subr.mxu0 %v53
  %275 = vmatpush1.msra.mxu0 %v52
  %276 = vmatprep.subr.mxu0 0.0
  %277 = vmatpush1.msra.mxu0 0.0
  %278 = vmatprep.subr.mxu0 0.0
  %279 = vmatpush1.msra.mxu0 0.0
  %280 = vmatprep.subr.mxu0 0.0
  %281 = vmatpush1.msra.mxu0 0.0
  %282 = vmatprep.subr.mxu0 0.0
  %283 = vmatpush1.msra.mxu0 0.0
  %284 = vmatprep.subr.mxu0 0.0
  %285 = vmatpush1.msra.mxu0 0.0
  %286 = vmatprep.subr.mxu0 0.0
  %287 = vmatpush1.msra.mxu0 0.0
  %288 = vmatprep.subr.mxu0 0.0
  %289 = vmatpush1.msra.mxu0 0.0
  %290 = vmatprep.subr.mxu0 0.0
  %291 = vmatpush1.msra.mxu0 0.0
  %292 = vmatprep.subr.mxu0 0.0
  %293 = vmatpush1.msra.mxu0 0.0
  %294 = vmatprep.subr.mxu0 0.0
  %295 = vmatpush1.msra.mxu0 0.0
  %296 = vmatprep.subr.mxu0 0.0
  %297 = vmatpush1.msra.mxu0 0.0
  %298 = vmatprep.subr.mxu0 0.0
  %299 = vmatpush1.msra.mxu0 0.0
  %300 = vmatprep.subr.mxu0 0.0
  %301 = vmatpush1.msra.mxu0 0.0
  %302 = vmatprep.subr.mxu0 0.0
  %303 = vmatpush1.msra.mxu0 0.0
  %304 = vmatprep.subr.mxu0 0.0
  %305 = vmatpush1.msra.mxu0 0.0
  %306 = vmatprep.subr.mxu0 0.0
  %307 = vmatpush1.msra.mxu0 0.0
  %308 = vmatprep.subr.mxu0 0.0
  %309 = vmatpush1.msra.mxu0 0.0
  %310 = vmatprep.subr.mxu0 0.0
  %311 = vmatpush1.msra.mxu0 0.0
  %312 = vmatprep.subr.mxu0 0.0
  %313 = vmatpush1.msra.mxu0 0.0
  %314 = vmatprep.subr.mxu0 0.0
  %315 = vmatpush1.msra.mxu0 0.0
  %316 = vmatprep.subr.mxu0 0.0
  %317 = vmatpush1.msra.mxu0 0.0
  %318 = vmatprep.subr.mxu0 0.0
  %319 = vmatpush1.msra.mxu0 0.0
  %320 = vmatprep.subr.mxu0 0.0
  %321 = vmatpush1.msra.mxu0 0.0
  %322 = vmatprep.subr.mxu0 0.0
  %323 = vmatpush1.msra.mxu0 0.0
  %324 = vmatprep.subr.mxu0 0.0
  %325 = vmatpush1.msra.mxu0 0.0
  %326 = vmatprep.subr.mxu0 0.0
  %327 = vmatpush1.msra.mxu0 0.0
  %328 = vmatprep.subr.mxu0 0.0
  %329 = vmatpush1.msra.mxu0 0.0
  %330 = vmatprep.subr.mxu0 0.0
  %331 = vmatpush1.msra.mxu0 0.0
  %332 = vmatprep.subr.mxu0 0.0
  %333 = vmatpush1.msra.mxu0 0.0
  %334 = vmatprep.subr.mxu0 0.0
  %335 = vmatpush1.msra.mxu0 0.0
  %336 = vmatprep.subr.mxu0 0.0
  %337 = vmatpush1.msra.mxu0 0.0
  %338 = vmatprep.mubr.f32.mxu0 0.0
  %339 = vmatmul.mubr.f32.gmra.mrb[0].mxu0 %v272
  %v340 = vpop.f32.mrb[0].mxu0
  %v341 = vadd.f32 %v196, %v340
  %v342 = vpop.f32.mrb[0].mxu0
  %v343 = vadd.f32 %v198, %v342
  %344 = vdwg.mxu0
  %345 = vmatprep.subr.mxu0 %v55
  %346 = vmatpush1.msra.mxu0 %v54
  %347 = vmatprep.subr.mxu0 0.0
  %348 = vmatpush1.msra.mxu0 0.0
  %349 = vmatprep.subr.mxu0 0.0
  %350 = vmatpush1.msra.mxu0 0.0
  %351 = vmatprep.subr.mxu0 0.0
  %352 = vmatpush1.msra.mxu0 0.0
  %353 = vmatprep.subr.mxu0 0.0
  %354 = vmatpush1.msra.mxu0 0.0
  %355 = vmatprep.subr.mxu0 0.0
  %356 = vmatpush1.msra.mxu0 0.0
  %357 = vmatprep.subr.mxu0 0.0
  %358 = vmatpush1.msra.mxu0 0.0
  %359 = vmatprep.subr.mxu0 0.0
  %360 = vmatpush1.msra.mxu0 0.0
  %361 = vmatprep.subr.mxu0 0.0
  %362 = vmatpush1.msra.mxu0 0.0
  %363 = vmatprep.subr.mxu0 0.0
  %364 = vmatpush1.msra.mxu0 0.0
  %365 = vmatprep.subr.mxu0 0.0
  %366 = vmatpush1.msra.mxu0 0.0
  %367 = vmatprep.subr.mxu0 0.0
  %368 = vmatpush1.msra.mxu0 0.0
  %369 = vmatprep.subr.mxu0 0.0
  %370 = vmatpush1.msra.mxu0 0.0
  %371 = vmatprep.subr.mxu0 0.0
  %372 = vmatpush1.msra.mxu0 0.0
  %373 = vmatprep.subr.mxu0 0.0
  %374 = vmatpush1.msra.mxu0 0.0
  %375 = vmatprep.subr.mxu0 0.0
  %376 = vmatpush1.msra.mxu0 0.0
  %377 = vmatprep.subr.mxu0 0.0
  %378 = vmatpush1.msra.mxu0 0.0
  %379 = vmatprep.subr.mxu0 0.0
  %380 = vmatpush1.msra.mxu0 0.0
  %381 = vmatprep.subr.mxu0 0.0
  %382 = vmatpush1.msra.mxu0 0.0
  %383 = vmatprep.subr.mxu0 0.0
  %384 = vmatpush1.msra.mxu0 0.0
  %385 = vmatprep.subr.mxu0 0.0
  %386 = vmatpush1.msra.mxu0 0.0
  %387 = vmatprep.subr.mxu0 0.0
  %388 = vmatpush1.msra.mxu0 0.0
  %389 = vmatprep.subr.mxu0 0.0
  %390 = vmatpush1.msra.mxu0 0.0
  %391 = vmatprep.subr.mxu0 0.0
  %392 = vmatpush1.msra.mxu0 0.0
  %393 = vmatprep.subr.mxu0 0.0
  %394 = vmatpush1.msra.mxu0 0.0
  %395 = vmatprep.subr.mxu0 0.0
  %396 = vmatpush1.msra.mxu0 0.0
  %397 = vmatprep.subr.mxu0 0.0
  %398 = vmatpush1.msra.mxu0 0.0
  %399 = vmatprep.subr.mxu0 0.0
  %400 = vmatpush1.msra.mxu0 0.0
  %401 = vmatprep.subr.mxu0 0.0
  %402 = vmatpush1.msra.mxu0 0.0
  %403 = vmatprep.subr.mxu0 0.0
  %404 = vmatpush1.msra.mxu0 0.0
  %405 = vmatprep.subr.mxu0 0.0
  %406 = vmatpush1.msra.mxu0 0.0
  %407 = vmatprep.subr.mxu0 0.0
  %408 = vmatpush1.msra.mxu0 0.0
  %409 = vmatprep.mubr.f32.mxu0 0.0
  %410 = vmatmul.mubr.f32.gmra.mrb[0].mxu0 %v272
  %v411 = vpop.f32.mrb[0].mxu0
  %v412 = vadd.f32 %v267, %v411
  %v413 = vpop.f32.mrb[0].mxu0
  %v414 = vadd.f32 %v269, %v413
  %415 = vdwg.mxu0
  %s416 = scalar_lea.vmem %s2, 8
  %v417 = vld [vmem:[%s416] sm:$0xf]
  %v419 = vlaneseq
  %v420 = vshrl.u32 %v419, 7
  %v421 = vsub.s32 0, %v420
  %v422 = vrot.slane %v417, %v421
  %v423 = vlaneseq
  %v424 = vshrl.u32 %v423, 7
  %v425 = vsub.s32 1, %v424
  %v426 = vrot.slane %v417, %v425
  %v427 = vlaneseq
  %v428 = vshrl.u32 %v427, 7
  %v429 = vsub.s32 2, %v428
  %v430 = vrot.slane %v417, %v429
  %v431 = vlaneseq
  %v432 = vshrl.u32 %v431, 7
  %v433 = vsub.s32 3, %v432
  %v434 = vrot.slane %v417, %v433
  %435 = vrot.lane.b32.xlu0 %v422, 2
  %v436 = vpop.permute.xlu0 %435
  %437 = vrot.lane.b32.xlu0 %v426, 2
  %v438 = vpop.permute.xlu0 %437
  %439 = vrot.lane.b32.xlu0 %v430, 2
  %v440 = vpop.permute.xlu0 %439
  %441 = vrot.lane.b32.xlu0 %v434, 2
  %v442 = vpop.permute.xlu0 %441
  %vm443 = vcmask 15360
  %v444 = vsel %vm443, %v436, %v438
  %v445 = vsel %vm443, %v438, %v440
  %v446 = vsel %vm443, %v440, %v442
  %v452 = vmul.f32 %v26, %v436
  %v453 = vmul.f32 %v27, %v444
  %v454 = vmul.f32 %v28, %v445
  %v455 = vmul.f32 %v29, %v446
  %v456 = vmul.f32 %v57, %v442
  %s457 = scalar_lea.vmem %s0, 16
  %v458 = vld [vmem:[%s457] sm:$0xff]
  %464 = vrot.lane.b32.xlu0 %v452, 126
  %v465 = vpop.permute.xlu0 %464
  %466 = vrot.lane.b32.xlu0 %v453, 126
  %v467 = vpop.permute.xlu0 %466
  %468 = vrot.lane.b32.xlu0 %v454, 126
  %v469 = vpop.permute.xlu0 %468
  %470 = vrot.lane.b32.xlu0 %v455, 126
  %v471 = vpop.permute.xlu0 %470
  %472 = vrot.lane.b32.xlu0 %v456, 126
  %v473 = vpop.permute.xlu0 %472
  %vm474 = vcmask 1031168
  %v475 = vsel %vm474, %v465, %v467
  %v476 = vsel %vm474, %v467, %v469
  %v477 = vsel %vm474, %v469, %v471
  %v478 = vsel %vm474, %v471, %v473
  %v484 = vsel %vm125, %v458, 0
  %486 = vmatprep.subr.mxu0 %v476
  %487 = vmatpush1.msra.mxu0 %v475
  %488 = vmatprep.subr.mxu0 0.0
  %489 = vmatpush1.msra.mxu0 0.0
  %490 = vmatprep.subr.mxu0 0.0
  %491 = vmatpush1.msra.mxu0 0.0
  %492 = vmatprep.subr.mxu0 0.0
  %493 = vmatpush1.msra.mxu0 0.0
  %494 = vmatprep.subr.mxu0 0.0
  %495 = vmatpush1.msra.mxu0 0.0
  %496 = vmatprep.subr.mxu0 0.0
  %497 = vmatpush1.msra.mxu0 0.0
  %498 = vmatprep.subr.mxu0 0.0
  %499 = vmatpush1.msra.mxu0 0.0
  %500 = vmatprep.subr.mxu0 0.0
  %501 = vmatpush1.msra.mxu0 0.0
  %502 = vmatprep.subr.mxu0 0.0
  %503 = vmatpush1.msra.mxu0 0.0
  %504 = vmatprep.subr.mxu0 0.0
  %505 = vmatpush1.msra.mxu0 0.0
  %506 = vmatprep.subr.mxu0 0.0
  %507 = vmatpush1.msra.mxu0 0.0
  %508 = vmatprep.subr.mxu0 0.0
  %509 = vmatpush1.msra.mxu0 0.0
  %510 = vmatprep.subr.mxu0 0.0
  %511 = vmatpush1.msra.mxu0 0.0
  %512 = vmatprep.subr.mxu0 0.0
  %513 = vmatpush1.msra.mxu0 0.0
  %514 = vmatprep.subr.mxu0 0.0
  %515 = vmatpush1.msra.mxu0 0.0
  %516 = vmatprep.subr.mxu0 0.0
  %517 = vmatpush1.msra.mxu0 0.0
  %518 = vmatprep.subr.mxu0 0.0
  %519 = vmatpush1.msra.mxu0 0.0
  %520 = vmatprep.subr.mxu0 0.0
  %521 = vmatpush1.msra.mxu0 0.0
  %522 = vmatprep.subr.mxu0 0.0
  %523 = vmatpush1.msra.mxu0 0.0
  %524 = vmatprep.subr.mxu0 0.0
  %525 = vmatpush1.msra.mxu0 0.0
  %526 = vmatprep.subr.mxu0 0.0
  %527 = vmatpush1.msra.mxu0 0.0
  %528 = vmatprep.subr.mxu0 0.0
  %529 = vmatpush1.msra.mxu0 0.0
  %530 = vmatprep.subr.mxu0 0.0
  %531 = vmatpush1.msra.mxu0 0.0
  %532 = vmatprep.subr.mxu0 0.0
  %533 = vmatpush1.msra.mxu0 0.0
  %534 = vmatprep.subr.mxu0 0.0
  %535 = vmatpush1.msra.mxu0 0.0
  %536 = vmatprep.subr.mxu0 0.0
  %537 = vmatpush1.msra.mxu0 0.0
  %538 = vmatprep.subr.mxu0 0.0
  %539 = vmatpush1.msra.mxu0 0.0
  %540 = vmatprep.subr.mxu0 0.0
  %541 = vmatpush1.msra.mxu0 0.0
  %542 = vmatprep.subr.mxu0 0.0
  %543 = vmatpush1.msra.mxu0 0.0
  %544 = vmatprep.subr.mxu0 0.0
  %545 = vmatpush1.msra.mxu0 0.0
  %546 = vmatprep.subr.mxu0 0.0
  %547 = vmatpush1.msra.mxu0 0.0
  %548 = vmatprep.subr.mxu0 0.0
  %549 = vmatpush1.msra.mxu0 0.0
  %550 = vmatprep.mubr.f32.mxu0 0.0
  %551 = vmatmul.mubr.f32.gmra.mrb[0].mxu0 %v484
  %v552 = vpop.f32.mrb[0].mxu0
  %v553 = vadd.f32 0.0, %v552
  %v554 = vpop.f32.mrb[0].mxu0
  %v555 = vadd.f32 0.0, %v554
  %556 = vdwg.mxu0
  %557 = vmatprep.subr.mxu0 %v478
  %558 = vmatpush1.msra.mxu0 %v477
  %559 = vmatprep.subr.mxu0 0.0
  %560 = vmatpush1.msra.mxu0 0.0
  %561 = vmatprep.subr.mxu0 0.0
  %562 = vmatpush1.msra.mxu0 0.0
  %563 = vmatprep.subr.mxu0 0.0
  %564 = vmatpush1.msra.mxu0 0.0
  %565 = vmatprep.subr.mxu0 0.0
  %566 = vmatpush1.msra.mxu0 0.0
  %567 = vmatprep.subr.mxu0 0.0
  %568 = vmatpush1.msra.mxu0 0.0
  %569 = vmatprep.subr.mxu0 0.0
  %570 = vmatpush1.msra.mxu0 0.0
  %571 = vmatprep.subr.mxu0 0.0
  %572 = vmatpush1.msra.mxu0 0.0
  %573 = vmatprep.subr.mxu0 0.0
  %574 = vmatpush1.msra.mxu0 0.0
  %575 = vmatprep.subr.mxu0 0.0
  %576 = vmatpush1.msra.mxu0 0.0
  %577 = vmatprep.subr.mxu0 0.0
  %578 = vmatpush1.msra.mxu0 0.0
  %579 = vmatprep.subr.mxu0 0.0
  %580 = vmatpush1.msra.mxu0 0.0
  %581 = vmatprep.subr.mxu0 0.0
  %582 = vmatpush1.msra.mxu0 0.0
  %583 = vmatprep.subr.mxu0 0.0
  %584 = vmatpush1.msra.mxu0 0.0
  %585 = vmatprep.subr.mxu0 0.0
  %586 = vmatpush1.msra.mxu0 0.0
  %587 = vmatprep.subr.mxu0 0.0
  %588 = vmatpush1.msra.mxu0 0.0
  %589 = vmatprep.subr.mxu0 0.0
  %590 = vmatpush1.msra.mxu0 0.0
  %591 = vmatprep.subr.mxu0 0.0
  %592 = vmatpush1.msra.mxu0 0.0
  %593 = vmatprep.subr.mxu0 0.0
  %594 = vmatpush1.msra.mxu0 0.0
  %595 = vmatprep.subr.mxu0 0.0
  %596 = vmatpush1.msra.mxu0 0.0
  %597 = vmatprep.subr.mxu0 0.0
  %598 = vmatpush1.msra.mxu0 0.0
  %599 = vmatprep.subr.mxu0 0.0
  %600 = vmatpush1.msra.mxu0 0.0
  %601 = vmatprep.subr.mxu0 0.0
  %602 = vmatpush1.msra.mxu0 0.0
  %603 = vmatprep.subr.mxu0 0.0
  %604 = vmatpush1.msra.mxu0 0.0
  %605 = vmatprep.subr.mxu0 0.0
  %606 = vmatpush1.msra.mxu0 0.0
  %607 = vmatprep.subr.mxu0 0.0
  %608 = vmatpush1.msra.mxu0 0.0
  %609 = vmatprep.subr.mxu0 0.0
  %610 = vmatpush1.msra.mxu0 0.0
  %611 = vmatprep.subr.mxu0 0.0
  %612 = vmatpush1.msra.mxu0 0.0
  %613 = vmatprep.subr.mxu0 0.0
  %614 = vmatpush1.msra.mxu0 0.0
  %615 = vmatprep.subr.mxu0 0.0
  %616 = vmatpush1.msra.mxu0 0.0
  %617 = vmatprep.subr.mxu0 0.0
  %618 = vmatpush1.msra.mxu0 0.0
  %619 = vmatprep.subr.mxu0 0.0
  %620 = vmatpush1.msra.mxu0 0.0
  %621 = vmatprep.mubr.f32.mxu0 0.0
  %622 = vmatmul.mubr.f32.gmra.mrb[0].mxu0 %v484
  %v623 = vpop.f32.mrb[0].mxu0
  %v624 = vadd.f32 0.0, %v623
  %v625 = vpop.f32.mrb[0].mxu0
  %v626 = vadd.f32 0.0, %v625
  %627 = vdwg.mxu0
  %v628 = vadd.f32 %v341, %v553
  %v629 = vadd.f32 %v343, %v555
  %v630 = vadd.f32 %v412, %v624
  %v631 = vadd.f32 %v414, %v626
  %s632 = scalar_lea.vmem %s2, 12
  %v633 = vld [vmem:[%s632] sm:$0xf]
  %v635 = vlaneseq
  %v636 = vshrl.u32 %v635, 7
  %v637 = vsub.s32 0, %v636
  %v638 = vrot.slane %v633, %v637
  %v639 = vlaneseq
  %v640 = vshrl.u32 %v639, 7
  %v641 = vsub.s32 1, %v640
  %v642 = vrot.slane %v633, %v641
  %v643 = vlaneseq
  %v644 = vshrl.u32 %v643, 7
  %v645 = vsub.s32 2, %v644
  %v646 = vrot.slane %v633, %v645
  %v647 = vlaneseq
  %v648 = vshrl.u32 %v647, 7
  %v649 = vsub.s32 3, %v648
  %v650 = vrot.slane %v633, %v649
  %651 = vrot.lane.b32.xlu0 %v638, 16
  %v652 = vpop.permute.xlu0 %651
  %653 = vrot.lane.b32.xlu0 %v642, 16
  %v654 = vpop.permute.xlu0 %653
  %655 = vrot.lane.b32.xlu0 %v646, 16
  %v656 = vpop.permute.xlu0 %655
  %657 = vrot.lane.b32.xlu0 %v650, 16
  %v658 = vpop.permute.xlu0 %657
  %vm659 = vcmask 130048
  %v660 = vsel %vm659, %v652, %v654
  %v661 = vsel %vm659, %v654, %v656
  %v662 = vsel %vm659, %v656, %v658
  %v668 = vmul.f32 %v26, %v652
  %v669 = vmul.f32 %v27, %v660
  %v670 = vmul.f32 %v28, %v661
  %v671 = vmul.f32 %v29, %v662
  %v672 = vmul.f32 %v57, %v658
  %s673 = scalar_lea.vmem %s0, 24
  %v674 = vld [vmem:[%s673] sm:$0xff]
  %680 = vrot.lane.b32.xlu0 %v668, 112
  %v681 = vpop.permute.xlu0 %680
  %682 = vrot.lane.b32.xlu0 %v669, 112
  %v683 = vpop.permute.xlu0 %682
  %684 = vrot.lane.b32.xlu0 %v670, 112
  %v685 = vpop.permute.xlu0 %684
  %686 = vrot.lane.b32.xlu0 %v671, 112
  %v687 = vpop.permute.xlu0 %686
  %688 = vrot.lane.b32.xlu0 %v672, 112
  %v689 = vpop.permute.xlu0 %688
  %vm690 = vcmask 916480
  %v691 = vsel %vm690, %v681, %v683
  %v692 = vsel %vm690, %v683, %v685
  %v693 = vsel %vm690, %v685, %v687
  %v694 = vsel %vm690, %v687, %v689
  %v700 = vsel %vm125, %v674, 0
  %702 = vmatprep.subr.mxu0 %v692
  %703 = vmatpush1.msra.mxu0 %v691
  %704 = vmatprep.subr.mxu0 0.0
  %705 = vmatpush1.msra.mxu0 0.0
  %706 = vmatprep.subr.mxu0 0.0
  %707 = vmatpush1.msra.mxu0 0.0
  %708 = vmatprep.subr.mxu0 0.0
  %709 = vmatpush1.msra.mxu0 0.0
  %710 = vmatprep.subr.mxu0 0.0
  %711 = vmatpush1.msra.mxu0 0.0
  %712 = vmatprep.subr.mxu0 0.0
  %713 = vmatpush1.msra.mxu0 0.0
  %714 = vmatprep.subr.mxu0 0.0
  %715 = vmatpush1.msra.mxu0 0.0
  %716 = vmatprep.subr.mxu0 0.0
  %717 = vmatpush1.msra.mxu0 0.0
  %718 = vmatprep.subr.mxu0 0.0
  %719 = vmatpush1.msra.mxu0 0.0
  %720 = vmatprep.subr.mxu0 0.0
  %721 = vmatpush1.msra.mxu0 0.0
  %722 = vmatprep.subr.mxu0 0.0
  %723 = vmatpush1.msra.mxu0 0.0
  %724 = vmatprep.subr.mxu0 0.0
  %725 = vmatpush1.msra.mxu0 0.0
  %726 = vmatprep.subr.mxu0 0.0
  %727 = vmatpush1.msra.mxu0 0.0
  %728 = vmatprep.subr.mxu0 0.0
  %729 = vmatpush1.msra.mxu0 0.0
  %730 = vmatprep.subr.mxu0 0.0
  %731 = vmatpush1.msra.mxu0 0.0
  %732 = vmatprep.subr.mxu0 0.0
  %733 = vmatpush1.msra.mxu0 0.0
  %734 = vmatprep.subr.mxu0 0.0
  %735 = vmatpush1.msra.mxu0 0.0
  %736 = vmatprep.subr.mxu0 0.0
  %737 = vmatpush1.msra.mxu0 0.0
  %738 = vmatprep.subr.mxu0 0.0
  %739 = vmatpush1.msra.mxu0 0.0
  %740 = vmatprep.subr.mxu0 0.0
  %741 = vmatpush1.msra.mxu0 0.0
  %742 = vmatprep.subr.mxu0 0.0
  %743 = vmatpush1.msra.mxu0 0.0
  %744 = vmatprep.subr.mxu0 0.0
  %745 = vmatpush1.msra.mxu0 0.0
  %746 = vmatprep.subr.mxu0 0.0
  %747 = vmatpush1.msra.mxu0 0.0
  %748 = vmatprep.subr.mxu0 0.0
  %749 = vmatpush1.msra.mxu0 0.0
  %750 = vmatprep.subr.mxu0 0.0
  %751 = vmatpush1.msra.mxu0 0.0
  %752 = vmatprep.subr.mxu0 0.0
  %753 = vmatpush1.msra.mxu0 0.0
  %754 = vmatprep.subr.mxu0 0.0
  %755 = vmatpush1.msra.mxu0 0.0
  %756 = vmatprep.subr.mxu0 0.0
  %757 = vmatpush1.msra.mxu0 0.0
  %758 = vmatprep.subr.mxu0 0.0
  %759 = vmatpush1.msra.mxu0 0.0
  %760 = vmatprep.subr.mxu0 0.0
  %761 = vmatpush1.msra.mxu0 0.0
  %762 = vmatprep.subr.mxu0 0.0
  %763 = vmatpush1.msra.mxu0 0.0
  %764 = vmatprep.subr.mxu0 0.0
  %765 = vmatpush1.msra.mxu0 0.0
  %766 = vmatprep.mubr.f32.mxu0 0.0
  %767 = vmatmul.mubr.f32.gmra.mrb[0].mxu0 %v700
  %v768 = vpop.f32.mrb[0].mxu0
  %v769 = vadd.f32 0.0, %v768
  %v770 = vpop.f32.mrb[0].mxu0
  %v771 = vadd.f32 0.0, %v770
  %772 = vdwg.mxu0
  %773 = vmatprep.subr.mxu0 %v694
  %774 = vmatpush1.msra.mxu0 %v693
  %775 = vmatprep.subr.mxu0 0.0
  %776 = vmatpush1.msra.mxu0 0.0
  %777 = vmatprep.subr.mxu0 0.0
  %778 = vmatpush1.msra.mxu0 0.0
  %779 = vmatprep.subr.mxu0 0.0
  %780 = vmatpush1.msra.mxu0 0.0
  %781 = vmatprep.subr.mxu0 0.0
  %782 = vmatpush1.msra.mxu0 0.0
  %783 = vmatprep.subr.mxu0 0.0
  %784 = vmatpush1.msra.mxu0 0.0
  %785 = vmatprep.subr.mxu0 0.0
  %786 = vmatpush1.msra.mxu0 0.0
  %787 = vmatprep.subr.mxu0 0.0
  %788 = vmatpush1.msra.mxu0 0.0
  %789 = vmatprep.subr.mxu0 0.0
  %790 = vmatpush1.msra.mxu0 0.0
  %791 = vmatprep.subr.mxu0 0.0
  %792 = vmatpush1.msra.mxu0 0.0
  %793 = vmatprep.subr.mxu0 0.0
  %794 = vmatpush1.msra.mxu0 0.0
  %795 = vmatprep.subr.mxu0 0.0
  %796 = vmatpush1.msra.mxu0 0.0
  %797 = vmatprep.subr.mxu0 0.0
  %798 = vmatpush1.msra.mxu0 0.0
  %799 = vmatprep.subr.mxu0 0.0
  %800 = vmatpush1.msra.mxu0 0.0
  %801 = vmatprep.subr.mxu0 0.0
  %802 = vmatpush1.msra.mxu0 0.0
  %803 = vmatprep.subr.mxu0 0.0
  %804 = vmatpush1.msra.mxu0 0.0
  %805 = vmatprep.subr.mxu0 0.0
  %806 = vmatpush1.msra.mxu0 0.0
  %807 = vmatprep.subr.mxu0 0.0
  %808 = vmatpush1.msra.mxu0 0.0
  %809 = vmatprep.subr.mxu0 0.0
  %810 = vmatpush1.msra.mxu0 0.0
  %811 = vmatprep.subr.mxu0 0.0
  %812 = vmatpush1.msra.mxu0 0.0
  %813 = vmatprep.subr.mxu0 0.0
  %814 = vmatpush1.msra.mxu0 0.0
  %815 = vmatprep.subr.mxu0 0.0
  %816 = vmatpush1.msra.mxu0 0.0
  %817 = vmatprep.subr.mxu0 0.0
  %818 = vmatpush1.msra.mxu0 0.0
  %819 = vmatprep.subr.mxu0 0.0
  %820 = vmatpush1.msra.mxu0 0.0
  %821 = vmatprep.subr.mxu0 0.0
  %822 = vmatpush1.msra.mxu0 0.0
  %823 = vmatprep.subr.mxu0 0.0
  %824 = vmatpush1.msra.mxu0 0.0
  %825 = vmatprep.subr.mxu0 0.0
  %826 = vmatpush1.msra.mxu0 0.0
  %827 = vmatprep.subr.mxu0 0.0
  %828 = vmatpush1.msra.mxu0 0.0
  %829 = vmatprep.subr.mxu0 0.0
  %830 = vmatpush1.msra.mxu0 0.0
  %831 = vmatprep.subr.mxu0 0.0
  %832 = vmatpush1.msra.mxu0 0.0
  %833 = vmatprep.subr.mxu0 0.0
  %834 = vmatpush1.msra.mxu0 0.0
  %835 = vmatprep.subr.mxu0 0.0
  %836 = vmatpush1.msra.mxu0 0.0
  %837 = vmatprep.mubr.f32.mxu0 0.0
  %838 = vmatmul.mubr.f32.gmra.mrb[0].mxu0 %v700
  %v839 = vpop.f32.mrb[0].mxu0
  %v840 = vadd.f32 0.0, %v839
  %v841 = vpop.f32.mrb[0].mxu0
  %v842 = vadd.f32 0.0, %v841
  %843 = vdwg.mxu0
  %v844 = vadd.f32 %v628, %v769
  %v845 = vadd.f32 %v629, %v771
  %v846 = vadd.f32 %v630, %v840
  %v847 = vadd.f32 %v631, %v842
  %s848 = scalar_lea.vmem %s0, 32
  %v849 = vld [vmem:[%s848] sm:$0xff]
  %855 = vrot.lane.b32.xlu0 %v26, 111
  %v856 = vpop.permute.xlu0 %855
  %857 = vrot.lane.b32.xlu0 %v27, 111
  %v858 = vpop.permute.xlu0 %857
  %859 = vrot.lane.b32.xlu0 %v28, 111
  %v860 = vpop.permute.xlu0 %859
  %861 = vrot.lane.b32.xlu0 %v29, 111
  %v862 = vpop.permute.xlu0 %861
  %863 = vrot.lane.b32.xlu0 %v57, 111
  %v864 = vpop.permute.xlu0 %863
  %vm865 = vcmask 908288
  %v866 = vsel %vm865, %v856, %v858
  %v867 = vsel %vm865, %v858, %v860
  %v868 = vsel %vm865, %v860, %v862
  %v869 = vsel %vm865, %v862, %v864
  %v875 = vsel %vm125, %v849, 0
  %877 = vmatprep.subr.mxu0 %v867
  %878 = vmatpush1.msra.mxu0 %v866
  %879 = vmatprep.subr.mxu0 0.0
  %880 = vmatpush1.msra.mxu0 0.0
  %881 = vmatprep.subr.mxu0 0.0
  %882 = vmatpush1.msra.mxu0 0.0
  %883 = vmatprep.subr.mxu0 0.0
  %884 = vmatpush1.msra.mxu0 0.0
  %885 = vmatprep.subr.mxu0 0.0
  %886 = vmatpush1.msra.mxu0 0.0
  %887 = vmatprep.subr.mxu0 0.0
  %888 = vmatpush1.msra.mxu0 0.0
  %889 = vmatprep.subr.mxu0 0.0
  %890 = vmatpush1.msra.mxu0 0.0
  %891 = vmatprep.subr.mxu0 0.0
  %892 = vmatpush1.msra.mxu0 0.0
  %893 = vmatprep.subr.mxu0 0.0
  %894 = vmatpush1.msra.mxu0 0.0
  %895 = vmatprep.subr.mxu0 0.0
  %896 = vmatpush1.msra.mxu0 0.0
  %897 = vmatprep.subr.mxu0 0.0
  %898 = vmatpush1.msra.mxu0 0.0
  %899 = vmatprep.subr.mxu0 0.0
  %900 = vmatpush1.msra.mxu0 0.0
  %901 = vmatprep.subr.mxu0 0.0
  %902 = vmatpush1.msra.mxu0 0.0
  %903 = vmatprep.subr.mxu0 0.0
  %904 = vmatpush1.msra.mxu0 0.0
  %905 = vmatprep.subr.mxu0 0.0
  %906 = vmatpush1.msra.mxu0 0.0
  %907 = vmatprep.subr.mxu0 0.0
  %908 = vmatpush1.msra.mxu0 0.0
  %909 = vmatprep.subr.mxu0 0.0
  %910 = vmatpush1.msra.mxu0 0.0
  %911 = vmatprep.subr.mxu0 0.0
  %912 = vmatpush1.msra.mxu0 0.0
  %913 = vmatprep.subr.mxu0 0.0
  %914 = vmatpush1.msra.mxu0 0.0
  %915 = vmatprep.subr.mxu0 0.0
  %916 = vmatpush1.msra.mxu0 0.0
  %917 = vmatprep.subr.mxu0 0.0
  %918 = vmatpush1.msra.mxu0 0.0
  %919 = vmatprep.subr.mxu0 0.0
  %920 = vmatpush1.msra.mxu0 0.0
  %921 = vmatprep.subr.mxu0 0.0
  %922 = vmatpush1.msra.mxu0 0.0
  %923 = vmatprep.subr.mxu0 0.0
  %924 = vmatpush1.msra.mxu0 0.0
  %925 = vmatprep.subr.mxu0 0.0
  %926 = vmatpush1.msra.mxu0 0.0
  %927 = vmatprep.subr.mxu0 0.0
  %928 = vmatpush1.msra.mxu0 0.0
  %929 = vmatprep.subr.mxu0 0.0
  %930 = vmatpush1.msra.mxu0 0.0
  %931 = vmatprep.subr.mxu0 0.0
  %932 = vmatpush1.msra.mxu0 0.0
  %933 = vmatprep.subr.mxu0 0.0
  %934 = vmatpush1.msra.mxu0 0.0
  %935 = vmatprep.subr.mxu0 0.0
  %936 = vmatpush1.msra.mxu0 0.0
  %937 = vmatprep.subr.mxu0 0.0
  %938 = vmatpush1.msra.mxu0 0.0
  %939 = vmatprep.subr.mxu0 0.0
  %940 = vmatpush1.msra.mxu0 0.0
  %941 = vmatprep.mubr.f32.mxu0 0.0
  %942 = vmatmul.mubr.f32.gmra.mrb[0].mxu0 %v875
  %v943 = vpop.f32.mrb[0].mxu0
  %v944 = vadd.f32 0.0, %v943
  %v945 = vpop.f32.mrb[0].mxu0
  %v946 = vadd.f32 0.0, %v945
  %947 = vdwg.mxu0
  %948 = vmatprep.subr.mxu0 %v869
  %949 = vmatpush1.msra.mxu0 %v868
  %950 = vmatprep.subr.mxu0 0.0
  %951 = vmatpush1.msra.mxu0 0.0
  %952 = vmatprep.subr.mxu0 0.0
  %953 = vmatpush1.msra.mxu0 0.0
  %954 = vmatprep.subr.mxu0 0.0
  %955 = vmatpush1.msra.mxu0 0.0
  %956 = vmatprep.subr.mxu0 0.0
  %957 = vmatpush1.msra.mxu0 0.0
  %958 = vmatprep.subr.mxu0 0.0
  %959 = vmatpush1.msra.mxu0 0.0
  %960 = vmatprep.subr.mxu0 0.0
  %961 = vmatpush1.msra.mxu0 0.0
  %962 = vmatprep.subr.mxu0 0.0
  %963 = vmatpush1.msra.mxu0 0.0
  %964 = vmatprep.subr.mxu0 0.0
  %965 = vmatpush1.msra.mxu0 0.0
  %966 = vmatprep.subr.mxu0 0.0
  %967 = vmatpush1.msra.mxu0 0.0
  %968 = vmatprep.subr.mxu0 0.0
  %969 = vmatpush1.msra.mxu0 0.0
  %970 = vmatprep.subr.mxu0 0.0
  %971 = vmatpush1.msra.mxu0 0.0
  %972 = vmatprep.subr.mxu0 0.0
  %973 = vmatpush1.msra.mxu0 0.0
  %974 = vmatprep.subr.mxu0 0.0
  %975 = vmatpush1.msra.mxu0 0.0
  %976 = vmatprep.subr.mxu0 0.0
  %977 = vmatpush1.msra.mxu0 0.0
  %978 = vmatprep.subr.mxu0 0.0
  %979 = vmatpush1.msra.mxu0 0.0
  %980 = vmatprep.subr.mxu0 0.0
  %981 = vmatpush1.msra.mxu0 0.0
  %982 = vmatprep.subr.mxu0 0.0
  %983 = vmatpush1.msra.mxu0 0.0
  %984 = vmatprep.subr.mxu0 0.0
  %985 = vmatpush1.msra.mxu0 0.0
  %986 = vmatprep.subr.mxu0 0.0
  %987 = vmatpush1.msra.mxu0 0.0
  %988 = vmatprep.subr.mxu0 0.0
  %989 = vmatpush1.msra.mxu0 0.0
  %990 = vmatprep.subr.mxu0 0.0
  %991 = vmatpush1.msra.mxu0 0.0
  %992 = vmatprep.subr.mxu0 0.0
  %993 = vmatpush1.msra.mxu0 0.0
  %994 = vmatprep.subr.mxu0 0.0
  %995 = vmatpush1.msra.mxu0 0.0
  %996 = vmatprep.subr.mxu0 0.0
  %997 = vmatpush1.msra.mxu0 0.0
  %998 = vmatprep.subr.mxu0 0.0
  %999 = vmatpush1.msra.mxu0 0.0
  %1000 = vmatprep.subr.mxu0 0.0
  %1001 = vmatpush1.msra.mxu0 0.0
  %1002 = vmatprep.subr.mxu0 0.0
  %1003 = vmatpush1.msra.mxu0 0.0
  %1004 = vmatprep.subr.mxu0 0.0
  %1005 = vmatpush1.msra.mxu0 0.0
  %1006 = vmatprep.subr.mxu0 0.0
  %1007 = vmatpush1.msra.mxu0 0.0
  %1008 = vmatprep.subr.mxu0 0.0
  %1009 = vmatpush1.msra.mxu0 0.0
  %1010 = vmatprep.subr.mxu0 0.0
  %1011 = vmatpush1.msra.mxu0 0.0
  %1012 = vmatprep.mubr.f32.mxu0 0.0
  %1013 = vmatmul.mubr.f32.gmra.mrb[0].mxu0 %v875
  %v1014 = vpop.f32.mrb[0].mxu0
  %v1015 = vadd.f32 0.0, %v1014
  %v1016 = vpop.f32.mrb[0].mxu0
  %v1017 = vadd.f32 0.0, %v1016
  %1018 = vdwg.mxu0
  %v1019 = vadd.f32 %v844, %v944
  %v1020 = vadd.f32 %v845, %v946
  %v1021 = vadd.f32 %v846, %v1015
  %v1022 = vadd.f32 %v847, %v1017
  %s1023 = scalar_lea.vmem %s2, 20
  %v1024 = vld [vmem:[%s1023] sm:$0xf]
  %v1026 = vlaneseq
  %v1027 = vshrl.u32 %v1026, 7
  %v1028 = vsub.s32 0, %v1027
  %v1029 = vrot.slane %v1024, %v1028
  %v1030 = vlaneseq
  %v1031 = vshrl.u32 %v1030, 7
  %v1032 = vsub.s32 1, %v1031
  %v1033 = vrot.slane %v1024, %v1032
  %v1034 = vlaneseq
  %v1035 = vshrl.u32 %v1034, 7
  %v1036 = vsub.s32 2, %v1035
  %v1037 = vrot.slane %v1024, %v1036
  %v1038 = vlaneseq
  %v1039 = vshrl.u32 %v1038, 7
  %v1040 = vsub.s32 3, %v1039
  %v1041 = vrot.slane %v1024, %v1040
  %1042 = vrot.lane.b32.xlu0 %v1029, 18
  %v1043 = vpop.permute.xlu0 %1042
  %1044 = vrot.lane.b32.xlu0 %v1033, 18
  %v1045 = vpop.permute.xlu0 %1044
  %1046 = vrot.lane.b32.xlu0 %v1037, 18
  %v1047 = vpop.permute.xlu0 %1046
  %1048 = vrot.lane.b32.xlu0 %v1041, 18
  %v1049 = vpop.permute.xlu0 %1048
  %vm1050 = vcmask 146432
  %v1051 = vsel %vm1050, %v1043, %v1045
  %v1052 = vsel %vm1050, %v1045, %v1047
  %v1053 = vsel %vm1050, %v1047, %v1049
  %v1059 = vmul.f32 %v26, %v1043
  %v1060 = vmul.f32 %v27, %v1051
  %v1061 = vmul.f32 %v28, %v1052
  %v1062 = vmul.f32 %v29, %v1053
  %v1063 = vmul.f32 %v57, %v1049
  %s1064 = scalar_lea.vmem %s0, 40
  %v1065 = vld [vmem:[%s1064] sm:$0xff]
  %1071 = vrot.lane.b32.xlu0 %v1059, 110
  %v1072 = vpop.permute.xlu0 %1071
  %1073 = vrot.lane.b32.xlu0 %v1060, 110
  %v1074 = vpop.permute.xlu0 %1073
  %1075 = vrot.lane.b32.xlu0 %v1061, 110
  %v1076 = vpop.permute.xlu0 %1075
  %1077 = vrot.lane.b32.xlu0 %v1062, 110
  %v1078 = vpop.permute.xlu0 %1077
  %1079 = vrot.lane.b32.xlu0 %v1063, 110
  %v1080 = vpop.permute.xlu0 %1079
  %vm1081 = vcmask 900096
  %v1082 = vsel %vm1081, %v1072, %v1074
  %v1083 = vsel %vm1081, %v1074, %v1076
  %v1084 = vsel %vm1081, %v1076, %v1078
  %v1085 = vsel %vm1081, %v1078, %v1080
  %v1091 = vsel %vm125, %v1065, 0
  %1093 = vmatprep.subr.mxu0 %v1083
  %1094 = vmatpush1.msra.mxu0 %v1082
  %1095 = vmatprep.subr.mxu0 0.0
  %1096 = vmatpush1.msra.mxu0 0.0
  %1097 = vmatprep.subr.mxu0 0.0
  %1098 = vmatpush1.msra.mxu0 0.0
  %1099 = vmatprep.subr.mxu0 0.0
  %1100 = vmatpush1.msra.mxu0 0.0
  %1101 = vmatprep.subr.mxu0 0.0
  %1102 = vmatpush1.msra.mxu0 0.0
  %1103 = vmatprep.subr.mxu0 0.0
  %1104 = vmatpush1.msra.mxu0 0.0
  %1105 = vmatprep.subr.mxu0 0.0
  %1106 = vmatpush1.msra.mxu0 0.0
  %1107 = vmatprep.subr.mxu0 0.0
  %1108 = vmatpush1.msra.mxu0 0.0
  %1109 = vmatprep.subr.mxu0 0.0
  %1110 = vmatpush1.msra.mxu0 0.0
  %1111 = vmatprep.subr.mxu0 0.0
  %1112 = vmatpush1.msra.mxu0 0.0
  %1113 = vmatprep.subr.mxu0 0.0
  %1114 = vmatpush1.msra.mxu0 0.0
  %1115 = vmatprep.subr.mxu0 0.0
  %1116 = vmatpush1.msra.mxu0 0.0
  %1117 = vmatprep.subr.mxu0 0.0
  %1118 = vmatpush1.msra.mxu0 0.0
  %1119 = vmatprep.subr.mxu0 0.0
  %1120 = vmatpush1.msra.mxu0 0.0
  %1121 = vmatprep.subr.mxu0 0.0
  %1122 = vmatpush1.msra.mxu0 0.0
  %1123 = vmatprep.subr.mxu0 0.0
  %1124 = vmatpush1.msra.mxu0 0.0
  %1125 = vmatprep.subr.mxu0 0.0
  %1126 = vmatpush1.msra.mxu0 0.0
  %1127 = vmatprep.subr.mxu0 0.0
  %1128 = vmatpush1.msra.mxu0 0.0
  %1129 = vmatprep.subr.mxu0 0.0
  %1130 = vmatpush1.msra.mxu0 0.0
  %1131 = vmatprep.subr.mxu0 0.0
  %1132 = vmatpush1.msra.mxu0 0.0
  %1133 = vmatprep.subr.mxu0 0.0
  %1134 = vmatpush1.msra.mxu0 0.0
  %1135 = vmatprep.subr.mxu0 0.0
  %1136 = vmatpush1.msra.mxu0 0.0
  %1137 = vmatprep.subr.mxu0 0.0
  %1138 = vmatpush1.msra.mxu0 0.0
  %1139 = vmatprep.subr.mxu0 0.0
  %1140 = vmatpush1.msra.mxu0 0.0
  %1141 = vmatprep.subr.mxu0 0.0
  %1142 = vmatpush1.msra.mxu0 0.0
  %1143 = vmatprep.subr.mxu0 0.0
  %1144 = vmatpush1.msra.mxu0 0.0
  %1145 = vmatprep.subr.mxu0 0.0
  %1146 = vmatpush1.msra.mxu0 0.0
  %1147 = vmatprep.subr.mxu0 0.0
  %1148 = vmatpush1.msra.mxu0 0.0
  %1149 = vmatprep.subr.mxu0 0.0
  %1150 = vmatpush1.msra.mxu0 0.0
  %1151 = vmatprep.subr.mxu0 0.0
  %1152 = vmatpush1.msra.mxu0 0.0
  %1153 = vmatprep.subr.mxu0 0.0
  %1154 = vmatpush1.msra.mxu0 0.0
  %1155 = vmatprep.subr.mxu0 0.0
  %1156 = vmatpush1.msra.mxu0 0.0
  %1157 = vmatprep.mubr.f32.mxu0 0.0
  %1158 = vmatmul.mubr.f32.gmra.mrb[0].mxu0 %v1091
  %v1159 = vpop.f32.mrb[0].mxu0
  %v1160 = vadd.f32 0.0, %v1159
  %v1161 = vpop.f32.mrb[0].mxu0
  %v1162 = vadd.f32 0.0, %v1161
  %1163 = vdwg.mxu0
  %1164 = vmatprep.subr.mxu0 %v1085
  %1165 = vmatpush1.msra.mxu0 %v1084
  %1166 = vmatprep.subr.mxu0 0.0
  %1167 = vmatpush1.msra.mxu0 0.0
  %1168 = vmatprep.subr.mxu0 0.0
  %1169 = vmatpush1.msra.mxu0 0.0
  %1170 = vmatprep.subr.mxu0 0.0
  %1171 = vmatpush1.msra.mxu0 0.0
  %1172 = vmatprep.subr.mxu0 0.0
  %1173 = vmatpush1.msra.mxu0 0.0
  %1174 = vmatprep.subr.mxu0 0.0
  %1175 = vmatpush1.msra.mxu0 0.0
  %1176 = vmatprep.subr.mxu0 0.0
  %1177 = vmatpush1.msra.mxu0 0.0
  %1178 = vmatprep.subr.mxu0 0.0
  %1179 = vmatpush1.msra.mxu0 0.0
  %1180 = vmatprep.subr.mxu0 0.0
  %1181 = vmatpush1.msra.mxu0 0.0
  %1182 = vmatprep.subr.mxu0 0.0
  %1183 = vmatpush1.msra.mxu0 0.0
  %1184 = vmatprep.subr.mxu0 0.0
  %1185 = vmatpush1.msra.mxu0 0.0
  %1186 = vmatprep.subr.mxu0 0.0
  %1187 = vmatpush1.msra.mxu0 0.0
  %1188 = vmatprep.subr.mxu0 0.0
  %1189 = vmatpush1.msra.mxu0 0.0
  %1190 = vmatprep.subr.mxu0 0.0
  %1191 = vmatpush1.msra.mxu0 0.0
  %1192 = vmatprep.subr.mxu0 0.0
  %1193 = vmatpush1.msra.mxu0 0.0
  %1194 = vmatprep.subr.mxu0 0.0
  %1195 = vmatpush1.msra.mxu0 0.0
  %1196 = vmatprep.subr.mxu0 0.0
  %1197 = vmatpush1.msra.mxu0 0.0
  %1198 = vmatprep.subr.mxu0 0.0
  %1199 = vmatpush1.msra.mxu0 0.0
  %1200 = vmatprep.subr.mxu0 0.0
  %1201 = vmatpush1.msra.mxu0 0.0
  %1202 = vmatprep.subr.mxu0 0.0
  %1203 = vmatpush1.msra.mxu0 0.0
  %1204 = vmatprep.subr.mxu0 0.0
  %1205 = vmatpush1.msra.mxu0 0.0
  %1206 = vmatprep.subr.mxu0 0.0
  %1207 = vmatpush1.msra.mxu0 0.0
  %1208 = vmatprep.subr.mxu0 0.0
  %1209 = vmatpush1.msra.mxu0 0.0
  %1210 = vmatprep.subr.mxu0 0.0
  %1211 = vmatpush1.msra.mxu0 0.0
  %1212 = vmatprep.subr.mxu0 0.0
  %1213 = vmatpush1.msra.mxu0 0.0
  %1214 = vmatprep.subr.mxu0 0.0
  %1215 = vmatpush1.msra.mxu0 0.0
  %1216 = vmatprep.subr.mxu0 0.0
  %1217 = vmatpush1.msra.mxu0 0.0
  %1218 = vmatprep.subr.mxu0 0.0
  %1219 = vmatpush1.msra.mxu0 0.0
  %1220 = vmatprep.subr.mxu0 0.0
  %1221 = vmatpush1.msra.mxu0 0.0
  %1222 = vmatprep.subr.mxu0 0.0
  %1223 = vmatpush1.msra.mxu0 0.0
  %1224 = vmatprep.subr.mxu0 0.0
  %1225 = vmatpush1.msra.mxu0 0.0
  %1226 = vmatprep.subr.mxu0 0.0
  %1227 = vmatpush1.msra.mxu0 0.0
  %1228 = vmatprep.mubr.f32.mxu0 0.0
  %1229 = vmatmul.mubr.f32.gmra.mrb[0].mxu0 %v1091
  %v1230 = vpop.f32.mrb[0].mxu0
  %v1231 = vadd.f32 0.0, %v1230
  %v1232 = vpop.f32.mrb[0].mxu0
  %v1233 = vadd.f32 0.0, %v1232
  %1234 = vdwg.mxu0
  %v1235 = vadd.f32 %v1019, %v1160
  %v1236 = vadd.f32 %v1020, %v1162
  %v1237 = vadd.f32 %v1021, %v1231
  %v1238 = vadd.f32 %v1022, %v1233
  %s1239 = scalar_lea.vmem %s2, 24
  %v1240 = vld [vmem:[%s1239] sm:$0xf]
  %v1242 = vlaneseq
  %v1243 = vshrl.u32 %v1242, 7
  %v1244 = vsub.s32 0, %v1243
  %v1245 = vrot.slane %v1240, %v1244
  %v1246 = vlaneseq
  %v1247 = vshrl.u32 %v1246, 7
  %v1248 = vsub.s32 1, %v1247
  %v1249 = vrot.slane %v1240, %v1248
  %v1250 = vlaneseq
  %v1251 = vshrl.u32 %v1250, 7
  %v1252 = vsub.s32 2, %v1251
  %v1253 = vrot.slane %v1240, %v1252
  %v1254 = vlaneseq
  %v1255 = vshrl.u32 %v1254, 7
  %v1256 = vsub.s32 3, %v1255
  %v1257 = vrot.slane %v1240, %v1256
  %1258 = vrot.lane.b32.xlu0 %v1245, 32
  %v1259 = vpop.permute.xlu0 %1258
  %1260 = vrot.lane.b32.xlu0 %v1249, 32
  %v1261 = vpop.permute.xlu0 %1260
  %1262 = vrot.lane.b32.xlu0 %v1253, 32
  %v1263 = vpop.permute.xlu0 %1262
  %1264 = vrot.lane.b32.xlu0 %v1257, 32
  %v1265 = vpop.permute.xlu0 %1264
  %vm1266 = vcmask 261120
  %v1267 = vsel %vm1266, %v1259, %v1261
  %v1268 = vsel %vm1266, %v1261, %v1263
  %v1269 = vsel %vm1266, %v1263, %v1265
  %v1275 = vmul.f32 %v26, %v1259
  %v1276 = vmul.f32 %v27, %v1267
  %v1277 = vmul.f32 %v28, %v1268
  %v1278 = vmul.f32 %v29, %v1269
  %v1279 = vmul.f32 %v57, %v1265
  %s1280 = scalar_lea.vmem %s0, 48
  %v1281 = vld [vmem:[%s1280] sm:$0xff]
  %1287 = vrot.lane.b32.xlu0 %v1275, 96
  %v1288 = vpop.permute.xlu0 %1287
  %1289 = vrot.lane.b32.xlu0 %v1276, 96
  %v1290 = vpop.permute.xlu0 %1289
  %1291 = vrot.lane.b32.xlu0 %v1277, 96
  %v1292 = vpop.permute.xlu0 %1291
  %1293 = vrot.lane.b32.xlu0 %v1278, 96
  %v1294 = vpop.permute.xlu0 %1293
  %1295 = vrot.lane.b32.xlu0 %v1279, 96
  %v1296 = vpop.permute.xlu0 %1295
  %vm1297 = vcmask 785408
  %v1298 = vsel %vm1297, %v1288, %v1290
  %v1299 = vsel %vm1297, %v1290, %v1292
  %v1300 = vsel %vm1297, %v1292, %v1294
  %v1301 = vsel %vm1297, %v1294, %v1296
  %v1307 = vsel %vm125, %v1281, 0
  %1309 = vmatprep.subr.mxu0 %v1299
  %1310 = vmatpush1.msra.mxu0 %v1298
  %1311 = vmatprep.subr.mxu0 0.0
  %1312 = vmatpush1.msra.mxu0 0.0
  %1313 = vmatprep.subr.mxu0 0.0
  %1314 = vmatpush1.msra.mxu0 0.0
  %1315 = vmatprep.subr.mxu0 0.0
  %1316 = vmatpush1.msra.mxu0 0.0
  %1317 = vmatprep.subr.mxu0 0.0
  %1318 = vmatpush1.msra.mxu0 0.0
  %1319 = vmatprep.subr.mxu0 0.0
  %1320 = vmatpush1.msra.mxu0 0.0
  %1321 = vmatprep.subr.mxu0 0.0
  %1322 = vmatpush1.msra.mxu0 0.0
  %1323 = vmatprep.subr.mxu0 0.0
  %1324 = vmatpush1.msra.mxu0 0.0
  %1325 = vmatprep.subr.mxu0 0.0
  %1326 = vmatpush1.msra.mxu0 0.0
  %1327 = vmatprep.subr.mxu0 0.0
  %1328 = vmatpush1.msra.mxu0 0.0
  %1329 = vmatprep.subr.mxu0 0.0
  %1330 = vmatpush1.msra.mxu0 0.0
  %1331 = vmatprep.subr.mxu0 0.0
  %1332 = vmatpush1.msra.mxu0 0.0
  %1333 = vmatprep.subr.mxu0 0.0
  %1334 = vmatpush1.msra.mxu0 0.0
  %1335 = vmatprep.subr.mxu0 0.0
  %1336 = vmatpush1.msra.mxu0 0.0
  %1337 = vmatprep.subr.mxu0 0.0
  %1338 = vmatpush1.msra.mxu0 0.0
  %1339 = vmatprep.subr.mxu0 0.0
  %1340 = vmatpush1.msra.mxu0 0.0
  %1341 = vmatprep.subr.mxu0 0.0
  %1342 = vmatpush1.msra.mxu0 0.0
  %1343 = vmatprep.subr.mxu0 0.0
  %1344 = vmatpush1.msra.mxu0 0.0
  %1345 = vmatprep.subr.mxu0 0.0
  %1346 = vmatpush1.msra.mxu0 0.0
  %1347 = vmatprep.subr.mxu0 0.0
  %1348 = vmatpush1.msra.mxu0 0.0
  %1349 = vmatprep.subr.mxu0 0.0
  %1350 = vmatpush1.msra.mxu0 0.0
  %1351 = vmatprep.subr.mxu0 0.0
  %1352 = vmatpush1.msra.mxu0 0.0
  %1353 = vmatprep.subr.mxu0 0.0
  %1354 = vmatpush1.msra.mxu0 0.0
  %1355 = vmatprep.subr.mxu0 0.0
  %1356 = vmatpush1.msra.mxu0 0.0
  %1357 = vmatprep.subr.mxu0 0.0
  %1358 = vmatpush1.msra.mxu0 0.0
  %1359 = vmatprep.subr.mxu0 0.0
  %1360 = vmatpush1.msra.mxu0 0.0
  %1361 = vmatprep.subr.mxu0 0.0
  %1362 = vmatpush1.msra.mxu0 0.0
  %1363 = vmatprep.subr.mxu0 0.0
  %1364 = vmatpush1.msra.mxu0 0.0
  %1365 = vmatprep.subr.mxu0 0.0
  %1366 = vmatpush1.msra.mxu0 0.0
  %1367 = vmatprep.subr.mxu0 0.0
  %1368 = vmatpush1.msra.mxu0 0.0
  %1369 = vmatprep.subr.mxu0 0.0
  %1370 = vmatpush1.msra.mxu0 0.0
  %1371 = vmatprep.subr.mxu0 0.0
  %1372 = vmatpush1.msra.mxu0 0.0
  %1373 = vmatprep.mubr.f32.mxu0 0.0
  %1374 = vmatmul.mubr.f32.gmra.mrb[0].mxu0 %v1307
  %v1375 = vpop.f32.mrb[0].mxu0
  %v1376 = vadd.f32 0.0, %v1375
  %v1377 = vpop.f32.mrb[0].mxu0
  %v1378 = vadd.f32 0.0, %v1377
  %1379 = vdwg.mxu0
  %1380 = vmatprep.subr.mxu0 %v1301
  %1381 = vmatpush1.msra.mxu0 %v1300
  %1382 = vmatprep.subr.mxu0 0.0
  %1383 = vmatpush1.msra.mxu0 0.0
  %1384 = vmatprep.subr.mxu0 0.0
  %1385 = vmatpush1.msra.mxu0 0.0
  %1386 = vmatprep.subr.mxu0 0.0
  %1387 = vmatpush1.msra.mxu0 0.0
  %1388 = vmatprep.subr.mxu0 0.0
  %1389 = vmatpush1.msra.mxu0 0.0
  %1390 = vmatprep.subr.mxu0 0.0
  %1391 = vmatpush1.msra.mxu0 0.0
  %1392 = vmatprep.subr.mxu0 0.0
  %1393 = vmatpush1.msra.mxu0 0.0
  %1394 = vmatprep.subr.mxu0 0.0
  %1395 = vmatpush1.msra.mxu0 0.0
  %1396 = vmatprep.subr.mxu0 0.0
  %1397 = vmatpush1.msra.mxu0 0.0
  %1398 = vmatprep.subr.mxu0 0.0
  %1399 = vmatpush1.msra.mxu0 0.0
  %1400 = vmatprep.subr.mxu0 0.0
  %1401 = vmatpush1.msra.mxu0 0.0
  %1402 = vmatprep.subr.mxu0 0.0
  %1403 = vmatpush1.msra.mxu0 0.0
  %1404 = vmatprep.subr.mxu0 0.0
  %1405 = vmatpush1.msra.mxu0 0.0
  %1406 = vmatprep.subr.mxu0 0.0
  %1407 = vmatpush1.msra.mxu0 0.0
  %1408 = vmatprep.subr.mxu0 0.0
  %1409 = vmatpush1.msra.mxu0 0.0
  %1410 = vmatprep.subr.mxu0 0.0
  %1411 = vmatpush1.msra.mxu0 0.0
  %1412 = vmatprep.subr.mxu0 0.0
  %1413 = vmatpush1.msra.mxu0 0.0
  %1414 = vmatprep.subr.mxu0 0.0
  %1415 = vmatpush1.msra.mxu0 0.0
  %1416 = vmatprep.subr.mxu0 0.0
  %1417 = vmatpush1.msra.mxu0 0.0
  %1418 = vmatprep.subr.mxu0 0.0
  %1419 = vmatpush1.msra.mxu0 0.0
  %1420 = vmatprep.subr.mxu0 0.0
  %1421 = vmatpush1.msra.mxu0 0.0
  %1422 = vmatprep.subr.mxu0 0.0
  %1423 = vmatpush1.msra.mxu0 0.0
  %1424 = vmatprep.subr.mxu0 0.0
  %1425 = vmatpush1.msra.mxu0 0.0
  %1426 = vmatprep.subr.mxu0 0.0
  %1427 = vmatpush1.msra.mxu0 0.0
  %1428 = vmatprep.subr.mxu0 0.0
  %1429 = vmatpush1.msra.mxu0 0.0
  %1430 = vmatprep.subr.mxu0 0.0
  %1431 = vmatpush1.msra.mxu0 0.0
  %1432 = vmatprep.subr.mxu0 0.0
  %1433 = vmatpush1.msra.mxu0 0.0
  %1434 = vmatprep.subr.mxu0 0.0
  %1435 = vmatpush1.msra.mxu0 0.0
  %1436 = vmatprep.subr.mxu0 0.0
  %1437 = vmatpush1.msra.mxu0 0.0
  %1438 = vmatprep.subr.mxu0 0.0
  %1439 = vmatpush1.msra.mxu0 0.0
  %1440 = vmatprep.subr.mxu0 0.0
  %1441 = vmatpush1.msra.mxu0 0.0
  %1442 = vmatprep.subr.mxu0 0.0
  %1443 = vmatpush1.msra.mxu0 0.0
  %1444 = vmatprep.mubr.f32.mxu0 0.0
  %1445 = vmatmul.mubr.f32.gmra.mrb[0].mxu0 %v1307
  %v1446 = vpop.f32.mrb[0].mxu0
  %v1447 = vadd.f32 0.0, %v1446
  %v1448 = vpop.f32.mrb[0].mxu0
  %v1449 = vadd.f32 0.0, %v1448
  %1450 = vdwg.mxu0
  %v1451 = vadd.f32 %v1235, %v1376
  %v1452 = vadd.f32 %v1236, %v1378
  %v1453 = vadd.f32 %v1237, %v1447
  %v1454 = vadd.f32 %v1238, %v1449
  %s1455 = scalar_lea.vmem %s2, 28
  %v1456 = vld [vmem:[%s1455] sm:$0xf]
  %v1458 = vlaneseq
  %v1459 = vshrl.u32 %v1458, 7
  %v1460 = vsub.s32 0, %v1459
  %v1461 = vrot.slane %v1456, %v1460
  %v1462 = vlaneseq
  %v1463 = vshrl.u32 %v1462, 7
  %v1464 = vsub.s32 1, %v1463
  %v1465 = vrot.slane %v1456, %v1464
  %v1466 = vlaneseq
  %v1467 = vshrl.u32 %v1466, 7
  %v1468 = vsub.s32 2, %v1467
  %v1469 = vrot.slane %v1456, %v1468
  %v1470 = vlaneseq
  %v1471 = vshrl.u32 %v1470, 7
  %v1472 = vsub.s32 3, %v1471
  %v1473 = vrot.slane %v1456, %v1472
  %1474 = vrot.lane.b32.xlu0 %v1461, 33
  %v1475 = vpop.permute.xlu0 %1474
  %1476 = vrot.lane.b32.xlu0 %v1465, 33
  %v1477 = vpop.permute.xlu0 %1476
  %1478 = vrot.lane.b32.xlu0 %v1469, 33
  %v1479 = vpop.permute.xlu0 %1478
  %1480 = vrot.lane.b32.xlu0 %v1473, 33
  %v1481 = vpop.permute.xlu0 %1480
  %vm1482 = vcmask 269312
  %v1483 = vsel %vm1482, %v1475, %v1477
  %v1484 = vsel %vm1482, %v1477, %v1479
  %v1485 = vsel %vm1482, %v1479, %v1481
  %v1491 = vmul.f32 %v26, %v1475
  %v1492 = vmul.f32 %v27, %v1483
  %v1493 = vmul.f32 %v28, %v1484
  %v1494 = vmul.f32 %v29, %v1485
  %v1495 = vmul.f32 %v57, %v1481
  %s1496 = scalar_lea.vmem %s0, 56
  %v1497 = vld [vmem:[%s1496] sm:$0xff]
  %1503 = vrot.lane.b32.xlu0 %v1491, 95
  %v1504 = vpop.permute.xlu0 %1503
  %1505 = vrot.lane.b32.xlu0 %v1492, 95
  %v1506 = vpop.permute.xlu0 %1505
  %1507 = vrot.lane.b32.xlu0 %v1493, 95
  %v1508 = vpop.permute.xlu0 %1507
  %1509 = vrot.lane.b32.xlu0 %v1494, 95
  %v1510 = vpop.permute.xlu0 %1509
  %1511 = vrot.lane.b32.xlu0 %v1495, 95
  %v1512 = vpop.permute.xlu0 %1511
  %vm1513 = vcmask 777216
  %v1514 = vsel %vm1513, %v1504, %v1506
  %v1515 = vsel %vm1513, %v1506, %v1508
  %v1516 = vsel %vm1513, %v1508, %v1510
  %v1517 = vsel %vm1513, %v1510, %v1512
  %v1523 = vsel %vm125, %v1497, 0
  %1525 = vmatprep.subr.mxu0 %v1515
  %1526 = vmatpush1.msra.mxu0 %v1514
  %1527 = vmatprep.subr.mxu0 0.0
  %1528 = vmatpush1.msra.mxu0 0.0
  %1529 = vmatprep.subr.mxu0 0.0
  %1530 = vmatpush1.msra.mxu0 0.0
  %1531 = vmatprep.subr.mxu0 0.0
  %1532 = vmatpush1.msra.mxu0 0.0
  %1533 = vmatprep.subr.mxu0 0.0
  %1534 = vmatpush1.msra.mxu0 0.0
  %1535 = vmatprep.subr.mxu0 0.0
  %1536 = vmatpush1.msra.mxu0 0.0
  %1537 = vmatprep.subr.mxu0 0.0
  %1538 = vmatpush1.msra.mxu0 0.0
  %1539 = vmatprep.subr.mxu0 0.0
  %1540 = vmatpush1.msra.mxu0 0.0
  %1541 = vmatprep.subr.mxu0 0.0
  %1542 = vmatpush1.msra.mxu0 0.0
  %1543 = vmatprep.subr.mxu0 0.0
  %1544 = vmatpush1.msra.mxu0 0.0
  %1545 = vmatprep.subr.mxu0 0.0
  %1546 = vmatpush1.msra.mxu0 0.0
  %1547 = vmatprep.subr.mxu0 0.0
  %1548 = vmatpush1.msra.mxu0 0.0
  %1549 = vmatprep.subr.mxu0 0.0
  %1550 = vmatpush1.msra.mxu0 0.0
  %1551 = vmatprep.subr.mxu0 0.0
  %1552 = vmatpush1.msra.mxu0 0.0
  %1553 = vmatprep.subr.mxu0 0.0
  %1554 = vmatpush1.msra.mxu0 0.0
  %1555 = vmatprep.subr.mxu0 0.0
  %1556 = vmatpush1.msra.mxu0 0.0
  %1557 = vmatprep.subr.mxu0 0.0
  %1558 = vmatpush1.msra.mxu0 0.0
  %1559 = vmatprep.subr.mxu0 0.0
  %1560 = vmatpush1.msra.mxu0 0.0
  %1561 = vmatprep.subr.mxu0 0.0
  %1562 = vmatpush1.msra.mxu0 0.0
  %1563 = vmatprep.subr.mxu0 0.0
  %1564 = vmatpush1.msra.mxu0 0.0
  %1565 = vmatprep.subr.mxu0 0.0
  %1566 = vmatpush1.msra.mxu0 0.0
  %1567 = vmatprep.subr.mxu0 0.0
  %1568 = vmatpush1.msra.mxu0 0.0
  %1569 = vmatprep.subr.mxu0 0.0
  %1570 = vmatpush1.msra.mxu0 0.0
  %1571 = vmatprep.subr.mxu0 0.0
  %1572 = vmatpush1.msra.mxu0 0.0
  %1573 = vmatprep.subr.mxu0 0.0
  %1574 = vmatpush1.msra.mxu0 0.0
  %1575 = vmatprep.subr.mxu0 0.0
  %1576 = vmatpush1.msra.mxu0 0.0
  %1577 = vmatprep.subr.mxu0 0.0
  %1578 = vmatpush1.msra.mxu0 0.0
  %1579 = vmatprep.subr.mxu0 0.0
  %1580 = vmatpush1.msra.mxu0 0.0
  %1581 = vmatprep.subr.mxu0 0.0
  %1582 = vmatpush1.msra.mxu0 0.0
  %1583 = vmatprep.subr.mxu0 0.0
  %1584 = vmatpush1.msra.mxu0 0.0
  %1585 = vmatprep.subr.mxu0 0.0
  %1586 = vmatpush1.msra.mxu0 0.0
  %1587 = vmatprep.subr.mxu0 0.0
  %1588 = vmatpush1.msra.mxu0 0.0
  %1589 = vmatprep.mubr.f32.mxu0 0.0
  %1590 = vmatmul.mubr.f32.gmra.mrb[0].mxu0 %v1523
  %v1591 = vpop.f32.mrb[0].mxu0
  %v1592 = vadd.f32 0.0, %v1591
  %v1593 = vpop.f32.mrb[0].mxu0
  %v1594 = vadd.f32 0.0, %v1593
  %1595 = vdwg.mxu0
  %1596 = vmatprep.subr.mxu0 %v1517
  %1597 = vmatpush1.msra.mxu0 %v1516
  %1598 = vmatprep.subr.mxu0 0.0
  %1599 = vmatpush1.msra.mxu0 0.0
  %1600 = vmatprep.subr.mxu0 0.0
  %1601 = vmatpush1.msra.mxu0 0.0
  %1602 = vmatprep.subr.mxu0 0.0
  %1603 = vmatpush1.msra.mxu0 0.0
  %1604 = vmatprep.subr.mxu0 0.0
  %1605 = vmatpush1.msra.mxu0 0.0
  %1606 = vmatprep.subr.mxu0 0.0
  %1607 = vmatpush1.msra.mxu0 0.0
  %1608 = vmatprep.subr.mxu0 0.0
  %1609 = vmatpush1.msra.mxu0 0.0
  %1610 = vmatprep.subr.mxu0 0.0
  %1611 = vmatpush1.msra.mxu0 0.0
  %1612 = vmatprep.subr.mxu0 0.0
  %1613 = vmatpush1.msra.mxu0 0.0
  %1614 = vmatprep.subr.mxu0 0.0
  %1615 = vmatpush1.msra.mxu0 0.0
  %1616 = vmatprep.subr.mxu0 0.0
  %1617 = vmatpush1.msra.mxu0 0.0
  %1618 = vmatprep.subr.mxu0 0.0
  %1619 = vmatpush1.msra.mxu0 0.0
  %1620 = vmatprep.subr.mxu0 0.0
  %1621 = vmatpush1.msra.mxu0 0.0
  %1622 = vmatprep.subr.mxu0 0.0
  %1623 = vmatpush1.msra.mxu0 0.0
  %1624 = vmatprep.subr.mxu0 0.0
  %1625 = vmatpush1.msra.mxu0 0.0
  %1626 = vmatprep.subr.mxu0 0.0
  %1627 = vmatpush1.msra.mxu0 0.0
  %1628 = vmatprep.subr.mxu0 0.0
  %1629 = vmatpush1.msra.mxu0 0.0
  %1630 = vmatprep.subr.mxu0 0.0
  %1631 = vmatpush1.msra.mxu0 0.0
  %1632 = vmatprep.subr.mxu0 0.0
  %1633 = vmatpush1.msra.mxu0 0.0
  %1634 = vmatprep.subr.mxu0 0.0
  %1635 = vmatpush1.msra.mxu0 0.0
  %1636 = vmatprep.subr.mxu0 0.0
  %1637 = vmatpush1.msra.mxu0 0.0
  %1638 = vmatprep.subr.mxu0 0.0
  %1639 = vmatpush1.msra.mxu0 0.0
  %1640 = vmatprep.subr.mxu0 0.0
  %1641 = vmatpush1.msra.mxu0 0.0
  %1642 = vmatprep.subr.mxu0 0.0
  %1643 = vmatpush1.msra.mxu0 0.0
  %1644 = vmatprep.subr.mxu0 0.0
  %1645 = vmatpush1.msra.mxu0 0.0
  %1646 = vmatprep.subr.mxu0 0.0
  %1647 = vmatpush1.msra.mxu0 0.0
  %1648 = vmatprep.subr.mxu0 0.0
  %1649 = vmatpush1.msra.mxu0 0.0
  %1650 = vmatprep.subr.mxu0 0.0
  %1651 = vmatpush1.msra.mxu0 0.0
  %1652 = vmatprep.subr.mxu0 0.0
  %1653 = vmatpush1.msra.mxu0 0.0
  %1654 = vmatprep.subr.mxu0 0.0
  %1655 = vmatpush1.msra.mxu0 0.0
  %1656 = vmatprep.subr.mxu0 0.0
  %1657 = vmatpush1.msra.mxu0 0.0
  %1658 = vmatprep.subr.mxu0 0.0
  %1659 = vmatpush1.msra.mxu0 0.0
  %1660 = vmatprep.mubr.f32.mxu0 0.0
  %1661 = vmatmul.mubr.f32.gmra.mrb[0].mxu0 %v1523
  %v1662 = vpop.f32.mrb[0].mxu0
  %v1663 = vadd.f32 0.0, %v1662
  %v1664 = vpop.f32.mrb[0].mxu0
  %v1665 = vadd.f32 0.0, %v1664
  %1666 = vdwg.mxu0
  %v1667 = vadd.f32 %v1451, %v1592
  %v1668 = vadd.f32 %v1452, %v1594
  %v1669 = vadd.f32 %v1453, %v1663
  %v1670 = vadd.f32 %v1454, %v1665
  %s1671 = scalar_lea.vmem %s2, 32
  %v1672 = vld [vmem:[%s1671] sm:$0xf]
  %v1674 = vlaneseq
  %v1675 = vshrl.u32 %v1674, 7
  %v1676 = vsub.s32 0, %v1675
  %v1677 = vrot.slane %v1672, %v1676
  %v1678 = vlaneseq
  %v1679 = vshrl.u32 %v1678, 7
  %v1680 = vsub.s32 1, %v1679
  %v1681 = vrot.slane %v1672, %v1680
  %v1682 = vlaneseq
  %v1683 = vshrl.u32 %v1682, 7
  %v1684 = vsub.s32 2, %v1683
  %v1685 = vrot.slane %v1672, %v1684
  %v1686 = vlaneseq
  %v1687 = vshrl.u32 %v1686, 7
  %v1688 = vsub.s32 3, %v1687
  %v1689 = vrot.slane %v1672, %v1688
  %1690 = vrot.lane.b32.xlu0 %v1677, 34
  %v1691 = vpop.permute.xlu0 %1690
  %1692 = vrot.lane.b32.xlu0 %v1681, 34
  %v1693 = vpop.permute.xlu0 %1692
  %1694 = vrot.lane.b32.xlu0 %v1685, 34
  %v1695 = vpop.permute.xlu0 %1694
  %1696 = vrot.lane.b32.xlu0 %v1689, 34
  %v1697 = vpop.permute.xlu0 %1696
  %vm1698 = vcmask 277504
  %v1699 = vsel %vm1698, %v1691, %v1693
  %v1700 = vsel %vm1698, %v1693, %v1695
  %v1701 = vsel %vm1698, %v1695, %v1697
  %v1707 = vmul.f32 %v26, %v1691
  %v1708 = vmul.f32 %v27, %v1699
  %v1709 = vmul.f32 %v28, %v1700
  %v1710 = vmul.f32 %v29, %v1701
  %v1711 = vmul.f32 %v57, %v1697
  %s1712 = scalar_lea.vmem %s0, 64
  %v1713 = vld [vmem:[%s1712] sm:$0xff]
  %1719 = vrot.lane.b32.xlu0 %v1707, 94
  %v1720 = vpop.permute.xlu0 %1719
  %1721 = vrot.lane.b32.xlu0 %v1708, 94
  %v1722 = vpop.permute.xlu0 %1721
  %1723 = vrot.lane.b32.xlu0 %v1709, 94
  %v1724 = vpop.permute.xlu0 %1723
  %1725 = vrot.lane.b32.xlu0 %v1710, 94
  %v1726 = vpop.permute.xlu0 %1725
  %1727 = vrot.lane.b32.xlu0 %v1711, 94
  %v1728 = vpop.permute.xlu0 %1727
  %vm1729 = vcmask 769024
  %v1730 = vsel %vm1729, %v1720, %v1722
  %v1731 = vsel %vm1729, %v1722, %v1724
  %v1732 = vsel %vm1729, %v1724, %v1726
  %v1733 = vsel %vm1729, %v1726, %v1728
  %v1739 = vsel %vm125, %v1713, 0
  %1741 = vmatprep.subr.mxu0 %v1731
  %1742 = vmatpush1.msra.mxu0 %v1730
  %1743 = vmatprep.subr.mxu0 0.0
  %1744 = vmatpush1.msra.mxu0 0.0
  %1745 = vmatprep.subr.mxu0 0.0
  %1746 = vmatpush1.msra.mxu0 0.0
  %1747 = vmatprep.subr.mxu0 0.0
  %1748 = vmatpush1.msra.mxu0 0.0
  %1749 = vmatprep.subr.mxu0 0.0
  %1750 = vmatpush1.msra.mxu0 0.0
  %1751 = vmatprep.subr.mxu0 0.0
  %1752 = vmatpush1.msra.mxu0 0.0
  %1753 = vmatprep.subr.mxu0 0.0
  %1754 = vmatpush1.msra.mxu0 0.0
  %1755 = vmatprep.subr.mxu0 0.0
  %1756 = vmatpush1.msra.mxu0 0.0
  %1757 = vmatprep.subr.mxu0 0.0
  %1758 = vmatpush1.msra.mxu0 0.0
  %1759 = vmatprep.subr.mxu0 0.0
  %1760 = vmatpush1.msra.mxu0 0.0
  %1761 = vmatprep.subr.mxu0 0.0
  %1762 = vmatpush1.msra.mxu0 0.0
  %1763 = vmatprep.subr.mxu0 0.0
  %1764 = vmatpush1.msra.mxu0 0.0
  %1765 = vmatprep.subr.mxu0 0.0
  %1766 = vmatpush1.msra.mxu0 0.0
  %1767 = vmatprep.subr.mxu0 0.0
  %1768 = vmatpush1.msra.mxu0 0.0
  %1769 = vmatprep.subr.mxu0 0.0
  %1770 = vmatpush1.msra.mxu0 0.0
  %1771 = vmatprep.subr.mxu0 0.0
  %1772 = vmatpush1.msra.mxu0 0.0
  %1773 = vmatprep.subr.mxu0 0.0
  %1774 = vmatpush1.msra.mxu0 0.0
  %1775 = vmatprep.subr.mxu0 0.0
  %1776 = vmatpush1.msra.mxu0 0.0
  %1777 = vmatprep.subr.mxu0 0.0
  %1778 = vmatpush1.msra.mxu0 0.0
  %1779 = vmatprep.subr.mxu0 0.0
  %1780 = vmatpush1.msra.mxu0 0.0
  %1781 = vmatprep.subr.mxu0 0.0
  %1782 = vmatpush1.msra.mxu0 0.0
  %1783 = vmatprep.subr.mxu0 0.0
  %1784 = vmatpush1.msra.mxu0 0.0
  %1785 = vmatprep.subr.mxu0 0.0
  %1786 = vmatpush1.msra.mxu0 0.0
  %1787 = vmatprep.subr.mxu0 0.0
  %1788 = vmatpush1.msra.mxu0 0.0
  %1789 = vmatprep.subr.mxu0 0.0
  %1790 = vmatpush1.msra.mxu0 0.0
  %1791 = vmatprep.subr.mxu0 0.0
  %1792 = vmatpush1.msra.mxu0 0.0
  %1793 = vmatprep.subr.mxu0 0.0
  %1794 = vmatpush1.msra.mxu0 0.0
  %1795 = vmatprep.subr.mxu0 0.0
  %1796 = vmatpush1.msra.mxu0 0.0
  %1797 = vmatprep.subr.mxu0 0.0
  %1798 = vmatpush1.msra.mxu0 0.0
  %1799 = vmatprep.subr.mxu0 0.0
  %1800 = vmatpush1.msra.mxu0 0.0
  %1801 = vmatprep.subr.mxu0 0.0
  %1802 = vmatpush1.msra.mxu0 0.0
  %1803 = vmatprep.subr.mxu0 0.0
  %1804 = vmatpush1.msra.mxu0 0.0
  %1805 = vmatprep.mubr.f32.mxu0 0.0
  %1806 = vmatmul.mubr.f32.gmra.mrb[0].mxu0 %v1739
  %v1807 = vpop.f32.mrb[0].mxu0
  %v1808 = vadd.f32 0.0, %v1807
  %v1809 = vpop.f32.mrb[0].mxu0
  %v1810 = vadd.f32 0.0, %v1809
  %1811 = vdwg.mxu0
  %1812 = vmatprep.subr.mxu0 %v1733
  %1813 = vmatpush1.msra.mxu0 %v1732
  %1814 = vmatprep.subr.mxu0 0.0
  %1815 = vmatpush1.msra.mxu0 0.0
  %1816 = vmatprep.subr.mxu0 0.0
  %1817 = vmatpush1.msra.mxu0 0.0
  %1818 = vmatprep.subr.mxu0 0.0
  %1819 = vmatpush1.msra.mxu0 0.0
  %1820 = vmatprep.subr.mxu0 0.0
  %1821 = vmatpush1.msra.mxu0 0.0
  %1822 = vmatprep.subr.mxu0 0.0
  %1823 = vmatpush1.msra.mxu0 0.0
  %1824 = vmatprep.subr.mxu0 0.0
  %1825 = vmatpush1.msra.mxu0 0.0
  %1826 = vmatprep.subr.mxu0 0.0
  %1827 = vmatpush1.msra.mxu0 0.0
  %1828 = vmatprep.subr.mxu0 0.0
  %1829 = vmatpush1.msra.mxu0 0.0
  %1830 = vmatprep.subr.mxu0 0.0
  %1831 = vmatpush1.msra.mxu0 0.0
  %1832 = vmatprep.subr.mxu0 0.0
  %1833 = vmatpush1.msra.mxu0 0.0
  %1834 = vmatprep.subr.mxu0 0.0
  %1835 = vmatpush1.msra.mxu0 0.0
  %1836 = vmatprep.subr.mxu0 0.0
  %1837 = vmatpush1.msra.mxu0 0.0
  %1838 = vmatprep.subr.mxu0 0.0
  %1839 = vmatpush1.msra.mxu0 0.0
  %1840 = vmatprep.subr.mxu0 0.0
  %1841 = vmatpush1.msra.mxu0 0.0
  %1842 = vmatprep.subr.mxu0 0.0
  %1843 = vmatpush1.msra.mxu0 0.0
  %1844 = vmatprep.subr.mxu0 0.0
  %1845 = vmatpush1.msra.mxu0 0.0
  %1846 = vmatprep.subr.mxu0 0.0
  %1847 = vmatpush1.msra.mxu0 0.0
  %1848 = vmatprep.subr.mxu0 0.0
  %1849 = vmatpush1.msra.mxu0 0.0
  %1850 = vmatprep.subr.mxu0 0.0
  %1851 = vmatpush1.msra.mxu0 0.0
  %1852 = vmatprep.subr.mxu0 0.0
  %1853 = vmatpush1.msra.mxu0 0.0
  %1854 = vmatprep.subr.mxu0 0.0
  %1855 = vmatpush1.msra.mxu0 0.0
  %1856 = vmatprep.subr.mxu0 0.0
  %1857 = vmatpush1.msra.mxu0 0.0
  %1858 = vmatprep.subr.mxu0 0.0
  %1859 = vmatpush1.msra.mxu0 0.0
  %1860 = vmatprep.subr.mxu0 0.0
  %1861 = vmatpush1.msra.mxu0 0.0
  %1862 = vmatprep.subr.mxu0 0.0
  %1863 = vmatpush1.msra.mxu0 0.0
  %1864 = vmatprep.subr.mxu0 0.0
  %1865 = vmatpush1.msra.mxu0 0.0
  %1866 = vmatprep.subr.mxu0 0.0
  %1867 = vmatpush1.msra.mxu0 0.0
  %1868 = vmatprep.subr.mxu0 0.0
  %1869 = vmatpush1.msra.mxu0 0.0
  %1870 = vmatprep.subr.mxu0 0.0
  %1871 = vmatpush1.msra.mxu0 0.0
  %1872 = vmatprep.subr.mxu0 0.0
  %1873 = vmatpush1.msra.mxu0 0.0
  %1874 = vmatprep.subr.mxu0 0.0
  %1875 = vmatpush1.msra.mxu0 0.0
  %1876 = vmatprep.mubr.f32.mxu0 0.0
  %1877 = vmatmul.mubr.f32.gmra.mrb[0].mxu0 %v1739
  %v1878 = vpop.f32.mrb[0].mxu0
  %v1879 = vadd.f32 0.0, %v1878
  %v1880 = vpop.f32.mrb[0].mxu0
  %v1881 = vadd.f32 0.0, %v1880
  %1882 = vdwg.mxu0
  %v1883 = vadd.f32 %v1667, %v1808
  %v1884 = vadd.f32 %v1668, %v1810
  %v1885 = vadd.f32 %v1669, %v1879
  %v1886 = vadd.f32 %v1670, %v1881
  %v1887 = vld [vmem:[%s3] sm:$0xff]
  %v1888 = vld [vmem:[%s3 + $0x8] sm:$0xff]
  %v1889 = vld [vmem:[%s3 + $0x10] sm:$0xff]
  %v1890 = vld [vmem:[%s3 + $0x18] sm:$0xff]
  %v1891 = vld [vmem:[%s4] sm:$0xff]
  %v1892 = vld [vmem:[%s4 + $0x8] sm:$0xff]
  %v1893 = vld [vmem:[%s4 + $0x10] sm:$0xff]
  %v1894 = vld [vmem:[%s4 + $0x18] sm:$0xff]
  %v1895 = vmul.f32 %v1887, %v1887
  %v1896 = vmul.f32 %v1888, %v1888
  %v1897 = vmul.f32 %v1889, %v1889
  %v1898 = vmul.f32 %v1890, %v1890
  %v1899 = vmul.f32 %v1891, %v1891
  %v1900 = vmul.f32 %v1892, %v1892
  %v1901 = vmul.f32 %v1893, %v1893
  %v1902 = vmul.f32 %v1894, %v1894
  %v1903 = vadd.f32 %v1895, %v1899
  %v1904 = vadd.f32 %v1896, %v1900
  %v1905 = vadd.f32 %v1897, %v1901
  %v1906 = vadd.f32 %v1898, %v1902
  %v1907 = vrsqrt.pop %v1903
  %v1908 = vmul.f32 %v1903, %v1907
  %vm1909 = vcmp.eq.f32.partialorder %v1903, inf
  %v1910 = vsel %vm1909, %v1903, %v1908
  %vm1911 = vcmp.eq.f32.partialorder %v1903, 0.0
  %v1912 = vand.u32 %v1903, 2147483648
  %v1913 = vsel %vm1911, %v1912, %v1910
  %v1914 = vrsqrt.pop %v1904
  %v1915 = vmul.f32 %v1904, %v1914
  %vm1916 = vcmp.eq.f32.partialorder %v1904, inf
  %v1917 = vsel %vm1916, %v1904, %v1915
  %vm1918 = vcmp.eq.f32.partialorder %v1904, 0.0
  %v1919 = vand.u32 %v1904, 2147483648
  %v1920 = vsel %vm1918, %v1919, %v1917
  %v1921 = vrsqrt.pop %v1905
  %v1922 = vmul.f32 %v1905, %v1921
  %vm1923 = vcmp.eq.f32.partialorder %v1905, inf
  %v1924 = vsel %vm1923, %v1905, %v1922
  %vm1925 = vcmp.eq.f32.partialorder %v1905, 0.0
  %v1926 = vand.u32 %v1905, 2147483648
  %v1927 = vsel %vm1925, %v1926, %v1924
  %v1928 = vrsqrt.pop %v1906
  %v1929 = vmul.f32 %v1906, %v1928
  %vm1930 = vcmp.eq.f32.partialorder %v1906, inf
  %v1931 = vsel %vm1930, %v1906, %v1929
  %vm1932 = vcmp.eq.f32.partialorder %v1906, 0.0
  %v1933 = vand.u32 %v1906, 2147483648
  %v1934 = vsel %vm1932, %v1933, %v1931
  %v1935 = vadd.f32 %v1883, %v1913
  %v1936 = vadd.f32 %v1884, %v1920
  %v1937 = vadd.f32 %v1885, %v1927
  %v1938 = vadd.f32 %v1886, %v1934
  %v1939 = vadd.f32 %v1935, %v1936
  %v1940 = vadd.f32 %v1939, %v1937
  %v1941 = vadd.f32 %v1940, %v1938
  %1942 = vadd.xlane.f32.xlu0 %v1941
  %v1943 = vpop.xlane.xlu0 %1942
  %v1944 = vmul.f32 %v1943, 0.001953125
  %v1945 = vmul.f32 %v1935, %v1935
  %v1946 = vmul.f32 %v1936, %v1936
  %v1947 = vmul.f32 %v1937, %v1937
  %v1948 = vmul.f32 %v1938, %v1938
  %v1949 = vadd.f32 %v1945, %v1946
  %v1950 = vadd.f32 %v1949, %v1947
  %v1951 = vadd.f32 %v1950, %v1948
  %1952 = vadd.xlane.f32.xlu0 %v1951
  %v1953 = vpop.xlane.xlu0 %1952
  %v1954 = vmul.f32 %v1953, 0.001953125
  %v1955 = vmul.f32 %v1944, %v1944
  %v1956 = vsub.f32 %v1954, %v1955
  %v1957 = vadd.f32 %v1956, 1e-05
  %v1958 = vrsqrt.pop %v1957
  %v1959 = vsub.f32 %v1935, %v1944
  %v1960 = vsub.f32 %v1936, %v1944
  %v1961 = vsub.f32 %v1937, %v1944
  %v1962 = vsub.f32 %v1938, %v1944
  %v1963 = vld [vmem:[%s5] sm:$0xff]
  %v1964 = vmul.f32 %v1958, %v1963
  %1966 = vset.pattern.permute.xlu0 0
  %1967 = vperm.xlu0 %1966, %v1964
  %v1968 = vpop.permute.xlu0 %1967
  %v1970 = vmul.f32 %v1959, %v1968
  %v1971 = vmul.f32 %v1960, %v1968
  %v1972 = vmul.f32 %v1961, %v1968
  %v1973 = vmul.f32 %v1962, %v1968
  %v1974 = vld [vmem:[%s6] sm:$0xff]
  %1976 = vset.pattern.permute.xlu0 0
  %1977 = vperm.xlu0 %1976, %v1974
  %v1978 = vpop.permute.xlu0 %1977
  %v1980 = vadd.f32 %v1970, %v1978
  %v1981 = vadd.f32 %v1971, %v1978
  %v1982 = vadd.f32 %v1972, %v1978
  %v1983 = vadd.f32 %v1973, %v1978
  %vm1984 = vcmp.ge.f32.partialorder %v1980, 0.0
  %vm1985 = vcmp.ge.f32.partialorder %v1981, 0.0
  %vm1986 = vcmp.ge.f32.partialorder %v1982, 0.0
  %vm1987 = vcmp.ge.f32.partialorder %v1983, 0.0
  %v1988 = vmul.f32 %v1980, 0.01
  %v1989 = vmul.f32 %v1981, 0.01
  %v1990 = vmul.f32 %v1982, 0.01
  %v1991 = vmul.f32 %v1983, 0.01
  %v1992 = vsel %vm1984, %v1980, %v1988
  %v1993 = vsel %vm1985, %v1981, %v1989
  %v1994 = vsel %vm1986, %v1982, %v1990
  %v1995 = vsel %vm1987, %v1983, %v1991
  %1996 = vst [vmem:[%s7] sm:$0xff] %v1992
  %1997 = vst [vmem:[%s7 + $0x8] sm:$0xff] %v1993
  %1998 = vst [vmem:[%s7 + $0x10] sm:$0xff] %v1994
  %1999 = vst [vmem:[%s7 + $0x18] sm:$0xff] %v1995
  // Predicated region
  $region30: #{gnet1_forward.14} parent=0 // pred_check
    _
  $region31: #{gnet1_forward.14} parent=0 // pred_check_branch
    %2001 = sbr.rel (0) target = $region33
  $region32: #{gnet1_forward.14} parent=0 // pred_region
    _
  $region33: #{gnet1_forward.14} parent=0 // pred_fallthru
    _
  // Predicated region
  $region34: #{gnet1_forward.14} parent=0 // pred_check
    _
  $region35: #{gnet1_forward.14} parent=0 // pred_check_branch
    %2003 = sbr.rel (0) target = $region37
  $region36: #{gnet1_forward.14} parent=0 // pred_region
    _
  $region37: #{gnet1_forward.14} parent=0 // pred_fallthru
    _

// kernel: gnet1_forward.17
$region0: #{gnet1_forward.17}
  #allocation0 [shape = 'u32[]', space=smem, size = 0x4, offset = 0x4, fixed_abs, tag = 'smem constant byte address 0x4 - core index']
  #allocation1 [shape = 'u32[144,128]{1,0:T(1,128)}', space=vmem, size = 0x12000, scoped, tag = 'internal scratch']
  %s0 = inlined_call_operand.vmem [shape: f32[1,2], index: 0, kind: input, shape index: {}]
  %s1 = inlined_call_operand.vmem [shape: f32[9,4,8], index: 1, kind: input, shape index: {}]
  %s2 = inlined_call_operand.vmem [shape: f32[8,546], index: 2, kind: input, shape index: {}]
  %s3 = inlined_call_operand.vmem [shape: f32[9,1,512], index: 3, kind: input, shape index: {}]
  %s4 = inlined_call_operand.vmem [shape: f32[4,1], index: 4, kind: input, shape index: {}]
  %s5 = inlined_call_operand.vmem [shape: f32[4,512], index: 5, kind: input, shape index: {}]
  %s6 = inlined_call_operand.vmem [shape: f32[4,512], index: 6, kind: output, shape index: {}]
  %s7 = sld [smem:[#allocation0]]
  $region38: #{gnet1_forward.17} parent=0
    _
  %s9 = ssub.s32 1, %s7
  %s10 = scalar_select 0, %s9, %s7
  $region1: #{gnet1_forward.17} parent=0
    #allocation2 [shape = 'u8[512]{0}', space=smem, size = 0x200, scoped, tag = 'input window, operand 0, single buffered']
    #allocation3 [shape = 's32[1]{0}', space=sflag, size = 0x4, scoped, tag = 'scoped memory for gnet1_forward.17']
    %11 = vsyncpa [#allocation3], 0
    // Predicated region
    $region2: #{gnet1_forward.17} parent=1 // pred_check
      _
    $region3: #{gnet1_forward.17} parent=1 // pred_check_branch
      %13 = sbr.rel (0) target = $region5
    $region4: #{gnet1_forward.17} parent=1 // pred_region
      %s15 = ssub.s32 16, 16
      %16 = vsyncadd [#allocation3], %s15
      %s18 = sshll.u32 %s0, 4
      %s19 = int_to_ptr.vmem [resolvable:$true] %s18
      %21 = dma.vmem_to_smem %s19, 16, [#allocation2], [#allocation3]
    $region5: #{gnet1_forward.17} parent=1 // pred_fallthru
      _
    // Predicated region
    $region6: #{gnet1_forward.17} parent=1 // pred_check
      _
    $region7: #{gnet1_forward.17} parent=1 // pred_check_branch
      %23 = sbr.rel (0) target = $region9
    $region8: #{gnet1_forward.17} parent=1 // pred_region
      _
    $region9: #{gnet1_forward.17} parent=1 // pred_fallthru
      _
    // Predicated region
    $region10: #{gnet1_forward.17} parent=1 // pred_check
      _
    $region11: #{gnet1_forward.17} parent=1 // pred_check_branch
      %25 = sbr.rel (0) target = $region13
    $region12: #{gnet1_forward.17} parent=1 // pred_region
      _
    $region13: #{gnet1_forward.17} parent=1 // pred_fallthru
      _
    // Predicated region
    $region14: #{gnet1_forward.17} parent=1 // pred_check
      _
    $region15: #{gnet1_forward.17} parent=1 // pred_check_branch
      %27 = sbr.rel (0) target = $region17
    $region16: #{gnet1_forward.17} parent=1 // pred_region
      _
    $region17: #{gnet1_forward.17} parent=1 // pred_fallthru
      _
    // Predicated region
    $region18: #{gnet1_forward.17} parent=1 // pred_check
      _
    $region19: #{gnet1_forward.17} parent=1 // pred_check_branch
      %29 = sbr.rel (0) target = $region21
    $region20: #{gnet1_forward.17} parent=1 // pred_region
      _
    $region21: #{gnet1_forward.17} parent=1 // pred_fallthru
      _
    // Predicated region
    $region22: #{gnet1_forward.17} parent=1 // pred_check
      _
    $region23: #{gnet1_forward.17} parent=1 // pred_check_branch
      %31 = sbr.rel (0) target = $region25
    $region24: #{gnet1_forward.17} parent=1 // pred_region
      _
    $region25: #{gnet1_forward.17} parent=1 // pred_fallthru
      _
    // Predicated region
    $region26: #{gnet1_forward.17} parent=1 // pred_check
      _
    $region27: #{gnet1_forward.17} parent=1 // pred_check_branch
      %33 = sbr.rel (0) target = $region29
    $region28: #{gnet1_forward.17} parent=1 // pred_region
      %34 = dma.done [#allocation3], 16
    $region29: #{gnet1_forward.17} parent=1 // pred_fallthru
      _
    %35 = sfence
    %v36 = vld [vmem:[%s2] sm:$0xff]
    %v37 = vld [vmem:[%s2 + $0x8] sm:$0xff]
    %v38 = vld [vmem:[%s2 + $0x10] sm:$0xff]
    %v39 = vld [vmem:[%s2 + $0x18] sm:$0xff]
    %v40 = vld [vmem:[%s3] sm:$0xf]
    %v42 = vlaneseq
    %v43 = vshrl.u32 %v42, 7
    %v44 = vsub.s32 0, %v43
    %v45 = vrot.slane %v40, %v44
    %v46 = vlaneseq
    %v47 = vshrl.u32 %v46, 7
    %v48 = vsub.s32 1, %v47
    %v49 = vrot.slane %v40, %v48
    %v50 = vlaneseq
    %v51 = vshrl.u32 %v50, 7
    %v52 = vsub.s32 2, %v51
    %v53 = vrot.slane %v40, %v52
    %v54 = vlaneseq
    %v55 = vshrl.u32 %v54, 7
    %v56 = vsub.s32 3, %v55
    %v57 = vrot.slane %v40, %v56
    %v62 = vmul.f32 %v36, %v45
    %v63 = vmul.f32 %v37, %v49
    %v64 = vmul.f32 %v38, %v53
    %v65 = vmul.f32 %v39, %v57
    %v66 = vld [vmem:[%s1] sm:$0xf]
    %v67 = vld [vmem:[%s2 + $0x20] sm:$0xff]
    %s68 = scalar_lea.vmem %s3, 4
    %v69 = vld [vmem:[%s68] sm:$0xf]
    %v71 = vlaneseq
    %v72 = vshrl.u32 %v71, 7
    %v73 = vsub.s32 0, %v72
    %v74 = vrot.slane %v69, %v73
    %v75 = vlaneseq
    %v76 = vshrl.u32 %v75, 7
    %v77 = vsub.s32 1, %v76
    %v78 = vrot.slane %v69, %v77
    %v79 = vlaneseq
    %v80 = vshrl.u32 %v79, 7
    %v81 = vsub.s32 2, %v80
    %v82 = vrot.slane %v69, %v81
    %v83 = vlaneseq
    %v84 = vshrl.u32 %v83, 7
    %v85 = vsub.s32 3, %v84
    %v86 = vrot.slane %v69, %v85
    %87 = vrot.lane.b32.xlu0 %v74, 1
    %v88 = vpop.permute.xlu0 %87
    %89 = vrot.lane.b32.xlu0 %v78, 1
    %v90 = vpop.permute.xlu0 %89
    %91 = vrot.lane.b32.xlu0 %v82, 1
    %v92 = vpop.permute.xlu0 %91
    %93 = vrot.lane.b32.xlu0 %v86, 1
    %v94 = vpop.permute.xlu0 %93
    %vm95 = vcmask 7168
    %v96 = vsel %vm95, %v88, %v90
    %v97 = vsel %vm95, %v90, %v92
    %v98 = vsel %vm95, %v92, %v94
    %v104 = vmul.f32 %v36, %v88
    %v105 = vmul.f32 %v37, %v96
    %v106 = vmul.f32 %v38, %v97
    %v107 = vmul.f32 %v39, %v98
    %v108 = vmul.f32 %v67, %v94
    %s109 = scalar_lea.vmem %s1, 4
    %v110 = vld [vmem:[%s109] sm:$0xf]
    %116 = vrot.lane.b32.xlu0 %v104, 127
    %v117 = vpop.permute.xlu0 %116
    %118 = vrot.lane.b32.xlu0 %v105, 127
    %v119 = vpop.permute.xlu0 %118
    %120 = vrot.lane.b32.xlu0 %v106, 127
    %v121 = vpop.permute.xlu0 %120
    %122 = vrot.lane.b32.xlu0 %v107, 127
    %v123 = vpop.permute.xlu0 %122
    %124 = vrot.lane.b32.xlu0 %v108, 127
    %v125 = vpop.permute.xlu0 %124
    %vm126 = vcmask 1039360
    %v127 = vsel %vm126, %v117, %v119
    %v128 = vsel %vm126, %v119, %v121
    %v129 = vsel %vm126, %v121, %v123
    %v130 = vsel %vm126, %v123, %v125
    %vm135 = vcmask 64512
    %v137 = vsel %vm135, %v110, 0
    %139 = vmatprep.subr.mxu0 %v128
    %140 = vmatpush1.msra.mxu0 %v127
    %141 = vmatprep.subr.mxu0 0.0
    %142 = vmatpush1.msra.mxu0 0.0
    %143 = vmatprep.subr.mxu0 0.0
    %144 = vmatpush1.msra.mxu0 0.0
    %145 = vmatprep.subr.mxu0 0.0
    %146 = vmatpush1.msra.mxu0 0.0
    %147 = vmatprep.subr.mxu0 0.0
    %148 = vmatpush1.msra.mxu0 0.0
    %149 = vmatprep.subr.mxu0 0.0
    %150 = vmatpush1.msra.mxu0 0.0
    %151 = vmatprep.subr.mxu0 0.0
    %152 = vmatpush1.msra.mxu0 0.0
    %153 = vmatprep.subr.mxu0 0.0
    %154 = vmatpush1.msra.mxu0 0.0
    %155 = vmatprep.subr.mxu0 0.0
    %156 = vmatpush1.msra.mxu0 0.0
    %157 = vmatprep.subr.mxu0 0.0
    %158 = vmatpush1.msra.mxu0 0.0
    %159 = vmatprep.subr.mxu0 0.0
    %160 = vmatpush1.msra.mxu0 0.0
    %161 = vmatprep.subr.mxu0 0.0
    %162 = vmatpush1.msra.mxu0 0.0
    %163 = vmatprep.subr.mxu0 0.0
    %164 = vmatpush1.msra.mxu0 0.0
    %165 = vmatprep.subr.mxu0 0.0
    %166 = vmatpush1.msra.mxu0 0.0
    %167 = vmatprep.subr.mxu0 0.0
    %168 = vmatpush1.msra.mxu0 0.0
    %169 = vmatprep.subr.mxu0 0.0
    %170 = vmatpush1.msra.mxu0 0.0
    %171 = vmatprep.subr.mxu0 0.0
    %172 = vmatpush1.msra.mxu0 0.0
    %173 = vmatprep.subr.mxu0 0.0
    %174 = vmatpush1.msra.mxu0 0.0
    %175 = vmatprep.subr.mxu0 0.0
    %176 = vmatpush1.msra.mxu0 0.0
    %177 = vmatprep.subr.mxu0 0.0
    %178 = vmatpush1.msra.mxu0 0.0
    %179 = vmatprep.subr.mxu0 0.0
    %180 = vmatpush1.msra.mxu0 0.0
    %181 = vmatprep.subr.mxu0 0.0
    %182 = vmatpush1.msra.mxu0 0.0
    %183 = vmatprep.subr.mxu0 0.0
    %184 = vmatpush1.msra.mxu0 0.0
    %185 = vmatprep.subr.mxu0 0.0
    %186 = vmatpush1.msra.mxu0 0.0
    %187 = vmatprep.subr.mxu0 0.0
    %188 = vmatpush1.msra.mxu0 0.0
    %189 = vmatprep.subr.mxu0 0.0
    %190 = vmatpush1.msra.mxu0 0.0
    %191 = vmatprep.subr.mxu0 0.0
    %192 = vmatpush1.msra.mxu0 0.0
    %193 = vmatprep.subr.mxu0 0.0
    %194 = vmatpush1.msra.mxu0 0.0
    %195 = vmatprep.subr.mxu0 0.0
    %196 = vmatpush1.msra.mxu0 0.0
    %197 = vmatprep.subr.mxu0 0.0
    %198 = vmatpush1.msra.mxu0 0.0
    %199 = vmatprep.subr.mxu0 0.0
    %200 = vmatpush1.msra.mxu0 0.0
    %201 = vmatprep.subr.mxu0 0.0
    %202 = vmatpush1.msra.mxu0 0.0
    %203 = vmatprep.mubr.f32.mxu0 0.0
    %204 = vmatmul.mubr.f32.gmra.mrb[0].mxu0 %v137
    %v205 = vpop.f32.mrb[0].mxu0
    %v206 = vadd.f32 0.0, %v205
    %v207 = vpop.f32.mrb[0].mxu0
    %v208 = vadd.f32 0.0, %v207
    %209 = vdwg.mxu0
    %210 = vmatprep.subr.mxu0 %v130
    %211 = vmatpush1.msra.mxu0 %v129
    %212 = vmatprep.subr.mxu0 0.0
    %213 = vmatpush1.msra.mxu0 0.0
    %214 = vmatprep.subr.mxu0 0.0
    %215 = vmatpush1.msra.mxu0 0.0
    %216 = vmatprep.subr.mxu0 0.0
    %217 = vmatpush1.msra.mxu0 0.0
    %218 = vmatprep.subr.mxu0 0.0
    %219 = vmatpush1.msra.mxu0 0.0
    %220 = vmatprep.subr.mxu0 0.0
    %221 = vmatpush1.msra.mxu0 0.0
    %222 = vmatprep.subr.mxu0 0.0
    %223 = vmatpush1.msra.mxu0 0.0
    %224 = vmatprep.subr.mxu0 0.0
    %225 = vmatpush1.msra.mxu0 0.0
    %226 = vmatprep.subr.mxu0 0.0
    %227 = vmatpush1.msra.mxu0 0.0
    %228 = vmatprep.subr.mxu0 0.0
    %229 = vmatpush1.msra.mxu0 0.0
    %230 = vmatprep.subr.mxu0 0.0
    %231 = vmatpush1.msra.mxu0 0.0
    %232 = vmatprep.subr.mxu0 0.0
    %233 = vmatpush1.msra.mxu0 0.0
    %234 = vmatprep.subr.mxu0 0.0
    %235 = vmatpush1.msra.mxu0 0.0
    %236 = vmatprep.subr.mxu0 0.0
    %237 = vmatpush1.msra.mxu0 0.0
    %238 = vmatprep.subr.mxu0 0.0
    %239 = vmatpush1.msra.mxu0 0.0
    %240 = vmatprep.subr.mxu0 0.0
    %241 = vmatpush1.msra.mxu0 0.0
    %242 = vmatprep.subr.mxu0 0.0
    %243 = vmatpush1.msra.mxu0 0.0
    %244 = vmatprep.subr.mxu0 0.0
    %245 = vmatpush1.msra.mxu0 0.0
    %246 = vmatprep.subr.mxu0 0.0
    %247 = vmatpush1.msra.mxu0 0.0
    %248 = vmatprep.subr.mxu0 0.0
    %249 = vmatpush1.msra.mxu0 0.0
    %250 = vmatprep.subr.mxu0 0.0
    %251 = vmatpush1.msra.mxu0 0.0
    %252 = vmatprep.subr.mxu0 0.0
    %253 = vmatpush1.msra.mxu0 0.0
    %254 = vmatprep.subr.mxu0 0.0
    %255 = vmatpush1.msra.mxu0 0.0
    %256 = vmatprep.subr.mxu0 0.0
    %257 = vmatpush1.msra.mxu0 0.0
    %258 = vmatprep.subr.mxu0 0.0
    %259 = vmatpush1.msra.mxu0 0.0
    %260 = vmatprep.subr.mxu0 0.0
    %261 = vmatpush1.msra.mxu0 0.0
    %262 = vmatprep.subr.mxu0 0.0
    %263 = vmatpush1.msra.mxu0 0.0
    %264 = vmatprep.subr.mxu0 0.0
    %265 = vmatpush1.msra.mxu0 0.0
    %266 = vmatprep.subr.mxu0 0.0
    %267 = vmatpush1.msra.mxu0 0.0
    %268 = vmatprep.subr.mxu0 0.0
    %269 = vmatpush1.msra.mxu0 0.0
    %270 = vmatprep.subr.mxu0 0.0
    %271 = vmatpush1.msra.mxu0 0.0
    %272 = vmatprep.subr.mxu0 0.0
    %273 = vmatpush1.msra.mxu0 0.0
    %274 = vmatprep.mubr.f32.mxu0 0.0
    %275 = vmatmul.mubr.f32.gmra.mrb[0].mxu0 %v137
    %v276 = vpop.f32.mrb[0].mxu0
    %v277 = vadd.f32 0.0, %v276
    %v278 = vpop.f32.mrb[0].mxu0
    %v279 = vadd.f32 0.0, %v278
    %280 = vdwg.mxu0
    %v282 = vsel %vm135, %v66, 0
    %284 = vmatprep.subr.mxu0 %v63
    %285 = vmatpush1.msra.mxu0 %v62
    %286 = vmatprep.subr.mxu0 0.0
    %287 = vmatpush1.msra.mxu0 0.0
    %288 = vmatprep.subr.mxu0 0.0
    %289 = vmatpush1.msra.mxu0 0.0
    %290 = vmatprep.subr.mxu0 0.0
    %291 = vmatpush1.msra.mxu0 0.0
    %292 = vmatprep.subr.mxu0 0.0
    %293 = vmatpush1.msra.mxu0 0.0
    %294 = vmatprep.subr.mxu0 0.0
    %295 = vmatpush1.msra.mxu0 0.0
    %296 = vmatprep.subr.mxu0 0.0
    %297 = vmatpush1.msra.mxu0 0.0
    %298 = vmatprep.subr.mxu0 0.0
    %299 = vmatpush1.msra.mxu0 0.0
    %300 = vmatprep.subr.mxu0 0.0
    %301 = vmatpush1.msra.mxu0 0.0
    %302 = vmatprep.subr.mxu0 0.0
    %303 = vmatpush1.msra.mxu0 0.0
    %304 = vmatprep.subr.mxu0 0.0
    %305 = vmatpush1.msra.mxu0 0.0
    %306 = vmatprep.subr.mxu0 0.0
    %307 = vmatpush1.msra.mxu0 0.0
    %308 = vmatprep.subr.mxu0 0.0
    %309 = vmatpush1.msra.mxu0 0.0
    %310 = vmatprep.subr.mxu0 0.0
    %311 = vmatpush1.msra.mxu0 0.0
    %312 = vmatprep.subr.mxu0 0.0
    %313 = vmatpush1.msra.mxu0 0.0
    %314 = vmatprep.subr.mxu0 0.0
    %315 = vmatpush1.msra.mxu0 0.0
    %316 = vmatprep.subr.mxu0 0.0
    %317 = vmatpush1.msra.mxu0 0.0
    %318 = vmatprep.subr.mxu0 0.0
    %319 = vmatpush1.msra.mxu0 0.0
    %320 = vmatprep.subr.mxu0 0.0
    %321 = vmatpush1.msra.mxu0 0.0
    %322 = vmatprep.subr.mxu0 0.0
    %323 = vmatpush1.msra.mxu0 0.0
    %324 = vmatprep.subr.mxu0 0.0
    %325 = vmatpush1.msra.mxu0 0.0
    %326 = vmatprep.subr.mxu0 0.0
    %327 = vmatpush1.msra.mxu0 0.0
    %328 = vmatprep.subr.mxu0 0.0
    %329 = vmatpush1.msra.mxu0 0.0
    %330 = vmatprep.subr.mxu0 0.0
    %331 = vmatpush1.msra.mxu0 0.0
    %332 = vmatprep.subr.mxu0 0.0
    %333 = vmatpush1.msra.mxu0 0.0
    %334 = vmatprep.subr.mxu0 0.0
    %335 = vmatpush1.msra.mxu0 0.0
    %336 = vmatprep.subr.mxu0 0.0
    %337 = vmatpush1.msra.mxu0 0.0
    %338 = vmatprep.subr.mxu0 0.0
    %339 = vmatpush1.msra.mxu0 0.0
    %340 = vmatprep.subr.mxu0 0.0
    %341 = vmatpush1.msra.mxu0 0.0
    %342 = vmatprep.subr.mxu0 0.0
    %343 = vmatpush1.msra.mxu0 0.0
    %344 = vmatprep.subr.mxu0 0.0
    %345 = vmatpush1.msra.mxu0 0.0
    %346 = vmatprep.subr.mxu0 0.0
    %347 = vmatpush1.msra.mxu0 0.0
    %348 = vmatprep.mubr.f32.mxu0 0.0
    %349 = vmatmul.mubr.f32.gmra.mrb[0].mxu0 %v282
    %v350 = vpop.f32.mrb[0].mxu0
    %v351 = vadd.f32 %v206, %v350
    %v352 = vpop.f32.mrb[0].mxu0
    %v353 = vadd.f32 %v208, %v352
    %354 = vdwg.mxu0
    %355 = vmatprep.subr.mxu0 %v65
    %356 = vmatpush1.msra.mxu0 %v64
    %357 = vmatprep.subr.mxu0 0.0
    %358 = vmatpush1.msra.mxu0 0.0
    %359 = vmatprep.subr.mxu0 0.0
    %360 = vmatpush1.msra.mxu0 0.0
    %361 = vmatprep.subr.mxu0 0.0
    %362 = vmatpush1.msra.mxu0 0.0
    %363 = vmatprep.subr.mxu0 0.0
    %364 = vmatpush1.msra.mxu0 0.0
    %365 = vmatprep.subr.mxu0 0.0
    %366 = vmatpush1.msra.mxu0 0.0
    %367 = vmatprep.subr.mxu0 0.0
    %368 = vmatpush1.msra.mxu0 0.0
    %369 = vmatprep.subr.mxu0 0.0
    %370 = vmatpush1.msra.mxu0 0.0
    %371 = vmatprep.subr.mxu0 0.0
    %372 = vmatpush1.msra.mxu0 0.0
    %373 = vmatprep.subr.mxu0 0.0
    %374 = vmatpush1.msra.mxu0 0.0
    %375 = vmatprep.subr.mxu0 0.0
    %376 = vmatpush1.msra.mxu0 0.0
    %377 = vmatprep.subr.mxu0 0.0
    %378 = vmatpush1.msra.mxu0 0.0
    %379 = vmatprep.subr.mxu0 0.0
    %380 = vmatpush1.msra.mxu0 0.0
    %381 = vmatprep.subr.mxu0 0.0
    %382 = vmatpush1.msra.mxu0 0.0
    %383 = vmatprep.subr.mxu0 0.0
    %384 = vmatpush1.msra.mxu0 0.0
    %385 = vmatprep.subr.mxu0 0.0
    %386 = vmatpush1.msra.mxu0 0.0
    %387 = vmatprep.subr.mxu0 0.0
    %388 = vmatpush1.msra.mxu0 0.0
    %389 = vmatprep.subr.mxu0 0.0
    %390 = vmatpush1.msra.mxu0 0.0
    %391 = vmatprep.subr.mxu0 0.0
    %392 = vmatpush1.msra.mxu0 0.0
    %393 = vmatprep.subr.mxu0 0.0
    %394 = vmatpush1.msra.mxu0 0.0
    %395 = vmatprep.subr.mxu0 0.0
    %396 = vmatpush1.msra.mxu0 0.0
    %397 = vmatprep.subr.mxu0 0.0
    %398 = vmatpush1.msra.mxu0 0.0
    %399 = vmatprep.subr.mxu0 0.0
    %400 = vmatpush1.msra.mxu0 0.0
    %401 = vmatprep.subr.mxu0 0.0
    %402 = vmatpush1.msra.mxu0 0.0
    %403 = vmatprep.subr.mxu0 0.0
    %404 = vmatpush1.msra.mxu0 0.0
    %405 = vmatprep.subr.mxu0 0.0
    %406 = vmatpush1.msra.mxu0 0.0
    %407 = vmatprep.subr.mxu0 0.0
    %408 = vmatpush1.msra.mxu0 0.0
    %409 = vmatprep.subr.mxu0 0.0
    %410 = vmatpush1.msra.mxu0 0.0
    %411 = vmatprep.subr.mxu0 0.0
    %412 = vmatpush1.msra.mxu0 0.0
    %413 = vmatprep.subr.mxu0 0.0
    %414 = vmatpush1.msra.mxu0 0.0
    %415 = vmatprep.subr.mxu0 0.0
    %416 = vmatpush1.msra.mxu0 0.0
    %417 = vmatprep.subr.mxu0 0.0
    %418 = vmatpush1.msra.mxu0 0.0
    %419 = vmatprep.mubr.f32.mxu0 0.0
    %420 = vmatmul.mubr.f32.gmra.mrb[0].mxu0 %v282
    %v421 = vpop.f32.mrb[0].mxu0
    %v422 = vadd.f32 %v277, %v421
    %v423 = vpop.f32.mrb[0].mxu0
    %v424 = vadd.f32 %v279, %v423
    %425 = vdwg.mxu0
    %s426 = scalar_lea.vmem %s3, 8
    %v427 = vld [vmem:[%s426] sm:$0xf]
    %v429 = vlaneseq
    %v430 = vshrl.u32 %v429, 7
    %v431 = vsub.s32 0, %v430
    %v432 = vrot.slane %v427, %v431
    %v433 = vlaneseq
    %v434 = vshrl.u32 %v433, 7
    %v435 = vsub.s32 1, %v434
    %v436 = vrot.slane %v427, %v435
    %v437 = vlaneseq
    %v438 = vshrl.u32 %v437, 7
    %v439 = vsub.s32 2, %v438
    %v440 = vrot.slane %v427, %v439
    %v441 = vlaneseq
    %v442 = vshrl.u32 %v441, 7
    %v443 = vsub.s32 3, %v442
    %v444 = vrot.slane %v427, %v443
    %445 = vrot.lane.b32.xlu0 %v432, 2
    %v446 = vpop.permute.xlu0 %445
    %447 = vrot.lane.b32.xlu0 %v436, 2
    %v448 = vpop.permute.xlu0 %447
    %449 = vrot.lane.b32.xlu0 %v440, 2
    %v450 = vpop.permute.xlu0 %449
    %451 = vrot.lane.b32.xlu0 %v444, 2
    %v452 = vpop.permute.xlu0 %451
    %vm453 = vcmask 15360
    %v454 = vsel %vm453, %v446, %v448
    %v455 = vsel %vm453, %v448, %v450
    %v456 = vsel %vm453, %v450, %v452
    %v462 = vmul.f32 %v36, %v446
    %v463 = vmul.f32 %v37, %v454
    %v464 = vmul.f32 %v38, %v455
    %v465 = vmul.f32 %v39, %v456
    %v466 = vmul.f32 %v67, %v452
    %s467 = scalar_lea.vmem %s1, 8
    %v468 = vld [vmem:[%s467] sm:$0xf]
    %474 = vrot.lane.b32.xlu0 %v462, 126
    %v475 = vpop.permute.xlu0 %474
    %476 = vrot.lane.b32.xlu0 %v463, 126
    %v477 = vpop.permute.xlu0 %476
    %478 = vrot.lane.b32.xlu0 %v464, 126
    %v479 = vpop.permute.xlu0 %478
    %480 = vrot.lane.b32.xlu0 %v465, 126
    %v481 = vpop.permute.xlu0 %480
    %482 = vrot.lane.b32.xlu0 %v466, 126
    %v483 = vpop.permute.xlu0 %482
    %vm484 = vcmask 1031168
    %v485 = vsel %vm484, %v475, %v477
    %v486 = vsel %vm484, %v477, %v479
    %v487 = vsel %vm484, %v479, %v481
    %v488 = vsel %vm484, %v481, %v483
    %v494 = vsel %vm135, %v468, 0
    %496 = vmatprep.subr.mxu0 %v486
    %497 = vmatpush1.msra.mxu0 %v485
    %498 = vmatprep.subr.mxu0 0.0
    %499 = vmatpush1.msra.mxu0 0.0
    %500 = vmatprep.subr.mxu0 0.0
    %501 = vmatpush1.msra.mxu0 0.0
    %502 = vmatprep.subr.mxu0 0.0
    %503 = vmatpush1.msra.mxu0 0.0
    %504 = vmatprep.subr.mxu0 0.0
    %505 = vmatpush1.msra.mxu0 0.0
    %506 = vmatprep.subr.mxu0 0.0
    %507 = vmatpush1.msra.mxu0 0.0
    %508 = vmatprep.subr.mxu0 0.0
    %509 = vmatpush1.msra.mxu0 0.0
    %510 = vmatprep.subr.mxu0 0.0
    %511 = vmatpush1.msra.mxu0 0.0
    %512 = vmatprep.subr.mxu0 0.0
    %513 = vmatpush1.msra.mxu0 0.0
    %514 = vmatprep.subr.mxu0 0.0
    %515 = vmatpush1.msra.mxu0 0.0
    %516 = vmatprep.subr.mxu0 0.0
    %517 = vmatpush1.msra.mxu0 0.0
    %518 = vmatprep.subr.mxu0 0.0
    %519 = vmatpush1.msra.mxu0 0.0
    %520 = vmatprep.subr.mxu0 0.0
    %521 = vmatpush1.msra.mxu0 0.0
    %522 = vmatprep.subr.mxu0 0.0
    %523 = vmatpush1.msra.mxu0 0.0
    %524 = vmatprep.subr.mxu0 0.0
    %525 = vmatpush1.msra.mxu0 0.0
    %526 = vmatprep.subr.mxu0 0.0
    %527 = vmatpush1.msra.mxu0 0.0
    %528 = vmatprep.subr.mxu0 0.0
    %529 = vmatpush1.msra.mxu0 0.0
    %530 = vmatprep.subr.mxu0 0.0
    %531 = vmatpush1.msra.mxu0 0.0
    %532 = vmatprep.subr.mxu0 0.0
    %533 = vmatpush1.msra.mxu0 0.0
    %534 = vmatprep.subr.mxu0 0.0
    %535 = vmatpush1.msra.mxu0 0.0
    %536 = vmatprep.subr.mxu0 0.0
    %537 = vmatpush1.msra.mxu0 0.0
    %538 = vmatprep.subr.mxu0 0.0
    %539 = vmatpush1.msra.mxu0 0.0
    %540 = vmatprep.subr.mxu0 0.0
    %541 = vmatpush1.msra.mxu0 0.0
    %542 = vmatprep.subr.mxu0 0.0
    %543 = vmatpush1.msra.mxu0 0.0
    %544 = vmatprep.subr.mxu0 0.0
    %545 = vmatpush1.msra.mxu0 0.0
    %546 = vmatprep.subr.mxu0 0.0
    %547 = vmatpush1.msra.mxu0 0.0
    %548 = vmatprep.subr.mxu0 0.0
    %549 = vmatpush1.msra.mxu0 0.0
    %550 = vmatprep.subr.mxu0 0.0
    %551 = vmatpush1.msra.mxu0 0.0
    %552 = vmatprep.subr.mxu0 0.0
    %553 = vmatpush1.msra.mxu0 0.0
    %554 = vmatprep.subr.mxu0 0.0
    %555 = vmatpush1.msra.mxu0 0.0
    %556 = vmatprep.subr.mxu0 0.0
    %557 = vmatpush1.msra.mxu0 0.0
    %558 = vmatprep.subr.mxu0 0.0
    %559 = vmatpush1.msra.mxu0 0.0
    %560 = vmatprep.mubr.f32.mxu0 0.0
    %561 = vmatmul.mubr.f32.gmra.mrb[0].mxu0 %v494
    %v562 = vpop.f32.mrb[0].mxu0
    %v563 = vadd.f32 0.0, %v562
    %v564 = vpop.f32.mrb[0].mxu0
    %v565 = vadd.f32 0.0, %v564
    %566 = vdwg.mxu0
    %567 = vmatprep.subr.mxu0 %v488
    %568 = vmatpush1.msra.mxu0 %v487
    %569 = vmatprep.subr.mxu0 0.0
    %570 = vmatpush1.msra.mxu0 0.0
    %571 = vmatprep.subr.mxu0 0.0
    %572 = vmatpush1.msra.mxu0 0.0
    %573 = vmatprep.subr.mxu0 0.0
    %574 = vmatpush1.msra.mxu0 0.0
    %575 = vmatprep.subr.mxu0 0.0
    %576 = vmatpush1.msra.mxu0 0.0
    %577 = vmatprep.subr.mxu0 0.0
    %578 = vmatpush1.msra.mxu0 0.0
    %579 = vmatprep.subr.mxu0 0.0
    %580 = vmatpush1.msra.mxu0 0.0
    %581 = vmatprep.subr.mxu0 0.0
    %582 = vmatpush1.msra.mxu0 0.0
    %583 = vmatprep.subr.mxu0 0.0
    %584 = vmatpush1.msra.mxu0 0.0
    %585 = vmatprep.subr.mxu0 0.0
    %586 = vmatpush1.msra.mxu0 0.0
    %587 = vmatprep.subr.mxu0 0.0
    %588 = vmatpush1.msra.mxu0 0.0
    %589 = vmatprep.subr.mxu0 0.0
    %590 = vmatpush1.msra.mxu0 0.0
    %591 = vmatprep.subr.mxu0 0.0
    %592 = vmatpush1.msra.mxu0 0.0
    %593 = vmatprep.subr.mxu0 0.0
    %594 = vmatpush1.msra.mxu0 0.0
    %595 = vmatprep.subr.mxu0 0.0
    %596 = vmatpush1.msra.mxu0 0.0
    %597 = vmatprep.subr.mxu0 0.0
    %598 = vmatpush1.msra.mxu0 0.0
    %599 = vmatprep.subr.mxu0 0.0
    %600 = vmatpush1.msra.mxu0 0.0
    %601 = vmatprep.subr.mxu0 0.0
    %602 = vmatpush1.msra.mxu0 0.0
    %603 = vmatprep.subr.mxu0 0.0
    %604 = vmatpush1.msra.mxu0 0.0
    %605 = vmatprep.subr.mxu0 0.0
    %606 = vmatpush1.msra.mxu0 0.0
    %607 = vmatprep.subr.mxu0 0.0
    %608 = vmatpush1.msra.mxu0 0.0
    %609 = vmatprep.subr.mxu0 0.0
    %610 = vmatpush1.msra.mxu0 0.0
    %611 = vmatprep.subr.mxu0 0.0
    %612 = vmatpush1.msra.mxu0 0.0
    %613 = vmatprep.subr.mxu0 0.0
    %614 = vmatpush1.msra.mxu0 0.0
    %615 = vmatprep.subr.mxu0 0.0
    %616 = vmatpush1.msra.mxu0 0.0
    %617 = vmatprep.subr.mxu0 0.0
    %618 = vmatpush1.msra.mxu0 0.0
    %619 = vmatprep.subr.mxu0 0.0
    %620 = vmatpush1.msra.mxu0 0.0
    %621 = vmatprep.subr.mxu0 0.0
    %622 = vmatpush1.msra.mxu0 0.0
    %623 = vmatprep.subr.mxu0 0.0
    %624 = vmatpush1.msra.mxu0 0.0
    %625 = vmatprep.subr.mxu0 0.0
    %626 = vmatpush1.msra.mxu0 0.0
    %627 = vmatprep.subr.mxu0 0.0
    %628 = vmatpush1.msra.mxu0 0.0
    %629 = vmatprep.subr.mxu0 0.0
    %630 = vmatpush1.msra.mxu0 0.0
    %631 = vmatprep.mubr.f32.mxu0 0.0
    %632 = vmatmul.mubr.f32.gmra.mrb[0].mxu0 %v494
    %v633 = vpop.f32.mrb[0].mxu0
    %v634 = vadd.f32 0.0, %v633
    %v635 = vpop.f32.mrb[0].mxu0
    %v636 = vadd.f32 0.0, %v635
    %637 = vdwg.mxu0
    %v638 = vadd.f32 %v351, %v563
    %v639 = vadd.f32 %v353, %v565
    %v640 = vadd.f32 %v422, %v634
    %v641 = vadd.f32 %v424, %v636
    %s642 = scalar_lea.vmem %s3, 12
    %v643 = vld [vmem:[%s642] sm:$0xf]
    %v645 = vlaneseq
    %v646 = vshrl.u32 %v645, 7
    %v647 = vsub.s32 0, %v646
    %v648 = vrot.slane %v643, %v647
    %v649 = vlaneseq
    %v650 = vshrl.u32 %v649, 7
    %v651 = vsub.s32 1, %v650
    %v652 = vrot.slane %v643, %v651
    %v653 = vlaneseq
    %v654 = vshrl.u32 %v653, 7
    %v655 = vsub.s32 2, %v654
    %v656 = vrot.slane %v643, %v655
    %v657 = vlaneseq
    %v658 = vshrl.u32 %v657, 7
    %v659 = vsub.s32 3, %v658
    %v660 = vrot.slane %v643, %v659
    %661 = vrot.lane.b32.xlu0 %v648, 16
    %v662 = vpop.permute.xlu0 %661
    %663 = vrot.lane.b32.xlu0 %v652, 16
    %v664 = vpop.permute.xlu0 %663
    %665 = vrot.lane.b32.xlu0 %v656, 16
    %v666 = vpop.permute.xlu0 %665
    %667 = vrot.lane.b32.xlu0 %v660, 16
    %v668 = vpop.permute.xlu0 %667
    %vm669 = vcmask 130048
    %v670 = vsel %vm669, %v662, %v664
    %v671 = vsel %vm669, %v664, %v666
    %v672 = vsel %vm669, %v666, %v668
    %v678 = vmul.f32 %v36, %v662
    %v679 = vmul.f32 %v37, %v670
    %v680 = vmul.f32 %v38, %v671
    %v681 = vmul.f32 %v39, %v672
    %v682 = vmul.f32 %v67, %v668
    %s683 = scalar_lea.vmem %s1, 12
    %v684 = vld [vmem:[%s683] sm:$0xf]
    %690 = vrot.lane.b32.xlu0 %v678, 112
    %v691 = vpop.permute.xlu0 %690
    %692 = vrot.lane.b32.xlu0 %v679, 112
    %v693 = vpop.permute.xlu0 %692
    %694 = vrot.lane.b32.xlu0 %v680, 112
    %v695 = vpop.permute.xlu0 %694
    %696 = vrot.lane.b32.xlu0 %v681, 112
    %v697 = vpop.permute.xlu0 %696
    %698 = vrot.lane.b32.xlu0 %v682, 112
    %v699 = vpop.permute.xlu0 %698
    %vm700 = vcmask 916480
    %v701 = vsel %vm700, %v691, %v693
    %v702 = vsel %vm700, %v693, %v695
    %v703 = vsel %vm700, %v695, %v697
    %v704 = vsel %vm700, %v697, %v699
    %v710 = vsel %vm135, %v684, 0
    %712 = vmatprep.subr.mxu0 %v702
    %713 = vmatpush1.msra.mxu0 %v701
    %714 = vmatprep.subr.mxu0 0.0
    %715 = vmatpush1.msra.mxu0 0.0
    %716 = vmatprep.subr.mxu0 0.0
    %717 = vmatpush1.msra.mxu0 0.0
    %718 = vmatprep.subr.mxu0 0.0
    %719 = vmatpush1.msra.mxu0 0.0
    %720 = vmatprep.subr.mxu0 0.0
    %721 = vmatpush1.msra.mxu0 0.0
    %722 = vmatprep.subr.mxu0 0.0
    %723 = vmatpush1.msra.mxu0 0.0
    %724 = vmatprep.subr.mxu0 0.0
    %725 = vmatpush1.msra.mxu0 0.0
    %726 = vmatprep.subr.mxu0 0.0
    %727 = vmatpush1.msra.mxu0 0.0
    %728 = vmatprep.subr.mxu0 0.0
    %729 = vmatpush1.msra.mxu0 0.0
    %730 = vmatprep.subr.mxu0 0.0
    %731 = vmatpush1.msra.mxu0 0.0
    %732 = vmatprep.subr.mxu0 0.0
    %733 = vmatpush1.msra.mxu0 0.0
    %734 = vmatprep.subr.mxu0 0.0
    %735 = vmatpush1.msra.mxu0 0.0
    %736 = vmatprep.subr.mxu0 0.0
    %737 = vmatpush1.msra.mxu0 0.0
    %738 = vmatprep.subr.mxu0 0.0
    %739 = vmatpush1.msra.mxu0 0.0
    %740 = vmatprep.subr.mxu0 0.0
    %741 = vmatpush1.msra.mxu0 0.0
    %742 = vmatprep.subr.mxu0 0.0
    %743 = vmatpush1.msra.mxu0 0.0
    %744 = vmatprep.subr.mxu0 0.0
    %745 = vmatpush1.msra.mxu0 0.0
    %746 = vmatprep.subr.mxu0 0.0
    %747 = vmatpush1.msra.mxu0 0.0
    %748 = vmatprep.subr.mxu0 0.0
    %749 = vmatpush1.msra.mxu0 0.0
    %750 = vmatprep.subr.mxu0 0.0
    %751 = vmatpush1.msra.mxu0 0.0
    %752 = vmatprep.subr.mxu0 0.0
    %753 = vmatpush1.msra.mxu0 0.0
    %754 = vmatprep.subr.mxu0 0.0
    %755 = vmatpush1.msra.mxu0 0.0
    %756 = vmatprep.subr.mxu0 0.0
    %757 = vmatpush1.msra.mxu0 0.0
    %758 = vmatprep.subr.mxu0 0.0
    %759 = vmatpush1.msra.mxu0 0.0
    %760 = vmatprep.subr.mxu0 0.0
    %761 = vmatpush1.msra.mxu0 0.0
    %762 = vmatprep.subr.mxu0 0.0
    %763 = vmatpush1.msra.mxu0 0.0
    %764 = vmatprep.subr.mxu0 0.0
    %765 = vmatpush1.msra.mxu0 0.0
    %766 = vmatprep.subr.mxu0 0.0
    %767 = vmatpush1.msra.mxu0 0.0
    %768 = vmatprep.subr.mxu0 0.0
    %769 = vmatpush1.msra.mxu0 0.0
    %770 = vmatprep.subr.mxu0 0.0
    %771 = vmatpush1.msra.mxu0 0.0
    %772 = vmatprep.subr.mxu0 0.0
    %773 = vmatpush1.msra.mxu0 0.0
    %774 = vmatprep.subr.mxu0 0.0
    %775 = vmatpush1.msra.mxu0 0.0
    %776 = vmatprep.mubr.f32.mxu0 0.0
    %777 = vmatmul.mubr.f32.gmra.mrb[0].mxu0 %v710
    %v778 = vpop.f32.mrb[0].mxu0
    %v779 = vadd.f32 0.0, %v778
    %v780 = vpop.f32.mrb[0].mxu0
    %v781 = vadd.f32 0.0, %v780
    %782 = vdwg.mxu0
    %783 = vmatprep.subr.mxu0 %v704
    %784 = vmatpush1.msra.mxu0 %v703
    %785 = vmatprep.subr.mxu0 0.0
    %786 = vmatpush1.msra.mxu0 0.0
    %787 = vmatprep.subr.mxu0 0.0
    %788 = vmatpush1.msra.mxu0 0.0
    %789 = vmatprep.subr.mxu0 0.0
    %790 = vmatpush1.msra.mxu0 0.0
    %791 = vmatprep.subr.mxu0 0.0
    %792 = vmatpush1.msra.mxu0 0.0
    %793 = vmatprep.subr.mxu0 0.0
    %794 = vmatpush1.msra.mxu0 0.0
    %795 = vmatprep.subr.mxu0 0.0
    %796 = vmatpush1.msra.mxu0 0.0
    %797 = vmatprep.subr.mxu0 0.0
    %798 = vmatpush1.msra.mxu0 0.0
    %799 = vmatprep.subr.mxu0 0.0
    %800 = vmatpush1.msra.mxu0 0.0
    %801 = vmatprep.subr.mxu0 0.0
    %802 = vmatpush1.msra.mxu0 0.0
    %803 = vmatprep.subr.mxu0 0.0
    %804 = vmatpush1.msra.mxu0 0.0
    %805 = vmatprep.subr.mxu0 0.0
    %806 = vmatpush1.msra.mxu0 0.0
    %807 = vmatprep.subr.mxu0 0.0
    %808 = vmatpush1.msra.mxu0 0.0
    %809 = vmatprep.subr.mxu0 0.0
    %810 = vmatpush1.msra.mxu0 0.0
    %811 = vmatprep.subr.mxu0 0.0
    %812 = vmatpush1.msra.mxu0 0.0
    %813 = vmatprep.subr.mxu0 0.0
    %814 = vmatpush1.msra.mxu0 0.0
    %815 = vmatprep.subr.mxu0 0.0
    %816 = vmatpush1.msra.mxu0 0.0
    %817 = vmatprep.subr.mxu0 0.0
    %818 = vmatpush1.msra.mxu0 0.0
    %819 = vmatprep.subr.mxu0 0.0
    %820 = vmatpush1.msra.mxu0 0.0
    %821 = vmatprep.subr.mxu0 0.0
    %822 = vmatpush1.msra.mxu0 0.0
    %823 = vmatprep.subr.mxu0 0.0
    %824 = vmatpush1.msra.mxu0 0.0
    %825 = vmatprep.subr.mxu0 0.0
    %826 = vmatpush1.msra.mxu0 0.0
    %827 = vmatprep.subr.mxu0 0.0
    %828 = vmatpush1.msra.mxu0 0.0
    %829 = vmatprep.subr.mxu0 0.0
    %830 = vmatpush1.msra.mxu0 0.0
    %831 = vmatprep.subr.mxu0 0.0
    %832 = vmatpush1.msra.mxu0 0.0
    %833 = vmatprep.subr.mxu0 0.0
    %834 = vmatpush1.msra.mxu0 0.0
    %835 = vmatprep.subr.mxu0 0.0
    %836 = vmatpush1.msra.mxu0 0.0
    %837 = vmatprep.subr.mxu0 0.0
    %838 = vmatpush1.msra.mxu0 0.0
    %839 = vmatprep.subr.mxu0 0.0
    %840 = vmatpush1.msra.mxu0 0.0
    %841 = vmatprep.subr.mxu0 0.0
    %842 = vmatpush1.msra.mxu0 0.0
    %843 = vmatprep.subr.mxu0 0.0
    %844 = vmatpush1.msra.mxu0 0.0
    %845 = vmatprep.subr.mxu0 0.0
    %846 = vmatpush1.msra.mxu0 0.0
    %847 = vmatprep.mubr.f32.mxu0 0.0
    %848 = vmatmul.mubr.f32.gmra.mrb[0].mxu0 %v710
    %v849 = vpop.f32.mrb[0].mxu0
    %v850 = vadd.f32 0.0, %v849
    %v851 = vpop.f32.mrb[0].mxu0
    %v852 = vadd.f32 0.0, %v851
    %853 = vdwg.mxu0
    %v854 = vadd.f32 %v638, %v779
    %v855 = vadd.f32 %v639, %v781
    %v856 = vadd.f32 %v640, %v850
    %v857 = vadd.f32 %v641, %v852
    %s858 = scalar_lea.vmem %s1, 16
    %v859 = vld [vmem:[%s858] sm:$0xf]
    %865 = vrot.lane.b32.xlu0 %v36, 111
    %v866 = vpop.permute.xlu0 %865
    %867 = vrot.lane.b32.xlu0 %v37, 111
    %v868 = vpop.permute.xlu0 %867
    %869 = vrot.lane.b32.xlu0 %v38, 111
    %v870 = vpop.permute.xlu0 %869
    %871 = vrot.lane.b32.xlu0 %v39, 111
    %v872 = vpop.permute.xlu0 %871
    %873 = vrot.lane.b32.xlu0 %v67, 111
    %v874 = vpop.permute.xlu0 %873
    %vm875 = vcmask 908288
    %v876 = vsel %vm875, %v866, %v868
    %v877 = vsel %vm875, %v868, %v870
    %v878 = vsel %vm875, %v870, %v872
    %v879 = vsel %vm875, %v872, %v874
    %v885 = vsel %vm135, %v859, 0
    %887 = vmatprep.subr.mxu0 %v877
    %888 = vmatpush1.msra.mxu0 %v876
    %889 = vmatprep.subr.mxu0 0.0
    %890 = vmatpush1.msra.mxu0 0.0
    %891 = vmatprep.subr.mxu0 0.0
    %892 = vmatpush1.msra.mxu0 0.0
    %893 = vmatprep.subr.mxu0 0.0
    %894 = vmatpush1.msra.mxu0 0.0
    %895 = vmatprep.subr.mxu0 0.0
    %896 = vmatpush1.msra.mxu0 0.0
    %897 = vmatprep.subr.mxu0 0.0
    %898 = vmatpush1.msra.mxu0 0.0
    %899 = vmatprep.subr.mxu0 0.0
    %900 = vmatpush1.msra.mxu0 0.0
    %901 = vmatprep.subr.mxu0 0.0
    %902 = vmatpush1.msra.mxu0 0.0
    %903 = vmatprep.subr.mxu0 0.0
    %904 = vmatpush1.msra.mxu0 0.0
    %905 = vmatprep.subr.mxu0 0.0
    %906 = vmatpush1.msra.mxu0 0.0
    %907 = vmatprep.subr.mxu0 0.0
    %908 = vmatpush1.msra.mxu0 0.0
    %909 = vmatprep.subr.mxu0 0.0
    %910 = vmatpush1.msra.mxu0 0.0
    %911 = vmatprep.subr.mxu0 0.0
    %912 = vmatpush1.msra.mxu0 0.0
    %913 = vmatprep.subr.mxu0 0.0
    %914 = vmatpush1.msra.mxu0 0.0
    %915 = vmatprep.subr.mxu0 0.0
    %916 = vmatpush1.msra.mxu0 0.0
    %917 = vmatprep.subr.mxu0 0.0
    %918 = vmatpush1.msra.mxu0 0.0
    %919 = vmatprep.subr.mxu0 0.0
    %920 = vmatpush1.msra.mxu0 0.0
    %921 = vmatprep.subr.mxu0 0.0
    %922 = vmatpush1.msra.mxu0 0.0
    %923 = vmatprep.subr.mxu0 0.0
    %924 = vmatpush1.msra.mxu0 0.0
    %925 = vmatprep.subr.mxu0 0.0
    %926 = vmatpush1.msra.mxu0 0.0
    %927 = vmatprep.subr.mxu0 0.0
    %928 = vmatpush1.msra.mxu0 0.0
    %929 = vmatprep.subr.mxu0 0.0
    %930 = vmatpush1.msra.mxu0 0.0
    %931 = vmatprep.subr.mxu0 0.0
    %932 = vmatpush1.msra.mxu0 0.0
    %933 = vmatprep.subr.mxu0 0.0
    %934 = vmatpush1.msra.mxu0 0.0
    %935 = vmatprep.subr.mxu0 0.0
    %936 = vmatpush1.msra.mxu0 0.0
    %937 = vmatprep.subr.mxu0 0.0
    %938 = vmatpush1.msra.mxu0 0.0
    %939 = vmatprep.subr.mxu0 0.0
    %940 = vmatpush1.msra.mxu0 0.0
    %941 = vmatprep.subr.mxu0 0.0
    %942 = vmatpush1.msra.mxu0 0.0
    %943 = vmatprep.subr.mxu0 0.0
    %944 = vmatpush1.msra.mxu0 0.0
    %945 = vmatprep.subr.mxu0 0.0
    %946 = vmatpush1.msra.mxu0 0.0
    %947 = vmatprep.subr.mxu0 0.0
    %948 = vmatpush1.msra.mxu0 0.0
    %949 = vmatprep.subr.mxu0 0.0
    %950 = vmatpush1.msra.mxu0 0.0
    %951 = vmatprep.mubr.f32.mxu0 0.0
    %952 = vmatmul.mubr.f32.gmra.mrb[0].mxu0 %v885
    %v953 = vpop.f32.mrb[0].mxu0
    %v954 = vadd.f32 0.0, %v953
    %v955 = vpop.f32.mrb[0].mxu0
    %v956 = vadd.f32 0.0, %v955
    %957 = vdwg.mxu0
    %958 = vmatprep.subr.mxu0 %v879
    %959 = vmatpush1.msra.mxu0 %v878
    %960 = vmatprep.subr.mxu0 0.0
    %961 = vmatpush1.msra.mxu0 0.0
    %962 = vmatprep.subr.mxu0 0.0
    %963 = vmatpush1.msra.mxu0 0.0
    %964 = vmatprep.subr.mxu0 0.0
    %965 = vmatpush1.msra.mxu0 0.0
    %966 = vmatprep.subr.mxu0 0.0
    %967 = vmatpush1.msra.mxu0 0.0
    %968 = vmatprep.subr.mxu0 0.0
    %969 = vmatpush1.msra.mxu0 0.0
    %970 = vmatprep.subr.mxu0 0.0
    %971 = vmatpush1.msra.mxu0 0.0
    %972 = vmatprep.subr.mxu0 0.0
    %973 = vmatpush1.msra.mxu0 0.0
    %974 = vmatprep.subr.mxu0 0.0
    %975 = vmatpush1.msra.mxu0 0.0
    %976 = vmatprep.subr.mxu0 0.0
    %977 = vmatpush1.msra.mxu0 0.0
    %978 = vmatprep.subr.mxu0 0.0
    %979 = vmatpush1.msra.mxu0 0.0
    %980 = vmatprep.subr.mxu0 0.0
    %981 = vmatpush1.msra.mxu0 0.0
    %982 = vmatprep.subr.mxu0 0.0
    %983 = vmatpush1.msra.mxu0 0.0
    %984 = vmatprep.subr.mxu0 0.0
    %985 = vmatpush1.msra.mxu0 0.0
    %986 = vmatprep.subr.mxu0 0.0
    %987 = vmatpush1.msra.mxu0 0.0
    %988 = vmatprep.subr.mxu0 0.0
    %989 = vmatpush1.msra.mxu0 0.0
    %990 = vmatprep.subr.mxu0 0.0
    %991 = vmatpush1.msra.mxu0 0.0
    %992 = vmatprep.subr.mxu0 0.0
    %993 = vmatpush1.msra.mxu0 0.0
    %994 = vmatprep.subr.mxu0 0.0
    %995 = vmatpush1.msra.mxu0 0.0
    %996 = vmatprep.subr.mxu0 0.0
    %997 = vmatpush1.msra.mxu0 0.0
    %998 = vmatprep.subr.mxu0 0.0
    %999 = vmatpush1.msra.mxu0 0.0
    %1000 = vmatprep.subr.mxu0 0.0
    %1001 = vmatpush1.msra.mxu0 0.0
    %1002 = vmatprep.subr.mxu0 0.0
    %1003 = vmatpush1.msra.mxu0 0.0
    %1004 = vmatprep.subr.mxu0 0.0
    %1005 = vmatpush1.msra.mxu0 0.0
    %1006 = vmatprep.subr.mxu0 0.0
    %1007 = vmatpush1.msra.mxu0 0.0
    %1008 = vmatprep.subr.mxu0 0.0
    %1009 = vmatpush1.msra.mxu0 0.0
    %1010 = vmatprep.subr.mxu0 0.0
    %1011 = vmatpush1.msra.mxu0 0.0
    %1012 = vmatprep.subr.mxu0 0.0
    %1013 = vmatpush1.msra.mxu0 0.0
    %1014 = vmatprep.subr.mxu0 0.0
    %1015 = vmatpush1.msra.mxu0 0.0
    %1016 = vmatprep.subr.mxu0 0.0
    %1017 = vmatpush1.msra.mxu0 0.0
    %1018 = vmatprep.subr.mxu0 0.0
    %1019 = vmatpush1.msra.mxu0 0.0
    %1020 = vmatprep.subr.mxu0 0.0
    %1021 = vmatpush1.msra.mxu0 0.0
    %1022 = vmatprep.mubr.f32.mxu0 0.0
    %1023 = vmatmul.mubr.f32.gmra.mrb[0].mxu0 %v885
    %v1024 = vpop.f32.mrb[0].mxu0
    %v1025 = vadd.f32 0.0, %v1024
    %v1026 = vpop.f32.mrb[0].mxu0
    %v1027 = vadd.f32 0.0, %v1026
    %1028 = vdwg.mxu0
    %v1029 = vadd.f32 %v854, %v954
    %v1030 = vadd.f32 %v855, %v956
    %v1031 = vadd.f32 %v856, %v1025
    %v1032 = vadd.f32 %v857, %v1027
    %s1033 = scalar_lea.vmem %s3, 20
    %v1034 = vld [vmem:[%s1033] sm:$0xf]
    %v1036 = vlaneseq
    %v1037 = vshrl.u32 %v1036, 7
    %v1038 = vsub.s32 0, %v1037
    %v1039 = vrot.slane %v1034, %v1038
    %v1040 = vlaneseq
    %v1041 = vshrl.u32 %v1040, 7
    %v1042 = vsub.s32 1, %v1041
    %v1043 = vrot.slane %v1034, %v1042
    %v1044 = vlaneseq
    %v1045 = vshrl.u32 %v1044, 7
    %v1046 = vsub.s32 2, %v1045
    %v1047 = vrot.slane %v1034, %v1046
    %v1048 = vlaneseq
    %v1049 = vshrl.u32 %v1048, 7
    %v1050 = vsub.s32 3, %v1049
    %v1051 = vrot.slane %v1034, %v1050
    %1052 = vrot.lane.b32.xlu0 %v1039, 18
    %v1053 = vpop.permute.xlu0 %1052
    %1054 = vrot.lane.b32.xlu0 %v1043, 18
    %v1055 = vpop.permute.xlu0 %1054
    %1056 = vrot.lane.b32.xlu0 %v1047, 18
    %v1057 = vpop.permute.xlu0 %1056
    %1058 = vrot.lane.b32.xlu0 %v1051, 18
    %v1059 = vpop.permute.xlu0 %1058
    %vm1060 = vcmask 146432
    %v1061 = vsel %vm1060, %v1053, %v1055
    %v1062 = vsel %vm1060, %v1055, %v1057
    %v1063 = vsel %vm1060, %v1057, %v1059
    %v1069 = vmul.f32 %v36, %v1053
    %v1070 = vmul.f32 %v37, %v1061
    %v1071 = vmul.f32 %v38, %v1062
    %v1072 = vmul.f32 %v39, %v1063
    %v1073 = vmul.f32 %v67, %v1059
    %s1074 = scalar_lea.vmem %s1, 20
    %v1075 = vld [vmem:[%s1074] sm:$0xf]
    %1081 = vrot.lane.b32.xlu0 %v1069, 110
    %v1082 = vpop.permute.xlu0 %1081
    %1083 = vrot.lane.b32.xlu0 %v1070, 110
    %v1084 = vpop.permute.xlu0 %1083
    %1085 = vrot.lane.b32.xlu0 %v1071, 110
    %v1086 = vpop.permute.xlu0 %1085
    %1087 = vrot.lane.b32.xlu0 %v1072, 110
    %v1088 = vpop.permute.xlu0 %1087
    %1089 = vrot.lane.b32.xlu0 %v1073, 110
    %v1090 = vpop.permute.xlu0 %1089
    %vm1091 = vcmask 900096
    %v1092 = vsel %vm1091, %v1082, %v1084
    %v1093 = vsel %vm1091, %v1084, %v1086
    %v1094 = vsel %vm1091, %v1086, %v1088
    %v1095 = vsel %vm1091, %v1088, %v1090
    %v1101 = vsel %vm135, %v1075, 0
    %1103 = vmatprep.subr.mxu0 %v1093
    %1104 = vmatpush1.msra.mxu0 %v1092
    %1105 = vmatprep.subr.mxu0 0.0
    %1106 = vmatpush1.msra.mxu0 0.0
    %1107 = vmatprep.subr.mxu0 0.0
    %1108 = vmatpush1.msra.mxu0 0.0
    %1109 = vmatprep.subr.mxu0 0.0
    %1110 = vmatpush1.msra.mxu0 0.0
    %1111 = vmatprep.subr.mxu0 0.0
    %1112 = vmatpush1.msra.mxu0 0.0
    %1113 = vmatprep.subr.mxu0 0.0
    %1114 = vmatpush1.msra.mxu0 0.0
    %1115 = vmatprep.subr.mxu0 0.0
    %1116 = vmatpush1.msra.mxu0 0.0
    %1117 = vmatprep.subr.mxu0 0.0
    %1118 = vmatpush1.msra.mxu0 0.0
    %1119 = vmatprep.subr.mxu0 0.0
    %1120 = vmatpush1.msra.mxu0 0.0
    %1121 = vmatprep.subr.mxu0 0.0
    %1122 = vmatpush1.msra.mxu0 0.0
    %1123 = vmatprep.subr.mxu0 0.0
    %1124 = vmatpush1.msra.mxu0 0.0
    %1125 = vmatprep.subr.mxu0 0.0
    %1126 = vmatpush1.msra.mxu0 0.0
    %1127 = vmatprep.subr.mxu0 0.0
    %1128 = vmatpush1.msra.mxu0 0.0
    %1129 = vmatprep.subr.mxu0 0.0
    %1130 = vmatpush1.msra.mxu0 0.0
    %1131 = vmatprep.subr.mxu0 0.0
    %1132 = vmatpush1.msra.mxu0 0.0
    %1133 = vmatprep.subr.mxu0 0.0
    %1134 = vmatpush1.msra.mxu0 0.0
    %1135 = vmatprep.subr.mxu0 0.0
    %1136 = vmatpush1.msra.mxu0 0.0
    %1137 = vmatprep.subr.mxu0 0.0
    %1138 = vmatpush1.msra.mxu0 0.0
    %1139 = vmatprep.subr.mxu0 0.0
    %1140 = vmatpush1.msra.mxu0 0.0
    %1141 = vmatprep.subr.mxu0 0.0
    %1142 = vmatpush1.msra.mxu0 0.0
    %1143 = vmatprep.subr.mxu0 0.0
    %1144 = vmatpush1.msra.mxu0 0.0
    %1145 = vmatprep.subr.mxu0 0.0
    %1146 = vmatpush1.msra.mxu0 0.0
    %1147 = vmatprep.subr.mxu0 0.0
    %1148 = vmatpush1.msra.mxu0 0.0
    %1149 = vmatprep.subr.mxu0 0.0
    %1150 = vmatpush1.msra.mxu0 0.0
    %1151 = vmatprep.subr.mxu0 0.0
    %1152 = vmatpush1.msra.mxu0 0.0
    %1153 = vmatprep.subr.mxu0 0.0
    %1154 = vmatpush1.msra.mxu0 0.0
    %1155 = vmatprep.subr.mxu0 0.0
    %1156 = vmatpush1.msra.mxu0 0.0
    %1157 = vmatprep.subr.mxu0 0.0
    %1158 = vmatpush1.msra.mxu0 0.0
    %1159 = vmatprep.subr.mxu0 0.0
    %1160 = vmatpush1.msra.mxu0 0.0
    %1161 = vmatprep.subr.mxu0 0.0
    %1162 = vmatpush1.msra.mxu0 0.0
    %1163 = vmatprep.subr.mxu0 0.0
    %1164 = vmatpush1.msra.mxu0 0.0
    %1165 = vmatprep.subr.mxu0 0.0
    %1166 = vmatpush1.msra.mxu0 0.0
    %1167 = vmatprep.mubr.f32.mxu0 0.0
    %1168 = vmatmul.mubr.f32.gmra.mrb[0].mxu0 %v1101
    %v1169 = vpop.f32.mrb[0].mxu0
    %v1170 = vadd.f32 0.0, %v1169
    %v1171 = vpop.f32.mrb[0].mxu0
    %v1172 = vadd.f32 0.0, %v1171
    %1173 = vdwg.mxu0
    %1174 = vmatprep.subr.mxu0 %v1095
    %1175 = vmatpush1.msra.mxu0 %v1094
    %1176 = vmatprep.subr.mxu0 0.0
    %1177 = vmatpush1.msra.mxu0 0.0
    %1178 = vmatprep.subr.mxu0 0.0
    %1179 = vmatpush1.msra.mxu0 0.0
    %1180 = vmatprep.subr.mxu0 0.0
    %1181 = vmatpush1.msra.mxu0 0.0
    %1182 = vmatprep.subr.mxu0 0.0
    %1183 = vmatpush1.msra.mxu0 0.0
    %1184 = vmatprep.subr.mxu0 0.0
    %1185 = vmatpush1.msra.mxu0 0.0
    %1186 = vmatprep.subr.mxu0 0.0
    %1187 = vmatpush1.msra.mxu0 0.0
    %1188 = vmatprep.subr.mxu0 0.0
    %1189 = vmatpush1.msra.mxu0 0.0
    %1190 = vmatprep.subr.mxu0 0.0
    %1191 = vmatpush1.msra.mxu0 0.0
    %1192 = vmatprep.subr.mxu0 0.0
    %1193 = vmatpush1.msra.mxu0 0.0
    %1194 = vmatprep.subr.mxu0 0.0
    %1195 = vmatpush1.msra.mxu0 0.0
    %1196 = vmatprep.subr.mxu0 0.0
    %1197 = vmatpush1.msra.mxu0 0.0
    %1198 = vmatprep.subr.mxu0 0.0
    %1199 = vmatpush1.msra.mxu0 0.0
    %1200 = vmatprep.subr.mxu0 0.0
    %1201 = vmatpush1.msra.mxu0 0.0
    %1202 = vmatprep.subr.mxu0 0.0
    %1203 = vmatpush1.msra.mxu0 0.0
    %1204 = vmatprep.subr.mxu0 0.0
    %1205 = vmatpush1.msra.mxu0 0.0
    %1206 = vmatprep.subr.mxu0 0.0
    %1207 = vmatpush1.msra.mxu0 0.0
    %1208 = vmatprep.subr.mxu0 0.0
    %1209 = vmatpush1.msra.mxu0 0.0
    %1210 = vmatprep.subr.mxu0 0.0
    %1211 = vmatpush1.msra.mxu0 0.0
    %1212 = vmatprep.subr.mxu0 0.0
    %1213 = vmatpush1.msra.mxu0 0.0
    %1214 = vmatprep.subr.mxu0 0.0
    %1215 = vmatpush1.msra.mxu0 0.0
    %1216 = vmatprep.subr.mxu0 0.0
    %1217 = vmatpush1.msra.mxu0 0.0
    %1218 = vmatprep.subr.mxu0 0.0
    %1219 = vmatpush1.msra.mxu0 0.0
    %1220 = vmatprep.subr.mxu0 0.0
    %1221 = vmatpush1.msra.mxu0 0.0
    %1222 = vmatprep.subr.mxu0 0.0
    %1223 = vmatpush1.msra.mxu0 0.0
    %1224 = vmatprep.subr.mxu0 0.0
    %1225 = vmatpush1.msra.mxu0 0.0
    %1226 = vmatprep.subr.mxu0 0.0
    %1227 = vmatpush1.msra.mxu0 0.0
    %1228 = vmatprep.subr.mxu0 0.0
    %1229 = vmatpush1.msra.mxu0 0.0
    %1230 = vmatprep.subr.mxu0 0.0
    %1231 = vmatpush1.msra.mxu0 0.0
    %1232 = vmatprep.subr.mxu0 0.0
    %1233 = vmatpush1.msra.mxu0 0.0
    %1234 = vmatprep.subr.mxu0 0.0
    %1235 = vmatpush1.msra.mxu0 0.0
    %1236 = vmatprep.subr.mxu0 0.0
    %1237 = vmatpush1.msra.mxu0 0.0
    %1238 = vmatprep.mubr.f32.mxu0 0.0
    %1239 = vmatmul.mubr.f32.gmra.mrb[0].mxu0 %v1101
    %v1240 = vpop.f32.mrb[0].mxu0
    %v1241 = vadd.f32 0.0, %v1240
    %v1242 = vpop.f32.mrb[0].mxu0
    %v1243 = vadd.f32 0.0, %v1242
    %1244 = vdwg.mxu0
    %v1245 = vadd.f32 %v1029, %v1170
    %v1246 = vadd.f32 %v1030, %v1172
    %v1247 = vadd.f32 %v1031, %v1241
    %v1248 = vadd.f32 %v1032, %v1243
    %s1249 = scalar_lea.vmem %s3, 24
    %v1250 = vld [vmem:[%s1249] sm:$0xf]
    %v1252 = vlaneseq
    %v1253 = vshrl.u32 %v1252, 7
    %v1254 = vsub.s32 0, %v1253
    %v1255 = vrot.slane %v1250, %v1254
    %v1256 = vlaneseq
    %v1257 = vshrl.u32 %v1256, 7
    %v1258 = vsub.s32 1, %v1257
    %v1259 = vrot.slane %v1250, %v1258
    %v1260 = vlaneseq
    %v1261 = vshrl.u32 %v1260, 7
    %v1262 = vsub.s32 2, %v1261
    %v1263 = vrot.slane %v1250, %v1262
    %v1264 = vlaneseq
    %v1265 = vshrl.u32 %v1264, 7
    %v1266 = vsub.s32 3, %v1265
    %v1267 = vrot.slane %v1250, %v1266
    %1268 = vrot.lane.b32.xlu0 %v1255, 32
    %v1269 = vpop.permute.xlu0 %1268
    %1270 = vrot.lane.b32.xlu0 %v1259, 32
    %v1271 = vpop.permute.xlu0 %1270
    %1272 = vrot.lane.b32.xlu0 %v1263, 32
    %v1273 = vpop.permute.xlu0 %1272
    %1274 = vrot.lane.b32.xlu0 %v1267, 32
    %v1275 = vpop.permute.xlu0 %1274
    %vm1276 = vcmask 261120
    %v1277 = vsel %vm1276, %v1269, %v1271
    %v1278 = vsel %vm1276, %v1271, %v1273
    %v1279 = vsel %vm1276, %v1273, %v1275
    %v1285 = vmul.f32 %v36, %v1269
    %v1286 = vmul.f32 %v37, %v1277
    %v1287 = vmul.f32 %v38, %v1278
    %v1288 = vmul.f32 %v39, %v1279
    %v1289 = vmul.f32 %v67, %v1275
    %s1290 = scalar_lea.vmem %s1, 24
    %v1291 = vld [vmem:[%s1290] sm:$0xf]
    %1297 = vrot.lane.b32.xlu0 %v1285, 96
    %v1298 = vpop.permute.xlu0 %1297
    %1299 = vrot.lane.b32.xlu0 %v1286, 96
    %v1300 = vpop.permute.xlu0 %1299
    %1301 = vrot.lane.b32.xlu0 %v1287, 96
    %v1302 = vpop.permute.xlu0 %1301
    %1303 = vrot.lane.b32.xlu0 %v1288, 96
    %v1304 = vpop.permute.xlu0 %1303
    %1305 = vrot.lane.b32.xlu0 %v1289, 96
    %v1306 = vpop.permute.xlu0 %1305
    %vm1307 = vcmask 785408
    %v1308 = vsel %vm1307, %v1298, %v1300
    %v1309 = vsel %vm1307, %v1300, %v1302
    %v1310 = vsel %vm1307, %v1302, %v1304
    %v1311 = vsel %vm1307, %v1304, %v1306
    %v1317 = vsel %vm135, %v1291, 0
    %1319 = vmatprep.subr.mxu0 %v1309
    %1320 = vmatpush1.msra.mxu0 %v1308
    %1321 = vmatprep.subr.mxu0 0.0
    %1322 = vmatpush1.msra.mxu0 0.0
    %1323 = vmatprep.subr.mxu0 0.0
    %1324 = vmatpush1.msra.mxu0 0.0
    %1325 = vmatprep.subr.mxu0 0.0
    %1326 = vmatpush1.msra.mxu0 0.0
    %1327 = vmatprep.subr.mxu0 0.0
    %1328 = vmatpush1.msra.mxu0 0.0
    %1329 = vmatprep.subr.mxu0 0.0
    %1330 = vmatpush1.msra.mxu0 0.0
    %1331 = vmatprep.subr.mxu0 0.0
    %1332 = vmatpush1.msra.mxu0 0.0
    %1333 = vmatprep.subr.mxu0 0.0
    %1334 = vmatpush1.msra.mxu0 0.0
    %1335 = vmatprep.subr.mxu0 0.0
    %1336 = vmatpush1.msra.mxu0 0.0
    %1337 = vmatprep.subr.mxu0 0.0
    %1338 = vmatpush1.msra.mxu0 0.0
    %1339 = vmatprep.subr.mxu0 0.0
    %1340 = vmatpush1.msra.mxu0 0.0
    %1341 = vmatprep.subr.mxu0 0.0
    %1342 = vmatpush1.msra.mxu0 0.0
    %1343 = vmatprep.subr.mxu0 0.0
    %1344 = vmatpush1.msra.mxu0 0.0
    %1345 = vmatprep.subr.mxu0 0.0
    %1346 = vmatpush1.msra.mxu0 0.0
    %1347 = vmatprep.subr.mxu0 0.0
    %1348 = vmatpush1.msra.mxu0 0.0
    %1349 = vmatprep.subr.mxu0 0.0
    %1350 = vmatpush1.msra.mxu0 0.0
    %1351 = vmatprep.subr.mxu0 0.0
    %1352 = vmatpush1.msra.mxu0 0.0
    %1353 = vmatprep.subr.mxu0 0.0
    %1354 = vmatpush1.msra.mxu0 0.0
    %1355 = vmatprep.subr.mxu0 0.0
    %1356 = vmatpush1.msra.mxu0 0.0
    %1357 = vmatprep.subr.mxu0 0.0
    %1358 = vmatpush1.msra.mxu0 0.0
    %1359 = vmatprep.subr.mxu0 0.0
    %1360 = vmatpush1.msra.mxu0 0.0
    %1361 = vmatprep.subr.mxu0 0.0
    %1362 = vmatpush1.msra.mxu0 0.0
    %1363 = vmatprep.subr.mxu0 0.0
    %1364 = vmatpush1.msra.mxu0 0.0
    %1365 = vmatprep.subr.mxu0 0.0
    %1366 = vmatpush1.msra.mxu0 0.0
    %1367 = vmatprep.subr.mxu0 0.0
    %1368 = vmatpush1.msra.mxu0 0.0
    %1369 = vmatprep.subr.mxu0 0.0
    %1370 = vmatpush1.msra.mxu0 0.0
    %1371 = vmatprep.subr.mxu0 0.0
    %1372 = vmatpush1.msra.mxu0 0.0
    %1373 = vmatprep.subr.mxu0 0.0
    %1374 = vmatpush1.msra.mxu0 0.0
    %1375 = vmatprep.subr.mxu0 0.0
    %1376 = vmatpush1.msra.mxu0 0.0
    %1377 = vmatprep.subr.mxu0 0.0
    %1378 = vmatpush1.msra.mxu0 0.0
    %1379 = vmatprep.subr.mxu0 0.0
    %1380 = vmatpush1.msra.mxu0 0.0
    %1381 = vmatprep.subr.mxu0 0.0
    %1382 = vmatpush1.msra.mxu0 0.0
    %1383 = vmatprep.mubr.f32.mxu0 0.0
    %1384 = vmatmul.mubr.f32.gmra.mrb[0].mxu0 %v1317
    %v1385 = vpop.f32.mrb[0].mxu0
    %v1386 = vadd.f32 0.0, %v1385
    %v1387 = vpop.f32.mrb[0].mxu0
    %v1388 = vadd.f32 0.0, %v1387
    %1389 = vdwg.mxu0
    %1390 = vmatprep.subr.mxu0 %v1311
    %1391 = vmatpush1.msra.mxu0 %v1310
    %1392 = vmatprep.subr.mxu0 0.0
    %1393 = vmatpush1.msra.mxu0 0.0
    %1394 = vmatprep.subr.mxu0 0.0
    %1395 = vmatpush1.msra.mxu0 0.0
    %1396 = vmatprep.subr.mxu0 0.0
    %1397 = vmatpush1.msra.mxu0 0.0
    %1398 = vmatprep.subr.mxu0 0.0
    %1399 = vmatpush1.msra.mxu0 0.0
    %1400 = vmatprep.subr.mxu0 0.0
    %1401 = vmatpush1.msra.mxu0 0.0
    %1402 = vmatprep.subr.mxu0 0.0
    %1403 = vmatpush1.msra.mxu0 0.0
    %1404 = vmatprep.subr.mxu0 0.0
    %1405 = vmatpush1.msra.mxu0 0.0
    %1406 = vmatprep.subr.mxu0 0.0
    %1407 = vmatpush1.msra.mxu0 0.0
    %1408 = vmatprep.subr.mxu0 0.0
    %1409 = vmatpush1.msra.mxu0 0.0
    %1410 = vmatprep.subr.mxu0 0.0
    %1411 = vmatpush1.msra.mxu0 0.0
    %1412 = vmatprep.subr.mxu0 0.0
    %1413 = vmatpush1.msra.mxu0 0.0
    %1414 = vmatprep.subr.mxu0 0.0
    %1415 = vmatpush1.msra.mxu0 0.0
    %1416 = vmatprep.subr.mxu0 0.0
    %1417 = vmatpush1.msra.mxu0 0.0
    %1418 = vmatprep.subr.mxu0 0.0
    %1419 = vmatpush1.msra.mxu0 0.0
    %1420 = vmatprep.subr.mxu0 0.0
    %1421 = vmatpush1.msra.mxu0 0.0
    %1422 = vmatprep.subr.mxu0 0.0
    %1423 = vmatpush1.msra.mxu0 0.0
    %1424 = vmatprep.subr.mxu0 0.0
    %1425 = vmatpush1.msra.mxu0 0.0
    %1426 = vmatprep.subr.mxu0 0.0
    %1427 = vmatpush1.msra.mxu0 0.0
    %1428 = vmatprep.subr.mxu0 0.0
    %1429 = vmatpush1.msra.mxu0 0.0
    %1430 = vmatprep.subr.mxu0 0.0
    %1431 = vmatpush1.msra.mxu0 0.0
    %1432 = vmatprep.subr.mxu0 0.0
    %1433 = vmatpush1.msra.mxu0 0.0
    %1434 = vmatprep.subr.mxu0 0.0
    %1435 = vmatpush1.msra.mxu0 0.0
    %1436 = vmatprep.subr.mxu0 0.0
    %1437 = vmatpush1.msra.mxu0 0.0
    %1438 = vmatprep.subr.mxu0 0.0
    %1439 = vmatpush1.msra.mxu0 0.0
    %1440 = vmatprep.subr.mxu0 0.0
    %1441 = vmatpush1.msra.mxu0 0.0
    %1442 = vmatprep.subr.mxu0 0.0
    %1443 = vmatpush1.msra.mxu0 0.0
    %1444 = vmatprep.subr.mxu0 0.0
    %1445 = vmatpush1.msra.mxu0 0.0
    %1446 = vmatprep.subr.mxu0 0.0
    %1447 = vmatpush1.msra.mxu0 0.0
    %1448 = vmatprep.subr.mxu0 0.0
    %1449 = vmatpush1.msra.mxu0 0.0
    %1450 = vmatprep.subr.mxu0 0.0
    %1451 = vmatpush1.msra.mxu0 0.0
    %1452 = vmatprep.subr.mxu0 0.0
    %1453 = vmatpush1.msra.mxu0 0.0
    %1454 = vmatprep.mubr.f32.mxu0 0.0
    %1455 = vmatmul.mubr.f32.gmra.mrb[0].mxu0 %v1317
    %v1456 = vpop.f32.mrb[0].mxu0
    %v1457 = vadd.f32 0.0, %v1456
    %v1458 = vpop.f32.mrb[0].mxu0
    %v1459 = vadd.f32 0.0, %v1458
    %1460 = vdwg.mxu0
    %v1461 = vadd.f32 %v1245, %v1386
    %v1462 = vadd.f32 %v1246, %v1388
    %v1463 = vadd.f32 %v1247, %v1457
    %v1464 = vadd.f32 %v1248, %v1459
    %s1465 = scalar_lea.vmem %s3, 28
    %v1466 = vld [vmem:[%s1465] sm:$0xf]
    %v1468 = vlaneseq
    %v1469 = vshrl.u32 %v1468, 7
    %v1470 = vsub.s32 0, %v1469
    %v1471 = vrot.slane %v1466, %v1470
    %v1472 = vlaneseq
    %v1473 = vshrl.u32 %v1472, 7
    %v1474 = vsub.s32 1, %v1473
    %v1475 = vrot.slane %v1466, %v1474
    %v1476 = vlaneseq
    %v1477 = vshrl.u32 %v1476, 7
    %v1478 = vsub.s32 2, %v1477
    %v1479 = vrot.slane %v1466, %v1478
    %v1480 = vlaneseq
    %v1481 = vshrl.u32 %v1480, 7
    %v1482 = vsub.s32 3, %v1481
    %v1483 = vrot.slane %v1466, %v1482
    %1484 = vrot.lane.b32.xlu0 %v1471, 33
    %v1485 = vpop.permute.xlu0 %1484
    %1486 = vrot.lane.b32.xlu0 %v1475, 33
    %v1487 = vpop.permute.xlu0 %1486
    %1488 = vrot.lane.b32.xlu0 %v1479, 33
    %v1489 = vpop.permute.xlu0 %1488
    %1490 = vrot.lane.b32.xlu0 %v1483, 33
    %v1491 = vpop.permute.xlu0 %1490
    %vm1492 = vcmask 269312
    %v1493 = vsel %vm1492, %v1485, %v1487
    %v1494 = vsel %vm1492, %v1487, %v1489
    %v1495 = vsel %vm1492, %v1489, %v1491
    %v1501 = vmul.f32 %v36, %v1485
    %v1502 = vmul.f32 %v37, %v1493
    %v1503 = vmul.f32 %v38, %v1494
    %v1504 = vmul.f32 %v39, %v1495
    %v1505 = vmul.f32 %v67, %v1491
    %s1506 = scalar_lea.vmem %s1, 28
    %v1507 = vld [vmem:[%s1506] sm:$0xf]
    %1513 = vrot.lane.b32.xlu0 %v1501, 95
    %v1514 = vpop.permute.xlu0 %1513
    %1515 = vrot.lane.b32.xlu0 %v1502, 95
    %v1516 = vpop.permute.xlu0 %1515
    %1517 = vrot.lane.b32.xlu0 %v1503, 95
    %v1518 = vpop.permute.xlu0 %1517
    %1519 = vrot.lane.b32.xlu0 %v1504, 95
    %v1520 = vpop.permute.xlu0 %1519
    %1521 = vrot.lane.b32.xlu0 %v1505, 95
    %v1522 = vpop.permute.xlu0 %1521
    %vm1523 = vcmask 777216
    %v1524 = vsel %vm1523, %v1514, %v1516
    %v1525 = vsel %vm1523, %v1516, %v1518
    %v1526 = vsel %vm1523, %v1518, %v1520
    %v1527 = vsel %vm1523, %v1520, %v1522
    %v1533 = vsel %vm135, %v1507, 0
    %1535 = vmatprep.subr.mxu0 %v1525
    %1536 = vmatpush1.msra.mxu0 %v1524
    %1537 = vmatprep.subr.mxu0 0.0
    %1538 = vmatpush1.msra.mxu0 0.0
    %1539 = vmatprep.subr.mxu0 0.0
    %1540 = vmatpush1.msra.mxu0 0.0
    %1541 = vmatprep.subr.mxu0 0.0
    %1542 = vmatpush1.msra.mxu0 0.0
    %1543 = vmatprep.subr.mxu0 0.0
    %1544 = vmatpush1.msra.mxu0 0.0
    %1545 = vmatprep.subr.mxu0 0.0
    %1546 = vmatpush1.msra.mxu0 0.0
    %1547 = vmatprep.subr.mxu0 0.0
    %1548 = vmatpush1.msra.mxu0 0.0
    %1549 = vmatprep.subr.mxu0 0.0
    %1550 = vmatpush1.msra.mxu0 0.0
    %1551 = vmatprep.subr.mxu0 0.0
    %1552 = vmatpush1.msra.mxu0 0.0
    %1553 = vmatprep.subr.mxu0 0.0
    %1554 = vmatpush1.msra.mxu0 0.0
    %1555 = vmatprep.subr.mxu0 0.0
    %1556 = vmatpush1.msra.mxu0 0.0
    %1557 = vmatprep.subr.mxu0 0.0
    %1558 = vmatpush1.msra.mxu0 0.0
    %1559 = vmatprep.subr.mxu0 0.0
    %1560 = vmatpush1.msra.mxu0 0.0
    %1561 = vmatprep.subr.mxu0 0.0
    %1562 = vmatpush1.msra.mxu0 0.0
    %1563 = vmatprep.subr.mxu0 0.0
    %1564 = vmatpush1.msra.mxu0 0.0
    %1565 = vmatprep.subr.mxu0 0.0
    %1566 = vmatpush1.msra.mxu0 0.0
    %1567 = vmatprep.subr.mxu0 0.0
    %1568 = vmatpush1.msra.mxu0 0.0
    %1569 = vmatprep.subr.mxu0 0.0
    %1570 = vmatpush1.msra.mxu0 0.0
    %1571 = vmatprep.subr.mxu0 0.0
    %1572 = vmatpush1.msra.mxu0 0.0
    %1573 = vmatprep.subr.mxu0 0.0
    %1574 = vmatpush1.msra.mxu0 0.0
    %1575 = vmatprep.subr.mxu0 0.0
    %1576 = vmatpush1.msra.mxu0 0.0
    %1577 = vmatprep.subr.mxu0 0.0
    %1578 = vmatpush1.msra.mxu0 0.0
    %1579 = vmatprep.subr.mxu0 0.0
    %1580 = vmatpush1.msra.mxu0 0.0
    %1581 = vmatprep.subr.mxu0 0.0
    %1582 = vmatpush1.msra.mxu0 0.0
    %1583 = vmatprep.subr.mxu0 0.0
    %1584 = vmatpush1.msra.mxu0 0.0
    %1585 = vmatprep.subr.mxu0 0.0
    %1586 = vmatpush1.msra.mxu0 0.0
    %1587 = vmatprep.subr.mxu0 0.0
    %1588 = vmatpush1.msra.mxu0 0.0
    %1589 = vmatprep.subr.mxu0 0.0
    %1590 = vmatpush1.msra.mxu0 0.0
    %1591 = vmatprep.subr.mxu0 0.0
    %1592 = vmatpush1.msra.mxu0 0.0
    %1593 = vmatprep.subr.mxu0 0.0
    %1594 = vmatpush1.msra.mxu0 0.0
    %1595 = vmatprep.subr.mxu0 0.0
    %1596 = vmatpush1.msra.mxu0 0.0
    %1597 = vmatprep.subr.mxu0 0.0
    %1598 = vmatpush1.msra.mxu0 0.0
    %1599 = vmatprep.mubr.f32.mxu0 0.0
    %1600 = vmatmul.mubr.f32.gmra.mrb[0].mxu0 %v1533
    %v1601 = vpop.f32.mrb[0].mxu0
    %v1602 = vadd.f32 0.0, %v1601
    %v1603 = vpop.f32.mrb[0].mxu0
    %v1604 = vadd.f32 0.0, %v1603
    %1605 = vdwg.mxu0
    %1606 = vmatprep.subr.mxu0 %v1527
    %1607 = vmatpush1.msra.mxu0 %v1526
    %1608 = vmatprep.subr.mxu0 0.0
    %1609 = vmatpush1.msra.mxu0 0.0
    %1610 = vmatprep.subr.mxu0 0.0
    %1611 = vmatpush1.msra.mxu0 0.0
    %1612 = vmatprep.subr.mxu0 0.0
    %1613 = vmatpush1.msra.mxu0 0.0
    %1614 = vmatprep.subr.mxu0 0.0
    %1615 = vmatpush1.msra.mxu0 0.0
    %1616 = vmatprep.subr.mxu0 0.0
    %1617 = vmatpush1.msra.mxu0 0.0
    %1618 = vmatprep.subr.mxu0 0.0
    %1619 = vmatpush1.msra.mxu0 0.0
    %1620 = vmatprep.subr.mxu0 0.0
    %1621 = vmatpush1.msra.mxu0 0.0
    %1622 = vmatprep.subr.mxu0 0.0
    %1623 = vmatpush1.msra.mxu0 0.0
    %1624 = vmatprep.subr.mxu0 0.0
    %1625 = vmatpush1.msra.mxu0 0.0
    %1626 = vmatprep.subr.mxu0 0.0
    %1627 = vmatpush1.msra.mxu0 0.0
    %1628 = vmatprep.subr.mxu0 0.0
    %1629 = vmatpush1.msra.mxu0 0.0
    %1630 = vmatprep.subr.mxu0 0.0
    %1631 = vmatpush1.msra.mxu0 0.0
    %1632 = vmatprep.subr.mxu0 0.0
    %1633 = vmatpush1.msra.mxu0 0.0
    %1634 = vmatprep.subr.mxu0 0.0
    %1635 = vmatpush1.msra.mxu0 0.0
    %1636 = vmatprep.subr.mxu0 0.0
    %1637 = vmatpush1.msra.mxu0 0.0
    %1638 = vmatprep.subr.mxu0 0.0
    %1639 = vmatpush1.msra.mxu0 0.0
    %1640 = vmatprep.subr.mxu0 0.0
    %1641 = vmatpush1.msra.mxu0 0.0
    %1642 = vmatprep.subr.mxu0 0.0
    %1643 = vmatpush1.msra.mxu0 0.0
    %1644 = vmatprep.subr.mxu0 0.0
    %1645 = vmatpush1.msra.mxu0 0.0
    %1646 = vmatprep.subr.mxu0 0.0
    %1647 = vmatpush1.msra.mxu0 0.0
    %1648 = vmatprep.subr.mxu0 0.0
    %1649 = vmatpush1.msra.mxu0 0.0
    %1650 = vmatprep.subr.mxu0 0.0
    %1651 = vmatpush1.msra.mxu0 0.0
    %1652 = vmatprep.subr.mxu0 0.0
    %1653 = vmatpush1.msra.mxu0 0.0
    %1654 = vmatprep.subr.mxu0 0.0
    %1655 = vmatpush1.msra.mxu0 0.0
    %1656 = vmatprep.subr.mxu0 0.0
    %1657 = vmatpush1.msra.mxu0 0.0
    %1658 = vmatprep.subr.mxu0 0.0
    %1659 = vmatpush1.msra.mxu0 0.0
    %1660 = vmatprep.subr.mxu0 0.0
    %1661 = vmatpush1.msra.mxu0 0.0
    %1662 = vmatprep.subr.mxu0 0.0
    %1663 = vmatpush1.msra.mxu0 0.0
    %1664 = vmatprep.subr.mxu0 0.0
    %1665 = vmatpush1.msra.mxu0 0.0
    %1666 = vmatprep.subr.mxu0 0.0
    %1667 = vmatpush1.msra.mxu0 0.0
    %1668 = vmatprep.subr.mxu0 0.0
    %1669 = vmatpush1.msra.mxu0 0.0
    %1670 = vmatprep.mubr.f32.mxu0 0.0
    %1671 = vmatmul.mubr.f32.gmra.mrb[0].mxu0 %v1533
    %v1672 = vpop.f32.mrb[0].mxu0
    %v1673 = vadd.f32 0.0, %v1672
    %v1674 = vpop.f32.mrb[0].mxu0
    %v1675 = vadd.f32 0.0, %v1674
    %1676 = vdwg.mxu0
    %v1677 = vadd.f32 %v1461, %v1602
    %v1678 = vadd.f32 %v1462, %v1604
    %v1679 = vadd.f32 %v1463, %v1673
    %v1680 = vadd.f32 %v1464, %v1675
    %s1681 = scalar_lea.vmem %s3, 32
    %v1682 = vld [vmem:[%s1681] sm:$0xf]
    %v1684 = vlaneseq
    %v1685 = vshrl.u32 %v1684, 7
    %v1686 = vsub.s32 0, %v1685
    %v1687 = vrot.slane %v1682, %v1686
    %v1688 = vlaneseq
    %v1689 = vshrl.u32 %v1688, 7
    %v1690 = vsub.s32 1, %v1689
    %v1691 = vrot.slane %v1682, %v1690
    %v1692 = vlaneseq
    %v1693 = vshrl.u32 %v1692, 7
    %v1694 = vsub.s32 2, %v1693
    %v1695 = vrot.slane %v1682, %v1694
    %v1696 = vlaneseq
    %v1697 = vshrl.u32 %v1696, 7
    %v1698 = vsub.s32 3, %v1697
    %v1699 = vrot.slane %v1682, %v1698
    %1700 = vrot.lane.b32.xlu0 %v1687, 34
    %v1701 = vpop.permute.xlu0 %1700
    %1702 = vrot.lane.b32.xlu0 %v1691, 34
    %v1703 = vpop.permute.xlu0 %1702
    %1704 = vrot.lane.b32.xlu0 %v1695, 34
    %v1705 = vpop.permute.xlu0 %1704
    %1706 = vrot.lane.b32.xlu0 %v1699, 34
    %v1707 = vpop.permute.xlu0 %1706
    %vm1708 = vcmask 277504
    %v1709 = vsel %vm1708, %v1701, %v1703
    %v1710 = vsel %vm1708, %v1703, %v1705
    %v1711 = vsel %vm1708, %v1705, %v1707
    %v1717 = vmul.f32 %v36, %v1701
    %v1718 = vmul.f32 %v37, %v1709
    %v1719 = vmul.f32 %v38, %v1710
    %v1720 = vmul.f32 %v39, %v1711
    %v1721 = vmul.f32 %v67, %v1707
    %s1722 = scalar_lea.vmem %s1, 32
    %v1723 = vld [vmem:[%s1722] sm:$0xf]
    %1729 = vrot.lane.b32.xlu0 %v1717, 94
    %v1730 = vpop.permute.xlu0 %1729
    %1731 = vrot.lane.b32.xlu0 %v1718, 94
    %v1732 = vpop.permute.xlu0 %1731
    %1733 = vrot.lane.b32.xlu0 %v1719, 94
    %v1734 = vpop.permute.xlu0 %1733
    %1735 = vrot.lane.b32.xlu0 %v1720, 94
    %v1736 = vpop.permute.xlu0 %1735
    %1737 = vrot.lane.b32.xlu0 %v1721, 94
    %v1738 = vpop.permute.xlu0 %1737
    %vm1739 = vcmask 769024
    %v1740 = vsel %vm1739, %v1730, %v1732
    %v1741 = vsel %vm1739, %v1732, %v1734
    %v1742 = vsel %vm1739, %v1734, %v1736
    %v1743 = vsel %vm1739, %v1736, %v1738
    %v1749 = vsel %vm135, %v1723, 0
    %1751 = vmatprep.subr.mxu0 %v1741
    %1752 = vmatpush1.msra.mxu0 %v1740
    %1753 = vmatprep.subr.mxu0 0.0
    %1754 = vmatpush1.msra.mxu0 0.0
    %1755 = vmatprep.subr.mxu0 0.0
    %1756 = vmatpush1.msra.mxu0 0.0
    %1757 = vmatprep.subr.mxu0 0.0
    %1758 = vmatpush1.msra.mxu0 0.0
    %1759 = vmatprep.subr.mxu0 0.0
    %1760 = vmatpush1.msra.mxu0 0.0
    %1761 = vmatprep.subr.mxu0 0.0
    %1762 = vmatpush1.msra.mxu0 0.0
    %1763 = vmatprep.subr.mxu0 0.0
    %1764 = vmatpush1.msra.mxu0 0.0
    %1765 = vmatprep.subr.mxu0 0.0
    %1766 = vmatpush1.msra.mxu0 0.0
    %1767 = vmatprep.subr.mxu0 0.0
    %1768 = vmatpush1.msra.mxu0 0.0
    %1769 = vmatprep.subr.mxu0 0.0
    %1770 = vmatpush1.msra.mxu0 0.0
    %1771 = vmatprep.subr.mxu0 0.0
    %1772 = vmatpush1.msra.mxu0 0.0
    %1773 = vmatprep.subr.mxu0 0.0
    %1774 = vmatpush1.msra.mxu0 0.0
    %1775 = vmatprep.subr.mxu0 0.0
    %1776 = vmatpush1.msra.mxu0 0.0
    %1777 = vmatprep.subr.mxu0 0.0
    %1778 = vmatpush1.msra.mxu0 0.0
    %1779 = vmatprep.subr.mxu0 0.0
    %1780 = vmatpush1.msra.mxu0 0.0
    %1781 = vmatprep.subr.mxu0 0.0
    %1782 = vmatpush1.msra.mxu0 0.0
    %1783 = vmatprep.subr.mxu0 0.0
    %1784 = vmatpush1.msra.mxu0 0.0
    %1785 = vmatprep.subr.mxu0 0.0
    %1786 = vmatpush1.msra.mxu0 0.0
    %1787 = vmatprep.subr.mxu0 0.0
    %1788 = vmatpush1.msra.mxu0 0.0
    %1789 = vmatprep.subr.mxu0 0.0
    %1790 = vmatpush1.msra.mxu0 0.0
    %1791 = vmatprep.subr.mxu0 0.0
    %1792 = vmatpush1.msra.mxu0 0.0
    %1793 = vmatprep.subr.mxu0 0.0
    %1794 = vmatpush1.msra.mxu0 0.0
    %1795 = vmatprep.subr.mxu0 0.0
    %1796 = vmatpush1.msra.mxu0 0.0
    %1797 = vmatprep.subr.mxu0 0.0
    %1798 = vmatpush1.msra.mxu0 0.0
    %1799 = vmatprep.subr.mxu0 0.0
    %1800 = vmatpush1.msra.mxu0 0.0
    %1801 = vmatprep.subr.mxu0 0.0
    %1802 = vmatpush1.msra.mxu0 0.0
    %1803 = vmatprep.subr.mxu0 0.0
    %1804 = vmatpush1.msra.mxu0 0.0
    %1805 = vmatprep.subr.mxu0 0.0
    %1806 = vmatpush1.msra.mxu0 0.0
    %1807 = vmatprep.subr.mxu0 0.0
    %1808 = vmatpush1.msra.mxu0 0.0
    %1809 = vmatprep.subr.mxu0 0.0
    %1810 = vmatpush1.msra.mxu0 0.0
    %1811 = vmatprep.subr.mxu0 0.0
    %1812 = vmatpush1.msra.mxu0 0.0
    %1813 = vmatprep.subr.mxu0 0.0
    %1814 = vmatpush1.msra.mxu0 0.0
    %1815 = vmatprep.mubr.f32.mxu0 0.0
    %1816 = vmatmul.mubr.f32.gmra.mrb[0].mxu0 %v1749
    %v1817 = vpop.f32.mrb[0].mxu0
    %v1818 = vadd.f32 0.0, %v1817
    %v1819 = vpop.f32.mrb[0].mxu0
    %v1820 = vadd.f32 0.0, %v1819
    %1821 = vdwg.mxu0
    %1822 = vmatprep.subr.mxu0 %v1743
    %1823 = vmatpush1.msra.mxu0 %v1742
    %1824 = vmatprep.subr.mxu0 0.0
    %1825 = vmatpush1.msra.mxu0 0.0
    %1826 = vmatprep.subr.mxu0 0.0
    %1827 = vmatpush1.msra.mxu0 0.0
    %1828 = vmatprep.subr.mxu0 0.0
    %1829 = vmatpush1.msra.mxu0 0.0
    %1830 = vmatprep.subr.mxu0 0.0
    %1831 = vmatpush1.msra.mxu0 0.0
    %1832 = vmatprep.subr.mxu0 0.0
    %1833 = vmatpush1.msra.mxu0 0.0
    %1834 = vmatprep.subr.mxu0 0.0
    %1835 = vmatpush1.msra.mxu0 0.0
    %1836 = vmatprep.subr.mxu0 0.0
    %1837 = vmatpush1.msra.mxu0 0.0
    %1838 = vmatprep.subr.mxu0 0.0
    %1839 = vmatpush1.msra.mxu0 0.0
    %1840 = vmatprep.subr.mxu0 0.0
    %1841 = vmatpush1.msra.mxu0 0.0
    %1842 = vmatprep.subr.mxu0 0.0
    %1843 = vmatpush1.msra.mxu0 0.0
    %1844 = vmatprep.subr.mxu0 0.0
    %1845 = vmatpush1.msra.mxu0 0.0
    %1846 = vmatprep.subr.mxu0 0.0
    %1847 = vmatpush1.msra.mxu0 0.0
    %1848 = vmatprep.subr.mxu0 0.0
    %1849 = vmatpush1.msra.mxu0 0.0
    %1850 = vmatprep.subr.mxu0 0.0
    %1851 = vmatpush1.msra.mxu0 0.0
    %1852 = vmatprep.subr.mxu0 0.0
    %1853 = vmatpush1.msra.mxu0 0.0
    %1854 = vmatprep.subr.mxu0 0.0
    %1855 = vmatpush1.msra.mxu0 0.0
    %1856 = vmatprep.subr.mxu0 0.0
    %1857 = vmatpush1.msra.mxu0 0.0
    %1858 = vmatprep.subr.mxu0 0.0
    %1859 = vmatpush1.msra.mxu0 0.0
    %1860 = vmatprep.subr.mxu0 0.0
    %1861 = vmatpush1.msra.mxu0 0.0
    %1862 = vmatprep.subr.mxu0 0.0
    %1863 = vmatpush1.msra.mxu0 0.0
    %1864 = vmatprep.subr.mxu0 0.0
    %1865 = vmatpush1.msra.mxu0 0.0
    %1866 = vmatprep.subr.mxu0 0.0
    %1867 = vmatpush1.msra.mxu0 0.0
    %1868 = vmatprep.subr.mxu0 0.0
    %1869 = vmatpush1.msra.mxu0 0.0
    %1870 = vmatprep.subr.mxu0 0.0
    %1871 = vmatpush1.msra.mxu0 0.0
    %1872 = vmatprep.subr.mxu0 0.0
    %1873 = vmatpush1.msra.mxu0 0.0
    %1874 = vmatprep.subr.mxu0 0.0
    %1875 = vmatpush1.msra.mxu0 0.0
    %1876 = vmatprep.subr.mxu0 0.0
    %1877 = vmatpush1.msra.mxu0 0.0
    %1878 = vmatprep.subr.mxu0 0.0
    %1879 = vmatpush1.msra.mxu0 0.0
    %1880 = vmatprep.subr.mxu0 0.0
    %1881 = vmatpush1.msra.mxu0 0.0
    %1882 = vmatprep.subr.mxu0 0.0
    %1883 = vmatpush1.msra.mxu0 0.0
    %1884 = vmatprep.subr.mxu0 0.0
    %1885 = vmatpush1.msra.mxu0 0.0
    %1886 = vmatprep.mubr.f32.mxu0 0.0
    %1887 = vmatmul.mubr.f32.gmra.mrb[0].mxu0 %v1749
    %v1888 = vpop.f32.mrb[0].mxu0
    %v1889 = vadd.f32 0.0, %v1888
    %v1890 = vpop.f32.mrb[0].mxu0
    %v1891 = vadd.f32 0.0, %v1890
    %1892 = vdwg.mxu0
    %v1893 = vadd.f32 %v1677, %v1818
    %v1894 = vadd.f32 %v1678, %v1820
    %v1895 = vadd.f32 %v1679, %v1889
    %v1896 = vadd.f32 %v1680, %v1891
    %v1897 = vld [vmem:[%s4] sm:$0xf]
    %1899 = vset.pattern.permute.xlu0 0
    %1900 = vperm.xlu0 %1899, %v1897
    %v1901 = vpop.permute.xlu0 %1900
    %v1903 = vadd.f32 %v1893, %v1901
    %v1904 = vadd.f32 %v1894, %v1901
    %v1905 = vadd.f32 %v1895, %v1901
    %v1906 = vadd.f32 %v1896, %v1901
    %s1907 = sld [smem:[#allocation2]]
    %v1908 = vld [vmem:[%s5] sm:$0xff]
    %v1909 = vld [vmem:[%s5 + $0x8] sm:$0xff]
    %v1910 = vstv %s1907
    %v1911 = vmul.f32 %v1910, %v1908
    %v1912 = vmul.f32 %v1910, %v1909
    %s1913 = sld [smem:[#allocation2 + $0x1]]
    %v1914 = vstv %s1913
    %v1915 = vmul.f32 %v1914, %v1903
    %v1916 = vmul.f32 %v1914, %v1904
    %v1917 = vmul.f32 %v1914, %v1905
    %v1918 = vmul.f32 %v1914, %v1906
    %v1923 = vcombine.low %v1915, %v1916
    %v1924 = vcombine.low %v1917, %v1918
    %v1927 = vadd.f32 %v1911, %v1923
    %v1928 = vadd.f32 %v1912, %v1924
    %1929 = vst [vmem:[%s6] sm:$0xff] %v1927
    %1930 = vst [vmem:[%s6 + $0x8] sm:$0xff] %v1928
    // Predicated region
    $region30: #{gnet1_forward.17} parent=1 // pred_check
      _
    $region31: #{gnet1_forward.17} parent=1 // pred_check_branch
      %1932 = sbr.rel (0) target = $region33
    $region32: #{gnet1_forward.17} parent=1 // pred_region
      _
    $region33: #{gnet1_forward.17} parent=1 // pred_fallthru
      _
    // Predicated region
    $region34: #{gnet1_forward.17} parent=1 // pred_check
      _
    $region35: #{gnet1_forward.17} parent=1 // pred_check_branch
      %1934 = sbr.rel (0) target = $region37
    $region36: #{gnet1_forward.17} parent=1 // pred_region
      _
    $region37: #{gnet1_forward.17} parent=1 // pred_fallthru
      _
    %1935 = vsyncpa [#allocation3], 1

</llo_original>
